<compile_context>
chip_gen: v6e
topology: v6e:2x2x1
jax: 0.10.0
libtpu: 0.0.40
codegen_flags: <defaults>
</compile_context>

<pallas_src>
import jax
import jax.numpy as jnp
from jax.experimental import pallas as pl
from jax.experimental.pallas import tpu as pltpu

# ---- model hyper-parameters (constructor args, chosen small but consistent) ----
NUM_CLASSES = 6
NUM_TOKENS = 4          # L
DEPTH = 2
DIM = 64                # dim / cT (hard-wired to conv out channels in the module)
MLP_DIM = 32
HEADS = 4
H_IN_DIM = 8            # spectral depth Y of x1; conv3 in-channels = 8*H_IN_DIM = 64
L_IN_DIM = 1
BN_EPS = 1e-5
LN_EPS = 1e-6

# ---- fixed small shapes used by the kernels ----
H_SP = 8
W_SP = 8
HW_SP = H_SP * W_SP     # 64
N_SEQ = NUM_TOKENS + 1  # 5
N_PAD = 8               # sequence padded to a full sublane tile
NC_PAD = 128            # lane-dense class-logit width (sliced to NUM_CLASSES in glue)
K_FOLD = 128            # lane-padded folded contraction (9*Cin) for the first convs
SCALE = float(DIM) ** (-0.5)


def _rep_spec(x):
    """Full-array block replicated across the batch grid."""
    nd = x.ndim
    return pl.BlockSpec(x.shape, lambda b, _nd=nd: (0,) * _nd)


# =====================================================================
# Kernel 1: conv2->conv3, conv4->conv5, pooled shared head
# =====================================================================

def _conv_fused_kernel(cols2_ref, cols4_ref,
                       w2_ref, s2_ref, b2_ref,
                       w3_ref, s3_ref, b3_ref,
                       w4_ref, s4_ref, b4_ref,
                       w5_ref, s5_ref, b5_ref,
                       hw_ref, hb_ref,
                       feat_ref, oc_ref,
                       pad1_ref, pad2_ref):
    f32 = jnp.float32
    bf16 = jnp.bfloat16

    def second_conv(y_first, pad_ref, w_taps_ref, s_ref, b_ref):
        """3x3 conv from VMEM: padded spatial scratch + 9-tap accumulation."""
        c1 = y_first.shape[-1]
        cout = w_taps_ref.shape[-1]
        pad_ref[...] = jnp.zeros_like(pad_ref)
        pad_ref[1:1 + H_SP, 1:1 + W_SP, :] = y_first.reshape(H_SP, W_SP, c1)
        acc = jnp.zeros((HW_SP, cout), f32)
        for k in range(9):           # single accumulator chain (v7x MRB friendly)
            kh, kw = k // 3, k % 3
            xk = pad_ref[kh:kh + H_SP, kw:kw + W_SP, :].reshape(HW_SP, c1)
            acc = acc + jnp.dot(xk.astype(bf16), w_taps_ref[k],
                                preferred_element_type=f32)
        return jnp.maximum(acc * s_ref[...] + b_ref[...], 0.0)

    # ---- branch 1: conv2 (banded 3D conv, folded K) -> conv3 ----
    y2 = jnp.dot(cols2_ref[0], w2_ref[...], preferred_element_type=f32)
    y2 = jnp.maximum(y2 * s2_ref[...] + b2_ref[...], 0.0)          # (HW, 8*Y)
    y3 = second_conv(y2, pad1_ref, w3_ref, s3_ref, b3_ref)         # (HW, DIM)

    # ---- branch 2: conv4 (folded K) -> conv5 ----
    y4 = jnp.dot(cols4_ref[0], w4_ref[...], preferred_element_type=f32)
    y4 = jnp.maximum(y4 * s4_ref[...] + b4_ref[...], 0.0)          # (HW, 16)
    y5 = second_conv(y4, pad2_ref, w5_ref, s5_ref, b5_ref)         # (HW, DIM)

    # lane-dense packed features: [:, :DIM] = x1_seq, [:, DIM:] = x2_seq
    feat_ref[0, :, :DIM] = y3.astype(feat_ref.dtype)
    feat_ref[0, :, DIM:] = y5.astype(feat_ref.dtype)

    # fused shared head: head(mean(t1)) + head(mean(t2)) = (p1 + p2) @ W + 2b
    p = jnp.mean(y3, axis=0, keepdims=True) + jnp.mean(y5, axis=0, keepdims=True)
    oc = jnp.dot(p, hw_ref[...], preferred_element_type=f32) + 2.0 * hb_ref[...]
    oc_ref[...] = oc[None]


def conv_stage(params, x1, x2):
    """x1: (B,1,H,W,Y) ; x2: (B,C2,H,W,Y2). Returns packed features + conv logits."""
    B, _, H, W, Y = x1.shape
    assert (H, W) == (H_SP, W_SP) and Y == H_IN_DIM
    bf16 = jnp.bfloat16
    f32 = jnp.float32

    def im2col_folded(x_nhwc, k_pad):
        Bb, Hh, Ww, Cin = x_nhwc.shape
        xp = jnp.pad(x_nhwc, ((0, 0), (1, 1), (1, 1), (0, 0)))
        cols = jnp.stack([xp[:, kh:kh + Hh, kw:kw + Ww, :]
                          for kh in range(3) for kw in range(3)], axis=3)
        cols = cols.reshape(Bb, Hh * Ww, 9 * Cin)
        return jnp.pad(cols, ((0, 0), (0, 0), (0, k_pad - 9 * Cin))).astype(bf16)

    # branch 1: 3D conv expressed as a banded 2D conv over the y-padded spectral axis
    x1_pady = jnp.pad(x1[:, 0], ((0, 0), (0, 0), (0, 0), (1, 1)))   # (B,H,W,Y+2)
    cols2 = im2col_folded(x1_pady, K_FOLD)                          # (B,HW,128)
    mband = conv3d_band_matrix(params["w_conv2"], Y)                # (3,3,Y+2,8Y)
    w2 = mband.reshape(9 * (Y + 2), 8 * Y)
    w2 = jnp.pad(w2, ((0, K_FOLD - 9 * (Y + 2)), (0, 0))).astype(bf16)
    s2 = jnp.repeat(params["bn2_scale"], Y).reshape(1, 8 * Y)
    b2 = jnp.repeat(params["bn2_bias"], Y).reshape(1, 8 * Y)
    w3 = params["w_conv3"].reshape(9, 8 * H_IN_DIM, DIM).astype(bf16)
    s3 = params["bn3_scale"].reshape(1, DIM)
    b3 = params["bn3_bias"].reshape(1, DIM)

    # branch 2: rearrange 'b c h w y -> b (c y) h w' then conv4, conv5
    B2, C2, H2, W2, Y2 = x2.shape
    x2_nhwc = jnp.transpose(x2, (0, 2, 3, 1, 4)).reshape(B2, H2, W2, C2 * Y2)
    cols4 = im2col_folded(x2_nhwc, K_FOLD)                          # (B,HW,128)
    w4 = params["w_conv4"].reshape(9 * C2 * Y2, 16)
    w4 = jnp.pad(w4, ((0, K_FOLD - 9 * C2 * Y2), (0, 0))).astype(bf16)
    s4 = params["bn4_scale"].reshape(1, 16)
    b4 = params["bn4_bias"].reshape(1, 16)
    w5 = params["w_conv5"].reshape(9, 16, DIM).astype(bf16)
    s5 = params["bn5_scale"].reshape(1, DIM)
    b5 = params["bn5_bias"].reshape(1, DIM)

    hw = jnp.pad(params["head_w"], ((0, 0), (0, NC_PAD - NUM_CLASSES))).astype(f32)
    hb = jnp.pad(params["head_b"].reshape(1, -1),
                 ((0, 0), (0, NC_PAD - NUM_CLASSES))).astype(f32)

    args = (cols2, cols4, w2, s2, b2, w3, s3, b3, w4, s4, b4, w5, s5, b5, hw, hb)
    in_specs = [pl.BlockSpec((1, HW_SP, K_FOLD), lambda b: (b, 0, 0)),
                pl.BlockSpec((1, HW_SP, K_FOLD), lambda b: (b, 0, 0))]
    in_specs += [_rep_spec(a) for a in args[2:]]

    feat, oc = pl.pallas_call(
        _conv_fused_kernel,
        out_shape=(jax.ShapeDtypeStruct((B, HW_SP, 2 * DIM), jnp.bfloat16),
                   jax.ShapeDtypeStruct((B, 1, NC_PAD), jnp.float32)),
        grid=(B,),
        in_specs=in_specs,
        out_specs=(pl.BlockSpec((1, HW_SP, 2 * DIM), lambda b: (b, 0, 0)),
                   pl.BlockSpec((1, 1, NC_PAD), lambda b: (b, 0, 0))),
        scratch_shapes=[pltpu.VMEM((H_SP + 2, W_SP + 2, 8 * H_IN_DIM), jnp.float32),
                        pltpu.VMEM((H_SP + 2, W_SP + 2, 16), jnp.float32)],
        compiler_params=pltpu.CompilerParams(dimension_semantics=("parallel",)),
    )(*args)
    return feat, oc


# =====================================================================
# Kernel 2: token learner + transformer (fused heads) + shared out head
# =====================================================================

def _token_transformer_kernel(feat_ref, wa_ref, wvt_ref, wv1_ref, pos_ref,
                              ln1g_ref, ln1b_ref,
                              wq_ref, bq_ref, wk_ref, bk_ref, wvp_ref, bv_ref,
                              wo_ref, bo_ref,
                              ln2g_ref, ln2b_ref, w1_ref, b1_ref, w2_ref, b2_ref,
                              g_ref, e_ref, ow_ref, ob_ref,
                              xcls_ref, seq_ref):
    f32 = jnp.float32
    bf16 = jnp.bfloat16

    feat = feat_ref[0]                       # (HW, 2*DIM) bf16
    x1 = feat[:, :DIM]
    x2 = feat[:, DIM:]

    def token_pair(x):
        """Returns (T_single (1,DIM), T_multi (L,DIM)) for one feature map."""
        A = jnp.dot(x, wa_ref[...], preferred_element_type=f32)     # (HW, 1+L)
        A = A - jnp.max(A, axis=0, keepdims=True)
        A = jnp.exp(A)
        A = A / jnp.sum(A, axis=0, keepdims=True)
        # rank-1 wV1 path: x @ (ones @ wV1) == rowsum(x) outer wV1
        rs = jnp.sum(x.astype(f32), axis=1, keepdims=True)          # (HW, 1)
        s = jnp.sum(A[:, 0:1] * rs, axis=0, keepdims=True)          # (1, 1)
        t_single = wv1_ref[...] * s                                  # (1, DIM)
        V = jnp.dot(x, wvt_ref[...], preferred_element_type=f32)    # (HW, DIM)
        t_multi = jax.lax.dot_general(A[:, 1:], V, (((0,), (0,)), ((), ())),
                                      preferred_element_type=f32)   # (L, DIM)
        return t_single, t_multi

    t0, t4 = token_pair(x1)      # x1 branch: single -> T0, multi -> T4
    t3, t2 = token_pair(x2)      # x2 branch: single -> T3, multi -> T2

    def build_seq(t_first, t_rest):
        seq_ref[...] = jnp.zeros_like(seq_ref)
        seq_ref[0:1, :] = t_first
        seq_ref[1:1 + NUM_TOKENS, :] = t_rest
        return seq_ref[...] + pos_ref[...]                           # (N_PAD, DIM)

    n_idx = jax.lax.broadcasted_iota(jnp.int32, (N_PAD, 1), 0)
    key_mask = jnp.where(n_idx < N_SEQ, 0.0, -1e30).astype(f32)      # mask padded keys

    def layernorm(v, g, b):
        mu = jnp.mean(v, axis=-1, keepdims=True)
        var = jnp.mean((v - mu) ** 2, axis=-1, keepdims=True)
        return (v - mu) * jax.lax.rsqrt(var + LN_EPS) * g + b

    def gelu_tanh(v):
        return 0.5 * v * (1.0 + jnp.tanh(0.7978845608028654 *
                                         (v + 0.044715 * v * v * v)))

    def run_transformer(x):
        for l in range(DEPTH):
            # ---- attention (all heads fused via block-diagonal projections) ----
            y = layernorm(x, ln1g_ref[l], ln1b_ref[l]).astype(bf16)
            q = jnp.dot(y[0:1], wq_ref[l], preferred_element_type=f32) + bq_ref[l]
            k = jnp.dot(y, wk_ref[l], preferred_element_type=f32) + bk_ref[l]
            v = jnp.dot(y, wvp_ref[l], preferred_element_type=f32) + bv_ref[l]
            # per-head q.k scores: elementwise product then per-head block sum
            scores = jnp.dot(k * q, g_ref[...],
                             preferred_element_type=f32) * SCALE      # (N_PAD, HEADS)
            scores = scores + key_mask
            scores = scores - jnp.max(scores, axis=0, keepdims=True)
            attn = jnp.exp(scores)
            attn = attn / jnp.sum(attn, axis=0, keepdims=True)
            a_exp = jnp.dot(attn, e_ref[...], preferred_element_type=f32)
            o = jnp.sum(a_exp * v, axis=0, keepdims=True)             # (1, HEADS*DIM)
            attn_out = jnp.dot(o.astype(bf16), wo_ref[l],
                               preferred_element_type=f32) + bo_ref[l]
            x = x + attn_out                   # broadcast residual (matches torch)

            # ---- MLP block ----
            y2 = layernorm(x, ln2g_ref[l], ln2b_ref[l]).astype(bf16)
            hdn = jnp.dot(y2, w1_ref[l], preferred_element_type=f32) + b1_ref[l]
            hdn = gelu_tanh(hdn)
            z = jnp.dot(hdn.astype(bf16), w2_ref[l],
                        preferred_element_type=f32) + b2_ref[l]
            x = x + z
        return x[0:1]                          # cls token

    cls_a = run_transformer(build_seq(t0, t2))
    cls_b = run_transformer(build_seq(t3, t4))

    # shared out head on both cls tokens: out(a) + out(b) = (a + b) @ W + 2b
    xcls = jnp.dot(cls_a + cls_b, ow_ref[...],
                   preferred_element_type=f32) + 2.0 * ob_ref[...]
    xcls_ref[...] = xcls[None]


def token_transformer(feat, params):
    B = feat.shape[0]
    bf16 = jnp.bfloat16
    f32 = jnp.float32

    # token-learner weights: combined attention weight [waT1 | waT]
    wa = jnp.concatenate([params["token_wA1"].T, params["token_wA"].T],
                         axis=1).astype(bf16)                        # (DIM, 1+L)
    wvt = params["token_wV"].astype(bf16)                            # (DIM, DIM)
    wv1 = params["token_wV1"].astype(f32)                            # (1, DIM)
    pos = jnp.pad(params["pos_embedding1"][0].astype(f32),
                  ((0, N_PAD - N_SEQ), (0, 0)))                      # (N_PAD, DIM)

    # transformer per-head projections in block-diagonal fused form
    def block_diag(w):                                               # (D, dh, C) -> (D, C, H*C)
        D_, dh, C = w.shape
        out = jnp.zeros((D_, C, HEADS * C), f32)
        for h in range(HEADS):
            out = out.at[:, h * dh:(h + 1) * dh, h * C:(h + 1) * C].set(w)
        return out

    wq = block_diag(params["t_wq"]).astype(bf16)
    wk = block_diag(params["t_wk"]).astype(bf16)
    wvp = block_diag(params["t_wv"]).astype(bf16)
    bq = jnp.tile(params["t_bq"], (1, 1, HEADS)).astype(f32)
    bk = jnp.tile(params["t_bk"], (1, 1, HEADS)).astype(f32)
    bv = jnp.tile(params["t_bv"], (1, 1, HEADS)).astype(f32)
    wo = params["t_wo"].astype(bf16)
    bo = params["t_bo"].astype(f32)
    ln1g, ln1b = params["t_ln1_g"], params["t_ln1_b"]
    ln2g, ln2b = params["t_ln2_g"], params["t_ln2_b"]
    w1 = params["t_w1"].astype(bf16)
    b1 = params["t_b1"].astype(f32)
    w2 = params["t_w2"].astype(bf16)
    b2 = params["t_b2"].astype(f32)

    # per-head block-sum / block-expand constant matrices
    rows = jnp.arange(HEADS * DIM) // DIM
    gmat = (rows[:, None] == jnp.arange(HEADS)[None, :]).astype(f32)  # (H*C, H)
    emat = gmat.T                                                     # (H, H*C)

    ow = jnp.pad(params["out_w"], ((0, 0), (0, NC_PAD - NUM_CLASSES))).astype(f32)
    ob = jnp.pad(params["out_b"].reshape(1, -1),
                 ((0, 0), (0, NC_PAD - NUM_CLASSES))).astype(f32)

    args = (feat, wa, wvt, wv1, pos, ln1g, ln1b, wq, bq, wk, bk, wvp, bv, wo, bo,
            ln2g, ln2b, w1, b1, w2, b2, gmat, emat, ow, ob)
    in_specs = [pl.BlockSpec((1, HW_SP, 2 * DIM), lambda b: (b, 0, 0))]
    in_specs += [_rep_spec(a) for a in args[1:]]

    return pl.pallas_call(
        _token_transformer_kernel,
        out_shape=jax.ShapeDtypeStruct((B, 1, NC_PAD), jnp.float32),
        grid=(B,),
        in_specs=in_specs,
        out_specs=pl.BlockSpec((1, 1, NC_PAD), lambda b: (b, 0, 0)),
        scratch_shapes=[pltpu.VMEM((N_PAD, DIM), jnp.float32)],
        compiler_params=pltpu.CompilerParams(dimension_semantics=("parallel",)),
    )(*args)


# =====================================================================
# Parameter setup (deterministic, synthetic)
# =====================================================================

def bn_fold(c):
    gamma = jnp.ones((c,), jnp.float32)
    beta = jnp.zeros((c,), jnp.float32)
    rmean = jnp.zeros((c,), jnp.float32)
    rvar = jnp.ones((c,), jnp.float32)
    scale = gamma / jnp.sqrt(rvar + BN_EPS)
    bias = beta - rmean * scale
    return scale, bias


def conv3d_band_matrix(w3d, Y):
    """Turn a (3,3,3,Cout) 3D-conv weight into a (3,3,Y+2, Cout*Y) banded weight
    so a 2D 3x3 conv over (H,W) reproduces conv3d + rearrange 'b c h w y -> b (c y) h w'."""
    Cout = w3d.shape[-1]
    M = jnp.zeros((3, 3, Y + 2, Cout * Y), jnp.float32)
    cidx = jnp.arange(Cout) * Y
    for ky in range(3):
        for y in range(Y):
            M = M.at[:, :, y + ky, cidx + y].set(w3d[:, :, ky, :])
    return M


def init_params(key):
    keys = jax.random.split(key, 32)
    ki = iter(keys)

    def xavier(shape):
        fan_in, fan_out = shape[-2], shape[-1]
        std = (2.0 / (fan_in + fan_out)) ** 0.5
        return std * jax.random.normal(next(ki), shape, jnp.float32)

    def normal(shape, std):
        return std * jax.random.normal(next(ki), shape, jnp.float32)

    p = {}
    # conv weights: (kh, kw, cin, cout)  /  conv2 3D: (kh, kw, ky, cout)
    p["w_conv2"] = normal((3, 3, 3, 8), 0.1)
    p["w_conv3"] = normal((3, 3, 8 * H_IN_DIM, DIM), 0.05)
    p["w_conv4"] = normal((3, 3, L_IN_DIM, 16), 0.1)
    p["w_conv5"] = normal((3, 3, 16, DIM), 0.05)
    for name, c in (("bn2", 8), ("bn3", DIM), ("bn4", 16), ("bn5", DIM)):
        s, b = bn_fold(c)
        p[name + "_scale"], p[name + "_bias"] = s, b
    # token-learner parameters
    p["token_wA1"] = xavier((1, DIM))
    p["token_wA"] = xavier((NUM_TOKENS, DIM))
    p["token_wV1"] = xavier((1, DIM))
    p["token_wV"] = xavier((DIM, DIM))
    p["pos_embedding1"] = normal((1, NUM_TOKENS + 1, DIM), 0.02)
    # classification heads
    p["head_w"] = xavier((DIM, NUM_CLASSES))
    p["head_b"] = normal((NUM_CLASSES,), 0.02)
    p["out_w"] = xavier((DIM, NUM_CLASSES))
    p["out_b"] = normal((NUM_CLASSES,), 0.02)
    # transformer (stacked over depth); linear weights stored (in, out)
    D, dh = DEPTH, DIM // HEADS
    p["t_ln1_g"] = jnp.ones((D, 1, DIM), jnp.float32)
    p["t_ln1_b"] = jnp.zeros((D, 1, DIM), jnp.float32)
    p["t_wq"] = xavier((D, dh, DIM)); p["t_bq"] = jnp.zeros((D, 1, DIM), jnp.float32)
    p["t_wk"] = xavier((D, dh, DIM)); p["t_bk"] = jnp.zeros((D, 1, DIM), jnp.float32)
    p["t_wv"] = xavier((D, dh, DIM)); p["t_bv"] = jnp.zeros((D, 1, DIM), jnp.float32)
    p["t_wo"] = xavier((D, HEADS * DIM, DIM)); p["t_bo"] = jnp.zeros((D, 1, DIM), jnp.float32)
    p["t_ln2_g"] = jnp.ones((D, 1, DIM), jnp.float32)
    p["t_ln2_b"] = jnp.zeros((D, 1, DIM), jnp.float32)
    p["t_w1"] = xavier((D, DIM, MLP_DIM)); p["t_b1"] = jnp.zeros((D, 1, MLP_DIM), jnp.float32)
    p["t_w2"] = xavier((D, MLP_DIM, DIM)); p["t_b2"] = jnp.zeros((D, 1, DIM), jnp.float32)
    # fusion weights
    p["weight_lambda"] = jnp.ones((2,), jnp.float32) / 2.0
    p["weight_lambda1"] = jnp.ones((2,), jnp.float32)
    return p


# =====================================================================
# Forward pass (tiny glue in JAX, all heavy lifting in 2 Pallas calls)
# =====================================================================

def lxnet_forward(params, x1, x2):
    feat, oc = conv_stage(params, x1, x2)          # (B,HW,128) bf16, (B,1,128) f32
    xcls = token_transformer(feat, params)         # (B,1,128) f32

    out_conv = oc[:, 0, :NUM_CLASSES]
    x_cls = xcls[:, 0, :NUM_CLASSES]

    weight = jax.nn.softmax(params["weight_lambda"])
    weight1 = jax.nn.softmax(params["weight_lambda1"])
    t = weight[0] * x_cls + weight[1] * out_conv
    return weight, weight1, out_conv, t


# =====================================================================
# main
# =====================================================================

if __name__ == "__main__":
    key = jax.random.PRNGKey(0)
    pkey, xkey1, xkey2 = jax.random.split(key, 3)
    params = init_params(pkey)

    B, Hs, Ws = 2, 8, 8
    x1 = jax.random.normal(xkey1, (B, 1, Hs, Ws, H_IN_DIM), jnp.float32)
    x2 = jax.random.normal(xkey2, (B, L_IN_DIM, Hs, Ws, 1), jnp.float32)

    fwd = jax.jit(lxnet_forward)
    weight, weight1, out_conv, t = fwd(params, x1, x2)
    jax.block_until_ready(t)
    assert weight.shape == (2,) and weight1.shape == (2,)
    assert out_conv.shape == (B, NUM_CLASSES) and t.shape == (B, NUM_CLASSES)
    print("KERNEL_OK")
</pallas_src>

<mosaic_0001>
module attributes {stable_mosaic.version = 11 : i64} {
  func.func @_conv_fused_kernel(%arg0: i32, %arg1: memref<1x64x128xbf16, #tpu.memory_space<vmem>>, %arg2: memref<1x64x128xbf16, #tpu.memory_space<vmem>>, %arg3: memref<128x64xbf16, #tpu.memory_space<vmem>>, %arg4: memref<1x64xf32, #tpu.memory_space<vmem>>, %arg5: memref<1x64xf32, #tpu.memory_space<vmem>>, %arg6: memref<9x64x64xbf16, #tpu.memory_space<vmem>>, %arg7: memref<1x64xf32, #tpu.memory_space<vmem>>, %arg8: memref<1x64xf32, #tpu.memory_space<vmem>>, %arg9: memref<128x16xbf16, #tpu.memory_space<vmem>>, %arg10: memref<1x16xf32, #tpu.memory_space<vmem>>, %arg11: memref<1x16xf32, #tpu.memory_space<vmem>>, %arg12: memref<9x16x64xbf16, #tpu.memory_space<vmem>>, %arg13: memref<1x64xf32, #tpu.memory_space<vmem>>, %arg14: memref<1x64xf32, #tpu.memory_space<vmem>>, %arg15: memref<64x128xf32, #tpu.memory_space<vmem>>, %arg16: memref<1x128xf32, #tpu.memory_space<vmem>>, %arg17: memref<1x64x128xbf16, #tpu.memory_space<vmem>>, %arg18: memref<1x1x128xf32, #tpu.memory_space<vmem>>, %arg19: memref<10x10x64xf32, #tpu.memory_space<vmem>>, %arg20: memref<10x10x16xf32, #tpu.memory_space<vmem>>) attributes {dimension_semantics = [#tpu.dimension_semantics<parallel>], iteration_bounds = array<i64: 2>, scalar_prefetch = 0 : i64, scratch_operands = 2 : i64, tpu.core_type = #tpu.core_type<tc>, window_params = [{transform_indices = @transform_0, window_bounds = array<i64: 1, 64, 128>}, {transform_indices = @transform_1, window_bounds = array<i64: 1, 64, 128>}, {pipeline_mode = #tpu.pipeline_mode<synchronous>, transform_indices = @transform_2, window_bounds = array<i64: 128, 64>}, {pipeline_mode = #tpu.pipeline_mode<synchronous>, transform_indices = @transform_3, window_bounds = array<i64: 1, 64>}, {pipeline_mode = #tpu.pipeline_mode<synchronous>, transform_indices = @transform_4, window_bounds = array<i64: 1, 64>}, {pipeline_mode = #tpu.pipeline_mode<synchronous>, transform_indices = @transform_5, window_bounds = array<i64: 9, 64, 64>}, {pipeline_mode = #tpu.pipeline_mode<synchronous>, transform_indices = @transform_6, window_bounds = array<i64: 1, 64>}, {pipeline_mode = #tpu.pipeline_mode<synchronous>, transform_indices = @transform_7, window_bounds = array<i64: 1, 64>}, {pipeline_mode = #tpu.pipeline_mode<synchronous>, transform_indices = @transform_8, window_bounds = array<i64: 128, 16>}, {pipeline_mode = #tpu.pipeline_mode<synchronous>, transform_indices = @transform_9, window_bounds = array<i64: 1, 16>}, {pipeline_mode = #tpu.pipeline_mode<synchronous>, transform_indices = @transform_10, window_bounds = array<i64: 1, 16>}, {pipeline_mode = #tpu.pipeline_mode<synchronous>, transform_indices = @transform_11, window_bounds = array<i64: 9, 16, 64>}, {pipeline_mode = #tpu.pipeline_mode<synchronous>, transform_indices = @transform_12, window_bounds = array<i64: 1, 64>}, {pipeline_mode = #tpu.pipeline_mode<synchronous>, transform_indices = @transform_13, window_bounds = array<i64: 1, 64>}, {pipeline_mode = #tpu.pipeline_mode<synchronous>, transform_indices = @transform_14, window_bounds = array<i64: 64, 128>}, {pipeline_mode = #tpu.pipeline_mode<synchronous>, transform_indices = @transform_15, window_bounds = array<i64: 1, 128>}, {transform_indices = @transform_16, window_bounds = array<i64: 1, 64, 128>}, {transform_indices = @transform_17, window_bounds = array<i64: 1, 1, 128>}]} {
    %c0 = arith.constant 0 : index
    %c0_0 = arith.constant 0 : index
    %c0_1 = arith.constant 0 : index
    %0 = vector.load %arg1[%c0, %c0_0, %c0_1] : memref<1x64x128xbf16, #tpu.memory_space<vmem>>, vector<1x64x128xbf16>
    %1 = vector.shape_cast %0 : vector<1x64x128xbf16> to vector<64x128xbf16>
    %c0_2 = arith.constant 0 : index
    %c0_3 = arith.constant 0 : index
    %2 = vector.load %arg3[%c0_2, %c0_3] : memref<128x64xbf16, #tpu.memory_space<vmem>>, vector<128x64xbf16>
    %cst = arith.constant dense<0.000000e+00> : vector<64x64xf32>
    %3 = tpu.matmul %1, %2, %cst {dimension_numbers = #tpu.dot_dimension_numbers<[1], [0], [0], [1], [0, 0, 1, 1], [], []>} : vector<64x128xbf16>, vector<128x64xbf16>, vector<64x64xf32> -> vector<64x64xf32>
    %c0_4 = arith.constant 0 : index
    %c0_5 = arith.constant 0 : index
    %4 = vector.load %arg4[%c0_4, %c0_5] : memref<1x64xf32, #tpu.memory_space<vmem>>, vector<1x64xf32>
    %5 = vector.broadcast %4 : vector<1x64xf32> to vector<64x64xf32>
    %6 = arith.mulf %3, %5 : vector<64x64xf32>
    %c0_6 = arith.constant 0 : index
    %c0_7 = arith.constant 0 : index
    %7 = vector.load %arg5[%c0_6, %c0_7] : memref<1x64xf32, #tpu.memory_space<vmem>>, vector<1x64xf32>
    %8 = vector.broadcast %7 : vector<1x64xf32> to vector<64x64xf32>
    %9 = arith.addf %6, %8 : vector<64x64xf32>
    %cst_8 = arith.constant 0.000000e+00 : f32
    %10 = vector.broadcast %cst_8 : f32 to vector<64x64xf32>
    %11 = arith.maximumf %9, %10 : vector<64x64xf32>
    %cst_9 = arith.constant 0.000000e+00 : f32
    %12 = vector.broadcast %cst_9 : f32 to vector<10x10x64xf32>
    %c0_10 = arith.constant 0 : index
    %c0_11 = arith.constant 0 : index
    %c0_12 = arith.constant 0 : index
    %13 = vector.load %arg19[%c0_10, %c0_11, %c0_12] : memref<10x10x64xf32, #tpu.memory_space<vmem>>, vector<10x10x64xf32>
    tpu.vector_store %arg19[%c0_10, %c0_11, %c0_12], %12 {strides = array<i32>} : memref<10x10x64xf32, #tpu.memory_space<vmem>>, vector<10x10x64xf32>,
    %14 = vector.shape_cast %11 : vector<64x64xf32> to vector<8x8x64xf32>
    %c1 = arith.constant 1 : index
    %c1_13 = arith.constant 1 : index
    %c0_14 = arith.constant 0 : index
    %15 = vector.load %arg19[%c1, %c1_13, %c0_14] : memref<10x10x64xf32, #tpu.memory_space<vmem>>, vector<8x8x64xf32>
    tpu.vector_store %arg19[%c1, %c1_13, %c0_14], %14 {strides = array<i32>} : memref<10x10x64xf32, #tpu.memory_space<vmem>>, vector<8x8x64xf32>,
    %cst_15 = arith.constant 0.000000e+00 : f32
    %16 = vector.broadcast %cst_15 : f32 to vector<64x64xf32>
    %c0_16 = arith.constant 0 : index
    %c0_17 = arith.constant 0 : index
    %c0_18 = arith.constant 0 : index
    %17 = vector.load %arg19[%c0_16, %c0_17, %c0_18] : memref<10x10x64xf32, #tpu.memory_space<vmem>>, vector<8x8x64xf32>
    %18 = vector.shape_cast %17 : vector<8x8x64xf32> to vector<64x64xf32>
    %19 = arith.truncf %18 : vector<64x64xf32> to vector<64x64xbf16>
    %c0_19 = arith.constant 0 : index
    %c0_20 = arith.constant 0 : index
    %c0_21 = arith.constant 0 : index
    %20 = vector.load %arg6[%c0_19, %c0_20, %c0_21] : memref<9x64x64xbf16, #tpu.memory_space<vmem>>, vector<1x64x64xbf16>
    %21 = vector.shape_cast %20 : vector<1x64x64xbf16> to vector<64x64xbf16>
    %cst_22 = arith.constant dense<0.000000e+00> : vector<64x64xf32>
    %22 = tpu.matmul %19, %21, %cst_22 {dimension_numbers = #tpu.dot_dimension_numbers<[1], [0], [0], [1], [0, 0, 1, 1], [], []>} : vector<64x64xbf16>, vector<64x64xbf16>, vector<64x64xf32> -> vector<64x64xf32>
    %23 = arith.addf %16, %22 : vector<64x64xf32>
    %c0_23 = arith.constant 0 : index
    %c1_24 = arith.constant 1 : index
    %c0_25 = arith.constant 0 : index
    %24 = vector.load %arg19[%c0_23, %c1_24, %c0_25] : memref<10x10x64xf32, #tpu.memory_space<vmem>>, vector<8x8x64xf32>
    %25 = vector.shape_cast %24 : vector<8x8x64xf32> to vector<64x64xf32>
    %26 = arith.truncf %25 : vector<64x64xf32> to vector<64x64xbf16>
    %c1_26 = arith.constant 1 : index
    %c0_27 = arith.constant 0 : index
    %c0_28 = arith.constant 0 : index
    %27 = vector.load %arg6[%c1_26, %c0_27, %c0_28] : memref<9x64x64xbf16, #tpu.memory_space<vmem>>, vector<1x64x64xbf16>
    %28 = vector.shape_cast %27 : vector<1x64x64xbf16> to vector<64x64xbf16>
    %cst_29 = arith.constant dense<0.000000e+00> : vector<64x64xf32>
    %29 = tpu.matmul %26, %28, %cst_29 {dimension_numbers = #tpu.dot_dimension_numbers<[1], [0], [0], [1], [0, 0, 1, 1], [], []>} : vector<64x64xbf16>, vector<64x64xbf16>, vector<64x64xf32> -> vector<64x64xf32>
    %30 = arith.addf %23, %29 : vector<64x64xf32>
    %c0_30 = arith.constant 0 : index
    %c2 = arith.constant 2 : index
    %c0_31 = arith.constant 0 : index
    %31 = vector.load %arg19[%c0_30, %c2, %c0_31] : memref<10x10x64xf32, #tpu.memory_space<vmem>>, vector<8x8x64xf32>
    %32 = vector.shape_cast %31 : vector<8x8x64xf32> to vector<64x64xf32>
    %33 = arith.truncf %32 : vector<64x64xf32> to vector<64x64xbf16>
    %c2_32 = arith.constant 2 : index
    %c0_33 = arith.constant 0 : index
    %c0_34 = arith.constant 0 : index
    %34 = vector.load %arg6[%c2_32, %c0_33, %c0_34] : memref<9x64x64xbf16, #tpu.memory_space<vmem>>, vector<1x64x64xbf16>
    %35 = vector.shape_cast %34 : vector<1x64x64xbf16> to vector<64x64xbf16>
    %cst_35 = arith.constant dense<0.000000e+00> : vector<64x64xf32>
    %36 = tpu.matmul %33, %35, %cst_35 {dimension_numbers = #tpu.dot_dimension_numbers<[1], [0], [0], [1], [0, 0, 1, 1], [], []>} : vector<64x64xbf16>, vector<64x64xbf16>, vector<64x64xf32> -> vector<64x64xf32>
    %37 = arith.addf %30, %36 : vector<64x64xf32>
    %c1_36 = arith.constant 1 : index
    %c0_37 = arith.constant 0 : index
    %c0_38 = arith.constant 0 : index
    %38 = vector.load %arg19[%c1_36, %c0_37, %c0_38] : memref<10x10x64xf32, #tpu.memory_space<vmem>>, vector<8x8x64xf32>
    %39 = vector.shape_cast %38 : vector<8x8x64xf32> to vector<64x64xf32>
    %40 = arith.truncf %39 : vector<64x64xf32> to vector<64x64xbf16>
    %c3 = arith.constant 3 : index
    %c0_39 = arith.constant 0 : index
    %c0_40 = arith.constant 0 : index
    %41 = vector.load %arg6[%c3, %c0_39, %c0_40] : memref<9x64x64xbf16, #tpu.memory_space<vmem>>, vector<1x64x64xbf16>
    %42 = vector.shape_cast %41 : vector<1x64x64xbf16> to vector<64x64xbf16>
    %cst_41 = arith.constant dense<0.000000e+00> : vector<64x64xf32>
    %43 = tpu.matmul %40, %42, %cst_41 {dimension_numbers = #tpu.dot_dimension_numbers<[1], [0], [0], [1], [0, 0, 1, 1], [], []>} : vector<64x64xbf16>, vector<64x64xbf16>, vector<64x64xf32> -> vector<64x64xf32>
    %44 = arith.addf %37, %43 : vector<64x64xf32>
    %c1_42 = arith.constant 1 : index
    %c1_43 = arith.constant 1 : index
    %c0_44 = arith.constant 0 : index
    %45 = vector.load %arg19[%c1_42, %c1_43, %c0_44] : memref<10x10x64xf32, #tpu.memory_space<vmem>>, vector<8x8x64xf32>
    %46 = vector.shape_cast %45 : vector<8x8x64xf32> to vector<64x64xf32>
    %47 = arith.truncf %46 : vector<64x64xf32> to vector<64x64xbf16>
    %c4 = arith.constant 4 : index
    %c0_45 = arith.constant 0 : index
    %c0_46 = arith.constant 0 : index
    %48 = vector.load %arg6[%c4, %c0_45, %c0_46] : memref<9x64x64xbf16, #tpu.memory_space<vmem>>, vector<1x64x64xbf16>
    %49 = vector.shape_cast %48 : vector<1x64x64xbf16> to vector<64x64xbf16>
    %cst_47 = arith.constant dense<0.000000e+00> : vector<64x64xf32>
    %50 = tpu.matmul %47, %49, %cst_47 {dimension_numbers = #tpu.dot_dimension_numbers<[1], [0], [0], [1], [0, 0, 1, 1], [], []>} : vector<64x64xbf16>, vector<64x64xbf16>, vector<64x64xf32> -> vector<64x64xf32>
    %51 = arith.addf %44, %50 : vector<64x64xf32>
    %c1_48 = arith.constant 1 : index
    %c2_49 = arith.constant 2 : index
    %c0_50 = arith.constant 0 : index
    %52 = vector.load %arg19[%c1_48, %c2_49, %c0_50] : memref<10x10x64xf32, #tpu.memory_space<vmem>>, vector<8x8x64xf32>
    %53 = vector.shape_cast %52 : vector<8x8x64xf32> to vector<64x64xf32>
    %54 = arith.truncf %53 : vector<64x64xf32> to vector<64x64xbf16>
    %c5 = arith.constant 5 : index
    %c0_51 = arith.constant 0 : index
    %c0_52 = arith.constant 0 : index
    %55 = vector.load %arg6[%c5, %c0_51, %c0_52] : memref<9x64x64xbf16, #tpu.memory_space<vmem>>, vector<1x64x64xbf16>
    %56 = vector.shape_cast %55 : vector<1x64x64xbf16> to vector<64x64xbf16>
    %cst_53 = arith.constant dense<0.000000e+00> : vector<64x64xf32>
    %57 = tpu.matmul %54, %56, %cst_53 {dimension_numbers = #tpu.dot_dimension_numbers<[1], [0], [0], [1], [0, 0, 1, 1], [], []>} : vector<64x64xbf16>, vector<64x64xbf16>, vector<64x64xf32> -> vector<64x64xf32>
    %58 = arith.addf %51, %57 : vector<64x64xf32>
    %c2_54 = arith.constant 2 : index
    %c0_55 = arith.constant 0 : index
    %c0_56 = arith.constant 0 : index
    %59 = vector.load %arg19[%c2_54, %c0_55, %c0_56] : memref<10x10x64xf32, #tpu.memory_space<vmem>>, vector<8x8x64xf32>
    %60 = vector.shape_cast %59 : vector<8x8x64xf32> to vector<64x64xf32>
    %61 = arith.truncf %60 : vector<64x64xf32> to vector<64x64xbf16>
    %c6 = arith.constant 6 : index
    %c0_57 = arith.constant 0 : index
    %c0_58 = arith.constant 0 : index
    %62 = vector.load %arg6[%c6, %c0_57, %c0_58] : memref<9x64x64xbf16, #tpu.memory_space<vmem>>, vector<1x64x64xbf16>
    %63 = vector.shape_cast %62 : vector<1x64x64xbf16> to vector<64x64xbf16>
    %cst_59 = arith.constant dense<0.000000e+00> : vector<64x64xf32>
    %64 = tpu.matmul %61, %63, %cst_59 {dimension_numbers = #tpu.dot_dimension_numbers<[1], [0], [0], [1], [0, 0, 1, 1], [], []>} : vector<64x64xbf16>, vector<64x64xbf16>, vector<64x64xf32> -> vector<64x64xf32>
    %65 = arith.addf %58, %64 : vector<64x64xf32>
    %c2_60 = arith.constant 2 : index
    %c1_61 = arith.constant 1 : index
    %c0_62 = arith.constant 0 : index
    %66 = vector.load %arg19[%c2_60, %c1_61, %c0_62] : memref<10x10x64xf32, #tpu.memory_space<vmem>>, vector<8x8x64xf32>
    %67 = vector.shape_cast %66 : vector<8x8x64xf32> to vector<64x64xf32>
    %68 = arith.truncf %67 : vector<64x64xf32> to vector<64x64xbf16>
    %c7 = arith.constant 7 : index
    %c0_63 = arith.constant 0 : index
    %c0_64 = arith.constant 0 : index
    %69 = vector.load %arg6[%c7, %c0_63, %c0_64] : memref<9x64x64xbf16, #tpu.memory_space<vmem>>, vector<1x64x64xbf16>
    %70 = vector.shape_cast %69 : vector<1x64x64xbf16> to vector<64x64xbf16>
    %cst_65 = arith.constant dense<0.000000e+00> : vector<64x64xf32>
    %71 = tpu.matmul %68, %70, %cst_65 {dimension_numbers = #tpu.dot_dimension_numbers<[1], [0], [0], [1], [0, 0, 1, 1], [], []>} : vector<64x64xbf16>, vector<64x64xbf16>, vector<64x64xf32> -> vector<64x64xf32>
    %72 = arith.addf %65, %71 : vector<64x64xf32>
    %c2_66 = arith.constant 2 : index
    %c2_67 = arith.constant 2 : index
    %c0_68 = arith.constant 0 : index
    %73 = vector.load %arg19[%c2_66, %c2_67, %c0_68] : memref<10x10x64xf32, #tpu.memory_space<vmem>>, vector<8x8x64xf32>
    %74 = vector.shape_cast %73 : vector<8x8x64xf32> to vector<64x64xf32>
    %75 = arith.truncf %74 : vector<64x64xf32> to vector<64x64xbf16>
    %c8 = arith.constant 8 : index
    %c0_69 = arith.constant 0 : index
    %c0_70 = arith.constant 0 : index
    %76 = vector.load %arg6[%c8, %c0_69, %c0_70] : memref<9x64x64xbf16, #tpu.memory_space<vmem>>, vector<1x64x64xbf16>
    %77 = vector.shape_cast %76 : vector<1x64x64xbf16> to vector<64x64xbf16>
    %cst_71 = arith.constant dense<0.000000e+00> : vector<64x64xf32>
    %78 = tpu.matmul %75, %77, %cst_71 {dimension_numbers = #tpu.dot_dimension_numbers<[1], [0], [0], [1], [0, 0, 1, 1], [], []>} : vector<64x64xbf16>, vector<64x64xbf16>, vector<64x64xf32> -> vector<64x64xf32>
    %79 = arith.addf %72, %78 : vector<64x64xf32>
    %c0_72 = arith.constant 0 : index
    %c0_73 = arith.constant 0 : index
    %80 = vector.load %arg7[%c0_72, %c0_73] : memref<1x64xf32, #tpu.memory_space<vmem>>, vector<1x64xf32>
    %81 = vector.broadcast %80 : vector<1x64xf32> to vector<64x64xf32>
    %82 = arith.mulf %79, %81 : vector<64x64xf32>
    %c0_74 = arith.constant 0 : index
    %c0_75 = arith.constant 0 : index
    %83 = vector.load %arg8[%c0_74, %c0_75] : memref<1x64xf32, #tpu.memory_space<vmem>>, vector<1x64xf32>
    %84 = vector.broadcast %83 : vector<1x64xf32> to vector<64x64xf32>
    %85 = arith.addf %82, %84 : vector<64x64xf32>
    %cst_76 = arith.constant 0.000000e+00 : f32
    %86 = vector.broadcast %cst_76 : f32 to vector<64x64xf32>
    %87 = arith.maximumf %85, %86 : vector<64x64xf32>
    %c0_77 = arith.constant 0 : index
    %c0_78 = arith.constant 0 : index
    %c0_79 = arith.constant 0 : index
    %88 = vector.load %arg2[%c0_77, %c0_78, %c0_79] : memref<1x64x128xbf16, #tpu.memory_space<vmem>>, vector<1x64x128xbf16>
    %89 = vector.shape_cast %88 : vector<1x64x128xbf16> to vector<64x128xbf16>
    %c0_80 = arith.constant 0 : index
    %c0_81 = arith.constant 0 : index
    %90 = vector.load %arg9[%c0_80, %c0_81] : memref<128x16xbf16, #tpu.memory_space<vmem>>, vector<128x16xbf16>
    %cst_82 = arith.constant dense<0.000000e+00> : vector<64x16xf32>
    %91 = tpu.matmul %89, %90, %cst_82 {dimension_numbers = #tpu.dot_dimension_numbers<[1], [0], [0], [1], [0, 0, 1, 1], [], []>} : vector<64x128xbf16>, vector<128x16xbf16>, vector<64x16xf32> -> vector<64x16xf32>
    %c0_83 = arith.constant 0 : index
    %c0_84 = arith.constant 0 : index
    %92 = vector.load %arg10[%c0_83, %c0_84] : memref<1x16xf32, #tpu.memory_space<vmem>>, vector<1x16xf32>
    %93 = vector.broadcast %92 : vector<1x16xf32> to vector<64x16xf32>
    %94 = arith.mulf %91, %93 : vector<64x16xf32>
    %c0_85 = arith.constant 0 : index
    %c0_86 = arith.constant 0 : index
    %95 = vector.load %arg11[%c0_85, %c0_86] : memref<1x16xf32, #tpu.memory_space<vmem>>, vector<1x16xf32>
    %96 = vector.broadcast %95 : vector<1x16xf32> to vector<64x16xf32>
    %97 = arith.addf %94, %96 : vector<64x16xf32>
    %cst_87 = arith.constant 0.000000e+00 : f32
    %98 = vector.broadcast %cst_87 : f32 to vector<64x16xf32>
    %99 = arith.maximumf %97, %98 : vector<64x16xf32>
    %cst_88 = arith.constant 0.000000e+00 : f32
    %100 = vector.broadcast %cst_88 : f32 to vector<10x10x16xf32>
    %c0_89 = arith.constant 0 : index
    %c0_90 = arith.constant 0 : index
    %c0_91 = arith.constant 0 : index
    %101 = vector.load %arg20[%c0_89, %c0_90, %c0_91] : memref<10x10x16xf32, #tpu.memory_space<vmem>>, vector<10x10x16xf32>
    tpu.vector_store %arg20[%c0_89, %c0_90, %c0_91], %100 {strides = array<i32>} : memref<10x10x16xf32, #tpu.memory_space<vmem>>, vector<10x10x16xf32>,
    %102 = vector.shape_cast %99 : vector<64x16xf32> to vector<8x8x16xf32>
    %c1_92 = arith.constant 1 : index
    %c1_93 = arith.constant 1 : index
    %c0_94 = arith.constant 0 : index
    %103 = vector.load %arg20[%c1_92, %c1_93, %c0_94] : memref<10x10x16xf32, #tpu.memory_space<vmem>>, vector<8x8x16xf32>
    tpu.vector_store %arg20[%c1_92, %c1_93, %c0_94], %102 {strides = array<i32>} : memref<10x10x16xf32, #tpu.memory_space<vmem>>, vector<8x8x16xf32>,
    %cst_95 = arith.constant 0.000000e+00 : f32
    %104 = vector.broadcast %cst_95 : f32 to vector<64x64xf32>
    %c0_96 = arith.constant 0 : index
    %c0_97 = arith.constant 0 : index
    %c0_98 = arith.constant 0 : index
    %105 = vector.load %arg20[%c0_96, %c0_97, %c0_98] : memref<10x10x16xf32, #tpu.memory_space<vmem>>, vector<8x8x16xf32>
    %106 = vector.shape_cast %105 : vector<8x8x16xf32> to vector<64x16xf32>
    %107 = arith.truncf %106 : vector<64x16xf32> to vector<64x16xbf16>
    %c0_99 = arith.constant 0 : index
    %c0_100 = arith.constant 0 : index
    %c0_101 = arith.constant 0 : index
    %108 = vector.load %arg12[%c0_99, %c0_100, %c0_101] : memref<9x16x64xbf16, #tpu.memory_space<vmem>>, vector<1x16x64xbf16>
    %109 = vector.shape_cast %108 : vector<1x16x64xbf16> to vector<16x64xbf16>
    %cst_102 = arith.constant dense<0.000000e+00> : vector<64x64xf32>
    %110 = tpu.matmul %107, %109, %cst_102 {dimension_numbers = #tpu.dot_dimension_numbers<[1], [0], [0], [1], [0, 0, 1, 1], [], []>} : vector<64x16xbf16>, vector<16x64xbf16>, vector<64x64xf32> -> vector<64x64xf32>
    %111 = arith.addf %104, %110 : vector<64x64xf32>
    %c0_103 = arith.constant 0 : index
    %c1_104 = arith.constant 1 : index
    %c0_105 = arith.constant 0 : index
    %112 = vector.load %arg20[%c0_103, %c1_104, %c0_105] : memref<10x10x16xf32, #tpu.memory_space<vmem>>, vector<8x8x16xf32>
    %113 = vector.shape_cast %112 : vector<8x8x16xf32> to vector<64x16xf32>
    %114 = arith.truncf %113 : vector<64x16xf32> to vector<64x16xbf16>
    %c1_106 = arith.constant 1 : index
    %c0_107 = arith.constant 0 : index
    %c0_108 = arith.constant 0 : index
    %115 = vector.load %arg12[%c1_106, %c0_107, %c0_108] : memref<9x16x64xbf16, #tpu.memory_space<vmem>>, vector<1x16x64xbf16>
    %116 = vector.shape_cast %115 : vector<1x16x64xbf16> to vector<16x64xbf16>
    %cst_109 = arith.constant dense<0.000000e+00> : vector<64x64xf32>
    %117 = tpu.matmul %114, %116, %cst_109 {dimension_numbers = #tpu.dot_dimension_numbers<[1], [0], [0], [1], [0, 0, 1, 1], [], []>} : vector<64x16xbf16>, vector<16x64xbf16>, vector<64x64xf32> -> vector<64x64xf32>
    %118 = arith.addf %111, %117 : vector<64x64xf32>
    %c0_110 = arith.constant 0 : index
    %c2_111 = arith.constant 2 : index
    %c0_112 = arith.constant 0 : index
    %119 = vector.load %arg20[%c0_110, %c2_111, %c0_112] : memref<10x10x16xf32, #tpu.memory_space<vmem>>, vector<8x8x16xf32>
    %120 = vector.shape_cast %119 : vector<8x8x16xf32> to vector<64x16xf32>
    %121 = arith.truncf %120 : vector<64x16xf32> to vector<64x16xbf16>
    %c2_113 = arith.constant 2 : index
    %c0_114 = arith.constant 0 : index
    %c0_115 = arith.constant 0 : index
    %122 = vector.load %arg12[%c2_113, %c0_114, %c0_115] : memref<9x16x64xbf16, #tpu.memory_space<vmem>>, vector<1x16x64xbf16>
    %123 = vector.shape_cast %122 : vector<1x16x64xbf16> to vector<16x64xbf16>
    %cst_116 = arith.constant dense<0.000000e+00> : vector<64x64xf32>
    %124 = tpu.matmul %121, %123, %cst_116 {dimension_numbers = #tpu.dot_dimension_numbers<[1], [0], [0], [1], [0, 0, 1, 1], [], []>} : vector<64x16xbf16>, vector<16x64xbf16>, vector<64x64xf32> -> vector<64x64xf32>
    %125 = arith.addf %118, %124 : vector<64x64xf32>
    %c1_117 = arith.constant 1 : index
    %c0_118 = arith.constant 0 : index
    %c0_119 = arith.constant 0 : index
    %126 = vector.load %arg20[%c1_117, %c0_118, %c0_119] : memref<10x10x16xf32, #tpu.memory_space<vmem>>, vector<8x8x16xf32>
    %127 = vector.shape_cast %126 : vector<8x8x16xf32> to vector<64x16xf32>
    %128 = arith.truncf %127 : vector<64x16xf32> to vector<64x16xbf16>
    %c3_120 = arith.constant 3 : index
    %c0_121 = arith.constant 0 : index
    %c0_122 = arith.constant 0 : index
    %129 = vector.load %arg12[%c3_120, %c0_121, %c0_122] : memref<9x16x64xbf16, #tpu.memory_space<vmem>>, vector<1x16x64xbf16>
    %130 = vector.shape_cast %129 : vector<1x16x64xbf16> to vector<16x64xbf16>
    %cst_123 = arith.constant dense<0.000000e+00> : vector<64x64xf32>
    %131 = tpu.matmul %128, %130, %cst_123 {dimension_numbers = #tpu.dot_dimension_numbers<[1], [0], [0], [1], [0, 0, 1, 1], [], []>} : vector<64x16xbf16>, vector<16x64xbf16>, vector<64x64xf32> -> vector<64x64xf32>
    %132 = arith.addf %125, %131 : vector<64x64xf32>
    %c1_124 = arith.constant 1 : index
    %c1_125 = arith.constant 1 : index
    %c0_126 = arith.constant 0 : index
    %133 = vector.load %arg20[%c1_124, %c1_125, %c0_126] : memref<10x10x16xf32, #tpu.memory_space<vmem>>, vector<8x8x16xf32>
    %134 = vector.shape_cast %133 : vector<8x8x16xf32> to vector<64x16xf32>
    %135 = arith.truncf %134 : vector<64x16xf32> to vector<64x16xbf16>
    %c4_127 = arith.constant 4 : index
    %c0_128 = arith.constant 0 : index
    %c0_129 = arith.constant 0 : index
    %136 = vector.load %arg12[%c4_127, %c0_128, %c0_129] : memref<9x16x64xbf16, #tpu.memory_space<vmem>>, vector<1x16x64xbf16>
    %137 = vector.shape_cast %136 : vector<1x16x64xbf16> to vector<16x64xbf16>
    %cst_130 = arith.constant dense<0.000000e+00> : vector<64x64xf32>
    %138 = tpu.matmul %135, %137, %cst_130 {dimension_numbers = #tpu.dot_dimension_numbers<[1], [0], [0], [1], [0, 0, 1, 1], [], []>} : vector<64x16xbf16>, vector<16x64xbf16>, vector<64x64xf32> -> vector<64x64xf32>
    %139 = arith.addf %132, %138 : vector<64x64xf32>
    %c1_131 = arith.constant 1 : index
    %c2_132 = arith.constant 2 : index
    %c0_133 = arith.constant 0 : index
    %140 = vector.load %arg20[%c1_131, %c2_132, %c0_133] : memref<10x10x16xf32, #tpu.memory_space<vmem>>, vector<8x8x16xf32>
    %141 = vector.shape_cast %140 : vector<8x8x16xf32> to vector<64x16xf32>
    %142 = arith.truncf %141 : vector<64x16xf32> to vector<64x16xbf16>
    %c5_134 = arith.constant 5 : index
    %c0_135 = arith.constant 0 : index
    %c0_136 = arith.constant 0 : index
    %143 = vector.load %arg12[%c5_134, %c0_135, %c0_136] : memref<9x16x64xbf16, #tpu.memory_space<vmem>>, vector<1x16x64xbf16>
    %144 = vector.shape_cast %143 : vector<1x16x64xbf16> to vector<16x64xbf16>
    %cst_137 = arith.constant dense<0.000000e+00> : vector<64x64xf32>
    %145 = tpu.matmul %142, %144, %cst_137 {dimension_numbers = #tpu.dot_dimension_numbers<[1], [0], [0], [1], [0, 0, 1, 1], [], []>} : vector<64x16xbf16>, vector<16x64xbf16>, vector<64x64xf32> -> vector<64x64xf32>
    %146 = arith.addf %139, %145 : vector<64x64xf32>
    %c2_138 = arith.constant 2 : index
    %c0_139 = arith.constant 0 : index
    %c0_140 = arith.constant 0 : index
    %147 = vector.load %arg20[%c2_138, %c0_139, %c0_140] : memref<10x10x16xf32, #tpu.memory_space<vmem>>, vector<8x8x16xf32>
    %148 = vector.shape_cast %147 : vector<8x8x16xf32> to vector<64x16xf32>
    %149 = arith.truncf %148 : vector<64x16xf32> to vector<64x16xbf16>
    %c6_141 = arith.constant 6 : index
    %c0_142 = arith.constant 0 : index
    %c0_143 = arith.constant 0 : index
    %150 = vector.load %arg12[%c6_141, %c0_142, %c0_143] : memref<9x16x64xbf16, #tpu.memory_space<vmem>>, vector<1x16x64xbf16>
    %151 = vector.shape_cast %150 : vector<1x16x64xbf16> to vector<16x64xbf16>
    %cst_144 = arith.constant dense<0.000000e+00> : vector<64x64xf32>
    %152 = tpu.matmul %149, %151, %cst_144 {dimension_numbers = #tpu.dot_dimension_numbers<[1], [0], [0], [1], [0, 0, 1, 1], [], []>} : vector<64x16xbf16>, vector<16x64xbf16>, vector<64x64xf32> -> vector<64x64xf32>
    %153 = arith.addf %146, %152 : vector<64x64xf32>
    %c2_145 = arith.constant 2 : index
    %c1_146 = arith.constant 1 : index
    %c0_147 = arith.constant 0 : index
    %154 = vector.load %arg20[%c2_145, %c1_146, %c0_147] : memref<10x10x16xf32, #tpu.memory_space<vmem>>, vector<8x8x16xf32>
    %155 = vector.shape_cast %154 : vector<8x8x16xf32> to vector<64x16xf32>
    %156 = arith.truncf %155 : vector<64x16xf32> to vector<64x16xbf16>
    %c7_148 = arith.constant 7 : index
    %c0_149 = arith.constant 0 : index
    %c0_150 = arith.constant 0 : index
    %157 = vector.load %arg12[%c7_148, %c0_149, %c0_150] : memref<9x16x64xbf16, #tpu.memory_space<vmem>>, vector<1x16x64xbf16>
    %158 = vector.shape_cast %157 : vector<1x16x64xbf16> to vector<16x64xbf16>
    %cst_151 = arith.constant dense<0.000000e+00> : vector<64x64xf32>
    %159 = tpu.matmul %156, %158, %cst_151 {dimension_numbers = #tpu.dot_dimension_numbers<[1], [0], [0], [1], [0, 0, 1, 1], [], []>} : vector<64x16xbf16>, vector<16x64xbf16>, vector<64x64xf32> -> vector<64x64xf32>
    %160 = arith.addf %153, %159 : vector<64x64xf32>
    %c2_152 = arith.constant 2 : index
    %c2_153 = arith.constant 2 : index
    %c0_154 = arith.constant 0 : index
    %161 = vector.load %arg20[%c2_152, %c2_153, %c0_154] : memref<10x10x16xf32, #tpu.memory_space<vmem>>, vector<8x8x16xf32>
    %162 = vector.shape_cast %161 : vector<8x8x16xf32> to vector<64x16xf32>
    %163 = arith.truncf %162 : vector<64x16xf32> to vector<64x16xbf16>
    %c8_155 = arith.constant 8 : index
    %c0_156 = arith.constant 0 : index
    %c0_157 = arith.constant 0 : index
    %164 = vector.load %arg12[%c8_155, %c0_156, %c0_157] : memref<9x16x64xbf16, #tpu.memory_space<vmem>>, vector<1x16x64xbf16>
    %165 = vector.shape_cast %164 : vector<1x16x64xbf16> to vector<16x64xbf16>
    %cst_158 = arith.constant dense<0.000000e+00> : vector<64x64xf32>
    %166 = tpu.matmul %163, %165, %cst_158 {dimension_numbers = #tpu.dot_dimension_numbers<[1], [0], [0], [1], [0, 0, 1, 1], [], []>} : vector<64x16xbf16>, vector<16x64xbf16>, vector<64x64xf32> -> vector<64x64xf32>
    %167 = arith.addf %160, %166 : vector<64x64xf32>
    %c0_159 = arith.constant 0 : index
    %c0_160 = arith.constant 0 : index
    %168 = vector.load %arg13[%c0_159, %c0_160] : memref<1x64xf32, #tpu.memory_space<vmem>>, vector<1x64xf32>
    %169 = vector.broadcast %168 : vector<1x64xf32> to vector<64x64xf32>
    %170 = arith.mulf %167, %169 : vector<64x64xf32>
    %c0_161 = arith.constant 0 : index
    %c0_162 = arith.constant 0 : index
    %171 = vector.load %arg14[%c0_161, %c0_162] : memref<1x64xf32, #tpu.memory_space<vmem>>, vector<1x64xf32>
    %172 = vector.broadcast %171 : vector<1x64xf32> to vector<64x64xf32>
    %173 = arith.addf %170, %172 : vector<64x64xf32>
    %cst_163 = arith.constant 0.000000e+00 : f32
    %174 = vector.broadcast %cst_163 : f32 to vector<64x64xf32>
    %175 = arith.maximumf %173, %174 : vector<64x64xf32>
    %176 = arith.truncf %87 : vector<64x64xf32> to vector<64x64xbf16>
    %c0_164 = arith.constant 0 : index
    %c0_165 = arith.constant 0 : index
    %c0_166 = arith.constant 0 : index
    %177 = vector.load %arg17[%c0_164, %c0_165, %c0_166] : memref<1x64x128xbf16, #tpu.memory_space<vmem>>, vector<1x64x64xbf16>
    %178 = vector.shape_cast %177 : vector<1x64x64xbf16> to vector<64x64xbf16>
    %179 = vector.shape_cast %176 : vector<64x64xbf16> to vector<1x64x64xbf16>
    tpu.vector_store %arg17[%c0_164, %c0_165, %c0_166], %179 {strides = array<i32>} : memref<1x64x128xbf16, #tpu.memory_space<vmem>>, vector<1x64x64xbf16>,
    %180 = arith.truncf %175 : vector<64x64xf32> to vector<64x64xbf16>
    %c0_167 = arith.constant 0 : index
    %c0_168 = arith.constant 0 : index
    %c64 = arith.constant 64 : index
    %181 = vector.load %arg17[%c0_167, %c0_168, %c64] : memref<1x64x128xbf16, #tpu.memory_space<vmem>>, vector<1x64x64xbf16>
    %182 = vector.shape_cast %181 : vector<1x64x64xbf16> to vector<64x64xbf16>
    %183 = vector.shape_cast %180 : vector<64x64xbf16> to vector<1x64x64xbf16>
    tpu.vector_store %arg17[%c0_167, %c0_168, %c64], %183 {strides = array<i32>} : memref<1x64x128xbf16, #tpu.memory_space<vmem>>, vector<1x64x64xbf16>,
    %cst_169 = arith.constant dense<0.000000e+00> : vector<64xf32>
    %184 = vector.multi_reduction <add>, %87, %cst_169 [0] : vector<64x64xf32> to vector<64xf32>
    %185 = vector.shape_cast %184 : vector<64xf32> to vector<1x64xf32>
    %cst_170 = arith.constant 6.400000e+01 : f32
    %186 = vector.broadcast %cst_170 : f32 to vector<1x64xf32>
    %187 = arith.divf %185, %186 : vector<1x64xf32>
    %cst_171 = arith.constant dense<0.000000e+00> : vector<64xf32>
    %188 = vector.multi_reduction <add>, %175, %cst_171 [0] : vector<64x64xf32> to vector<64xf32>
    %189 = vector.shape_cast %188 : vector<64xf32> to vector<1x64xf32>
    %cst_172 = arith.constant 6.400000e+01 : f32
    %190 = vector.broadcast %cst_172 : f32 to vector<1x64xf32>
    %191 = arith.divf %189, %190 : vector<1x64xf32>
    %192 = arith.addf %187, %191 : vector<1x64xf32>
    %c0_173 = arith.constant 0 : index
    %c0_174 = arith.constant 0 : index
    %193 = vector.load %arg15[%c0_173, %c0_174] : memref<64x128xf32, #tpu.memory_space<vmem>>, vector<64x128xf32>
    %cst_175 = arith.constant dense<0.000000e+00> : vector<1x128xf32>
    %194 = tpu.matmul %192, %193, %cst_175 {dimension_numbers = #tpu.dot_dimension_numbers<[1], [0], [0], [1], [0, 0, 1, 1], [], []>} : vector<1x64xf32>, vector<64x128xf32>, vector<1x128xf32> -> vector<1x128xf32>
    %c0_176 = arith.constant 0 : index
    %c0_177 = arith.constant 0 : index
    %195 = vector.load %arg16[%c0_176, %c0_177] : memref<1x128xf32, #tpu.memory_space<vmem>>, vector<1x128xf32>
    %cst_178 = arith.constant 2.000000e+00 : f32
    %196 = vector.broadcast %cst_178 : f32 to vector<1x128xf32>
    %197 = arith.mulf %196, %195 : vector<1x128xf32>
    %198 = arith.addf %194, %197 : vector<1x128xf32>
    %199 = vector.shape_cast %198 : vector<1x128xf32> to vector<1x1x128xf32>
    %c0_179 = arith.constant 0 : index
    %c0_180 = arith.constant 0 : index
    %c0_181 = arith.constant 0 : index
    %200 = vector.load %arg18[%c0_179, %c0_180, %c0_181] : memref<1x1x128xf32, #tpu.memory_space<vmem>>, vector<1x1x128xf32>
    tpu.vector_store %arg18[%c0_179, %c0_180, %c0_181], %199 {strides = array<i32>} : memref<1x1x128xf32, #tpu.memory_space<vmem>>, vector<1x1x128xf32>,
    return
  }
  func.func @transform_0(%arg0: i32) -> (i32, i32, i32) {
    %c0_i32 = arith.constant 0 : i32
    %c0_i32_0 = arith.constant 0 : i32
    %c0_i32_1 = arith.constant 0 : i32
    return %arg0, %c0_i32, %c0_i32_0 : i32, i32, i32
  }
  func.func @transform_1(%arg0: i32) -> (i32, i32, i32) {
    %c0_i32 = arith.constant 0 : i32
    %c0_i32_0 = arith.constant 0 : i32
    %c0_i32_1 = arith.constant 0 : i32
    return %arg0, %c0_i32, %c0_i32_0 : i32, i32, i32
  }
  func.func @transform_2(%arg0: i32) -> (i32, i32) {
    %c0_i32 = arith.constant 0 : i32
    %c0_i32_0 = arith.constant 0 : i32
    %c0_i32_1 = arith.constant 0 : i32
    return %c0_i32, %c0_i32_0 : i32, i32
  }
  func.func @transform_3(%arg0: i32) -> (i32, i32) {
    %c0_i32 = arith.constant 0 : i32
    %c0_i32_0 = arith.constant 0 : i32
    %c0_i32_1 = arith.constant 0 : i32
    return %c0_i32, %c0_i32_0 : i32, i32
  }
  func.func @transform_4(%arg0: i32) -> (i32, i32) {
    %c0_i32 = arith.constant 0 : i32
    %c0_i32_0 = arith.constant 0 : i32
    %c0_i32_1 = arith.constant 0 : i32
    return %c0_i32, %c0_i32_0 : i32, i32
  }
  func.func @transform_5(%arg0: i32) -> (i32, i32, i32) {
    %c0_i32 = arith.constant 0 : i32
    %c0_i32_0 = arith.constant 0 : i32
    %c0_i32_1 = arith.constant 0 : i32
    %c0_i32_2 = arith.constant 0 : i32
    return %c0_i32, %c0_i32_0, %c0_i32_1 : i32, i32, i32
  }
  func.func @transform_6(%arg0: i32) -> (i32, i32) {
    %c0_i32 = arith.constant 0 : i32
    %c0_i32_0 = arith.constant 0 : i32
    %c0_i32_1 = arith.constant 0 : i32
    return %c0_i32, %c0_i32_0 : i32, i32
  }
  func.func @transform_7(%arg0: i32) -> (i32, i32) {
    %c0_i32 = arith.constant 0 : i32
    %c0_i32_0 = arith.constant 0 : i32
    %c0_i32_1 = arith.constant 0 : i32
    return %c0_i32, %c0_i32_0 : i32, i32
  }
  func.func @transform_8(%arg0: i32) -> (i32, i32) {
    %c0_i32 = arith.constant 0 : i32
    %c0_i32_0 = arith.constant 0 : i32
    %c0_i32_1 = arith.constant 0 : i32
    return %c0_i32, %c0_i32_0 : i32, i32
  }
  func.func @transform_9(%arg0: i32) -> (i32, i32) {
    %c0_i32 = arith.constant 0 : i32
    %c0_i32_0 = arith.constant 0 : i32
    %c0_i32_1 = arith.constant 0 : i32
    return %c0_i32, %c0_i32_0 : i32, i32
  }
  func.func @transform_10(%arg0: i32) -> (i32, i32) {
    %c0_i32 = arith.constant 0 : i32
    %c0_i32_0 = arith.constant 0 : i32
    %c0_i32_1 = arith.constant 0 : i32
    return %c0_i32, %c0_i32_0 : i32, i32
  }
  func.func @transform_11(%arg0: i32) -> (i32, i32, i32) {
    %c0_i32 = arith.constant 0 : i32
    %c0_i32_0 = arith.constant 0 : i32
    %c0_i32_1 = arith.constant 0 : i32
    %c0_i32_2 = arith.constant 0 : i32
    return %c0_i32, %c0_i32_0, %c0_i32_1 : i32, i32, i32
  }
  func.func @transform_12(%arg0: i32) -> (i32, i32) {
    %c0_i32 = arith.constant 0 : i32
    %c0_i32_0 = arith.constant 0 : i32
    %c0_i32_1 = arith.constant 0 : i32
    return %c0_i32, %c0_i32_0 : i32, i32
  }
  func.func @transform_13(%arg0: i32) -> (i32, i32) {
    %c0_i32 = arith.constant 0 : i32
    %c0_i32_0 = arith.constant 0 : i32
    %c0_i32_1 = arith.constant 0 : i32
    return %c0_i32, %c0_i32_0 : i32, i32
  }
  func.func @transform_14(%arg0: i32) -> (i32, i32) {
    %c0_i32 = arith.constant 0 : i32
    %c0_i32_0 = arith.constant 0 : i32
    %c0_i32_1 = arith.constant 0 : i32
    return %c0_i32, %c0_i32_0 : i32, i32
  }
  func.func @transform_15(%arg0: i32) -> (i32, i32) {
    %c0_i32 = arith.constant 0 : i32
    %c0_i32_0 = arith.constant 0 : i32
    %c0_i32_1 = arith.constant 0 : i32
    return %c0_i32, %c0_i32_0 : i32, i32
  }
  func.func @transform_16(%arg0: i32) -> (i32, i32, i32) {
    %c0_i32 = arith.constant 0 : i32
    %c0_i32_0 = arith.constant 0 : i32
    %c0_i32_1 = arith.constant 0 : i32
    return %arg0, %c0_i32, %c0_i32_0 : i32, i32, i32
  }
  func.func @transform_17(%arg0: i32) -> (i32, i32, i32) {
    %c0_i32 = arith.constant 0 : i32
    %c0_i32_0 = arith.constant 0 : i32
    %c0_i32_1 = arith.constant 0 : i32
    return %arg0, %c0_i32, %c0_i32_0 : i32, i32, i32
  }
}

module attributes {stable_mosaic.version = 11 : i64} {
  func.func @_token_transformer_kernel(%arg0: i32, %arg1: memref<1x64x128xbf16, #tpu.memory_space<vmem>>, %arg2: memref<64x5xbf16, #tpu.memory_space<vmem>>, %arg3: memref<64x64xbf16, #tpu.memory_space<vmem>>, %arg4: memref<1x64xf32, #tpu.memory_space<vmem>>, %arg5: memref<8x64xf32, #tpu.memory_space<vmem>>, %arg6: memref<2x1x64xf32, #tpu.memory_space<vmem>>, %arg7: memref<2x1x64xf32, #tpu.memory_space<vmem>>, %arg8: memref<2x64x256xbf16, #tpu.memory_space<vmem>>, %arg9: memref<2x1x256xf32, #tpu.memory_space<vmem>>, %arg10: memref<2x64x256xbf16, #tpu.memory_space<vmem>>, %arg11: memref<2x1x256xf32, #tpu.memory_space<vmem>>, %arg12: memref<2x64x256xbf16, #tpu.memory_space<vmem>>, %arg13: memref<2x1x256xf32, #tpu.memory_space<vmem>>, %arg14: memref<2x256x64xbf16, #tpu.memory_space<vmem>>, %arg15: memref<2x1x64xf32, #tpu.memory_space<vmem>>, %arg16: memref<2x1x64xf32, #tpu.memory_space<vmem>>, %arg17: memref<2x1x64xf32, #tpu.memory_space<vmem>>, %arg18: memref<2x64x32xbf16, #tpu.memory_space<vmem>>, %arg19: memref<2x1x32xf32, #tpu.memory_space<vmem>>, %arg20: memref<2x32x64xbf16, #tpu.memory_space<vmem>>, %arg21: memref<2x1x64xf32, #tpu.memory_space<vmem>>, %arg22: memref<256x4xf32, #tpu.memory_space<vmem>>, %arg23: memref<4x256xf32, #tpu.memory_space<vmem>>, %arg24: memref<64x128xf32, #tpu.memory_space<vmem>>, %arg25: memref<1x128xf32, #tpu.memory_space<vmem>>, %arg26: memref<1x1x128xf32, #tpu.memory_space<vmem>>, %arg27: memref<8x64xf32, #tpu.memory_space<vmem>>) attributes {dimension_semantics = [#tpu.dimension_semantics<parallel>], iteration_bounds = array<i64: 2>, scalar_prefetch = 0 : i64, scratch_operands = 1 : i64, tpu.core_type = #tpu.core_type<tc>, window_params = [{transform_indices = @transform_0, window_bounds = array<i64: 1, 64, 128>}, {pipeline_mode = #tpu.pipeline_mode<synchronous>, transform_indices = @transform_1, window_bounds = array<i64: 64, 5>}, {pipeline_mode = #tpu.pipeline_mode<synchronous>, transform_indices = @transform_2, window_bounds = array<i64: 64, 64>}, {pipeline_mode = #tpu.pipeline_mode<synchronous>, transform_indices = @transform_3, window_bounds = array<i64: 1, 64>}, {pipeline_mode = #tpu.pipeline_mode<synchronous>, transform_indices = @transform_4, window_bounds = array<i64: 8, 64>}, {pipeline_mode = #tpu.pipeline_mode<synchronous>, transform_indices = @transform_5, window_bounds = array<i64: 2, 1, 64>}, {pipeline_mode = #tpu.pipeline_mode<synchronous>, transform_indices = @transform_6, window_bounds = array<i64: 2, 1, 64>}, {pipeline_mode = #tpu.pipeline_mode<synchronous>, transform_indices = @transform_7, window_bounds = array<i64: 2, 64, 256>}, {pipeline_mode = #tpu.pipeline_mode<synchronous>, transform_indices = @transform_8, window_bounds = array<i64: 2, 1, 256>}, {pipeline_mode = #tpu.pipeline_mode<synchronous>, transform_indices = @transform_9, window_bounds = array<i64: 2, 64, 256>}, {pipeline_mode = #tpu.pipeline_mode<synchronous>, transform_indices = @transform_10, window_bounds = array<i64: 2, 1, 256>}, {pipeline_mode = #tpu.pipeline_mode<synchronous>, transform_indices = @transform_11, window_bounds = array<i64: 2, 64, 256>}, {pipeline_mode = #tpu.pipeline_mode<synchronous>, transform_indices = @transform_12, window_bounds = array<i64: 2, 1, 256>}, {pipeline_mode = #tpu.pipeline_mode<synchronous>, transform_indices = @transform_13, window_bounds = array<i64: 2, 256, 64>}, {pipeline_mode = #tpu.pipeline_mode<synchronous>, transform_indices = @transform_14, window_bounds = array<i64: 2, 1, 64>}, {pipeline_mode = #tpu.pipeline_mode<synchronous>, transform_indices = @transform_15, window_bounds = array<i64: 2, 1, 64>}, {pipeline_mode = #tpu.pipeline_mode<synchronous>, transform_indices = @transform_16, window_bounds = array<i64: 2, 1, 64>}, {pipeline_mode = #tpu.pipeline_mode<synchronous>, transform_indices = @transform_17, window_bounds = array<i64: 2, 64, 32>}, {pipeline_mode = #tpu.pipeline_mode<synchronous>, transform_indices = @transform_18, window_bounds = array<i64: 2, 1, 32>}, {pipeline_mode = #tpu.pipeline_mode<synchronous>, transform_indices = @transform_19, window_bounds = array<i64: 2, 32, 64>}, {pipeline_mode = #tpu.pipeline_mode<synchronous>, transform_indices = @transform_20, window_bounds = array<i64: 2, 1, 64>}, {pipeline_mode = #tpu.pipeline_mode<synchronous>, transform_indices = @transform_21, window_bounds = array<i64: 256, 4>}, {pipeline_mode = #tpu.pipeline_mode<synchronous>, transform_indices = @transform_22, window_bounds = array<i64: 4, 256>}, {pipeline_mode = #tpu.pipeline_mode<synchronous>, transform_indices = @transform_23, window_bounds = array<i64: 64, 128>}, {pipeline_mode = #tpu.pipeline_mode<synchronous>, transform_indices = @transform_24, window_bounds = array<i64: 1, 128>}, {transform_indices = @transform_25, window_bounds = array<i64: 1, 1, 128>}]} {
    %c0 = arith.constant 0 : index
    %c0_0 = arith.constant 0 : index
    %c0_1 = arith.constant 0 : index
    %0 = vector.load %arg1[%c0, %c0_0, %c0_1] : memref<1x64x128xbf16, #tpu.memory_space<vmem>>, vector<1x64x128xbf16>
    %1 = vector.shape_cast %0 : vector<1x64x128xbf16> to vector<64x128xbf16>
    %2 = vector.extract_strided_slice %1 {offsets = [0, 0], sizes = [64, 64], strides = [1, 1]} : vector<64x128xbf16> to vector<64x64xbf16>
    %3 = vector.extract_strided_slice %1 {offsets = [0, 64], sizes = [64, 64], strides = [1, 1]} : vector<64x128xbf16> to vector<64x64xbf16>
    %c0_2 = arith.constant 0 : index
    %c0_3 = arith.constant 0 : index
    %4 = vector.load %arg2[%c0_2, %c0_3] : memref<64x5xbf16, #tpu.memory_space<vmem>>, vector<64x5xbf16>
    %cst = arith.constant dense<0.000000e+00> : vector<64x5xf32>
    %5 = tpu.matmul %2, %4, %cst {dimension_numbers = #tpu.dot_dimension_numbers<[1], [0], [0], [1], [0, 0, 1, 1], [], []>} : vector<64x64xbf16>, vector<64x5xbf16>, vector<64x5xf32> -> vector<64x5xf32>
    %cst_4 = arith.constant dense<0xFF800000> : vector<5xf32>
    %6 = vector.multi_reduction <maximumf>, %5, %cst_4 [0] : vector<64x5xf32> to vector<5xf32>
    %7 = vector.shape_cast %6 : vector<5xf32> to vector<1x5xf32>
    %8 = vector.broadcast %7 : vector<1x5xf32> to vector<64x5xf32>
    %9 = arith.subf %5, %8 : vector<64x5xf32>
    %10 = math.exp %9 : vector<64x5xf32>
    %cst_5 = arith.constant dense<0.000000e+00> : vector<5xf32>
    %11 = vector.multi_reduction <add>, %10, %cst_5 [0] : vector<64x5xf32> to vector<5xf32>
    %12 = vector.shape_cast %11 : vector<5xf32> to vector<1x5xf32>
    %13 = vector.broadcast %12 : vector<1x5xf32> to vector<64x5xf32>
    %14 = arith.divf %10, %13 : vector<64x5xf32>
    %15 = arith.extf %2 : vector<64x64xbf16> to vector<64x64xf32>
    %cst_6 = arith.constant dense<0.000000e+00> : vector<64xf32>
    %16 = vector.multi_reduction <add>, %15, %cst_6 [1] : vector<64x64xf32> to vector<64xf32>
    %17 = vector.shape_cast %16 : vector<64xf32> to vector<64x1xf32>
    %18 = vector.extract_strided_slice %14 {offsets = [0, 0], sizes = [64, 1], strides = [1, 1]} : vector<64x5xf32> to vector<64x1xf32>
    %19 = arith.mulf %18, %17 : vector<64x1xf32>
    %cst_7 = arith.constant dense<0.000000e+00> : vector<1xf32>
    %20 = vector.multi_reduction <add>, %19, %cst_7 [0] : vector<64x1xf32> to vector<1xf32>
    %21 = vector.shape_cast %20 : vector<1xf32> to vector<1x1xf32>
    %c0_8 = arith.constant 0 : index
    %c0_9 = arith.constant 0 : index
    %22 = vector.load %arg4[%c0_8, %c0_9] : memref<1x64xf32, #tpu.memory_space<vmem>>, vector<1x64xf32>
    %23 = vector.broadcast %21 : vector<1x1xf32> to vector<1x64xf32>
    %24 = arith.mulf %22, %23 : vector<1x64xf32>
    %c0_10 = arith.constant 0 : index
    %c0_11 = arith.constant 0 : index
    %25 = vector.load %arg3[%c0_10, %c0_11] : memref<64x64xbf16, #tpu.memory_space<vmem>>, vector<64x64xbf16>
    %cst_12 = arith.constant dense<0.000000e+00> : vector<64x64xf32>
    %26 = tpu.matmul %2, %25, %cst_12 {dimension_numbers = #tpu.dot_dimension_numbers<[1], [0], [0], [1], [0, 0, 1, 1], [], []>} : vector<64x64xbf16>, vector<64x64xbf16>, vector<64x64xf32> -> vector<64x64xf32>
    %27 = vector.extract_strided_slice %14 {offsets = [0, 1], sizes = [64, 4], strides = [1, 1]} : vector<64x5xf32> to vector<64x4xf32>
    %cst_13 = arith.constant dense<0.000000e+00> : vector<4x64xf32>
    %28 = tpu.matmul %27, %26, %cst_13 {dimension_numbers = #tpu.dot_dimension_numbers<[0], [0], [1], [1], [0, 1, 1, 1], [], []>} : vector<64x4xf32>, vector<64x64xf32>, vector<4x64xf32> -> vector<4x64xf32>
    %c0_14 = arith.constant 0 : index
    %c0_15 = arith.constant 0 : index
    %29 = vector.load %arg2[%c0_14, %c0_15] : memref<64x5xbf16, #tpu.memory_space<vmem>>, vector<64x5xbf16>
    %cst_16 = arith.constant dense<0.000000e+00> : vector<64x5xf32>
    %30 = tpu.matmul %3, %29, %cst_16 {dimension_numbers = #tpu.dot_dimension_numbers<[1], [0], [0], [1], [0, 0, 1, 1], [], []>} : vector<64x64xbf16>, vector<64x5xbf16>, vector<64x5xf32> -> vector<64x5xf32>
    %cst_17 = arith.constant dense<0xFF800000> : vector<5xf32>
    %31 = vector.multi_reduction <maximumf>, %30, %cst_17 [0] : vector<64x5xf32> to vector<5xf32>
    %32 = vector.shape_cast %31 : vector<5xf32> to vector<1x5xf32>
    %33 = vector.broadcast %32 : vector<1x5xf32> to vector<64x5xf32>
    %34 = arith.subf %30, %33 : vector<64x5xf32>
    %35 = math.exp %34 : vector<64x5xf32>
    %cst_18 = arith.constant dense<0.000000e+00> : vector<5xf32>
    %36 = vector.multi_reduction <add>, %35, %cst_18 [0] : vector<64x5xf32> to vector<5xf32>
    %37 = vector.shape_cast %36 : vector<5xf32> to vector<1x5xf32>
    %38 = vector.broadcast %37 : vector<1x5xf32> to vector<64x5xf32>
    %39 = arith.divf %35, %38 : vector<64x5xf32>
    %40 = arith.extf %3 : vector<64x64xbf16> to vector<64x64xf32>
    %cst_19 = arith.constant dense<0.000000e+00> : vector<64xf32>
    %41 = vector.multi_reduction <add>, %40, %cst_19 [1] : vector<64x64xf32> to vector<64xf32>
    %42 = vector.shape_cast %41 : vector<64xf32> to vector<64x1xf32>
    %43 = vector.extract_strided_slice %39 {offsets = [0, 0], sizes = [64, 1], strides = [1, 1]} : vector<64x5xf32> to vector<64x1xf32>
    %44 = arith.mulf %43, %42 : vector<64x1xf32>
    %cst_20 = arith.constant dense<0.000000e+00> : vector<1xf32>
    %45 = vector.multi_reduction <add>, %44, %cst_20 [0] : vector<64x1xf32> to vector<1xf32>
    %46 = vector.shape_cast %45 : vector<1xf32> to vector<1x1xf32>
    %c0_21 = arith.constant 0 : index
    %c0_22 = arith.constant 0 : index
    %47 = vector.load %arg4[%c0_21, %c0_22] : memref<1x64xf32, #tpu.memory_space<vmem>>, vector<1x64xf32>
    %48 = vector.broadcast %46 : vector<1x1xf32> to vector<1x64xf32>
    %49 = arith.mulf %47, %48 : vector<1x64xf32>
    %c0_23 = arith.constant 0 : index
    %c0_24 = arith.constant 0 : index
    %50 = vector.load %arg3[%c0_23, %c0_24] : memref<64x64xbf16, #tpu.memory_space<vmem>>, vector<64x64xbf16>
    %cst_25 = arith.constant dense<0.000000e+00> : vector<64x64xf32>
    %51 = tpu.matmul %3, %50, %cst_25 {dimension_numbers = #tpu.dot_dimension_numbers<[1], [0], [0], [1], [0, 0, 1, 1], [], []>} : vector<64x64xbf16>, vector<64x64xbf16>, vector<64x64xf32> -> vector<64x64xf32>
    %52 = vector.extract_strided_slice %39 {offsets = [0, 1], sizes = [64, 4], strides = [1, 1]} : vector<64x5xf32> to vector<64x4xf32>
    %cst_26 = arith.constant dense<0.000000e+00> : vector<4x64xf32>
    %53 = tpu.matmul %52, %51, %cst_26 {dimension_numbers = #tpu.dot_dimension_numbers<[0], [0], [1], [1], [0, 1, 1, 1], [], []>} : vector<64x4xf32>, vector<64x64xf32>, vector<4x64xf32> -> vector<4x64xf32>
    %54 = tpu.iota {dimensions = array<i32: 0>} : vector<8x1xi32>
    %c5_i32 = arith.constant 5 : i32
    %55 = vector.broadcast %c5_i32 : i32 to vector<8x1xi32>
    %56 = arith.cmpi slt, %54, %55 : vector<8x1xi32>
    %cst_27 = arith.constant 0.000000e+00 : f32
    %cst_28 = arith.constant -1.000000e+30 : f32
    %57 = vector.broadcast %cst_27 : f32 to vector<8x1xf32>
    %58 = vector.broadcast %cst_28 : f32 to vector<8x1xf32>
    %59 = arith.select %56, %57, %58 : vector<8x1xi1>, vector<8x1xf32>
    %cst_29 = arith.constant 0.000000e+00 : f32
    %60 = vector.broadcast %cst_29 : f32 to vector<8x64xf32>
    %c0_30 = arith.constant 0 : index
    %c0_31 = arith.constant 0 : index
    %61 = vector.load %arg27[%c0_30, %c0_31] : memref<8x64xf32, #tpu.memory_space<vmem>>, vector<8x64xf32>
    tpu.vector_store %arg27[%c0_30, %c0_31], %60 {strides = array<i32>} : memref<8x64xf32, #tpu.memory_space<vmem>>, vector<8x64xf32>,
    %c0_32 = arith.constant 0 : index
    %c0_33 = arith.constant 0 : index
    %62 = vector.load %arg27[%c0_32, %c0_33] : memref<8x64xf32, #tpu.memory_space<vmem>>, vector<1x64xf32>
    tpu.vector_store %arg27[%c0_32, %c0_33], %24 {strides = array<i32>} : memref<8x64xf32, #tpu.memory_space<vmem>>, vector<1x64xf32>,
    %c1 = arith.constant 1 : index
    %c0_34 = arith.constant 0 : index
    %63 = vector.load %arg27[%c1, %c0_34] : memref<8x64xf32, #tpu.memory_space<vmem>>, vector<4x64xf32>
    tpu.vector_store %arg27[%c1, %c0_34], %53 {strides = array<i32>} : memref<8x64xf32, #tpu.memory_space<vmem>>, vector<4x64xf32>,
    %c0_35 = arith.constant 0 : index
    %c0_36 = arith.constant 0 : index
    %64 = vector.load %arg27[%c0_35, %c0_36] : memref<8x64xf32, #tpu.memory_space<vmem>>, vector<8x64xf32>
    %c0_37 = arith.constant 0 : index
    %c0_38 = arith.constant 0 : index
    %65 = vector.load %arg5[%c0_37, %c0_38] : memref<8x64xf32, #tpu.memory_space<vmem>>, vector<8x64xf32>
    %66 = arith.addf %64, %65 : vector<8x64xf32>
    %c0_39 = arith.constant 0 : index
    %c0_40 = arith.constant 0 : index
    %c0_41 = arith.constant 0 : index
    %67 = vector.load %arg6[%c0_39, %c0_40, %c0_41] : memref<2x1x64xf32, #tpu.memory_space<vmem>>, vector<1x1x64xf32>
    %68 = vector.shape_cast %67 : vector<1x1x64xf32> to vector<1x64xf32>
    %c0_42 = arith.constant 0 : index
    %c0_43 = arith.constant 0 : index
    %c0_44 = arith.constant 0 : index
    %69 = vector.load %arg7[%c0_42, %c0_43, %c0_44] : memref<2x1x64xf32, #tpu.memory_space<vmem>>, vector<1x1x64xf32>
    %70 = vector.shape_cast %69 : vector<1x1x64xf32> to vector<1x64xf32>
    %cst_45 = arith.constant dense<0.000000e+00> : vector<8xf32>
    %71 = vector.multi_reduction <add>, %66, %cst_45 [1] : vector<8x64xf32> to vector<8xf32>
    %72 = vector.shape_cast %71 : vector<8xf32> to vector<8x1xf32>
    %cst_46 = arith.constant 6.400000e+01 : f32
    %73 = vector.broadcast %cst_46 : f32 to vector<8x1xf32>
    %74 = arith.divf %72, %73 : vector<8x1xf32>
    %75 = vector.broadcast %74 : vector<8x1xf32> to vector<8x64xf32>
    %76 = arith.subf %66, %75 : vector<8x64xf32>
    %77 = arith.mulf %76, %76 : vector<8x64xf32>
    %cst_47 = arith.constant dense<0.000000e+00> : vector<8xf32>
    %78 = vector.multi_reduction <add>, %77, %cst_47 [1] : vector<8x64xf32> to vector<8xf32>
    %79 = vector.shape_cast %78 : vector<8xf32> to vector<8x1xf32>
    %cst_48 = arith.constant 6.400000e+01 : f32
    %80 = vector.broadcast %cst_48 : f32 to vector<8x1xf32>
    %81 = arith.divf %79, %80 : vector<8x1xf32>
    %82 = vector.broadcast %74 : vector<8x1xf32> to vector<8x64xf32>
    %83 = arith.subf %66, %82 : vector<8x64xf32>
    %cst_49 = arith.constant 9.99999997E-7 : f32
    %84 = vector.broadcast %cst_49 : f32 to vector<8x1xf32>
    %85 = arith.addf %81, %84 : vector<8x1xf32>
    %86 = math.rsqrt %85 : vector<8x1xf32>
    %87 = vector.broadcast %86 : vector<8x1xf32> to vector<8x64xf32>
    %88 = arith.mulf %83, %87 : vector<8x64xf32>
    %89 = vector.broadcast %68 : vector<1x64xf32> to vector<8x64xf32>
    %90 = arith.mulf %88, %89 : vector<8x64xf32>
    %91 = vector.broadcast %70 : vector<1x64xf32> to vector<8x64xf32>
    %92 = arith.addf %90, %91 : vector<8x64xf32>
    %93 = arith.truncf %92 : vector<8x64xf32> to vector<8x64xbf16>
    %94 = vector.extract_strided_slice %93 {offsets = [0, 0], sizes = [1, 64], strides = [1, 1]} : vector<8x64xbf16> to vector<1x64xbf16>
    %c0_50 = arith.constant 0 : index
    %c0_51 = arith.constant 0 : index
    %c0_52 = arith.constant 0 : index
    %95 = vector.load %arg8[%c0_50, %c0_51, %c0_52] : memref<2x64x256xbf16, #tpu.memory_space<vmem>>, vector<1x64x256xbf16>
    %96 = vector.shape_cast %95 : vector<1x64x256xbf16> to vector<64x256xbf16>
    %cst_53 = arith.constant dense<0.000000e+00> : vector<1x256xf32>
    %97 = tpu.matmul %94, %96, %cst_53 {dimension_numbers = #tpu.dot_dimension_numbers<[1], [0], [0], [1], [0, 0, 1, 1], [], []>} : vector<1x64xbf16>, vector<64x256xbf16>, vector<1x256xf32> -> vector<1x256xf32>
    %c0_54 = arith.constant 0 : index
    %c0_55 = arith.constant 0 : index
    %c0_56 = arith.constant 0 : index
    %98 = vector.load %arg9[%c0_54, %c0_55, %c0_56] : memref<2x1x256xf32, #tpu.memory_space<vmem>>, vector<1x1x256xf32>
    %99 = vector.shape_cast %98 : vector<1x1x256xf32> to vector<1x256xf32>
    %100 = arith.addf %97, %99 : vector<1x256xf32>
    %c0_57 = arith.constant 0 : index
    %c0_58 = arith.constant 0 : index
    %c0_59 = arith.constant 0 : index
    %101 = vector.load %arg10[%c0_57, %c0_58, %c0_59] : memref<2x64x256xbf16, #tpu.memory_space<vmem>>, vector<1x64x256xbf16>
    %102 = vector.shape_cast %101 : vector<1x64x256xbf16> to vector<64x256xbf16>
    %cst_60 = arith.constant dense<0.000000e+00> : vector<8x256xf32>
    %103 = tpu.matmul %93, %102, %cst_60 {dimension_numbers = #tpu.dot_dimension_numbers<[1], [0], [0], [1], [0, 0, 1, 1], [], []>} : vector<8x64xbf16>, vector<64x256xbf16>, vector<8x256xf32> -> vector<8x256xf32>
    %c0_61 = arith.constant 0 : index
    %c0_62 = arith.constant 0 : index
    %c0_63 = arith.constant 0 : index
    %104 = vector.load %arg11[%c0_61, %c0_62, %c0_63] : memref<2x1x256xf32, #tpu.memory_space<vmem>>, vector<1x1x256xf32>
    %105 = vector.shape_cast %104 : vector<1x1x256xf32> to vector<1x256xf32>
    %106 = vector.broadcast %105 : vector<1x256xf32> to vector<8x256xf32>
    %107 = arith.addf %103, %106 : vector<8x256xf32>
    %c0_64 = arith.constant 0 : index
    %c0_65 = arith.constant 0 : index
    %c0_66 = arith.constant 0 : index
    %108 = vector.load %arg12[%c0_64, %c0_65, %c0_66] : memref<2x64x256xbf16, #tpu.memory_space<vmem>>, vector<1x64x256xbf16>
    %109 = vector.shape_cast %108 : vector<1x64x256xbf16> to vector<64x256xbf16>
    %cst_67 = arith.constant dense<0.000000e+00> : vector<8x256xf32>
    %110 = tpu.matmul %93, %109, %cst_67 {dimension_numbers = #tpu.dot_dimension_numbers<[1], [0], [0], [1], [0, 0, 1, 1], [], []>} : vector<8x64xbf16>, vector<64x256xbf16>, vector<8x256xf32> -> vector<8x256xf32>
    %c0_68 = arith.constant 0 : index
    %c0_69 = arith.constant 0 : index
    %c0_70 = arith.constant 0 : index
    %111 = vector.load %arg13[%c0_68, %c0_69, %c0_70] : memref<2x1x256xf32, #tpu.memory_space<vmem>>, vector<1x1x256xf32>
    %112 = vector.shape_cast %111 : vector<1x1x256xf32> to vector<1x256xf32>
    %113 = vector.broadcast %112 : vector<1x256xf32> to vector<8x256xf32>
    %114 = arith.addf %110, %113 : vector<8x256xf32>
    %115 = vector.broadcast %100 : vector<1x256xf32> to vector<8x256xf32>
    %116 = arith.mulf %107, %115 : vector<8x256xf32>
    %c0_71 = arith.constant 0 : index
    %c0_72 = arith.constant 0 : index
    %117 = vector.load %arg22[%c0_71, %c0_72] : memref<256x4xf32, #tpu.memory_space<vmem>>, vector<256x4xf32>
    %cst_73 = arith.constant dense<0.000000e+00> : vector<8x4xf32>
    %118 = tpu.matmul %116, %117, %cst_73 {dimension_numbers = #tpu.dot_dimension_numbers<[1], [0], [0], [1], [0, 0, 1, 1], [], []>} : vector<8x256xf32>, vector<256x4xf32>, vector<8x4xf32> -> vector<8x4xf32>
    %cst_74 = arith.constant 1.250000e-01 : f32
    %119 = vector.broadcast %cst_74 : f32 to vector<8x4xf32>
    %120 = arith.mulf %118, %119 : vector<8x4xf32>
    %121 = vector.broadcast %59 : vector<8x1xf32> to vector<8x4xf32>
    %122 = arith.addf %120, %121 : vector<8x4xf32>
    %cst_75 = arith.constant dense<0xFF800000> : vector<4xf32>
    %123 = vector.multi_reduction <maximumf>, %122, %cst_75 [0] : vector<8x4xf32> to vector<4xf32>
    %124 = vector.shape_cast %123 : vector<4xf32> to vector<1x4xf32>
    %125 = vector.broadcast %124 : vector<1x4xf32> to vector<8x4xf32>
    %126 = arith.subf %122, %125 : vector<8x4xf32>
    %127 = math.exp %126 : vector<8x4xf32>
    %cst_76 = arith.constant dense<0.000000e+00> : vector<4xf32>
    %128 = vector.multi_reduction <add>, %127, %cst_76 [0] : vector<8x4xf32> to vector<4xf32>
    %129 = vector.shape_cast %128 : vector<4xf32> to vector<1x4xf32>
    %130 = vector.broadcast %129 : vector<1x4xf32> to vector<8x4xf32>
    %131 = arith.divf %127, %130 : vector<8x4xf32>
    %c0_77 = arith.constant 0 : index
    %c0_78 = arith.constant 0 : index
    %132 = vector.load %arg23[%c0_77, %c0_78] : memref<4x256xf32, #tpu.memory_space<vmem>>, vector<4x256xf32>
    %cst_79 = arith.constant dense<0.000000e+00> : vector<8x256xf32>
    %133 = tpu.matmul %131, %132, %cst_79 {dimension_numbers = #tpu.dot_dimension_numbers<[1], [0], [0], [1], [0, 0, 1, 1], [], []>} : vector<8x4xf32>, vector<4x256xf32>, vector<8x256xf32> -> vector<8x256xf32>
    %134 = arith.mulf %133, %114 : vector<8x256xf32>
    %cst_80 = arith.constant dense<0.000000e+00> : vector<256xf32>
    %135 = vector.multi_reduction <add>, %134, %cst_80 [0] : vector<8x256xf32> to vector<256xf32>
    %136 = vector.shape_cast %135 : vector<256xf32> to vector<1x256xf32>
    %137 = arith.truncf %136 : vector<1x256xf32> to vector<1x256xbf16>
    %c0_81 = arith.constant 0 : index
    %c0_82 = arith.constant 0 : index
    %c0_83 = arith.constant 0 : index
    %138 = vector.load %arg14[%c0_81, %c0_82, %c0_83] : memref<2x256x64xbf16, #tpu.memory_space<vmem>>, vector<1x256x64xbf16>
    %139 = vector.shape_cast %138 : vector<1x256x64xbf16> to vector<256x64xbf16>
    %cst_84 = arith.constant dense<0.000000e+00> : vector<1x64xf32>
    %140 = tpu.matmul %137, %139, %cst_84 {dimension_numbers = #tpu.dot_dimension_numbers<[1], [0], [0], [1], [0, 0, 1, 1], [], []>} : vector<1x256xbf16>, vector<256x64xbf16>, vector<1x64xf32> -> vector<1x64xf32>
    %c0_85 = arith.constant 0 : index
    %c0_86 = arith.constant 0 : index
    %c0_87 = arith.constant 0 : index
    %141 = vector.load %arg15[%c0_85, %c0_86, %c0_87] : memref<2x1x64xf32, #tpu.memory_space<vmem>>, vector<1x1x64xf32>
    %142 = vector.shape_cast %141 : vector<1x1x64xf32> to vector<1x64xf32>
    %143 = arith.addf %140, %142 : vector<1x64xf32>
    %144 = vector.broadcast %143 : vector<1x64xf32> to vector<8x64xf32>
    %145 = arith.addf %66, %144 : vector<8x64xf32>
    %c0_88 = arith.constant 0 : index
    %c0_89 = arith.constant 0 : index
    %c0_90 = arith.constant 0 : index
    %146 = vector.load %arg16[%c0_88, %c0_89, %c0_90] : memref<2x1x64xf32, #tpu.memory_space<vmem>>, vector<1x1x64xf32>
    %147 = vector.shape_cast %146 : vector<1x1x64xf32> to vector<1x64xf32>
    %c0_91 = arith.constant 0 : index
    %c0_92 = arith.constant 0 : index
    %c0_93 = arith.constant 0 : index
    %148 = vector.load %arg17[%c0_91, %c0_92, %c0_93] : memref<2x1x64xf32, #tpu.memory_space<vmem>>, vector<1x1x64xf32>
    %149 = vector.shape_cast %148 : vector<1x1x64xf32> to vector<1x64xf32>
    %cst_94 = arith.constant dense<0.000000e+00> : vector<8xf32>
    %150 = vector.multi_reduction <add>, %145, %cst_94 [1] : vector<8x64xf32> to vector<8xf32>
    %151 = vector.shape_cast %150 : vector<8xf32> to vector<8x1xf32>
    %cst_95 = arith.constant 6.400000e+01 : f32
    %152 = vector.broadcast %cst_95 : f32 to vector<8x1xf32>
    %153 = arith.divf %151, %152 : vector<8x1xf32>
    %154 = vector.broadcast %153 : vector<8x1xf32> to vector<8x64xf32>
    %155 = arith.subf %145, %154 : vector<8x64xf32>
    %156 = arith.mulf %155, %155 : vector<8x64xf32>
    %cst_96 = arith.constant dense<0.000000e+00> : vector<8xf32>
    %157 = vector.multi_reduction <add>, %156, %cst_96 [1] : vector<8x64xf32> to vector<8xf32>
    %158 = vector.shape_cast %157 : vector<8xf32> to vector<8x1xf32>
    %cst_97 = arith.constant 6.400000e+01 : f32
    %159 = vector.broadcast %cst_97 : f32 to vector<8x1xf32>
    %160 = arith.divf %158, %159 : vector<8x1xf32>
    %161 = vector.broadcast %153 : vector<8x1xf32> to vector<8x64xf32>
    %162 = arith.subf %145, %161 : vector<8x64xf32>
    %cst_98 = arith.constant 9.99999997E-7 : f32
    %163 = vector.broadcast %cst_98 : f32 to vector<8x1xf32>
    %164 = arith.addf %160, %163 : vector<8x1xf32>
    %165 = math.rsqrt %164 : vector<8x1xf32>
    %166 = vector.broadcast %165 : vector<8x1xf32> to vector<8x64xf32>
    %167 = arith.mulf %162, %166 : vector<8x64xf32>
    %168 = vector.broadcast %147 : vector<1x64xf32> to vector<8x64xf32>
    %169 = arith.mulf %167, %168 : vector<8x64xf32>
    %170 = vector.broadcast %149 : vector<1x64xf32> to vector<8x64xf32>
    %171 = arith.addf %169, %170 : vector<8x64xf32>
    %172 = arith.truncf %171 : vector<8x64xf32> to vector<8x64xbf16>
    %c0_99 = arith.constant 0 : index
    %c0_100 = arith.constant 0 : index
    %c0_101 = arith.constant 0 : index
    %173 = vector.load %arg18[%c0_99, %c0_100, %c0_101] : memref<2x64x32xbf16, #tpu.memory_space<vmem>>, vector<1x64x32xbf16>
    %174 = vector.shape_cast %173 : vector<1x64x32xbf16> to vector<64x32xbf16>
    %cst_102 = arith.constant dense<0.000000e+00> : vector<8x32xf32>
    %175 = tpu.matmul %172, %174, %cst_102 {dimension_numbers = #tpu.dot_dimension_numbers<[1], [0], [0], [1], [0, 0, 1, 1], [], []>} : vector<8x64xbf16>, vector<64x32xbf16>, vector<8x32xf32> -> vector<8x32xf32>
    %c0_103 = arith.constant 0 : index
    %c0_104 = arith.constant 0 : index
    %c0_105 = arith.constant 0 : index
    %176 = vector.load %arg19[%c0_103, %c0_104, %c0_105] : memref<2x1x32xf32, #tpu.memory_space<vmem>>, vector<1x1x32xf32>
    %177 = vector.shape_cast %176 : vector<1x1x32xf32> to vector<1x32xf32>
    %178 = vector.broadcast %177 : vector<1x32xf32> to vector<8x32xf32>
    %179 = arith.addf %175, %178 : vector<8x32xf32>
    %cst_106 = arith.constant 5.000000e-01 : f32
    %180 = vector.broadcast %cst_106 : f32 to vector<8x32xf32>
    %181 = arith.mulf %180, %179 : vector<8x32xf32>
    %cst_107 = arith.constant 4.471500e-02 : f32
    %182 = vector.broadcast %cst_107 : f32 to vector<8x32xf32>
    %183 = arith.mulf %182, %179 : vector<8x32xf32>
    %184 = arith.mulf %183, %179 : vector<8x32xf32>
    %185 = arith.mulf %184, %179 : vector<8x32xf32>
    %186 = arith.addf %179, %185 : vector<8x32xf32>
    %cst_108 = arith.constant 0.797884583 : f32
    %187 = vector.broadcast %cst_108 : f32 to vector<8x32xf32>
    %188 = arith.mulf %187, %186 : vector<8x32xf32>
    %189 = math.tanh %188 : vector<8x32xf32>
    %cst_109 = arith.constant 1.000000e+00 : f32
    %190 = vector.broadcast %cst_109 : f32 to vector<8x32xf32>
    %191 = arith.addf %190, %189 : vector<8x32xf32>
    %192 = arith.mulf %181, %191 : vector<8x32xf32>
    %193 = arith.truncf %192 : vector<8x32xf32> to vector<8x32xbf16>
    %c0_110 = arith.constant 0 : index
    %c0_111 = arith.constant 0 : index
    %c0_112 = arith.constant 0 : index
    %194 = vector.load %arg20[%c0_110, %c0_111, %c0_112] : memref<2x32x64xbf16, #tpu.memory_space<vmem>>, vector<1x32x64xbf16>
    %195 = vector.shape_cast %194 : vector<1x32x64xbf16> to vector<32x64xbf16>
    %cst_113 = arith.constant dense<0.000000e+00> : vector<8x64xf32>
    %196 = tpu.matmul %193, %195, %cst_113 {dimension_numbers = #tpu.dot_dimension_numbers<[1], [0], [0], [1], [0, 0, 1, 1], [], []>} : vector<8x32xbf16>, vector<32x64xbf16>, vector<8x64xf32> -> vector<8x64xf32>
    %c0_114 = arith.constant 0 : index
    %c0_115 = arith.constant 0 : index
    %c0_116 = arith.constant 0 : index
    %197 = vector.load %arg21[%c0_114, %c0_115, %c0_116] : memref<2x1x64xf32, #tpu.memory_space<vmem>>, vector<1x1x64xf32>
    %198 = vector.shape_cast %197 : vector<1x1x64xf32> to vector<1x64xf32>
    %199 = vector.broadcast %198 : vector<1x64xf32> to vector<8x64xf32>
    %200 = arith.addf %196, %199 : vector<8x64xf32>
    %201 = arith.addf %145, %200 : vector<8x64xf32>
    %c1_117 = arith.constant 1 : index
    %c0_118 = arith.constant 0 : index
    %c0_119 = arith.constant 0 : index
    %202 = vector.load %arg6[%c1_117, %c0_118, %c0_119] : memref<2x1x64xf32, #tpu.memory_space<vmem>>, vector<1x1x64xf32>
    %203 = vector.shape_cast %202 : vector<1x1x64xf32> to vector<1x64xf32>
    %c1_120 = arith.constant 1 : index
    %c0_121 = arith.constant 0 : index
    %c0_122 = arith.constant 0 : index
    %204 = vector.load %arg7[%c1_120, %c0_121, %c0_122] : memref<2x1x64xf32, #tpu.memory_space<vmem>>, vector<1x1x64xf32>
    %205 = vector.shape_cast %204 : vector<1x1x64xf32> to vector<1x64xf32>
    %cst_123 = arith.constant dense<0.000000e+00> : vector<8xf32>
    %206 = vector.multi_reduction <add>, %201, %cst_123 [1] : vector<8x64xf32> to vector<8xf32>
    %207 = vector.shape_cast %206 : vector<8xf32> to vector<8x1xf32>
    %cst_124 = arith.constant 6.400000e+01 : f32
    %208 = vector.broadcast %cst_124 : f32 to vector<8x1xf32>
    %209 = arith.divf %207, %208 : vector<8x1xf32>
    %210 = vector.broadcast %209 : vector<8x1xf32> to vector<8x64xf32>
    %211 = arith.subf %201, %210 : vector<8x64xf32>
    %212 = arith.mulf %211, %211 : vector<8x64xf32>
    %cst_125 = arith.constant dense<0.000000e+00> : vector<8xf32>
    %213 = vector.multi_reduction <add>, %212, %cst_125 [1] : vector<8x64xf32> to vector<8xf32>
    %214 = vector.shape_cast %213 : vector<8xf32> to vector<8x1xf32>
    %cst_126 = arith.constant 6.400000e+01 : f32
    %215 = vector.broadcast %cst_126 : f32 to vector<8x1xf32>
    %216 = arith.divf %214, %215 : vector<8x1xf32>
    %217 = vector.broadcast %209 : vector<8x1xf32> to vector<8x64xf32>
    %218 = arith.subf %201, %217 : vector<8x64xf32>
    %cst_127 = arith.constant 9.99999997E-7 : f32
    %219 = vector.broadcast %cst_127 : f32 to vector<8x1xf32>
    %220 = arith.addf %216, %219 : vector<8x1xf32>
    %221 = math.rsqrt %220 : vector<8x1xf32>
    %222 = vector.broadcast %221 : vector<8x1xf32> to vector<8x64xf32>
    %223 = arith.mulf %218, %222 : vector<8x64xf32>
    %224 = vector.broadcast %203 : vector<1x64xf32> to vector<8x64xf32>
    %225 = arith.mulf %223, %224 : vector<8x64xf32>
    %226 = vector.broadcast %205 : vector<1x64xf32> to vector<8x64xf32>
    %227 = arith.addf %225, %226 : vector<8x64xf32>
    %228 = arith.truncf %227 : vector<8x64xf32> to vector<8x64xbf16>
    %229 = vector.extract_strided_slice %228 {offsets = [0, 0], sizes = [1, 64], strides = [1, 1]} : vector<8x64xbf16> to vector<1x64xbf16>
    %c1_128 = arith.constant 1 : index
    %c0_129 = arith.constant 0 : index
    %c0_130 = arith.constant 0 : index
    %230 = vector.load %arg8[%c1_128, %c0_129, %c0_130] : memref<2x64x256xbf16, #tpu.memory_space<vmem>>, vector<1x64x256xbf16>
    %231 = vector.shape_cast %230 : vector<1x64x256xbf16> to vector<64x256xbf16>
    %cst_131 = arith.constant dense<0.000000e+00> : vector<1x256xf32>
    %232 = tpu.matmul %229, %231, %cst_131 {dimension_numbers = #tpu.dot_dimension_numbers<[1], [0], [0], [1], [0, 0, 1, 1], [], []>} : vector<1x64xbf16>, vector<64x256xbf16>, vector<1x256xf32> -> vector<1x256xf32>
    %c1_132 = arith.constant 1 : index
    %c0_133 = arith.constant 0 : index
    %c0_134 = arith.constant 0 : index
    %233 = vector.load %arg9[%c1_132, %c0_133, %c0_134] : memref<2x1x256xf32, #tpu.memory_space<vmem>>, vector<1x1x256xf32>
    %234 = vector.shape_cast %233 : vector<1x1x256xf32> to vector<1x256xf32>
    %235 = arith.addf %232, %234 : vector<1x256xf32>
    %c1_135 = arith.constant 1 : index
    %c0_136 = arith.constant 0 : index
    %c0_137 = arith.constant 0 : index
    %236 = vector.load %arg10[%c1_135, %c0_136, %c0_137] : memref<2x64x256xbf16, #tpu.memory_space<vmem>>, vector<1x64x256xbf16>
    %237 = vector.shape_cast %236 : vector<1x64x256xbf16> to vector<64x256xbf16>
    %cst_138 = arith.constant dense<0.000000e+00> : vector<8x256xf32>
    %238 = tpu.matmul %228, %237, %cst_138 {dimension_numbers = #tpu.dot_dimension_numbers<[1], [0], [0], [1], [0, 0, 1, 1], [], []>} : vector<8x64xbf16>, vector<64x256xbf16>, vector<8x256xf32> -> vector<8x256xf32>
    %c1_139 = arith.constant 1 : index
    %c0_140 = arith.constant 0 : index
    %c0_141 = arith.constant 0 : index
    %239 = vector.load %arg11[%c1_139, %c0_140, %c0_141] : memref<2x1x256xf32, #tpu.memory_space<vmem>>, vector<1x1x256xf32>
    %240 = vector.shape_cast %239 : vector<1x1x256xf32> to vector<1x256xf32>
    %241 = vector.broadcast %240 : vector<1x256xf32> to vector<8x256xf32>
    %242 = arith.addf %238, %241 : vector<8x256xf32>
    %c1_142 = arith.constant 1 : index
    %c0_143 = arith.constant 0 : index
    %c0_144 = arith.constant 0 : index
    %243 = vector.load %arg12[%c1_142, %c0_143, %c0_144] : memref<2x64x256xbf16, #tpu.memory_space<vmem>>, vector<1x64x256xbf16>
    %244 = vector.shape_cast %243 : vector<1x64x256xbf16> to vector<64x256xbf16>
    %cst_145 = arith.constant dense<0.000000e+00> : vector<8x256xf32>
    %245 = tpu.matmul %228, %244, %cst_145 {dimension_numbers = #tpu.dot_dimension_numbers<[1], [0], [0], [1], [0, 0, 1, 1], [], []>} : vector<8x64xbf16>, vector<64x256xbf16>, vector<8x256xf32> -> vector<8x256xf32>
    %c1_146 = arith.constant 1 : index
    %c0_147 = arith.constant 0 : index
    %c0_148 = arith.constant 0 : index
    %246 = vector.load %arg13[%c1_146, %c0_147, %c0_148] : memref<2x1x256xf32, #tpu.memory_space<vmem>>, vector<1x1x256xf32>
    %247 = vector.shape_cast %246 : vector<1x1x256xf32> to vector<1x256xf32>
    %248 = vector.broadcast %247 : vector<1x256xf32> to vector<8x256xf32>
    %249 = arith.addf %245, %248 : vector<8x256xf32>
    %250 = vector.broadcast %235 : vector<1x256xf32> to vector<8x256xf32>
    %251 = arith.mulf %242, %250 : vector<8x256xf32>
    %c0_149 = arith.constant 0 : index
    %c0_150 = arith.constant 0 : index
    %252 = vector.load %arg22[%c0_149, %c0_150] : memref<256x4xf32, #tpu.memory_space<vmem>>, vector<256x4xf32>
    %cst_151 = arith.constant dense<0.000000e+00> : vector<8x4xf32>
    %253 = tpu.matmul %251, %252, %cst_151 {dimension_numbers = #tpu.dot_dimension_numbers<[1], [0], [0], [1], [0, 0, 1, 1], [], []>} : vector<8x256xf32>, vector<256x4xf32>, vector<8x4xf32> -> vector<8x4xf32>
    %cst_152 = arith.constant 1.250000e-01 : f32
    %254 = vector.broadcast %cst_152 : f32 to vector<8x4xf32>
    %255 = arith.mulf %253, %254 : vector<8x4xf32>
    %256 = vector.broadcast %59 : vector<8x1xf32> to vector<8x4xf32>
    %257 = arith.addf %255, %256 : vector<8x4xf32>
    %cst_153 = arith.constant dense<0xFF800000> : vector<4xf32>
    %258 = vector.multi_reduction <maximumf>, %257, %cst_153 [0] : vector<8x4xf32> to vector<4xf32>
    %259 = vector.shape_cast %258 : vector<4xf32> to vector<1x4xf32>
    %260 = vector.broadcast %259 : vector<1x4xf32> to vector<8x4xf32>
    %261 = arith.subf %257, %260 : vector<8x4xf32>
    %262 = math.exp %261 : vector<8x4xf32>
    %cst_154 = arith.constant dense<0.000000e+00> : vector<4xf32>
    %263 = vector.multi_reduction <add>, %262, %cst_154 [0] : vector<8x4xf32> to vector<4xf32>
    %264 = vector.shape_cast %263 : vector<4xf32> to vector<1x4xf32>
    %265 = vector.broadcast %264 : vector<1x4xf32> to vector<8x4xf32>
    %266 = arith.divf %262, %265 : vector<8x4xf32>
    %c0_155 = arith.constant 0 : index
    %c0_156 = arith.constant 0 : index
    %267 = vector.load %arg23[%c0_155, %c0_156] : memref<4x256xf32, #tpu.memory_space<vmem>>, vector<4x256xf32>
    %cst_157 = arith.constant dense<0.000000e+00> : vector<8x256xf32>
    %268 = tpu.matmul %266, %267, %cst_157 {dimension_numbers = #tpu.dot_dimension_numbers<[1], [0], [0], [1], [0, 0, 1, 1], [], []>} : vector<8x4xf32>, vector<4x256xf32>, vector<8x256xf32> -> vector<8x256xf32>
    %269 = arith.mulf %268, %249 : vector<8x256xf32>
    %cst_158 = arith.constant dense<0.000000e+00> : vector<256xf32>
    %270 = vector.multi_reduction <add>, %269, %cst_158 [0] : vector<8x256xf32> to vector<256xf32>
    %271 = vector.shape_cast %270 : vector<256xf32> to vector<1x256xf32>
    %272 = arith.truncf %271 : vector<1x256xf32> to vector<1x256xbf16>
    %c1_159 = arith.constant 1 : index
    %c0_160 = arith.constant 0 : index
    %c0_161 = arith.constant 0 : index
    %273 = vector.load %arg14[%c1_159, %c0_160, %c0_161] : memref<2x256x64xbf16, #tpu.memory_space<vmem>>, vector<1x256x64xbf16>
    %274 = vector.shape_cast %273 : vector<1x256x64xbf16> to vector<256x64xbf16>
    %cst_162 = arith.constant dense<0.000000e+00> : vector<1x64xf32>
    %275 = tpu.matmul %272, %274, %cst_162 {dimension_numbers = #tpu.dot_dimension_numbers<[1], [0], [0], [1], [0, 0, 1, 1], [], []>} : vector<1x256xbf16>, vector<256x64xbf16>, vector<1x64xf32> -> vector<1x64xf32>
    %c1_163 = arith.constant 1 : index
    %c0_164 = arith.constant 0 : index
    %c0_165 = arith.constant 0 : index
    %276 = vector.load %arg15[%c1_163, %c0_164, %c0_165] : memref<2x1x64xf32, #tpu.memory_space<vmem>>, vector<1x1x64xf32>
    %277 = vector.shape_cast %276 : vector<1x1x64xf32> to vector<1x64xf32>
    %278 = arith.addf %275, %277 : vector<1x64xf32>
    %279 = vector.broadcast %278 : vector<1x64xf32> to vector<8x64xf32>
    %280 = arith.addf %201, %279 : vector<8x64xf32>
    %c1_166 = arith.constant 1 : index
    %c0_167 = arith.constant 0 : index
    %c0_168 = arith.constant 0 : index
    %281 = vector.load %arg16[%c1_166, %c0_167, %c0_168] : memref<2x1x64xf32, #tpu.memory_space<vmem>>, vector<1x1x64xf32>
    %282 = vector.shape_cast %281 : vector<1x1x64xf32> to vector<1x64xf32>
    %c1_169 = arith.constant 1 : index
    %c0_170 = arith.constant 0 : index
    %c0_171 = arith.constant 0 : index
    %283 = vector.load %arg17[%c1_169, %c0_170, %c0_171] : memref<2x1x64xf32, #tpu.memory_space<vmem>>, vector<1x1x64xf32>
    %284 = vector.shape_cast %283 : vector<1x1x64xf32> to vector<1x64xf32>
    %cst_172 = arith.constant dense<0.000000e+00> : vector<8xf32>
    %285 = vector.multi_reduction <add>, %280, %cst_172 [1] : vector<8x64xf32> to vector<8xf32>
    %286 = vector.shape_cast %285 : vector<8xf32> to vector<8x1xf32>
    %cst_173 = arith.constant 6.400000e+01 : f32
    %287 = vector.broadcast %cst_173 : f32 to vector<8x1xf32>
    %288 = arith.divf %286, %287 : vector<8x1xf32>
    %289 = vector.broadcast %288 : vector<8x1xf32> to vector<8x64xf32>
    %290 = arith.subf %280, %289 : vector<8x64xf32>
    %291 = arith.mulf %290, %290 : vector<8x64xf32>
    %cst_174 = arith.constant dense<0.000000e+00> : vector<8xf32>
    %292 = vector.multi_reduction <add>, %291, %cst_174 [1] : vector<8x64xf32> to vector<8xf32>
    %293 = vector.shape_cast %292 : vector<8xf32> to vector<8x1xf32>
    %cst_175 = arith.constant 6.400000e+01 : f32
    %294 = vector.broadcast %cst_175 : f32 to vector<8x1xf32>
    %295 = arith.divf %293, %294 : vector<8x1xf32>
    %296 = vector.broadcast %288 : vector<8x1xf32> to vector<8x64xf32>
    %297 = arith.subf %280, %296 : vector<8x64xf32>
    %cst_176 = arith.constant 9.99999997E-7 : f32
    %298 = vector.broadcast %cst_176 : f32 to vector<8x1xf32>
    %299 = arith.addf %295, %298 : vector<8x1xf32>
    %300 = math.rsqrt %299 : vector<8x1xf32>
    %301 = vector.broadcast %300 : vector<8x1xf32> to vector<8x64xf32>
    %302 = arith.mulf %297, %301 : vector<8x64xf32>
    %303 = vector.broadcast %282 : vector<1x64xf32> to vector<8x64xf32>
    %304 = arith.mulf %302, %303 : vector<8x64xf32>
    %305 = vector.broadcast %284 : vector<1x64xf32> to vector<8x64xf32>
    %306 = arith.addf %304, %305 : vector<8x64xf32>
    %307 = arith.truncf %306 : vector<8x64xf32> to vector<8x64xbf16>
    %c1_177 = arith.constant 1 : index
    %c0_178 = arith.constant 0 : index
    %c0_179 = arith.constant 0 : index
    %308 = vector.load %arg18[%c1_177, %c0_178, %c0_179] : memref<2x64x32xbf16, #tpu.memory_space<vmem>>, vector<1x64x32xbf16>
    %309 = vector.shape_cast %308 : vector<1x64x32xbf16> to vector<64x32xbf16>
    %cst_180 = arith.constant dense<0.000000e+00> : vector<8x32xf32>
    %310 = tpu.matmul %307, %309, %cst_180 {dimension_numbers = #tpu.dot_dimension_numbers<[1], [0], [0], [1], [0, 0, 1, 1], [], []>} : vector<8x64xbf16>, vector<64x32xbf16>, vector<8x32xf32> -> vector<8x32xf32>
    %c1_181 = arith.constant 1 : index
    %c0_182 = arith.constant 0 : index
    %c0_183 = arith.constant 0 : index
    %311 = vector.load %arg19[%c1_181, %c0_182, %c0_183] : memref<2x1x32xf32, #tpu.memory_space<vmem>>, vector<1x1x32xf32>
    %312 = vector.shape_cast %311 : vector<1x1x32xf32> to vector<1x32xf32>
    %313 = vector.broadcast %312 : vector<1x32xf32> to vector<8x32xf32>
    %314 = arith.addf %310, %313 : vector<8x32xf32>
    %cst_184 = arith.constant 5.000000e-01 : f32
    %315 = vector.broadcast %cst_184 : f32 to vector<8x32xf32>
    %316 = arith.mulf %315, %314 : vector<8x32xf32>
    %cst_185 = arith.constant 4.471500e-02 : f32
    %317 = vector.broadcast %cst_185 : f32 to vector<8x32xf32>
    %318 = arith.mulf %317, %314 : vector<8x32xf32>
    %319 = arith.mulf %318, %314 : vector<8x32xf32>
    %320 = arith.mulf %319, %314 : vector<8x32xf32>
    %321 = arith.addf %314, %320 : vector<8x32xf32>
    %cst_186 = arith.constant 0.797884583 : f32
    %322 = vector.broadcast %cst_186 : f32 to vector<8x32xf32>
    %323 = arith.mulf %322, %321 : vector<8x32xf32>
    %324 = math.tanh %323 : vector<8x32xf32>
    %cst_187 = arith.constant 1.000000e+00 : f32
    %325 = vector.broadcast %cst_187 : f32 to vector<8x32xf32>
    %326 = arith.addf %325, %324 : vector<8x32xf32>
    %327 = arith.mulf %316, %326 : vector<8x32xf32>
    %328 = arith.truncf %327 : vector<8x32xf32> to vector<8x32xbf16>
    %c1_188 = arith.constant 1 : index
    %c0_189 = arith.constant 0 : index
    %c0_190 = arith.constant 0 : index
    %329 = vector.load %arg20[%c1_188, %c0_189, %c0_190] : memref<2x32x64xbf16, #tpu.memory_space<vmem>>, vector<1x32x64xbf16>
    %330 = vector.shape_cast %329 : vector<1x32x64xbf16> to vector<32x64xbf16>
    %cst_191 = arith.constant dense<0.000000e+00> : vector<8x64xf32>
    %331 = tpu.matmul %328, %330, %cst_191 {dimension_numbers = #tpu.dot_dimension_numbers<[1], [0], [0], [1], [0, 0, 1, 1], [], []>} : vector<8x32xbf16>, vector<32x64xbf16>, vector<8x64xf32> -> vector<8x64xf32>
    %c1_192 = arith.constant 1 : index
    %c0_193 = arith.constant 0 : index
    %c0_194 = arith.constant 0 : index
    %332 = vector.load %arg21[%c1_192, %c0_193, %c0_194] : memref<2x1x64xf32, #tpu.memory_space<vmem>>, vector<1x1x64xf32>
    %333 = vector.shape_cast %332 : vector<1x1x64xf32> to vector<1x64xf32>
    %334 = vector.broadcast %333 : vector<1x64xf32> to vector<8x64xf32>
    %335 = arith.addf %331, %334 : vector<8x64xf32>
    %336 = arith.addf %280, %335 : vector<8x64xf32>
    %337 = vector.extract_strided_slice %336 {offsets = [0, 0], sizes = [1, 64], strides = [1, 1]} : vector<8x64xf32> to vector<1x64xf32>
    %cst_195 = arith.constant 0.000000e+00 : f32
    %338 = vector.broadcast %cst_195 : f32 to vector<8x64xf32>
    %c0_196 = arith.constant 0 : index
    %c0_197 = arith.constant 0 : index
    %339 = vector.load %arg27[%c0_196, %c0_197] : memref<8x64xf32, #tpu.memory_space<vmem>>, vector<8x64xf32>
    tpu.vector_store %arg27[%c0_196, %c0_197], %338 {strides = array<i32>} : memref<8x64xf32, #tpu.memory_space<vmem>>, vector<8x64xf32>,
    %c0_198 = arith.constant 0 : index
    %c0_199 = arith.constant 0 : index
    %340 = vector.load %arg27[%c0_198, %c0_199] : memref<8x64xf32, #tpu.memory_space<vmem>>, vector<1x64xf32>
    tpu.vector_store %arg27[%c0_198, %c0_199], %49 {strides = array<i32>} : memref<8x64xf32, #tpu.memory_space<vmem>>, vector<1x64xf32>,
    %c1_200 = arith.constant 1 : index
    %c0_201 = arith.constant 0 : index
    %341 = vector.load %arg27[%c1_200, %c0_201] : memref<8x64xf32, #tpu.memory_space<vmem>>, vector<4x64xf32>
    tpu.vector_store %arg27[%c1_200, %c0_201], %28 {strides = array<i32>} : memref<8x64xf32, #tpu.memory_space<vmem>>, vector<4x64xf32>,
    %c0_202 = arith.constant 0 : index
    %c0_203 = arith.constant 0 : index
    %342 = vector.load %arg27[%c0_202, %c0_203] : memref<8x64xf32, #tpu.memory_space<vmem>>, vector<8x64xf32>
    %c0_204 = arith.constant 0 : index
    %c0_205 = arith.constant 0 : index
    %343 = vector.load %arg5[%c0_204, %c0_205] : memref<8x64xf32, #tpu.memory_space<vmem>>, vector<8x64xf32>
    %344 = arith.addf %342, %343 : vector<8x64xf32>
    %c0_206 = arith.constant 0 : index
    %c0_207 = arith.constant 0 : index
    %c0_208 = arith.constant 0 : index
    %345 = vector.load %arg6[%c0_206, %c0_207, %c0_208] : memref<2x1x64xf32, #tpu.memory_space<vmem>>, vector<1x1x64xf32>
    %346 = vector.shape_cast %345 : vector<1x1x64xf32> to vector<1x64xf32>
    %c0_209 = arith.constant 0 : index
    %c0_210 = arith.constant 0 : index
    %c0_211 = arith.constant 0 : index
    %347 = vector.load %arg7[%c0_209, %c0_210, %c0_211] : memref<2x1x64xf32, #tpu.memory_space<vmem>>, vector<1x1x64xf32>
    %348 = vector.shape_cast %347 : vector<1x1x64xf32> to vector<1x64xf32>
    %cst_212 = arith.constant dense<0.000000e+00> : vector<8xf32>
    %349 = vector.multi_reduction <add>, %344, %cst_212 [1] : vector<8x64xf32> to vector<8xf32>
    %350 = vector.shape_cast %349 : vector<8xf32> to vector<8x1xf32>
    %cst_213 = arith.constant 6.400000e+01 : f32
    %351 = vector.broadcast %cst_213 : f32 to vector<8x1xf32>
    %352 = arith.divf %350, %351 : vector<8x1xf32>
    %353 = vector.broadcast %352 : vector<8x1xf32> to vector<8x64xf32>
    %354 = arith.subf %344, %353 : vector<8x64xf32>
    %355 = arith.mulf %354, %354 : vector<8x64xf32>
    %cst_214 = arith.constant dense<0.000000e+00> : vector<8xf32>
    %356 = vector.multi_reduction <add>, %355, %cst_214 [1] : vector<8x64xf32> to vector<8xf32>
    %357 = vector.shape_cast %356 : vector<8xf32> to vector<8x1xf32>
    %cst_215 = arith.constant 6.400000e+01 : f32
    %358 = vector.broadcast %cst_215 : f32 to vector<8x1xf32>
    %359 = arith.divf %357, %358 : vector<8x1xf32>
    %360 = vector.broadcast %352 : vector<8x1xf32> to vector<8x64xf32>
    %361 = arith.subf %344, %360 : vector<8x64xf32>
    %cst_216 = arith.constant 9.99999997E-7 : f32
    %362 = vector.broadcast %cst_216 : f32 to vector<8x1xf32>
    %363 = arith.addf %359, %362 : vector<8x1xf32>
    %364 = math.rsqrt %363 : vector<8x1xf32>
    %365 = vector.broadcast %364 : vector<8x1xf32> to vector<8x64xf32>
    %366 = arith.mulf %361, %365 : vector<8x64xf32>
    %367 = vector.broadcast %346 : vector<1x64xf32> to vector<8x64xf32>
    %368 = arith.mulf %366, %367 : vector<8x64xf32>
    %369 = vector.broadcast %348 : vector<1x64xf32> to vector<8x64xf32>
    %370 = arith.addf %368, %369 : vector<8x64xf32>
    %371 = arith.truncf %370 : vector<8x64xf32> to vector<8x64xbf16>
    %372 = vector.extract_strided_slice %371 {offsets = [0, 0], sizes = [1, 64], strides = [1, 1]} : vector<8x64xbf16> to vector<1x64xbf16>
    %c0_217 = arith.constant 0 : index
    %c0_218 = arith.constant 0 : index
    %c0_219 = arith.constant 0 : index
    %373 = vector.load %arg8[%c0_217, %c0_218, %c0_219] : memref<2x64x256xbf16, #tpu.memory_space<vmem>>, vector<1x64x256xbf16>
    %374 = vector.shape_cast %373 : vector<1x64x256xbf16> to vector<64x256xbf16>
    %cst_220 = arith.constant dense<0.000000e+00> : vector<1x256xf32>
    %375 = tpu.matmul %372, %374, %cst_220 {dimension_numbers = #tpu.dot_dimension_numbers<[1], [0], [0], [1], [0, 0, 1, 1], [], []>} : vector<1x64xbf16>, vector<64x256xbf16>, vector<1x256xf32> -> vector<1x256xf32>
    %c0_221 = arith.constant 0 : index
    %c0_222 = arith.constant 0 : index
    %c0_223 = arith.constant 0 : index
    %376 = vector.load %arg9[%c0_221, %c0_222, %c0_223] : memref<2x1x256xf32, #tpu.memory_space<vmem>>, vector<1x1x256xf32>
    %377 = vector.shape_cast %376 : vector<1x1x256xf32> to vector<1x256xf32>
    %378 = arith.addf %375, %377 : vector<1x256xf32>
    %c0_224 = arith.constant 0 : index
    %c0_225 = arith.constant 0 : index
    %c0_226 = arith.constant 0 : index
    %379 = vector.load %arg10[%c0_224, %c0_225, %c0_226] : memref<2x64x256xbf16, #tpu.memory_space<vmem>>, vector<1x64x256xbf16>
    %380 = vector.shape_cast %379 : vector<1x64x256xbf16> to vector<64x256xbf16>
    %cst_227 = arith.constant dense<0.000000e+00> : vector<8x256xf32>
    %381 = tpu.matmul %371, %380, %cst_227 {dimension_numbers = #tpu.dot_dimension_numbers<[1], [0], [0], [1], [0, 0, 1, 1], [], []>} : vector<8x64xbf16>, vector<64x256xbf16>, vector<8x256xf32> -> vector<8x256xf32>
    %c0_228 = arith.constant 0 : index
    %c0_229 = arith.constant 0 : index
    %c0_230 = arith.constant 0 : index
    %382 = vector.load %arg11[%c0_228, %c0_229, %c0_230] : memref<2x1x256xf32, #tpu.memory_space<vmem>>, vector<1x1x256xf32>
    %383 = vector.shape_cast %382 : vector<1x1x256xf32> to vector<1x256xf32>
    %384 = vector.broadcast %383 : vector<1x256xf32> to vector<8x256xf32>
    %385 = arith.addf %381, %384 : vector<8x256xf32>
    %c0_231 = arith.constant 0 : index
    %c0_232 = arith.constant 0 : index
    %c0_233 = arith.constant 0 : index
    %386 = vector.load %arg12[%c0_231, %c0_232, %c0_233] : memref<2x64x256xbf16, #tpu.memory_space<vmem>>, vector<1x64x256xbf16>
    %387 = vector.shape_cast %386 : vector<1x64x256xbf16> to vector<64x256xbf16>
    %cst_234 = arith.constant dense<0.000000e+00> : vector<8x256xf32>
    %388 = tpu.matmul %371, %387, %cst_234 {dimension_numbers = #tpu.dot_dimension_numbers<[1], [0], [0], [1], [0, 0, 1, 1], [], []>} : vector<8x64xbf16>, vector<64x256xbf16>, vector<8x256xf32> -> vector<8x256xf32>
    %c0_235 = arith.constant 0 : index
    %c0_236 = arith.constant 0 : index
    %c0_237 = arith.constant 0 : index
    %389 = vector.load %arg13[%c0_235, %c0_236, %c0_237] : memref<2x1x256xf32, #tpu.memory_space<vmem>>, vector<1x1x256xf32>
    %390 = vector.shape_cast %389 : vector<1x1x256xf32> to vector<1x256xf32>
    %391 = vector.broadcast %390 : vector<1x256xf32> to vector<8x256xf32>
    %392 = arith.addf %388, %391 : vector<8x256xf32>
    %393 = vector.broadcast %378 : vector<1x256xf32> to vector<8x256xf32>
    %394 = arith.mulf %385, %393 : vector<8x256xf32>
    %c0_238 = arith.constant 0 : index
    %c0_239 = arith.constant 0 : index
    %395 = vector.load %arg22[%c0_238, %c0_239] : memref<256x4xf32, #tpu.memory_space<vmem>>, vector<256x4xf32>
    %cst_240 = arith.constant dense<0.000000e+00> : vector<8x4xf32>
    %396 = tpu.matmul %394, %395, %cst_240 {dimension_numbers = #tpu.dot_dimension_numbers<[1], [0], [0], [1], [0, 0, 1, 1], [], []>} : vector<8x256xf32>, vector<256x4xf32>, vector<8x4xf32> -> vector<8x4xf32>
    %cst_241 = arith.constant 1.250000e-01 : f32
    %397 = vector.broadcast %cst_241 : f32 to vector<8x4xf32>
    %398 = arith.mulf %396, %397 : vector<8x4xf32>
    %399 = vector.broadcast %59 : vector<8x1xf32> to vector<8x4xf32>
    %400 = arith.addf %398, %399 : vector<8x4xf32>
    %cst_242 = arith.constant dense<0xFF800000> : vector<4xf32>
    %401 = vector.multi_reduction <maximumf>, %400, %cst_242 [0] : vector<8x4xf32> to vector<4xf32>
    %402 = vector.shape_cast %401 : vector<4xf32> to vector<1x4xf32>
    %403 = vector.broadcast %402 : vector<1x4xf32> to vector<8x4xf32>
    %404 = arith.subf %400, %403 : vector<8x4xf32>
    %405 = math.exp %404 : vector<8x4xf32>
    %cst_243 = arith.constant dense<0.000000e+00> : vector<4xf32>
    %406 = vector.multi_reduction <add>, %405, %cst_243 [0] : vector<8x4xf32> to vector<4xf32>
    %407 = vector.shape_cast %406 : vector<4xf32> to vector<1x4xf32>
    %408 = vector.broadcast %407 : vector<1x4xf32> to vector<8x4xf32>
    %409 = arith.divf %405, %408 : vector<8x4xf32>
    %c0_244 = arith.constant 0 : index
    %c0_245 = arith.constant 0 : index
    %410 = vector.load %arg23[%c0_244, %c0_245] : memref<4x256xf32, #tpu.memory_space<vmem>>, vector<4x256xf32>
    %cst_246 = arith.constant dense<0.000000e+00> : vector<8x256xf32>
    %411 = tpu.matmul %409, %410, %cst_246 {dimension_numbers = #tpu.dot_dimension_numbers<[1], [0], [0], [1], [0, 0, 1, 1], [], []>} : vector<8x4xf32>, vector<4x256xf32>, vector<8x256xf32> -> vector<8x256xf32>
    %412 = arith.mulf %411, %392 : vector<8x256xf32>
    %cst_247 = arith.constant dense<0.000000e+00> : vector<256xf32>
    %413 = vector.multi_reduction <add>, %412, %cst_247 [0] : vector<8x256xf32> to vector<256xf32>
    %414 = vector.shape_cast %413 : vector<256xf32> to vector<1x256xf32>
    %415 = arith.truncf %414 : vector<1x256xf32> to vector<1x256xbf16>
    %c0_248 = arith.constant 0 : index
    %c0_249 = arith.constant 0 : index
    %c0_250 = arith.constant 0 : index
    %416 = vector.load %arg14[%c0_248, %c0_249, %c0_250] : memref<2x256x64xbf16, #tpu.memory_space<vmem>>, vector<1x256x64xbf16>
    %417 = vector.shape_cast %416 : vector<1x256x64xbf16> to vector<256x64xbf16>
    %cst_251 = arith.constant dense<0.000000e+00> : vector<1x64xf32>
    %418 = tpu.matmul %415, %417, %cst_251 {dimension_numbers = #tpu.dot_dimension_numbers<[1], [0], [0], [1], [0, 0, 1, 1], [], []>} : vector<1x256xbf16>, vector<256x64xbf16>, vector<1x64xf32> -> vector<1x64xf32>
    %c0_252 = arith.constant 0 : index
    %c0_253 = arith.constant 0 : index
    %c0_254 = arith.constant 0 : index
    %419 = vector.load %arg15[%c0_252, %c0_253, %c0_254] : memref<2x1x64xf32, #tpu.memory_space<vmem>>, vector<1x1x64xf32>
    %420 = vector.shape_cast %419 : vector<1x1x64xf32> to vector<1x64xf32>
    %421 = arith.addf %418, %420 : vector<1x64xf32>
    %422 = vector.broadcast %421 : vector<1x64xf32> to vector<8x64xf32>
    %423 = arith.addf %344, %422 : vector<8x64xf32>
    %c0_255 = arith.constant 0 : index
    %c0_256 = arith.constant 0 : index
    %c0_257 = arith.constant 0 : index
    %424 = vector.load %arg16[%c0_255, %c0_256, %c0_257] : memref<2x1x64xf32, #tpu.memory_space<vmem>>, vector<1x1x64xf32>
    %425 = vector.shape_cast %424 : vector<1x1x64xf32> to vector<1x64xf32>
    %c0_258 = arith.constant 0 : index
    %c0_259 = arith.constant 0 : index
    %c0_260 = arith.constant 0 : index
    %426 = vector.load %arg17[%c0_258, %c0_259, %c0_260] : memref<2x1x64xf32, #tpu.memory_space<vmem>>, vector<1x1x64xf32>
    %427 = vector.shape_cast %426 : vector<1x1x64xf32> to vector<1x64xf32>
    %cst_261 = arith.constant dense<0.000000e+00> : vector<8xf32>
    %428 = vector.multi_reduction <add>, %423, %cst_261 [1] : vector<8x64xf32> to vector<8xf32>
    %429 = vector.shape_cast %428 : vector<8xf32> to vector<8x1xf32>
    %cst_262 = arith.constant 6.400000e+01 : f32
    %430 = vector.broadcast %cst_262 : f32 to vector<8x1xf32>
    %431 = arith.divf %429, %430 : vector<8x1xf32>
    %432 = vector.broadcast %431 : vector<8x1xf32> to vector<8x64xf32>
    %433 = arith.subf %423, %432 : vector<8x64xf32>
    %434 = arith.mulf %433, %433 : vector<8x64xf32>
    %cst_263 = arith.constant dense<0.000000e+00> : vector<8xf32>
    %435 = vector.multi_reduction <add>, %434, %cst_263 [1] : vector<8x64xf32> to vector<8xf32>
    %436 = vector.shape_cast %435 : vector<8xf32> to vector<8x1xf32>
    %cst_264 = arith.constant 6.400000e+01 : f32
    %437 = vector.broadcast %cst_264 : f32 to vector<8x1xf32>
    %438 = arith.divf %436, %437 : vector<8x1xf32>
    %439 = vector.broadcast %431 : vector<8x1xf32> to vector<8x64xf32>
    %440 = arith.subf %423, %439 : vector<8x64xf32>
    %cst_265 = arith.constant 9.99999997E-7 : f32
    %441 = vector.broadcast %cst_265 : f32 to vector<8x1xf32>
    %442 = arith.addf %438, %441 : vector<8x1xf32>
    %443 = math.rsqrt %442 : vector<8x1xf32>
    %444 = vector.broadcast %443 : vector<8x1xf32> to vector<8x64xf32>
    %445 = arith.mulf %440, %444 : vector<8x64xf32>
    %446 = vector.broadcast %425 : vector<1x64xf32> to vector<8x64xf32>
    %447 = arith.mulf %445, %446 : vector<8x64xf32>
    %448 = vector.broadcast %427 : vector<1x64xf32> to vector<8x64xf32>
    %449 = arith.addf %447, %448 : vector<8x64xf32>
    %450 = arith.truncf %449 : vector<8x64xf32> to vector<8x64xbf16>
    %c0_266 = arith.constant 0 : index
    %c0_267 = arith.constant 0 : index
    %c0_268 = arith.constant 0 : index
    %451 = vector.load %arg18[%c0_266, %c0_267, %c0_268] : memref<2x64x32xbf16, #tpu.memory_space<vmem>>, vector<1x64x32xbf16>
    %452 = vector.shape_cast %451 : vector<1x64x32xbf16> to vector<64x32xbf16>
    %cst_269 = arith.constant dense<0.000000e+00> : vector<8x32xf32>
    %453 = tpu.matmul %450, %452, %cst_269 {dimension_numbers = #tpu.dot_dimension_numbers<[1], [0], [0], [1], [0, 0, 1, 1], [], []>} : vector<8x64xbf16>, vector<64x32xbf16>, vector<8x32xf32> -> vector<8x32xf32>
    %c0_270 = arith.constant 0 : index
    %c0_271 = arith.constant 0 : index
    %c0_272 = arith.constant 0 : index
    %454 = vector.load %arg19[%c0_270, %c0_271, %c0_272] : memref<2x1x32xf32, #tpu.memory_space<vmem>>, vector<1x1x32xf32>
    %455 = vector.shape_cast %454 : vector<1x1x32xf32> to vector<1x32xf32>
    %456 = vector.broadcast %455 : vector<1x32xf32> to vector<8x32xf32>
    %457 = arith.addf %453, %456 : vector<8x32xf32>
    %cst_273 = arith.constant 5.000000e-01 : f32
    %458 = vector.broadcast %cst_273 : f32 to vector<8x32xf32>
    %459 = arith.mulf %458, %457 : vector<8x32xf32>
    %cst_274 = arith.constant 4.471500e-02 : f32
    %460 = vector.broadcast %cst_274 : f32 to vector<8x32xf32>
    %461 = arith.mulf %460, %457 : vector<8x32xf32>
    %462 = arith.mulf %461, %457 : vector<8x32xf32>
    %463 = arith.mulf %462, %457 : vector<8x32xf32>
    %464 = arith.addf %457, %463 : vector<8x32xf32>
    %cst_275 = arith.constant 0.797884583 : f32
    %465 = vector.broadcast %cst_275 : f32 to vector<8x32xf32>
    %466 = arith.mulf %465, %464 : vector<8x32xf32>
    %467 = math.tanh %466 : vector<8x32xf32>
    %cst_276 = arith.constant 1.000000e+00 : f32
    %468 = vector.broadcast %cst_276 : f32 to vector<8x32xf32>
    %469 = arith.addf %468, %467 : vector<8x32xf32>
    %470 = arith.mulf %459, %469 : vector<8x32xf32>
    %471 = arith.truncf %470 : vector<8x32xf32> to vector<8x32xbf16>
    %c0_277 = arith.constant 0 : index
    %c0_278 = arith.constant 0 : index
    %c0_279 = arith.constant 0 : index
    %472 = vector.load %arg20[%c0_277, %c0_278, %c0_279] : memref<2x32x64xbf16, #tpu.memory_space<vmem>>, vector<1x32x64xbf16>
    %473 = vector.shape_cast %472 : vector<1x32x64xbf16> to vector<32x64xbf16>
    %cst_280 = arith.constant dense<0.000000e+00> : vector<8x64xf32>
    %474 = tpu.matmul %471, %473, %cst_280 {dimension_numbers = #tpu.dot_dimension_numbers<[1], [0], [0], [1], [0, 0, 1, 1], [], []>} : vector<8x32xbf16>, vector<32x64xbf16>, vector<8x64xf32> -> vector<8x64xf32>
    %c0_281 = arith.constant 0 : index
    %c0_282 = arith.constant 0 : index
    %c0_283 = arith.constant 0 : index
    %475 = vector.load %arg21[%c0_281, %c0_282, %c0_283] : memref<2x1x64xf32, #tpu.memory_space<vmem>>, vector<1x1x64xf32>
    %476 = vector.shape_cast %475 : vector<1x1x64xf32> to vector<1x64xf32>
    %477 = vector.broadcast %476 : vector<1x64xf32> to vector<8x64xf32>
    %478 = arith.addf %474, %477 : vector<8x64xf32>
    %479 = arith.addf %423, %478 : vector<8x64xf32>
    %c1_284 = arith.constant 1 : index
    %c0_285 = arith.constant 0 : index
    %c0_286 = arith.constant 0 : index
    %480 = vector.load %arg6[%c1_284, %c0_285, %c0_286] : memref<2x1x64xf32, #tpu.memory_space<vmem>>, vector<1x1x64xf32>
    %481 = vector.shape_cast %480 : vector<1x1x64xf32> to vector<1x64xf32>
    %c1_287 = arith.constant 1 : index
    %c0_288 = arith.constant 0 : index
    %c0_289 = arith.constant 0 : index
    %482 = vector.load %arg7[%c1_287, %c0_288, %c0_289] : memref<2x1x64xf32, #tpu.memory_space<vmem>>, vector<1x1x64xf32>
    %483 = vector.shape_cast %482 : vector<1x1x64xf32> to vector<1x64xf32>
    %cst_290 = arith.constant dense<0.000000e+00> : vector<8xf32>
    %484 = vector.multi_reduction <add>, %479, %cst_290 [1] : vector<8x64xf32> to vector<8xf32>
    %485 = vector.shape_cast %484 : vector<8xf32> to vector<8x1xf32>
    %cst_291 = arith.constant 6.400000e+01 : f32
    %486 = vector.broadcast %cst_291 : f32 to vector<8x1xf32>
    %487 = arith.divf %485, %486 : vector<8x1xf32>
    %488 = vector.broadcast %487 : vector<8x1xf32> to vector<8x64xf32>
    %489 = arith.subf %479, %488 : vector<8x64xf32>
    %490 = arith.mulf %489, %489 : vector<8x64xf32>
    %cst_292 = arith.constant dense<0.000000e+00> : vector<8xf32>
    %491 = vector.multi_reduction <add>, %490, %cst_292 [1] : vector<8x64xf32> to vector<8xf32>
    %492 = vector.shape_cast %491 : vector<8xf32> to vector<8x1xf32>
    %cst_293 = arith.constant 6.400000e+01 : f32
    %493 = vector.broadcast %cst_293 : f32 to vector<8x1xf32>
    %494 = arith.divf %492, %493 : vector<8x1xf32>
    %495 = vector.broadcast %487 : vector<8x1xf32> to vector<8x64xf32>
    %496 = arith.subf %479, %495 : vector<8x64xf32>
    %cst_294 = arith.constant 9.99999997E-7 : f32
    %497 = vector.broadcast %cst_294 : f32 to vector<8x1xf32>
    %498 = arith.addf %494, %497 : vector<8x1xf32>
    %499 = math.rsqrt %498 : vector<8x1xf32>
    %500 = vector.broadcast %499 : vector<8x1xf32> to vector<8x64xf32>
    %501 = arith.mulf %496, %500 : vector<8x64xf32>
    %502 = vector.broadcast %481 : vector<1x64xf32> to vector<8x64xf32>
    %503 = arith.mulf %501, %502 : vector<8x64xf32>
    %504 = vector.broadcast %483 : vector<1x64xf32> to vector<8x64xf32>
    %505 = arith.addf %503, %504 : vector<8x64xf32>
    %506 = arith.truncf %505 : vector<8x64xf32> to vector<8x64xbf16>
    %507 = vector.extract_strided_slice %506 {offsets = [0, 0], sizes = [1, 64], strides = [1, 1]} : vector<8x64xbf16> to vector<1x64xbf16>
    %c1_295 = arith.constant 1 : index
    %c0_296 = arith.constant 0 : index
    %c0_297 = arith.constant 0 : index
    %508 = vector.load %arg8[%c1_295, %c0_296, %c0_297] : memref<2x64x256xbf16, #tpu.memory_space<vmem>>, vector<1x64x256xbf16>
    %509 = vector.shape_cast %508 : vector<1x64x256xbf16> to vector<64x256xbf16>
    %cst_298 = arith.constant dense<0.000000e+00> : vector<1x256xf32>
    %510 = tpu.matmul %507, %509, %cst_298 {dimension_numbers = #tpu.dot_dimension_numbers<[1], [0], [0], [1], [0, 0, 1, 1], [], []>} : vector<1x64xbf16>, vector<64x256xbf16>, vector<1x256xf32> -> vector<1x256xf32>
    %c1_299 = arith.constant 1 : index
    %c0_300 = arith.constant 0 : index
    %c0_301 = arith.constant 0 : index
    %511 = vector.load %arg9[%c1_299, %c0_300, %c0_301] : memref<2x1x256xf32, #tpu.memory_space<vmem>>, vector<1x1x256xf32>
    %512 = vector.shape_cast %511 : vector<1x1x256xf32> to vector<1x256xf32>
    %513 = arith.addf %510, %512 : vector<1x256xf32>
    %c1_302 = arith.constant 1 : index
    %c0_303 = arith.constant 0 : index
    %c0_304 = arith.constant 0 : index
    %514 = vector.load %arg10[%c1_302, %c0_303, %c0_304] : memref<2x64x256xbf16, #tpu.memory_space<vmem>>, vector<1x64x256xbf16>
    %515 = vector.shape_cast %514 : vector<1x64x256xbf16> to vector<64x256xbf16>
    %cst_305 = arith.constant dense<0.000000e+00> : vector<8x256xf32>
    %516 = tpu.matmul %506, %515, %cst_305 {dimension_numbers = #tpu.dot_dimension_numbers<[1], [0], [0], [1], [0, 0, 1, 1], [], []>} : vector<8x64xbf16>, vector<64x256xbf16>, vector<8x256xf32> -> vector<8x256xf32>
    %c1_306 = arith.constant 1 : index
    %c0_307 = arith.constant 0 : index
    %c0_308 = arith.constant 0 : index
    %517 = vector.load %arg11[%c1_306, %c0_307, %c0_308] : memref<2x1x256xf32, #tpu.memory_space<vmem>>, vector<1x1x256xf32>
    %518 = vector.shape_cast %517 : vector<1x1x256xf32> to vector<1x256xf32>
    %519 = vector.broadcast %518 : vector<1x256xf32> to vector<8x256xf32>
    %520 = arith.addf %516, %519 : vector<8x256xf32>
    %c1_309 = arith.constant 1 : index
    %c0_310 = arith.constant 0 : index
    %c0_311 = arith.constant 0 : index
    %521 = vector.load %arg12[%c1_309, %c0_310, %c0_311] : memref<2x64x256xbf16, #tpu.memory_space<vmem>>, vector<1x64x256xbf16>
    %522 = vector.shape_cast %521 : vector<1x64x256xbf16> to vector<64x256xbf16>
    %cst_312 = arith.constant dense<0.000000e+00> : vector<8x256xf32>
    %523 = tpu.matmul %506, %522, %cst_312 {dimension_numbers = #tpu.dot_dimension_numbers<[1], [0], [0], [1], [0, 0, 1, 1], [], []>} : vector<8x64xbf16>, vector<64x256xbf16>, vector<8x256xf32> -> vector<8x256xf32>
    %c1_313 = arith.constant 1 : index
    %c0_314 = arith.constant 0 : index
    %c0_315 = arith.constant 0 : index
    %524 = vector.load %arg13[%c1_313, %c0_314, %c0_315] : memref<2x1x256xf32, #tpu.memory_space<vmem>>, vector<1x1x256xf32>
    %525 = vector.shape_cast %524 : vector<1x1x256xf32> to vector<1x256xf32>
    %526 = vector.broadcast %525 : vector<1x256xf32> to vector<8x256xf32>
    %527 = arith.addf %523, %526 : vector<8x256xf32>
    %528 = vector.broadcast %513 : vector<1x256xf32> to vector<8x256xf32>
    %529 = arith.mulf %520, %528 : vector<8x256xf32>
    %c0_316 = arith.constant 0 : index
    %c0_317 = arith.constant 0 : index
    %530 = vector.load %arg22[%c0_316, %c0_317] : memref<256x4xf32, #tpu.memory_space<vmem>>, vector<256x4xf32>
    %cst_318 = arith.constant dense<0.000000e+00> : vector<8x4xf32>
    %531 = tpu.matmul %529, %530, %cst_318 {dimension_numbers = #tpu.dot_dimension_numbers<[1], [0], [0], [1], [0, 0, 1, 1], [], []>} : vector<8x256xf32>, vector<256x4xf32>, vector<8x4xf32> -> vector<8x4xf32>
    %cst_319 = arith.constant 1.250000e-01 : f32
    %532 = vector.broadcast %cst_319 : f32 to vector<8x4xf32>
    %533 = arith.mulf %531, %532 : vector<8x4xf32>
    %534 = vector.broadcast %59 : vector<8x1xf32> to vector<8x4xf32>
    %535 = arith.addf %533, %534 : vector<8x4xf32>
    %cst_320 = arith.constant dense<0xFF800000> : vector<4xf32>
    %536 = vector.multi_reduction <maximumf>, %535, %cst_320 [0] : vector<8x4xf32> to vector<4xf32>
    %537 = vector.shape_cast %536 : vector<4xf32> to vector<1x4xf32>
    %538 = vector.broadcast %537 : vector<1x4xf32> to vector<8x4xf32>
    %539 = arith.subf %535, %538 : vector<8x4xf32>
    %540 = math.exp %539 : vector<8x4xf32>
    %cst_321 = arith.constant dense<0.000000e+00> : vector<4xf32>
    %541 = vector.multi_reduction <add>, %540, %cst_321 [0] : vector<8x4xf32> to vector<4xf32>
    %542 = vector.shape_cast %541 : vector<4xf32> to vector<1x4xf32>
    %543 = vector.broadcast %542 : vector<1x4xf32> to vector<8x4xf32>
    %544 = arith.divf %540, %543 : vector<8x4xf32>
    %c0_322 = arith.constant 0 : index
    %c0_323 = arith.constant 0 : index
    %545 = vector.load %arg23[%c0_322, %c0_323] : memref<4x256xf32, #tpu.memory_space<vmem>>, vector<4x256xf32>
    %cst_324 = arith.constant dense<0.000000e+00> : vector<8x256xf32>
    %546 = tpu.matmul %544, %545, %cst_324 {dimension_numbers = #tpu.dot_dimension_numbers<[1], [0], [0], [1], [0, 0, 1, 1], [], []>} : vector<8x4xf32>, vector<4x256xf32>, vector<8x256xf32> -> vector<8x256xf32>
    %547 = arith.mulf %546, %527 : vector<8x256xf32>
    %cst_325 = arith.constant dense<0.000000e+00> : vector<256xf32>
    %548 = vector.multi_reduction <add>, %547, %cst_325 [0] : vector<8x256xf32> to vector<256xf32>
    %549 = vector.shape_cast %548 : vector<256xf32> to vector<1x256xf32>
    %550 = arith.truncf %549 : vector<1x256xf32> to vector<1x256xbf16>
    %c1_326 = arith.constant 1 : index
    %c0_327 = arith.constant 0 : index
    %c0_328 = arith.constant 0 : index
    %551 = vector.load %arg14[%c1_326, %c0_327, %c0_328] : memref<2x256x64xbf16, #tpu.memory_space<vmem>>, vector<1x256x64xbf16>
    %552 = vector.shape_cast %551 : vector<1x256x64xbf16> to vector<256x64xbf16>
    %cst_329 = arith.constant dense<0.000000e+00> : vector<1x64xf32>
    %553 = tpu.matmul %550, %552, %cst_329 {dimension_numbers = #tpu.dot_dimension_numbers<[1], [0], [0], [1], [0, 0, 1, 1], [], []>} : vector<1x256xbf16>, vector<256x64xbf16>, vector<1x64xf32> -> vector<1x64xf32>
    %c1_330 = arith.constant 1 : index
    %c0_331 = arith.constant 0 : index
    %c0_332 = arith.constant 0 : index
    %554 = vector.load %arg15[%c1_330, %c0_331, %c0_332] : memref<2x1x64xf32, #tpu.memory_space<vmem>>, vector<1x1x64xf32>
    %555 = vector.shape_cast %554 : vector<1x1x64xf32> to vector<1x64xf32>
    %556 = arith.addf %553, %555 : vector<1x64xf32>
    %557 = vector.broadcast %556 : vector<1x64xf32> to vector<8x64xf32>
    %558 = arith.addf %479, %557 : vector<8x64xf32>
    %c1_333 = arith.constant 1 : index
    %c0_334 = arith.constant 0 : index
    %c0_335 = arith.constant 0 : index
    %559 = vector.load %arg16[%c1_333, %c0_334, %c0_335] : memref<2x1x64xf32, #tpu.memory_space<vmem>>, vector<1x1x64xf32>
    %560 = vector.shape_cast %559 : vector<1x1x64xf32> to vector<1x64xf32>
    %c1_336 = arith.constant 1 : index
    %c0_337 = arith.constant 0 : index
    %c0_338 = arith.constant 0 : index
    %561 = vector.load %arg17[%c1_336, %c0_337, %c0_338] : memref<2x1x64xf32, #tpu.memory_space<vmem>>, vector<1x1x64xf32>
    %562 = vector.shape_cast %561 : vector<1x1x64xf32> to vector<1x64xf32>
    %cst_339 = arith.constant dense<0.000000e+00> : vector<8xf32>
    %563 = vector.multi_reduction <add>, %558, %cst_339 [1] : vector<8x64xf32> to vector<8xf32>
    %564 = vector.shape_cast %563 : vector<8xf32> to vector<8x1xf32>
    %cst_340 = arith.constant 6.400000e+01 : f32
    %565 = vector.broadcast %cst_340 : f32 to vector<8x1xf32>
    %566 = arith.divf %564, %565 : vector<8x1xf32>
    %567 = vector.broadcast %566 : vector<8x1xf32> to vector<8x64xf32>
    %568 = arith.subf %558, %567 : vector<8x64xf32>
    %569 = arith.mulf %568, %568 : vector<8x64xf32>
    %cst_341 = arith.constant dense<0.000000e+00> : vector<8xf32>
    %570 = vector.multi_reduction <add>, %569, %cst_341 [1] : vector<8x64xf32> to vector<8xf32>
    %571 = vector.shape_cast %570 : vector<8xf32> to vector<8x1xf32>
    %cst_342 = arith.constant 6.400000e+01 : f32
    %572 = vector.broadcast %cst_342 : f32 to vector<8x1xf32>
    %573 = arith.divf %571, %572 : vector<8x1xf32>
    %574 = vector.broadcast %566 : vector<8x1xf32> to vector<8x64xf32>
    %575 = arith.subf %558, %574 : vector<8x64xf32>
    %cst_343 = arith.constant 9.99999997E-7 : f32
    %576 = vector.broadcast %cst_343 : f32 to vector<8x1xf32>
    %577 = arith.addf %573, %576 : vector<8x1xf32>
    %578 = math.rsqrt %577 : vector<8x1xf32>
    %579 = vector.broadcast %578 : vector<8x1xf32> to vector<8x64xf32>
    %580 = arith.mulf %575, %579 : vector<8x64xf32>
    %581 = vector.broadcast %560 : vector<1x64xf32> to vector<8x64xf32>
    %582 = arith.mulf %580, %581 : vector<8x64xf32>
    %583 = vector.broadcast %562 : vector<1x64xf32> to vector<8x64xf32>
    %584 = arith.addf %582, %583 : vector<8x64xf32>
    %585 = arith.truncf %584 : vector<8x64xf32> to vector<8x64xbf16>
    %c1_344 = arith.constant 1 : index
    %c0_345 = arith.constant 0 : index
    %c0_346 = arith.constant 0 : index
    %586 = vector.load %arg18[%c1_344, %c0_345, %c0_346] : memref<2x64x32xbf16, #tpu.memory_space<vmem>>, vector<1x64x32xbf16>
    %587 = vector.shape_cast %586 : vector<1x64x32xbf16> to vector<64x32xbf16>
    %cst_347 = arith.constant dense<0.000000e+00> : vector<8x32xf32>
    %588 = tpu.matmul %585, %587, %cst_347 {dimension_numbers = #tpu.dot_dimension_numbers<[1], [0], [0], [1], [0, 0, 1, 1], [], []>} : vector<8x64xbf16>, vector<64x32xbf16>, vector<8x32xf32> -> vector<8x32xf32>
    %c1_348 = arith.constant 1 : index
    %c0_349 = arith.constant 0 : index
    %c0_350 = arith.constant 0 : index
    %589 = vector.load %arg19[%c1_348, %c0_349, %c0_350] : memref<2x1x32xf32, #tpu.memory_space<vmem>>, vector<1x1x32xf32>
    %590 = vector.shape_cast %589 : vector<1x1x32xf32> to vector<1x32xf32>
    %591 = vector.broadcast %590 : vector<1x32xf32> to vector<8x32xf32>
    %592 = arith.addf %588, %591 : vector<8x32xf32>
    %cst_351 = arith.constant 5.000000e-01 : f32
    %593 = vector.broadcast %cst_351 : f32 to vector<8x32xf32>
    %594 = arith.mulf %593, %592 : vector<8x32xf32>
    %cst_352 = arith.constant 4.471500e-02 : f32
    %595 = vector.broadcast %cst_352 : f32 to vector<8x32xf32>
    %596 = arith.mulf %595, %592 : vector<8x32xf32>
    %597 = arith.mulf %596, %592 : vector<8x32xf32>
    %598 = arith.mulf %597, %592 : vector<8x32xf32>
    %599 = arith.addf %592, %598 : vector<8x32xf32>
    %cst_353 = arith.constant 0.797884583 : f32
    %600 = vector.broadcast %cst_353 : f32 to vector<8x32xf32>
    %601 = arith.mulf %600, %599 : vector<8x32xf32>
    %602 = math.tanh %601 : vector<8x32xf32>
    %cst_354 = arith.constant 1.000000e+00 : f32
    %603 = vector.broadcast %cst_354 : f32 to vector<8x32xf32>
    %604 = arith.addf %603, %602 : vector<8x32xf32>
    %605 = arith.mulf %594, %604 : vector<8x32xf32>
    %606 = arith.truncf %605 : vector<8x32xf32> to vector<8x32xbf16>
    %c1_355 = arith.constant 1 : index
    %c0_356 = arith.constant 0 : index
    %c0_357 = arith.constant 0 : index
    %607 = vector.load %arg20[%c1_355, %c0_356, %c0_357] : memref<2x32x64xbf16, #tpu.memory_space<vmem>>, vector<1x32x64xbf16>
    %608 = vector.shape_cast %607 : vector<1x32x64xbf16> to vector<32x64xbf16>
    %cst_358 = arith.constant dense<0.000000e+00> : vector<8x64xf32>
    %609 = tpu.matmul %606, %608, %cst_358 {dimension_numbers = #tpu.dot_dimension_numbers<[1], [0], [0], [1], [0, 0, 1, 1], [], []>} : vector<8x32xbf16>, vector<32x64xbf16>, vector<8x64xf32> -> vector<8x64xf32>
    %c1_359 = arith.constant 1 : index
    %c0_360 = arith.constant 0 : index
    %c0_361 = arith.constant 0 : index
    %610 = vector.load %arg21[%c1_359, %c0_360, %c0_361] : memref<2x1x64xf32, #tpu.memory_space<vmem>>, vector<1x1x64xf32>
    %611 = vector.shape_cast %610 : vector<1x1x64xf32> to vector<1x64xf32>
    %612 = vector.broadcast %611 : vector<1x64xf32> to vector<8x64xf32>
    %613 = arith.addf %609, %612 : vector<8x64xf32>
    %614 = arith.addf %558, %613 : vector<8x64xf32>
    %615 = vector.extract_strided_slice %614 {offsets = [0, 0], sizes = [1, 64], strides = [1, 1]} : vector<8x64xf32> to vector<1x64xf32>
    %616 = arith.addf %337, %615 : vector<1x64xf32>
    %c0_362 = arith.constant 0 : index
    %c0_363 = arith.constant 0 : index
    %617 = vector.load %arg24[%c0_362, %c0_363] : memref<64x128xf32, #tpu.memory_space<vmem>>, vector<64x128xf32>
    %cst_364 = arith.constant dense<0.000000e+00> : vector<1x128xf32>
    %618 = tpu.matmul %616, %617, %cst_364 {dimension_numbers = #tpu.dot_dimension_numbers<[1], [0], [0], [1], [0, 0, 1, 1], [], []>} : vector<1x64xf32>, vector<64x128xf32>, vector<1x128xf32> -> vector<1x128xf32>
    %c0_365 = arith.constant 0 : index
    %c0_366 = arith.constant 0 : index
    %619 = vector.load %arg25[%c0_365, %c0_366] : memref<1x128xf32, #tpu.memory_space<vmem>>, vector<1x128xf32>
    %cst_367 = arith.constant 2.000000e+00 : f32
    %620 = vector.broadcast %cst_367 : f32 to vector<1x128xf32>
    %621 = arith.mulf %620, %619 : vector<1x128xf32>
    %622 = arith.addf %618, %621 : vector<1x128xf32>
    %623 = vector.shape_cast %622 : vector<1x128xf32> to vector<1x1x128xf32>
    %c0_368 = arith.constant 0 : index
    %c0_369 = arith.constant 0 : index
    %c0_370 = arith.constant 0 : index
    %624 = vector.load %arg26[%c0_368, %c0_369, %c0_370] : memref<1x1x128xf32, #tpu.memory_space<vmem>>, vector<1x1x128xf32>
    tpu.vector_store %arg26[%c0_368, %c0_369, %c0_370], %623 {strides = array<i32>} : memref<1x1x128xf32, #tpu.memory_space<vmem>>, vector<1x1x128xf32>,
    return
  }
  func.func @transform_0(%arg0: i32) -> (i32, i32, i32) {
    %c0_i32 = arith.constant 0 : i32
    %c0_i32_0 = arith.constant 0 : i32
    %c0_i32_1 = arith.constant 0 : i32
    return %arg0, %c0_i32, %c0_i32_0 : i32, i32, i32
  }
  func.func @transform_1(%arg0: i32) -> (i32, i32) {
    %c0_i32 = arith.constant 0 : i32
    %c0_i32_0 = arith.constant 0 : i32
    %c0_i32_1 = arith.constant 0 : i32
    return %c0_i32, %c0_i32_0 : i32, i32
  }
  func.func @transform_2(%arg0: i32) -> (i32, i32) {
    %c0_i32 = arith.constant 0 : i32
    %c0_i32_0 = arith.constant 0 : i32
    %c0_i32_1 = arith.constant 0 : i32
    return %c0_i32, %c0_i32_0 : i32, i32
  }
  func.func @transform_3(%arg0: i32) -> (i32, i32) {
    %c0_i32 = arith.constant 0 : i32
    %c0_i32_0 = arith.constant 0 : i32
    %c0_i32_1 = arith.constant 0 : i32
    return %c0_i32, %c0_i32_0 : i32, i32
  }
  func.func @transform_4(%arg0: i32) -> (i32, i32) {
    %c0_i32 = arith.constant 0 : i32
    %c0_i32_0 = arith.constant 0 : i32
    %c0_i32_1 = arith.constant 0 : i32
    return %c0_i32, %c0_i32_0 : i32, i32
  }
  func.func @transform_5(%arg0: i32) -> (i32, i32, i32) {
    %c0_i32 = arith.constant 0 : i32
    %c0_i32_0 = arith.constant 0 : i32
    %c0_i32_1 = arith.constant 0 : i32
    %c0_i32_2 = arith.constant 0 : i32
    return %c0_i32, %c0_i32_0, %c0_i32_1 : i32, i32, i32
  }
  func.func @transform_6(%arg0: i32) -> (i32, i32, i32) {
    %c0_i32 = arith.constant 0 : i32
    %c0_i32_0 = arith.constant 0 : i32
    %c0_i32_1 = arith.constant 0 : i32
    %c0_i32_2 = arith.constant 0 : i32
    return %c0_i32, %c0_i32_0, %c0_i32_1 : i32, i32, i32
  }
  func.func @transform_7(%arg0: i32) -> (i32, i32, i32) {
    %c0_i32 = arith.constant 0 : i32
    %c0_i32_0 = arith.constant 0 : i32
    %c0_i32_1 = arith.constant 0 : i32
    %c0_i32_2 = arith.constant 0 : i32
    return %c0_i32, %c0_i32_0, %c0_i32_1 : i32, i32, i32
  }
  func.func @transform_8(%arg0: i32) -> (i32, i32, i32) {
    %c0_i32 = arith.constant 0 : i32
    %c0_i32_0 = arith.constant 0 : i32
    %c0_i32_1 = arith.constant 0 : i32
    %c0_i32_2 = arith.constant 0 : i32
    return %c0_i32, %c0_i32_0, %c0_i32_1 : i32, i32, i32
  }
  func.func @transform_9(%arg0: i32) -> (i32, i32, i32) {
    %c0_i32 = arith.constant 0 : i32
    %c0_i32_0 = arith.constant 0 : i32
    %c0_i32_1 = arith.constant 0 : i32
    %c0_i32_2 = arith.constant 0 : i32
    return %c0_i32, %c0_i32_0, %c0_i32_1 : i32, i32, i32
  }
  func.func @transform_10(%arg0: i32) -> (i32, i32, i32) {
    %c0_i32 = arith.constant 0 : i32
    %c0_i32_0 = arith.constant 0 : i32
    %c0_i32_1 = arith.constant 0 : i32
    %c0_i32_2 = arith.constant 0 : i32
    return %c0_i32, %c0_i32_0, %c0_i32_1 : i32, i32, i32
  }
  func.func @transform_11(%arg0: i32) -> (i32, i32, i32) {
    %c0_i32 = arith.constant 0 : i32
    %c0_i32_0 = arith.constant 0 : i32
    %c0_i32_1 = arith.constant 0 : i32
    %c0_i32_2 = arith.constant 0 : i32
    return %c0_i32, %c0_i32_0, %c0_i32_1 : i32, i32, i32
  }
  func.func @transform_12(%arg0: i32) -> (i32, i32, i32) {
    %c0_i32 = arith.constant 0 : i32
    %c0_i32_0 = arith.constant 0 : i32
    %c0_i32_1 = arith.constant 0 : i32
    %c0_i32_2 = arith.constant 0 : i32
    return %c0_i32, %c0_i32_0, %c0_i32_1 : i32, i32, i32
  }
  func.func @transform_13(%arg0: i32) -> (i32, i32, i32) {
    %c0_i32 = arith.constant 0 : i32
    %c0_i32_0 = arith.constant 0 : i32
    %c0_i32_1 = arith.constant 0 : i32
    %c0_i32_2 = arith.constant 0 : i32
    return %c0_i32, %c0_i32_0, %c0_i32_1 : i32, i32, i32
  }
  func.func @transform_14(%arg0: i32) -> (i32, i32, i32) {
    %c0_i32 = arith.constant 0 : i32
    %c0_i32_0 = arith.constant 0 : i32
    %c0_i32_1 = arith.constant 0 : i32
    %c0_i32_2 = arith.constant 0 : i32
    return %c0_i32, %c0_i32_0, %c0_i32_1 : i32, i32, i32
  }
  func.func @transform_15(%arg0: i32) -> (i32, i32, i32) {
    %c0_i32 = arith.constant 0 : i32
    %c0_i32_0 = arith.constant 0 : i32
    %c0_i32_1 = arith.constant 0 : i32
    %c0_i32_2 = arith.constant 0 : i32
    return %c0_i32, %c0_i32_0, %c0_i32_1 : i32, i32, i32
  }
  func.func @transform_16(%arg0: i32) -> (i32, i32, i32) {
    %c0_i32 = arith.constant 0 : i32
    %c0_i32_0 = arith.constant 0 : i32
    %c0_i32_1 = arith.constant 0 : i32
    %c0_i32_2 = arith.constant 0 : i32
    return %c0_i32, %c0_i32_0, %c0_i32_1 : i32, i32, i32
  }
  func.func @transform_17(%arg0: i32) -> (i32, i32, i32) {
    %c0_i32 = arith.constant 0 : i32
    %c0_i32_0 = arith.constant 0 : i32
    %c0_i32_1 = arith.constant 0 : i32
    %c0_i32_2 = arith.constant 0 : i32
    return %c0_i32, %c0_i32_0, %c0_i32_1 : i32, i32, i32
  }
  func.func @transform_18(%arg0: i32) -> (i32, i32, i32) {
    %c0_i32 = arith.constant 0 : i32
    %c0_i32_0 = arith.constant 0 : i32
    %c0_i32_1 = arith.constant 0 : i32
    %c0_i32_2 = arith.constant 0 : i32
    return %c0_i32, %c0_i32_0, %c0_i32_1 : i32, i32, i32
  }
  func.func @transform_19(%arg0: i32) -> (i32, i32, i32) {
    %c0_i32 = arith.constant 0 : i32
    %c0_i32_0 = arith.constant 0 : i32
    %c0_i32_1 = arith.constant 0 : i32
    %c0_i32_2 = arith.constant 0 : i32
    return %c0_i32, %c0_i32_0, %c0_i32_1 : i32, i32, i32
  }
  func.func @transform_20(%arg0: i32) -> (i32, i32, i32) {
    %c0_i32 = arith.constant 0 : i32
    %c0_i32_0 = arith.constant 0 : i32
    %c0_i32_1 = arith.constant 0 : i32
    %c0_i32_2 = arith.constant 0 : i32
    return %c0_i32, %c0_i32_0, %c0_i32_1 : i32, i32, i32
  }
  func.func @transform_21(%arg0: i32) -> (i32, i32) {
    %c0_i32 = arith.constant 0 : i32
    %c0_i32_0 = arith.constant 0 : i32
    %c0_i32_1 = arith.constant 0 : i32
    return %c0_i32, %c0_i32_0 : i32, i32
  }
  func.func @transform_22(%arg0: i32) -> (i32, i32) {
    %c0_i32 = arith.constant 0 : i32
    %c0_i32_0 = arith.constant 0 : i32
    %c0_i32_1 = arith.constant 0 : i32
    return %c0_i32, %c0_i32_0 : i32, i32
  }
  func.func @transform_23(%arg0: i32) -> (i32, i32) {
    %c0_i32 = arith.constant 0 : i32
    %c0_i32_0 = arith.constant 0 : i32
    %c0_i32_1 = arith.constant 0 : i32
    return %c0_i32, %c0_i32_0 : i32, i32
  }
  func.func @transform_24(%arg0: i32) -> (i32, i32) {
    %c0_i32 = arith.constant 0 : i32
    %c0_i32_0 = arith.constant 0 : i32
    %c0_i32_1 = arith.constant 0 : i32
    return %c0_i32, %c0_i32_0 : i32, i32
  }
  func.func @transform_25(%arg0: i32) -> (i32, i32, i32) {
    %c0_i32 = arith.constant 0 : i32
    %c0_i32_0 = arith.constant 0 : i32
    %c0_i32_1 = arith.constant 0 : i32
    return %arg0, %c0_i32, %c0_i32_0 : i32, i32, i32
  }
}

</mosaic_0001>

<llo_original>
// kernel: lxnet_forward.2
$region0: #{lxnet_forward.2}
  #allocation0 [shape = 'u32[]', space=smem, size = 0x4, offset = 0x4, fixed_abs, tag = 'smem constant byte address 0x4 - core index']
  #allocation1 [shape = 'u32[144,128]{1,0:T(1,128)}', space=vmem, size = 0x12000, scoped, tag = 'internal scratch']
  #allocation2 [shape = 'f32[10,10,64]{2,1,0:T(8,128)}', space=vmem, size = 0x14000, scoped, tag = 'scratch operand']
  #allocation3 [shape = 'f32[10,10,16]{2,1,0:T(8,128)}', space=vmem, size = 0x14000, scoped, tag = 'scratch operand']
  %s0 = inlined_call_operand.vmem [shape: bf16[2,64,128], index: 0, kind: input, shape index: {}]
  %s1 = inlined_call_operand.vmem [shape: bf16[2,64,128], index: 1, kind: input, shape index: {}]
  %s2 = inlined_call_operand.vmem [shape: bf16[128,64], index: 2, kind: input, shape index: {}]
  %s3 = inlined_call_operand.vmem [shape: f32[1,64], index: 3, kind: input, shape index: {}]
  %s4 = inlined_call_operand.vmem [shape: f32[1,64], index: 4, kind: input, shape index: {}]
  %s5 = inlined_call_operand.vmem [shape: bf16[9,64,64], index: 5, kind: input, shape index: {}]
  %s6 = inlined_call_operand.vmem [shape: f32[1,64], index: 6, kind: input, shape index: {}]
  %s7 = inlined_call_operand.vmem [shape: f32[1,64], index: 7, kind: input, shape index: {}]
  %s8 = inlined_call_operand.vmem [shape: bf16[128,16], index: 8, kind: input, shape index: {}]
  %s9 = inlined_call_operand.vmem [shape: f32[1,16], index: 9, kind: input, shape index: {}]
  %s10 = inlined_call_operand.vmem [shape: f32[1,16], index: 10, kind: input, shape index: {}]
  %s11 = inlined_call_operand.vmem [shape: bf16[9,16,64], index: 11, kind: input, shape index: {}]
  %s12 = inlined_call_operand.vmem [shape: f32[1,64], index: 12, kind: input, shape index: {}]
  %s13 = inlined_call_operand.vmem [shape: f32[1,64], index: 13, kind: input, shape index: {}]
  %s14 = inlined_call_operand.vmem [shape: f32[64,128], index: 14, kind: input, shape index: {}]
  %s15 = inlined_call_operand.vmem [shape: f32[1,128], index: 15, kind: input, shape index: {}]
  %s16 = inlined_call_operand.vmem [shape: bf16[2,64,128], index: 16, kind: output, shape index: {0}]
  %s17 = inlined_call_operand.vmem [shape: f32[2,1,128], index: 17, kind: output, shape index: {1}]
  %18 = xla_tuple %s16, %s17
  %s19 = sld [smem:[#allocation0]]
  $region105: #{lxnet_forward.2} parent=0
    _
  %s21 = ssub.s32 1, %s19
  %s22 = scalar_select 0, %s21, %s19
  loop: start=0, step=1, limit=4
  $region2: #{lxnet_forward.2} parent=0 // loop_pre_header
    _
  $region3: #{lxnet_forward.2} parent=0 // loop_header
    %s24 = sphi 0, %s28
    %p25 = scmp.ge.s32.totalorder %s24, 4
    %s34 = sphi 0, %s36
    %s37 = sphi 0, %s34
    %s38 = sphi 0, %s37
    %s54 = sphi 0, %s38
    %s60 = sphi 0, %s62
    %s63 = sphi 0, %s60
    %s64 = sphi 0, %s63
    %s80 = sphi 0, %s64
    %s84 = sphi 0, %s84
    %s86 = sphi 0, %s84
    %s87 = sphi 0, %s86
    %s101 = sphi 0, %s87
    %s105 = sphi 0, %s105
    %s107 = sphi 0, %s105
    %s108 = sphi 0, %s107
    %s122 = sphi 0, %s108
    %s126 = sphi 0, %s126
    %s128 = sphi 0, %s126
    %s129 = sphi 0, %s128
    %s143 = sphi 0, %s129
    %s147 = sphi 0, %s147
    %s149 = sphi 0, %s147
    %s150 = sphi 0, %s149
    %s164 = sphi 0, %s150
    %s168 = sphi 0, %s168
    %s170 = sphi 0, %s168
    %s171 = sphi 0, %s170
    %s185 = sphi 0, %s171
    %s189 = sphi 0, %s189
    %s191 = sphi 0, %s189
    %s192 = sphi 0, %s191
    %s206 = sphi 0, %s192
    %s210 = sphi 0, %s210
    %s212 = sphi 0, %s210
    %s213 = sphi 0, %s212
    %s227 = sphi 0, %s213
    %s231 = sphi 0, %s231
    %s233 = sphi 0, %s231
    %s234 = sphi 0, %s233
    %s248 = sphi 0, %s234
    %s252 = sphi 0, %s252
    %s254 = sphi 0, %s252
    %s255 = sphi 0, %s254
    %s269 = sphi 0, %s255
    %s273 = sphi 0, %s273
    %s275 = sphi 0, %s273
    %s276 = sphi 0, %s275
    %s290 = sphi 0, %s276
    %s294 = sphi 0, %s294
    %s296 = sphi 0, %s294
    %s297 = sphi 0, %s296
    %s311 = sphi 0, %s297
    %s315 = sphi 0, %s315
    %s317 = sphi 0, %s315
    %s318 = sphi 0, %s317
    %s332 = sphi 0, %s318
    %s336 = sphi 0, %s336
    %s338 = sphi 0, %s336
    %s339 = sphi 0, %s338
    %s353 = sphi 0, %s339
    %s357 = sphi 0, %s357
    %s359 = sphi 0, %s357
    %s360 = sphi 0, %s359
    %s374 = sphi 0, %s360
    %s380 = sphi 0, %s382
    %s383 = sphi 0, %s380
    %s384 = sphi 0, %s383
    %s400 = sphi 0, %s384
    %s406 = sphi 0, %s408
    %s409 = sphi 0, %s406
    %s410 = sphi 0, %s409
    %s426 = sphi 0, %s410
  $region4: #{lxnet_forward.2} parent=0 // loop_header_branch
    %27 = sbr.rel (%p25) target = $region8
  $region5: #{lxnet_forward.2} parent=0 // loop_body
    %s29 = ssub.s32 %s24, 1
    %s30 = ssub.s32 %s24, 2
    %s31 = sadd.s32 %s24, 1
    %s32 = ssub.s32 %s24, %s31
    %p33 = scmp.eq.s32.totalorder %s32, 0
    %s35 = sadd.s32 %s34, 1
    %s36 = scalar_select %p33, %s34, %s35
    %p39 = pneg %p33
    %p40 = scmp.eq.s32.totalorder %s24, 1
    %p41 = por %p39, %p40
    %p42 = scmp.ne.s32.totalorder %s34, %s37
    %p43 = scmp.eq.s32.totalorder %s24, 0
    %p44 = por %p42, %p43
    %p45 = scmp.ne.s32.totalorder %s34, %s37
    %p46 = scmp.eq.s32.totalorder %s29, 1
    %p47 = por %p45, %p46
    %p48 = scmp.ne.s32.totalorder %s37, %s38
    %p49 = scmp.eq.s32.totalorder %s29, 0
    %p50 = por %p48, %p49
    %p51 = scmp.ne.s32.totalorder %s37, %s38
    %p52 = scmp.eq.s32.totalorder %s30, 1
    %p53 = por %p51, %p52
    %p55 = scmp.ne.s32.totalorder %s38, %s54
    %p56 = scmp.eq.s32.totalorder %s30, 0
    %p57 = por %p55, %p56
    %s58 = ssub.s32 %s24, %s31
    %p59 = scmp.eq.s32.totalorder %s58, 0
    %s61 = sadd.s32 %s60, 1
    %s62 = scalar_select %p59, %s60, %s61
    %p65 = pneg %p59
    %p66 = scmp.eq.s32.totalorder %s24, 1
    %p67 = por %p65, %p66
    %p68 = scmp.ne.s32.totalorder %s60, %s63
    %p69 = scmp.eq.s32.totalorder %s24, 0
    %p70 = por %p68, %p69
    %p71 = scmp.ne.s32.totalorder %s60, %s63
    %p72 = scmp.eq.s32.totalorder %s29, 1
    %p73 = por %p71, %p72
    %p74 = scmp.ne.s32.totalorder %s63, %s64
    %p75 = scmp.eq.s32.totalorder %s29, 0
    %p76 = por %p74, %p75
    %p77 = scmp.ne.s32.totalorder %s63, %s64
    %p78 = scmp.eq.s32.totalorder %s30, 1
    %p79 = por %p77, %p78
    %p81 = scmp.ne.s32.totalorder %s64, %s80
    %p82 = scmp.eq.s32.totalorder %s30, 0
    %p83 = por %p81, %p82
    %s85 = sadd.s32 %s84, 1
    %p88 = scmp.eq.s32.totalorder %s24, 1
    %p89 = scmp.ne.s32.totalorder %s84, %s86
    %p90 = scmp.eq.s32.totalorder %s24, 0
    %p91 = por %p89, %p90
    %p92 = scmp.ne.s32.totalorder %s84, %s86
    %p93 = scmp.eq.s32.totalorder %s29, 1
    %p94 = por %p92, %p93
    %p95 = scmp.ne.s32.totalorder %s86, %s87
    %p96 = scmp.eq.s32.totalorder %s29, 0
    %p97 = por %p95, %p96
    %p98 = scmp.ne.s32.totalorder %s86, %s87
    %p99 = scmp.eq.s32.totalorder %s30, 1
    %p100 = por %p98, %p99
    %p102 = scmp.ne.s32.totalorder %s87, %s101
    %p103 = scmp.eq.s32.totalorder %s30, 0
    %p104 = por %p102, %p103
    %s106 = sadd.s32 %s105, 1
    %p109 = scmp.eq.s32.totalorder %s24, 1
    %p110 = scmp.ne.s32.totalorder %s105, %s107
    %p111 = scmp.eq.s32.totalorder %s24, 0
    %p112 = por %p110, %p111
    %p113 = scmp.ne.s32.totalorder %s105, %s107
    %p114 = scmp.eq.s32.totalorder %s29, 1
    %p115 = por %p113, %p114
    %p116 = scmp.ne.s32.totalorder %s107, %s108
    %p117 = scmp.eq.s32.totalorder %s29, 0
    %p118 = por %p116, %p117
    %p119 = scmp.ne.s32.totalorder %s107, %s108
    %p120 = scmp.eq.s32.totalorder %s30, 1
    %p121 = por %p119, %p120
    %p123 = scmp.ne.s32.totalorder %s108, %s122
    %p124 = scmp.eq.s32.totalorder %s30, 0
    %p125 = por %p123, %p124
    %s127 = sadd.s32 %s126, 1
    %p130 = scmp.eq.s32.totalorder %s24, 1
    %p131 = scmp.ne.s32.totalorder %s126, %s128
    %p132 = scmp.eq.s32.totalorder %s24, 0
    %p133 = por %p131, %p132
    %p134 = scmp.ne.s32.totalorder %s126, %s128
    %p135 = scmp.eq.s32.totalorder %s29, 1
    %p136 = por %p134, %p135
    %p137 = scmp.ne.s32.totalorder %s128, %s129
    %p138 = scmp.eq.s32.totalorder %s29, 0
    %p139 = por %p137, %p138
    %p140 = scmp.ne.s32.totalorder %s128, %s129
    %p141 = scmp.eq.s32.totalorder %s30, 1
    %p142 = por %p140, %p141
    %p144 = scmp.ne.s32.totalorder %s129, %s143
    %p145 = scmp.eq.s32.totalorder %s30, 0
    %p146 = por %p144, %p145
    %s148 = sadd.s32 %s147, 1
    %p151 = scmp.eq.s32.totalorder %s24, 1
    %p152 = scmp.ne.s32.totalorder %s147, %s149
    %p153 = scmp.eq.s32.totalorder %s24, 0
    %p154 = por %p152, %p153
    %p155 = scmp.ne.s32.totalorder %s147, %s149
    %p156 = scmp.eq.s32.totalorder %s29, 1
    %p157 = por %p155, %p156
    %p158 = scmp.ne.s32.totalorder %s149, %s150
    %p159 = scmp.eq.s32.totalorder %s29, 0
    %p160 = por %p158, %p159
    %p161 = scmp.ne.s32.totalorder %s149, %s150
    %p162 = scmp.eq.s32.totalorder %s30, 1
    %p163 = por %p161, %p162
    %p165 = scmp.ne.s32.totalorder %s150, %s164
    %p166 = scmp.eq.s32.totalorder %s30, 0
    %p167 = por %p165, %p166
    %s169 = sadd.s32 %s168, 1
    %p172 = scmp.eq.s32.totalorder %s24, 1
    %p173 = scmp.ne.s32.totalorder %s168, %s170
    %p174 = scmp.eq.s32.totalorder %s24, 0
    %p175 = por %p173, %p174
    %p176 = scmp.ne.s32.totalorder %s168, %s170
    %p177 = scmp.eq.s32.totalorder %s29, 1
    %p178 = por %p176, %p177
    %p179 = scmp.ne.s32.totalorder %s170, %s171
    %p180 = scmp.eq.s32.totalorder %s29, 0
    %p181 = por %p179, %p180
    %p182 = scmp.ne.s32.totalorder %s170, %s171
    %p183 = scmp.eq.s32.totalorder %s30, 1
    %p184 = por %p182, %p183
    %p186 = scmp.ne.s32.totalorder %s171, %s185
    %p187 = scmp.eq.s32.totalorder %s30, 0
    %p188 = por %p186, %p187
    %s190 = sadd.s32 %s189, 1
    %p193 = scmp.eq.s32.totalorder %s24, 1
    %p194 = scmp.ne.s32.totalorder %s189, %s191
    %p195 = scmp.eq.s32.totalorder %s24, 0
    %p196 = por %p194, %p195
    %p197 = scmp.ne.s32.totalorder %s189, %s191
    %p198 = scmp.eq.s32.totalorder %s29, 1
    %p199 = por %p197, %p198
    %p200 = scmp.ne.s32.totalorder %s191, %s192
    %p201 = scmp.eq.s32.totalorder %s29, 0
    %p202 = por %p200, %p201
    %p203 = scmp.ne.s32.totalorder %s191, %s192
    %p204 = scmp.eq.s32.totalorder %s30, 1
    %p205 = por %p203, %p204
    %p207 = scmp.ne.s32.totalorder %s192, %s206
    %p208 = scmp.eq.s32.totalorder %s30, 0
    %p209 = por %p207, %p208
    %s211 = sadd.s32 %s210, 1
    %p214 = scmp.eq.s32.totalorder %s24, 1
    %p215 = scmp.ne.s32.totalorder %s210, %s212
    %p216 = scmp.eq.s32.totalorder %s24, 0
    %p217 = por %p215, %p216
    %p218 = scmp.ne.s32.totalorder %s210, %s212
    %p219 = scmp.eq.s32.totalorder %s29, 1
    %p220 = por %p218, %p219
    %p221 = scmp.ne.s32.totalorder %s212, %s213
    %p222 = scmp.eq.s32.totalorder %s29, 0
    %p223 = por %p221, %p222
    %p224 = scmp.ne.s32.totalorder %s212, %s213
    %p225 = scmp.eq.s32.totalorder %s30, 1
    %p226 = por %p224, %p225
    %p228 = scmp.ne.s32.totalorder %s213, %s227
    %p229 = scmp.eq.s32.totalorder %s30, 0
    %p230 = por %p228, %p229
    %s232 = sadd.s32 %s231, 1
    %p235 = scmp.eq.s32.totalorder %s24, 1
    %p236 = scmp.ne.s32.totalorder %s231, %s233
    %p237 = scmp.eq.s32.totalorder %s24, 0
    %p238 = por %p236, %p237
    %p239 = scmp.ne.s32.totalorder %s231, %s233
    %p240 = scmp.eq.s32.totalorder %s29, 1
    %p241 = por %p239, %p240
    %p242 = scmp.ne.s32.totalorder %s233, %s234
    %p243 = scmp.eq.s32.totalorder %s29, 0
    %p244 = por %p242, %p243
    %p245 = scmp.ne.s32.totalorder %s233, %s234
    %p246 = scmp.eq.s32.totalorder %s30, 1
    %p247 = por %p245, %p246
    %p249 = scmp.ne.s32.totalorder %s234, %s248
    %p250 = scmp.eq.s32.totalorder %s30, 0
    %p251 = por %p249, %p250
    %s253 = sadd.s32 %s252, 1
    %p256 = scmp.eq.s32.totalorder %s24, 1
    %p257 = scmp.ne.s32.totalorder %s252, %s254
    %p258 = scmp.eq.s32.totalorder %s24, 0
    %p259 = por %p257, %p258
    %p260 = scmp.ne.s32.totalorder %s252, %s254
    %p261 = scmp.eq.s32.totalorder %s29, 1
    %p262 = por %p260, %p261
    %p263 = scmp.ne.s32.totalorder %s254, %s255
    %p264 = scmp.eq.s32.totalorder %s29, 0
    %p265 = por %p263, %p264
    %p266 = scmp.ne.s32.totalorder %s254, %s255
    %p267 = scmp.eq.s32.totalorder %s30, 1
    %p268 = por %p266, %p267
    %p270 = scmp.ne.s32.totalorder %s255, %s269
    %p271 = scmp.eq.s32.totalorder %s30, 0
    %p272 = por %p270, %p271
    %s274 = sadd.s32 %s273, 1
    %p277 = scmp.eq.s32.totalorder %s24, 1
    %p278 = scmp.ne.s32.totalorder %s273, %s275
    %p279 = scmp.eq.s32.totalorder %s24, 0
    %p280 = por %p278, %p279
    %p281 = scmp.ne.s32.totalorder %s273, %s275
    %p282 = scmp.eq.s32.totalorder %s29, 1
    %p283 = por %p281, %p282
    %p284 = scmp.ne.s32.totalorder %s275, %s276
    %p285 = scmp.eq.s32.totalorder %s29, 0
    %p286 = por %p284, %p285
    %p287 = scmp.ne.s32.totalorder %s275, %s276
    %p288 = scmp.eq.s32.totalorder %s30, 1
    %p289 = por %p287, %p288
    %p291 = scmp.ne.s32.totalorder %s276, %s290
    %p292 = scmp.eq.s32.totalorder %s30, 0
    %p293 = por %p291, %p292
    %s295 = sadd.s32 %s294, 1
    %p298 = scmp.eq.s32.totalorder %s24, 1
    %p299 = scmp.ne.s32.totalorder %s294, %s296
    %p300 = scmp.eq.s32.totalorder %s24, 0
    %p301 = por %p299, %p300
    %p302 = scmp.ne.s32.totalorder %s294, %s296
    %p303 = scmp.eq.s32.totalorder %s29, 1
    %p304 = por %p302, %p303
    %p305 = scmp.ne.s32.totalorder %s296, %s297
    %p306 = scmp.eq.s32.totalorder %s29, 0
    %p307 = por %p305, %p306
    %p308 = scmp.ne.s32.totalorder %s296, %s297
    %p309 = scmp.eq.s32.totalorder %s30, 1
    %p310 = por %p308, %p309
    %p312 = scmp.ne.s32.totalorder %s297, %s311
    %p313 = scmp.eq.s32.totalorder %s30, 0
    %p314 = por %p312, %p313
    %s316 = sadd.s32 %s315, 1
    %p319 = scmp.eq.s32.totalorder %s24, 1
    %p320 = scmp.ne.s32.totalorder %s315, %s317
    %p321 = scmp.eq.s32.totalorder %s24, 0
    %p322 = por %p320, %p321
    %p323 = scmp.ne.s32.totalorder %s315, %s317
    %p324 = scmp.eq.s32.totalorder %s29, 1
    %p325 = por %p323, %p324
    %p326 = scmp.ne.s32.totalorder %s317, %s318
    %p327 = scmp.eq.s32.totalorder %s29, 0
    %p328 = por %p326, %p327
    %p329 = scmp.ne.s32.totalorder %s317, %s318
    %p330 = scmp.eq.s32.totalorder %s30, 1
    %p331 = por %p329, %p330
    %p333 = scmp.ne.s32.totalorder %s318, %s332
    %p334 = scmp.eq.s32.totalorder %s30, 0
    %p335 = por %p333, %p334
    %s337 = sadd.s32 %s336, 1
    %p340 = scmp.eq.s32.totalorder %s24, 1
    %p341 = scmp.ne.s32.totalorder %s336, %s338
    %p342 = scmp.eq.s32.totalorder %s24, 0
    %p343 = por %p341, %p342
    %p344 = scmp.ne.s32.totalorder %s336, %s338
    %p345 = scmp.eq.s32.totalorder %s29, 1
    %p346 = por %p344, %p345
    %p347 = scmp.ne.s32.totalorder %s338, %s339
    %p348 = scmp.eq.s32.totalorder %s29, 0
    %p349 = por %p347, %p348
    %p350 = scmp.ne.s32.totalorder %s338, %s339
    %p351 = scmp.eq.s32.totalorder %s30, 1
    %p352 = por %p350, %p351
    %p354 = scmp.ne.s32.totalorder %s339, %s353
    %p355 = scmp.eq.s32.totalorder %s30, 0
    %p356 = por %p354, %p355
    %s358 = sadd.s32 %s357, 1
    %p361 = scmp.eq.s32.totalorder %s24, 1
    %p362 = scmp.ne.s32.totalorder %s357, %s359
    %p363 = scmp.eq.s32.totalorder %s24, 0
    %p364 = por %p362, %p363
    %p365 = scmp.ne.s32.totalorder %s357, %s359
    %p366 = scmp.eq.s32.totalorder %s29, 1
    %p367 = por %p365, %p366
    %p368 = scmp.ne.s32.totalorder %s359, %s360
    %p369 = scmp.eq.s32.totalorder %s29, 0
    %p370 = por %p368, %p369
    %p371 = scmp.ne.s32.totalorder %s359, %s360
    %p372 = scmp.eq.s32.totalorder %s30, 1
    %p373 = por %p371, %p372
    %p375 = scmp.ne.s32.totalorder %s360, %s374
    %p376 = scmp.eq.s32.totalorder %s30, 0
    %p377 = por %p375, %p376
    %s378 = ssub.s32 %s24, %s31
    %p379 = scmp.eq.s32.totalorder %s378, 0
    %s381 = sadd.s32 %s380, 1
    %s382 = scalar_select %p379, %s380, %s381
    %p385 = pneg %p379
    %p386 = scmp.eq.s32.totalorder %s24, 1
    %p387 = por %p385, %p386
    %p388 = scmp.ne.s32.totalorder %s380, %s383
    %p389 = scmp.eq.s32.totalorder %s24, 0
    %p390 = por %p388, %p389
    %p391 = scmp.ne.s32.totalorder %s380, %s383
    %p392 = scmp.eq.s32.totalorder %s29, 1
    %p393 = por %p391, %p392
    %p394 = scmp.ne.s32.totalorder %s383, %s384
    %p395 = scmp.eq.s32.totalorder %s29, 0
    %p396 = por %p394, %p395
    %p397 = scmp.ne.s32.totalorder %s383, %s384
    %p398 = scmp.eq.s32.totalorder %s30, 1
    %p399 = por %p397, %p398
    %p401 = scmp.ne.s32.totalorder %s384, %s400
    %p402 = scmp.eq.s32.totalorder %s30, 0
    %p403 = por %p401, %p402
    %s404 = ssub.s32 %s24, %s31
    %p405 = scmp.eq.s32.totalorder %s404, 0
    %s407 = sadd.s32 %s406, 1
    %s408 = scalar_select %p405, %s406, %s407
    %p411 = pneg %p405
    %p412 = scmp.eq.s32.totalorder %s24, 1
    %p413 = por %p411, %p412
    %p414 = scmp.ne.s32.totalorder %s406, %s409
    %p415 = scmp.eq.s32.totalorder %s24, 0
    %p416 = por %p414, %p415
    %p417 = scmp.ne.s32.totalorder %s406, %s409
    %p418 = scmp.eq.s32.totalorder %s29, 1
    %p419 = por %p417, %p418
    %p420 = scmp.ne.s32.totalorder %s409, %s410
    %p421 = scmp.eq.s32.totalorder %s29, 0
    %p422 = por %p420, %p421
    %p423 = scmp.ne.s32.totalorder %s409, %s410
    %p424 = scmp.eq.s32.totalorder %s30, 1
    %p425 = por %p423, %p424
    %p427 = scmp.ne.s32.totalorder %s410, %s426
    %p428 = scmp.eq.s32.totalorder %s30, 0
    %p429 = por %p427, %p428
    %p430 = scmp.le.s32.totalorder 1, %s24
    %p431 = scmp.lt.s32.totalorder %s24, 3
    %p432 = pnand %p430, %p431
    %p433 = pneg %p432
    // Predicated region
    $region9: #{lxnet_forward.2} parent=5 // pred_check
      _
    $region10: #{lxnet_forward.2} parent=5 // pred_check_branch
      %435 = sbr.rel (%p432) target = $region12
    $region11: #{lxnet_forward.2} parent=5 // pred_region
      %s436 = ssub.s32 %s24, 1
      // Predicated region
      $region13: #{lxnet_forward.2} parent=11 // pred_check
        %p437 = pneg %p97
      $region14: #{lxnet_forward.2} parent=11 // pred_check_branch
        %439 = sbr.rel (%p437) target = $region16
      $region15: #{lxnet_forward.2} parent=11 // pred_region
        _
      $region16: #{lxnet_forward.2} parent=11 // pred_fallthru
        _
      // Predicated region
      $region17: #{lxnet_forward.2} parent=11 // pred_check
        %p440 = pneg %p118
      $region18: #{lxnet_forward.2} parent=11 // pred_check_branch
        %442 = sbr.rel (%p440) target = $region20
      $region19: #{lxnet_forward.2} parent=11 // pred_region
        _
      $region20: #{lxnet_forward.2} parent=11 // pred_fallthru
        _
      // Predicated region
      $region21: #{lxnet_forward.2} parent=11 // pred_check
        %p443 = pneg %p139
      $region22: #{lxnet_forward.2} parent=11 // pred_check_branch
        %445 = sbr.rel (%p443) target = $region24
      $region23: #{lxnet_forward.2} parent=11 // pred_region
        _
      $region24: #{lxnet_forward.2} parent=11 // pred_fallthru
        _
      // Predicated region
      $region25: #{lxnet_forward.2} parent=11 // pred_check
        %p446 = pneg %p160
      $region26: #{lxnet_forward.2} parent=11 // pred_check_branch
        %448 = sbr.rel (%p446) target = $region28
      $region27: #{lxnet_forward.2} parent=11 // pred_region
        _
      $region28: #{lxnet_forward.2} parent=11 // pred_fallthru
        _
      // Predicated region
      $region29: #{lxnet_forward.2} parent=11 // pred_check
        %p449 = pneg %p181
      $region30: #{lxnet_forward.2} parent=11 // pred_check_branch
        %451 = sbr.rel (%p449) target = $region32
      $region31: #{lxnet_forward.2} parent=11 // pred_region
        _
      $region32: #{lxnet_forward.2} parent=11 // pred_fallthru
        _
      // Predicated region
      $region33: #{lxnet_forward.2} parent=11 // pred_check
        %p452 = pneg %p202
      $region34: #{lxnet_forward.2} parent=11 // pred_check_branch
        %454 = sbr.rel (%p452) target = $region36
      $region35: #{lxnet_forward.2} parent=11 // pred_region
        _
      $region36: #{lxnet_forward.2} parent=11 // pred_fallthru
        _
      // Predicated region
      $region37: #{lxnet_forward.2} parent=11 // pred_check
        %p455 = pneg %p223
      $region38: #{lxnet_forward.2} parent=11 // pred_check_branch
        %457 = sbr.rel (%p455) target = $region40
      $region39: #{lxnet_forward.2} parent=11 // pred_region
        _
      $region40: #{lxnet_forward.2} parent=11 // pred_fallthru
        _
      // Predicated region
      $region41: #{lxnet_forward.2} parent=11 // pred_check
        %p458 = pneg %p244
      $region42: #{lxnet_forward.2} parent=11 // pred_check_branch
        %460 = sbr.rel (%p458) target = $region44
      $region43: #{lxnet_forward.2} parent=11 // pred_region
        _
      $region44: #{lxnet_forward.2} parent=11 // pred_fallthru
        _
      // Predicated region
      $region45: #{lxnet_forward.2} parent=11 // pred_check
        %p461 = pneg %p265
      $region46: #{lxnet_forward.2} parent=11 // pred_check_branch
        %463 = sbr.rel (%p461) target = $region48
      $region47: #{lxnet_forward.2} parent=11 // pred_region
        _
      $region48: #{lxnet_forward.2} parent=11 // pred_fallthru
        _
      // Predicated region
      $region49: #{lxnet_forward.2} parent=11 // pred_check
        %p464 = pneg %p286
      $region50: #{lxnet_forward.2} parent=11 // pred_check_branch
        %466 = sbr.rel (%p464) target = $region52
      $region51: #{lxnet_forward.2} parent=11 // pred_region
        _
      $region52: #{lxnet_forward.2} parent=11 // pred_fallthru
        _
      // Predicated region
      $region53: #{lxnet_forward.2} parent=11 // pred_check
        %p467 = pneg %p307
      $region54: #{lxnet_forward.2} parent=11 // pred_check_branch
        %469 = sbr.rel (%p467) target = $region56
      $region55: #{lxnet_forward.2} parent=11 // pred_region
        _
      $region56: #{lxnet_forward.2} parent=11 // pred_fallthru
        _
      // Predicated region
      $region57: #{lxnet_forward.2} parent=11 // pred_check
        %p470 = pneg %p328
      $region58: #{lxnet_forward.2} parent=11 // pred_check_branch
        %472 = sbr.rel (%p470) target = $region60
      $region59: #{lxnet_forward.2} parent=11 // pred_region
        _
      $region60: #{lxnet_forward.2} parent=11 // pred_fallthru
        _
      // Predicated region
      $region61: #{lxnet_forward.2} parent=11 // pred_check
        %p473 = pneg %p349
      $region62: #{lxnet_forward.2} parent=11 // pred_check_branch
        %475 = sbr.rel (%p473) target = $region64
      $region63: #{lxnet_forward.2} parent=11 // pred_region
        _
      $region64: #{lxnet_forward.2} parent=11 // pred_fallthru
        _
      // Predicated region
      $region65: #{lxnet_forward.2} parent=11 // pred_check
        %p476 = pneg %p370
      $region66: #{lxnet_forward.2} parent=11 // pred_check_branch
        %478 = sbr.rel (%p476) target = $region68
      $region67: #{lxnet_forward.2} parent=11 // pred_region
        _
      $region68: #{lxnet_forward.2} parent=11 // pred_fallthru
        _
    $region12: #{lxnet_forward.2} parent=5 // pred_fallthru
      _
    %p479 = scmp.lt.s32.totalorder %s24, 2
    // Predicated region
    $region69: #{lxnet_forward.2} parent=5 // pred_check
      %p480 = pneg %p479
    $region70: #{lxnet_forward.2} parent=5 // pred_check_branch
      %482 = sbr.rel (%p480) target = $region72
    $region71: #{lxnet_forward.2} parent=5 // pred_region
      // Predicated region
      $region73: #{lxnet_forward.2} parent=71 // pred_check
        %p483 = pneg %p44
      $region74: #{lxnet_forward.2} parent=71 // pred_check_branch
        %485 = sbr.rel (%p483) target = $region76
      $region75: #{lxnet_forward.2} parent=71 // pred_region
        %p486 = scmp.lt.s32.totalorder %s24, 1
        %s487 = scalar_select %p486, %s24, 1
        %s488 = smul.addr %s487, 8
        %s489 = smul.addr %s488, 4
        %s490 = scalar_lea.vmem %s0, %s489
      $region76: #{lxnet_forward.2} parent=71 // pred_fallthru
        _
      // Predicated region
      $region77: #{lxnet_forward.2} parent=71 // pred_check
        %p491 = pneg %p70
      $region78: #{lxnet_forward.2} parent=71 // pred_check_branch
        %493 = sbr.rel (%p491) target = $region80
      $region79: #{lxnet_forward.2} parent=71 // pred_region
        %p494 = scmp.lt.s32.totalorder %s24, 1
        %s495 = scalar_select %p494, %s24, 1
        %s496 = smul.addr %s495, 8
        %s497 = smul.addr %s496, 4
        %s498 = scalar_lea.vmem %s1, %s497
      $region80: #{lxnet_forward.2} parent=71 // pred_fallthru
        _
    $region72: #{lxnet_forward.2} parent=5 // pred_fallthru
      _
    %p499 = scmp.le.s32.totalorder 1, %s24
    %p500 = scmp.lt.s32.totalorder %s24, 3
    %p501 = pnand %p499, %p500
    %p502 = pneg %p501
    // Predicated region
    $region81: #{lxnet_forward.2} parent=5 // pred_check
      _
    $region82: #{lxnet_forward.2} parent=5 // pred_check_branch
      %504 = sbr.rel (%p501) target = $region84
    $region83: #{lxnet_forward.2} parent=5 // pred_region
      %s505 = ssub.s32 %s24, 1
      %p506 = scmp.lt.s32.totalorder %s29, 1
      %s507 = scalar_select %p506, %s29, 1
      %s508 = smul.addr %s507, 8
      %s509 = smul.addr %s508, 4
      %s510 = scalar_lea.vmem %s0, %s509
      %p511 = pneg %p50
      %p512 = pneg %p47
      %p513 = scmp.lt.s32.totalorder %s29, 1
      %s514 = scalar_select %p513, %s29, 1
      %s515 = smul.addr %s514, 8
      %s516 = smul.addr %s515, 4
      %s517 = scalar_lea.vmem %s1, %s516
      %p518 = pneg %p76
      %p519 = pneg %p73
      %p520 = pneg %p97
      %p521 = pneg %p94
      %p522 = pneg %p118
      %p523 = pneg %p115
      %p524 = pneg %p139
      %p525 = pneg %p136
      %p526 = pneg %p160
      %p527 = pneg %p157
      %p528 = pneg %p181
      %p529 = pneg %p178
      %p530 = pneg %p202
      %p531 = pneg %p199
      %p532 = pneg %p223
      %p533 = pneg %p220
      %p534 = pneg %p244
      %p535 = pneg %p241
      %p536 = pneg %p265
      %p537 = pneg %p262
      %p538 = pneg %p286
      %p539 = pneg %p283
      %p540 = pneg %p307
      %p541 = pneg %p304
      %p542 = pneg %p328
      %p543 = pneg %p325
      %p544 = pneg %p349
      %p545 = pneg %p346
      %p546 = pneg %p370
      %p547 = pneg %p367
      %p548 = pneg %p396
      %p549 = pneg %p393
      %p550 = scmp.lt.s32.totalorder %s29, 1
      %s551 = scalar_select %p550, %s29, 1
      %s552 = smul.addr %s551, 8
      %s553 = smul.addr %s552, 4
      %s554 = scalar_lea.vmem %s16, %s553
      %p555 = pneg %p422
      %p556 = pneg %p419
      %p557 = scmp.lt.s32.totalorder %s29, 1
      %s558 = scalar_select %p557, %s29, 1
      %s559 = scalar_lea.vmem %s17, %s558
      %p560 = scmp.lt.s32.totalorder %s29, 1
      %s561 = scalar_select %p560, %s29, 1
      %s562 = smul.addr %s561, 8
      %s563 = smul.addr %s562, 4
      %s564 = scalar_lea.vmem %s0, %s563
      %p565 = scmp.lt.s32.totalorder %s29, 1
      %s566 = scalar_select %p565, %s29, 1
      %s567 = smul.addr %s566, 8
      %s568 = smul.addr %s567, 4
      %s569 = scalar_lea.vmem %s1, %s568
      %p570 = scmp.lt.s32.totalorder %s29, 1
      %s571 = scalar_select %p570, %s29, 1
      %s572 = smul.addr %s571, 8
      %s573 = smul.addr %s572, 4
      %s574 = scalar_lea.vmem %s16, %s573
      %p575 = scmp.lt.s32.totalorder %s29, 1
      %s576 = scalar_select %p575, %s29, 1
      %s577 = scalar_lea.vmem %s17, %s576
      %v579 = vld [vmem:[%s564] sm:$0xf]
      %v580 = vld [vmem:[%s564 + $0x4] sm:$0xf]
      %v581 = vld [vmem:[%s564 + $0x8] sm:$0xf]
      %v582 = vld [vmem:[%s564 + $0xc] sm:$0xf]
      %v583 = vld [vmem:[%s564 + $0x10] sm:$0xf]
      %v584 = vld [vmem:[%s564 + $0x14] sm:$0xf]
      %v585 = vld [vmem:[%s564 + $0x18] sm:$0xf]
      %v586 = vld [vmem:[%s564 + $0x1c] sm:$0xf]
      %v587 = vld [vmem:[%s2] sm:$0xf]
      %v588 = vld [vmem:[%s2 + $0x4] sm:$0xf]
      %v589 = vld [vmem:[%s2 + $0x8] sm:$0xf]
      %v590 = vld [vmem:[%s2 + $0xc] sm:$0xf]
      %v591 = vld [vmem:[%s2 + $0x10] sm:$0xf]
      %v592 = vld [vmem:[%s2 + $0x14] sm:$0xf]
      %v593 = vld [vmem:[%s2 + $0x18] sm:$0xf]
      %v594 = vld [vmem:[%s2 + $0x1c] sm:$0xf]
      %v595 = vld [vmem:[%s2 + $0x20] sm:$0xf]
      %v596 = vld [vmem:[%s2 + $0x24] sm:$0xf]
      %v597 = vld [vmem:[%s2 + $0x28] sm:$0xf]
      %v598 = vld [vmem:[%s2 + $0x2c] sm:$0xf]
      %v599 = vld [vmem:[%s2 + $0x30] sm:$0xf]
      %v600 = vld [vmem:[%s2 + $0x34] sm:$0xf]
      %v601 = vld [vmem:[%s2 + $0x38] sm:$0xf]
      %v602 = vld [vmem:[%s2 + $0x3c] sm:$0xf]
      %v611 = vunpack.c.l.b16 %v579
      %v612 = vunpack.c.l.b16 %v580
      %v613 = vunpack.c.l.b16 %v581
      %v614 = vunpack.c.l.b16 %v582
      %v615 = vunpack.c.l.b16 %v583
      %v616 = vunpack.c.l.b16 %v584
      %v617 = vunpack.c.l.b16 %v585
      %v618 = vunpack.c.l.b16 %v586
      %v619 = vpack.c.b16 %v612, %v611
      %v620 = vpack.c.b16 %v614, %v613
      %v621 = vpack.c.b16 %v616, %v615
      %v622 = vpack.c.b16 %v618, %v617
      %v643 = vunpack.c.l.b16 %v587
      %v644 = vunpack.c.l.b16 %v588
      %v645 = vunpack.c.l.b16 %v589
      %v646 = vunpack.c.l.b16 %v590
      %v647 = vunpack.c.l.b16 %v591
      %v648 = vunpack.c.l.b16 %v592
      %v649 = vunpack.c.l.b16 %v593
      %v650 = vunpack.c.l.b16 %v594
      %v651 = vunpack.c.l.b16 %v595
      %v652 = vunpack.c.l.b16 %v596
      %v653 = vunpack.c.l.b16 %v597
      %v654 = vunpack.c.l.b16 %v598
      %v655 = vunpack.c.l.b16 %v599
      %v656 = vunpack.c.l.b16 %v600
      %v657 = vunpack.c.l.b16 %v601
      %v658 = vunpack.c.l.b16 %v602
      %v659 = vpack.c.b16 %v644, %v643
      %v660 = vpack.c.b16 %v646, %v645
      %v661 = vpack.c.b16 %v648, %v647
      %v662 = vpack.c.b16 %v650, %v649
      %v663 = vpack.c.b16 %v652, %v651
      %v664 = vpack.c.b16 %v654, %v653
      %v665 = vpack.c.b16 %v656, %v655
      %v666 = vpack.c.b16 %v658, %v657
      %675 = vmatprep.subr.bf16.mxu0 0
      %676 = vmatpush1.bf16.msra.mxu0 %v666
      %677 = vmatprep.subr.bf16.mxu0 0
      %678 = vmatpush1.bf16.msra.mxu0 %v665
      %679 = vmatprep.subr.bf16.mxu0 0
      %680 = vmatpush1.bf16.msra.mxu0 %v664
      %681 = vmatprep.subr.bf16.mxu0 0
      %682 = vmatpush1.bf16.msra.mxu0 %v663
      %683 = vmatprep.subr.bf16.mxu0 0
      %684 = vmatpush1.bf16.msra.mxu0 %v662
      %685 = vmatprep.subr.bf16.mxu0 0
      %686 = vmatpush1.bf16.msra.mxu0 %v661
      %687 = vmatprep.subr.bf16.mxu0 0
      %688 = vmatpush1.bf16.msra.mxu0 %v660
      %689 = vmatprep.subr.bf16.mxu0 0
      %690 = vmatpush1.bf16.msra.mxu0 %v659
      %691 = vmatprep.subr.bf16.mxu0 0
      %692 = vmatpush2.bf16.msra.mxu0 0
      %693 = vmatprep.subr.bf16.mxu0 0
      %694 = vmatpush2.bf16.msra.mxu0 0
      %695 = vmatprep.subr.bf16.mxu0 0
      %696 = vmatpush2.bf16.msra.mxu0 0
      %697 = vmatprep.subr.bf16.mxu0 0
      %698 = vmatpush2.bf16.msra.mxu0 0
      %699 = vmatprep.subr.bf16.mxu0 0
      %700 = vmatpush2.bf16.msra.mxu0 0
      %701 = vmatprep.subr.bf16.mxu0 0
      %702 = vmatpush2.bf16.msra.mxu0 0
      %703 = vmatprep.subr.bf16.mxu0 0
      %704 = vmatpush2.bf16.msra.mxu0 0
      %705 = vmatprep.subr.bf16.mxu0 0
      %706 = vmatpush2.bf16.msra.mxu0 0
      %707 = vmatprep.mubr.bf16.mxu0 0
      %708 = vmatmul.mubr.bf16.gmra.mxu0 %v619
      %v709 = vpop.f32.mrf.mxu0
      %v710 = vadd.f32 0.0, %v709
      %v711 = vpop.f32.mrf.mxu0
      %v712 = vpop.f32.mrf.mxu0
      %v713 = vadd.f32 0.0, %v712
      %v714 = vpop.f32.mrf.mxu0
      %715 = vmatprep.mubr.bf16.mxu0 0
      %716 = vmatmul.mubr.bf16.gmra.mxu0 %v620
      %v717 = vpop.f32.mrf.mxu0
      %v718 = vadd.f32 0.0, %v717
      %v719 = vpop.f32.mrf.mxu0
      %v720 = vpop.f32.mrf.mxu0
      %v721 = vadd.f32 0.0, %v720
      %v722 = vpop.f32.mrf.mxu0
      %723 = vmatprep.mubr.bf16.mxu0 0
      %724 = vmatmul.mubr.bf16.gmra.mxu0 %v621
      %v725 = vpop.f32.mrf.mxu0
      %v726 = vadd.f32 0.0, %v725
      %v727 = vpop.f32.mrf.mxu0
      %v728 = vpop.f32.mrf.mxu0
      %v729 = vadd.f32 0.0, %v728
      %v730 = vpop.f32.mrf.mxu0
      %731 = vmatprep.mubr.bf16.mxu0 0
      %732 = vmatmul.mubr.bf16.gmra.mxu0 %v622
      %v733 = vpop.f32.mrf.mxu0
      %v734 = vadd.f32 0.0, %v733
      %v735 = vpop.f32.mrf.mxu0
      %v736 = vpop.f32.mrf.mxu0
      %v737 = vadd.f32 0.0, %v736
      %v738 = vpop.f32.mrf.mxu0
      %739 = vdwg.mxu0
      %v740 = vld [vmem:[%s3] sm:$0x1]
      %v742 = vlaneseq
      %v743 = vshrl.u32 %v742, 7
      %v744 = vsub.s32 0, %v743
      %v745 = vrot.slane %v740, %v744
      %v747 = vmul.f32 %v710, %v745
      %v748 = vmul.f32 %v713, %v745
      %v749 = vmul.f32 %v718, %v745
      %v750 = vmul.f32 %v721, %v745
      %v751 = vmul.f32 %v726, %v745
      %v752 = vmul.f32 %v729, %v745
      %v753 = vmul.f32 %v734, %v745
      %v754 = vmul.f32 %v737, %v745
      %v755 = vld [vmem:[%s4] sm:$0x1]
      %v757 = vlaneseq
      %v758 = vshrl.u32 %v757, 7
      %v759 = vsub.s32 0, %v758
      %v760 = vrot.slane %v755, %v759
      %v762 = vadd.f32 %v747, %v760
      %v763 = vadd.f32 %v748, %v760
      %v764 = vadd.f32 %v749, %v760
      %v765 = vadd.f32 %v750, %v760
      %v766 = vadd.f32 %v751, %v760
      %v767 = vadd.f32 %v752, %v760
      %v768 = vadd.f32 %v753, %v760
      %v769 = vadd.f32 %v754, %v760
      %v770 = vmax.f32 %v762, 0.0
      %v771 = vmax.f32 %v763, 0.0
      %v772 = vmax.f32 %v764, 0.0
      %v773 = vmax.f32 %v765, 0.0
      %v774 = vmax.f32 %v766, 0.0
      %v775 = vmax.f32 %v767, 0.0
      %v776 = vmax.f32 %v768, 0.0
      %v777 = vmax.f32 %v769, 0.0
      %vm778 = vcmask 523264
      %779 = vst.msk [vmem:[#allocation2] sm:$0xff] %vm778, 0.0
      %vm780 = vcmask 517120
      %781 = vst.msk [vmem:[#allocation2 + $0x8] sm:$0x3] %vm780, 0.0
      %782 = vst.msk [vmem:[#allocation2 + $0x10] sm:$0xff] %vm778, 0.0
      %783 = vst.msk [vmem:[#allocation2 + $0x18] sm:$0x3] %vm780, 0.0
      %784 = vst.msk [vmem:[#allocation2 + $0x20] sm:$0xff] %vm778, 0.0
      %785 = vst.msk [vmem:[#allocation2 + $0x28] sm:$0x3] %vm780, 0.0
      %786 = vst.msk [vmem:[#allocation2 + $0x30] sm:$0xff] %vm778, 0.0
      %787 = vst.msk [vmem:[#allocation2 + $0x38] sm:$0x3] %vm780, 0.0
      %788 = vst.msk [vmem:[#allocation2 + $0x40] sm:$0xff] %vm778, 0.0
      %789 = vst.msk [vmem:[#allocation2 + $0x48] sm:$0x3] %vm780, 0.0
      %790 = vst.msk [vmem:[#allocation2 + $0x50] sm:$0xff] %vm778, 0.0
      %791 = vst.msk [vmem:[#allocation2 + $0x58] sm:$0x3] %vm780, 0.0
      %792 = vst.msk [vmem:[#allocation2 + $0x60] sm:$0xff] %vm778, 0.0
      %793 = vst.msk [vmem:[#allocation2 + $0x68] sm:$0x3] %vm780, 0.0
      %794 = vst.msk [vmem:[#allocation2 + $0x70] sm:$0xff] %vm778, 0.0
      %795 = vst.msk [vmem:[#allocation2 + $0x78] sm:$0x3] %vm780, 0.0
      %796 = vst.msk [vmem:[#allocation2 + $0x80] sm:$0xff] %vm778, 0.0
      %797 = vst.msk [vmem:[#allocation2 + $0x88] sm:$0x3] %vm780, 0.0
      %798 = vst.msk [vmem:[#allocation2 + $0x90] sm:$0xff] %vm778, 0.0
      %799 = vst.msk [vmem:[#allocation2 + $0x98] sm:$0x3] %vm780, 0.0
      %s800 = scalar_lea.vmem [#allocation2], 16
      %801 = vst.msk [vmem:[%s800 + $0x1] sm:$0xff] %vm778, %v770
      %802 = vst.msk [vmem:[%s800 + $0x11] sm:$0xff] %vm778, %v771
      %803 = vst.msk [vmem:[%s800 + $0x21] sm:$0xff] %vm778, %v772
      %804 = vst.msk [vmem:[%s800 + $0x31] sm:$0xff] %vm778, %v773
      %805 = vst.msk [vmem:[%s800 + $0x41] sm:$0xff] %vm778, %v774
      %806 = vst.msk [vmem:[%s800 + $0x51] sm:$0xff] %vm778, %v775
      %807 = vst.msk [vmem:[%s800 + $0x61] sm:$0xff] %vm778, %v776
      %808 = vst.msk [vmem:[%s800 + $0x71] sm:$0xff] %vm778, %v777
      %v809 = vld [vmem:[#allocation2] sm:$0xff]
      %v810 = vld [vmem:[#allocation2 + $0x10] sm:$0xff]
      %v811 = vld [vmem:[#allocation2 + $0x20] sm:$0xff]
      %v812 = vld [vmem:[#allocation2 + $0x30] sm:$0xff]
      %v813 = vld [vmem:[#allocation2 + $0x40] sm:$0xff]
      %v814 = vld [vmem:[#allocation2 + $0x50] sm:$0xff]
      %v815 = vld [vmem:[#allocation2 + $0x60] sm:$0xff]
      %v816 = vld [vmem:[#allocation2 + $0x70] sm:$0xff]
      %v817 = vpack.c.bf16 %v810, %v809
      %v818 = vpack.c.bf16 %v812, %v811
      %v819 = vpack.c.bf16 %v814, %v813
      %v820 = vpack.c.bf16 %v816, %v815
      %v821 = vld [vmem:[%s5] sm:$0xf]
      %v822 = vld [vmem:[%s5 + $0x4] sm:$0xf]
      %v823 = vld [vmem:[%s5 + $0x8] sm:$0xf]
      %v824 = vld [vmem:[%s5 + $0xc] sm:$0xf]
      %v825 = vld [vmem:[%s5 + $0x10] sm:$0xf]
      %v826 = vld [vmem:[%s5 + $0x14] sm:$0xf]
      %v827 = vld [vmem:[%s5 + $0x18] sm:$0xf]
      %v828 = vld [vmem:[%s5 + $0x1c] sm:$0xf]
      %v829 = vld [vmem:[#allocation2 + $0x1] sm:$0xff]
      %v830 = vld [vmem:[#allocation2 + $0x11] sm:$0xff]
      %v831 = vld [vmem:[#allocation2 + $0x21] sm:$0xff]
      %v832 = vld [vmem:[#allocation2 + $0x31] sm:$0xff]
      %v833 = vld [vmem:[#allocation2 + $0x41] sm:$0xff]
      %v834 = vld [vmem:[#allocation2 + $0x51] sm:$0xff]
      %v835 = vld [vmem:[#allocation2 + $0x61] sm:$0xff]
      %v836 = vld [vmem:[#allocation2 + $0x71] sm:$0xff]
      %v837 = vpack.c.bf16 %v830, %v829
      %v838 = vpack.c.bf16 %v832, %v831
      %v839 = vpack.c.bf16 %v834, %v833
      %v840 = vpack.c.bf16 %v836, %v835
      %s841 = scalar_lea.vmem %s5, 32
      %v842 = vld [vmem:[%s841] sm:$0xf]
      %v843 = vld [vmem:[%s841 + $0x4] sm:$0xf]
      %v844 = vld [vmem:[%s841 + $0x8] sm:$0xf]
      %v845 = vld [vmem:[%s841 + $0xc] sm:$0xf]
      %v846 = vld [vmem:[%s841 + $0x10] sm:$0xf]
      %v847 = vld [vmem:[%s841 + $0x14] sm:$0xf]
      %v848 = vld [vmem:[%s841 + $0x18] sm:$0xf]
      %v849 = vld [vmem:[%s841 + $0x1c] sm:$0xf]
      %v858 = vunpack.c.l.b16 %v842
      %v859 = vunpack.c.l.b16 %v843
      %v860 = vunpack.c.l.b16 %v844
      %v861 = vunpack.c.l.b16 %v845
      %v862 = vunpack.c.l.b16 %v846
      %v863 = vunpack.c.l.b16 %v847
      %v864 = vunpack.c.l.b16 %v848
      %v865 = vunpack.c.l.b16 %v849
      %v866 = vpack.c.b16 %v859, %v858
      %v867 = vpack.c.b16 %v861, %v860
      %v868 = vpack.c.b16 %v863, %v862
      %v869 = vpack.c.b16 %v865, %v864
      %v875 = vsel %vm778, %v837, 0
      %v878 = vsel %vm778, %v838, 0
      %v881 = vsel %vm778, %v839, 0
      %v884 = vsel %vm778, %v840, 0
      %886 = vmatprep.subr.bf16.mxu0 0
      %887 = vmatpush1.bf16.msra.mxu0 0
      %888 = vmatprep.subr.bf16.mxu0 0
      %889 = vmatpush1.bf16.msra.mxu0 0
      %890 = vmatprep.subr.bf16.mxu0 0
      %891 = vmatpush1.bf16.msra.mxu0 0
      %892 = vmatprep.subr.bf16.mxu0 0
      %893 = vmatpush1.bf16.msra.mxu0 0
      %894 = vmatprep.subr.bf16.mxu0 0
      %895 = vmatpush1.bf16.msra.mxu0 %v869
      %896 = vmatprep.subr.bf16.mxu0 0
      %897 = vmatpush1.bf16.msra.mxu0 %v868
      %898 = vmatprep.subr.bf16.mxu0 0
      %899 = vmatpush1.bf16.msra.mxu0 %v867
      %900 = vmatprep.subr.bf16.mxu0 0
      %901 = vmatpush1.bf16.msra.mxu0 %v866
      %902 = vmatprep.subr.bf16.mxu0 0
      %903 = vmatpush2.bf16.msra.mxu0 0
      %904 = vmatprep.subr.bf16.mxu0 0
      %905 = vmatpush2.bf16.msra.mxu0 0
      %906 = vmatprep.subr.bf16.mxu0 0
      %907 = vmatpush2.bf16.msra.mxu0 0
      %908 = vmatprep.subr.bf16.mxu0 0
      %909 = vmatpush2.bf16.msra.mxu0 0
      %910 = vmatprep.subr.bf16.mxu0 0
      %911 = vmatpush2.bf16.msra.mxu0 0
      %912 = vmatprep.subr.bf16.mxu0 0
      %913 = vmatpush2.bf16.msra.mxu0 0
      %914 = vmatprep.subr.bf16.mxu0 0
      %915 = vmatpush2.bf16.msra.mxu0 0
      %916 = vmatprep.subr.bf16.mxu0 0
      %917 = vmatpush2.bf16.msra.mxu0 0
      %918 = vmatprep.mubr.bf16.mxu0 0
      %919 = vmatmul.mubr.bf16.gmra.mxu0 %v875
      %v920 = vpop.f32.mrf.mxu0
      %v921 = vadd.f32 0.0, %v920
      %v922 = vpop.f32.mrf.mxu0
      %v923 = vpop.f32.mrf.mxu0
      %v924 = vadd.f32 0.0, %v923
      %v925 = vpop.f32.mrf.mxu0
      %926 = vmatprep.mubr.bf16.mxu0 0
      %927 = vmatmul.mubr.bf16.gmra.mxu0 %v878
      %v928 = vpop.f32.mrf.mxu0
      %v929 = vadd.f32 0.0, %v928
      %v930 = vpop.f32.mrf.mxu0
      %v931 = vpop.f32.mrf.mxu0
      %v932 = vadd.f32 0.0, %v931
      %v933 = vpop.f32.mrf.mxu0
      %934 = vmatprep.mubr.bf16.mxu0 0
      %935 = vmatmul.mubr.bf16.gmra.mxu0 %v881
      %v936 = vpop.f32.mrf.mxu0
      %v937 = vadd.f32 0.0, %v936
      %v938 = vpop.f32.mrf.mxu0
      %v939 = vpop.f32.mrf.mxu0
      %v940 = vadd.f32 0.0, %v939
      %v941 = vpop.f32.mrf.mxu0
      %942 = vmatprep.mubr.bf16.mxu0 0
      %943 = vmatmul.mubr.bf16.gmra.mxu0 %v884
      %v944 = vpop.f32.mrf.mxu0
      %v945 = vadd.f32 0.0, %v944
      %v946 = vpop.f32.mrf.mxu0
      %v947 = vpop.f32.mrf.mxu0
      %v948 = vadd.f32 0.0, %v947
      %v949 = vpop.f32.mrf.mxu0
      %950 = vdwg.mxu0
      %v959 = vunpack.c.l.b16 %v821
      %v960 = vunpack.c.l.b16 %v822
      %v961 = vunpack.c.l.b16 %v823
      %v962 = vunpack.c.l.b16 %v824
      %v963 = vunpack.c.l.b16 %v825
      %v964 = vunpack.c.l.b16 %v826
      %v965 = vunpack.c.l.b16 %v827
      %v966 = vunpack.c.l.b16 %v828
      %v967 = vpack.c.b16 %v960, %v959
      %v968 = vpack.c.b16 %v962, %v961
      %v969 = vpack.c.b16 %v964, %v963
      %v970 = vpack.c.b16 %v966, %v965
      %v976 = vsel %vm778, %v817, 0
      %v979 = vsel %vm778, %v818, 0
      %v982 = vsel %vm778, %v819, 0
      %v985 = vsel %vm778, %v820, 0
      %987 = vmatprep.subr.bf16.mxu0 0
      %988 = vmatpush1.bf16.msra.mxu0 0
      %989 = vmatprep.subr.bf16.mxu0 0
      %990 = vmatpush1.bf16.msra.mxu0 0
      %991 = vmatprep.subr.bf16.mxu0 0
      %992 = vmatpush1.bf16.msra.mxu0 0
      %993 = vmatprep.subr.bf16.mxu0 0
      %994 = vmatpush1.bf16.msra.mxu0 0
      %995 = vmatprep.subr.bf16.mxu0 0
      %996 = vmatpush1.bf16.msra.mxu0 %v970
      %997 = vmatprep.subr.bf16.mxu0 0
      %998 = vmatpush1.bf16.msra.mxu0 %v969
      %999 = vmatprep.subr.bf16.mxu0 0
      %1000 = vmatpush1.bf16.msra.mxu0 %v968
      %1001 = vmatprep.subr.bf16.mxu0 0
      %1002 = vmatpush1.bf16.msra.mxu0 %v967
      %1003 = vmatprep.subr.bf16.mxu0 0
      %1004 = vmatpush2.bf16.msra.mxu0 0
      %1005 = vmatprep.subr.bf16.mxu0 0
      %1006 = vmatpush2.bf16.msra.mxu0 0
      %1007 = vmatprep.subr.bf16.mxu0 0
      %1008 = vmatpush2.bf16.msra.mxu0 0
      %1009 = vmatprep.subr.bf16.mxu0 0
      %1010 = vmatpush2.bf16.msra.mxu0 0
      %1011 = vmatprep.subr.bf16.mxu0 0
      %1012 = vmatpush2.bf16.msra.mxu0 0
      %1013 = vmatprep.subr.bf16.mxu0 0
      %1014 = vmatpush2.bf16.msra.mxu0 0
      %1015 = vmatprep.subr.bf16.mxu0 0
      %1016 = vmatpush2.bf16.msra.mxu0 0
      %1017 = vmatprep.subr.bf16.mxu0 0
      %1018 = vmatpush2.bf16.msra.mxu0 0
      %1019 = vmatprep.mubr.bf16.mxu0 0
      %1020 = vmatmul.mubr.bf16.gmra.mxu0 %v976
      %v1021 = vpop.f32.mrf.mxu0
      %v1022 = vadd.f32 %v921, %v1021
      %v1023 = vpop.f32.mrf.mxu0
      %v1024 = vpop.f32.mrf.mxu0
      %v1025 = vadd.f32 %v924, %v1024
      %v1026 = vpop.f32.mrf.mxu0
      %1027 = vmatprep.mubr.bf16.mxu0 0
      %1028 = vmatmul.mubr.bf16.gmra.mxu0 %v979
      %v1029 = vpop.f32.mrf.mxu0
      %v1030 = vadd.f32 %v929, %v1029
      %v1031 = vpop.f32.mrf.mxu0
      %v1032 = vpop.f32.mrf.mxu0
      %v1033 = vadd.f32 %v932, %v1032
      %v1034 = vpop.f32.mrf.mxu0
      %1035 = vmatprep.mubr.bf16.mxu0 0
      %1036 = vmatmul.mubr.bf16.gmra.mxu0 %v982
      %v1037 = vpop.f32.mrf.mxu0
      %v1038 = vadd.f32 %v937, %v1037
      %v1039 = vpop.f32.mrf.mxu0
      %v1040 = vpop.f32.mrf.mxu0
      %v1041 = vadd.f32 %v940, %v1040
      %v1042 = vpop.f32.mrf.mxu0
      %1043 = vmatprep.mubr.bf16.mxu0 0
      %1044 = vmatmul.mubr.bf16.gmra.mxu0 %v985
      %v1045 = vpop.f32.mrf.mxu0
      %v1046 = vadd.f32 %v945, %v1045
      %v1047 = vpop.f32.mrf.mxu0
      %v1048 = vpop.f32.mrf.mxu0
      %v1049 = vadd.f32 %v948, %v1048
      %v1050 = vpop.f32.mrf.mxu0
      %1051 = vdwg.mxu0
      %v1052 = vld [vmem:[#allocation2 + $0x2] sm:$0xff]
      %v1053 = vld [vmem:[#allocation2 + $0x12] sm:$0xff]
      %v1054 = vld [vmem:[#allocation2 + $0x22] sm:$0xff]
      %v1055 = vld [vmem:[#allocation2 + $0x32] sm:$0xff]
      %v1056 = vld [vmem:[#allocation2 + $0x42] sm:$0xff]
      %v1057 = vld [vmem:[#allocation2 + $0x52] sm:$0xff]
      %v1058 = vld [vmem:[#allocation2 + $0x62] sm:$0xff]
      %v1059 = vld [vmem:[#allocation2 + $0x72] sm:$0xff]
      %v1060 = vpack.c.bf16 %v1053, %v1052
      %v1061 = vpack.c.bf16 %v1055, %v1054
      %v1062 = vpack.c.bf16 %v1057, %v1056
      %v1063 = vpack.c.bf16 %v1059, %v1058
      %s1064 = scalar_lea.vmem %s5, 64
      %v1065 = vld [vmem:[%s1064] sm:$0xf]
      %v1066 = vld [vmem:[%s1064 + $0x4] sm:$0xf]
      %v1067 = vld [vmem:[%s1064 + $0x8] sm:$0xf]
      %v1068 = vld [vmem:[%s1064 + $0xc] sm:$0xf]
      %v1069 = vld [vmem:[%s1064 + $0x10] sm:$0xf]
      %v1070 = vld [vmem:[%s1064 + $0x14] sm:$0xf]
      %v1071 = vld [vmem:[%s1064 + $0x18] sm:$0xf]
      %v1072 = vld [vmem:[%s1064 + $0x1c] sm:$0xf]
      %v1081 = vunpack.c.l.b16 %v1065
      %v1082 = vunpack.c.l.b16 %v1066
      %v1083 = vunpack.c.l.b16 %v1067
      %v1084 = vunpack.c.l.b16 %v1068
      %v1085 = vunpack.c.l.b16 %v1069
      %v1086 = vunpack.c.l.b16 %v1070
      %v1087 = vunpack.c.l.b16 %v1071
      %v1088 = vunpack.c.l.b16 %v1072
      %v1089 = vpack.c.b16 %v1082, %v1081
      %v1090 = vpack.c.b16 %v1084, %v1083
      %v1091 = vpack.c.b16 %v1086, %v1085
      %v1092 = vpack.c.b16 %v1088, %v1087
      %v1098 = vsel %vm778, %v1060, 0
      %v1101 = vsel %vm778, %v1061, 0
      %v1104 = vsel %vm778, %v1062, 0
      %v1107 = vsel %vm778, %v1063, 0
      %1109 = vmatprep.subr.bf16.mxu0 0
      %1110 = vmatpush1.bf16.msra.mxu0 0
      %1111 = vmatprep.subr.bf16.mxu0 0
      %1112 = vmatpush1.bf16.msra.mxu0 0
      %1113 = vmatprep.subr.bf16.mxu0 0
      %1114 = vmatpush1.bf16.msra.mxu0 0
      %1115 = vmatprep.subr.bf16.mxu0 0
      %1116 = vmatpush1.bf16.msra.mxu0 0
      %1117 = vmatprep.subr.bf16.mxu0 0
      %1118 = vmatpush1.bf16.msra.mxu0 %v1092
      %1119 = vmatprep.subr.bf16.mxu0 0
      %1120 = vmatpush1.bf16.msra.mxu0 %v1091
      %1121 = vmatprep.subr.bf16.mxu0 0
      %1122 = vmatpush1.bf16.msra.mxu0 %v1090
      %1123 = vmatprep.subr.bf16.mxu0 0
      %1124 = vmatpush1.bf16.msra.mxu0 %v1089
      %1125 = vmatprep.subr.bf16.mxu0 0
      %1126 = vmatpush2.bf16.msra.mxu0 0
      %1127 = vmatprep.subr.bf16.mxu0 0
      %1128 = vmatpush2.bf16.msra.mxu0 0
      %1129 = vmatprep.subr.bf16.mxu0 0
      %1130 = vmatpush2.bf16.msra.mxu0 0
      %1131 = vmatprep.subr.bf16.mxu0 0
      %1132 = vmatpush2.bf16.msra.mxu0 0
      %1133 = vmatprep.subr.bf16.mxu0 0
      %1134 = vmatpush2.bf16.msra.mxu0 0
      %1135 = vmatprep.subr.bf16.mxu0 0
      %1136 = vmatpush2.bf16.msra.mxu0 0
      %1137 = vmatprep.subr.bf16.mxu0 0
      %1138 = vmatpush2.bf16.msra.mxu0 0
      %1139 = vmatprep.subr.bf16.mxu0 0
      %1140 = vmatpush2.bf16.msra.mxu0 0
      %1141 = vmatprep.mubr.bf16.mxu0 0
      %1142 = vmatmul.mubr.bf16.gmra.mxu0 %v1098
      %v1143 = vpop.f32.mrf.mxu0
      %v1144 = vadd.f32 0.0, %v1143
      %v1145 = vpop.f32.mrf.mxu0
      %v1146 = vpop.f32.mrf.mxu0
      %v1147 = vadd.f32 0.0, %v1146
      %v1148 = vpop.f32.mrf.mxu0
      %1149 = vmatprep.mubr.bf16.mxu0 0
      %1150 = vmatmul.mubr.bf16.gmra.mxu0 %v1101
      %v1151 = vpop.f32.mrf.mxu0
      %v1152 = vadd.f32 0.0, %v1151
      %v1153 = vpop.f32.mrf.mxu0
      %v1154 = vpop.f32.mrf.mxu0
      %v1155 = vadd.f32 0.0, %v1154
      %v1156 = vpop.f32.mrf.mxu0
      %1157 = vmatprep.mubr.bf16.mxu0 0
      %1158 = vmatmul.mubr.bf16.gmra.mxu0 %v1104
      %v1159 = vpop.f32.mrf.mxu0
      %v1160 = vadd.f32 0.0, %v1159
      %v1161 = vpop.f32.mrf.mxu0
      %v1162 = vpop.f32.mrf.mxu0
      %v1163 = vadd.f32 0.0, %v1162
      %v1164 = vpop.f32.mrf.mxu0
      %1165 = vmatprep.mubr.bf16.mxu0 0
      %1166 = vmatmul.mubr.bf16.gmra.mxu0 %v1107
      %v1167 = vpop.f32.mrf.mxu0
      %v1168 = vadd.f32 0.0, %v1167
      %v1169 = vpop.f32.mrf.mxu0
      %v1170 = vpop.f32.mrf.mxu0
      %v1171 = vadd.f32 0.0, %v1170
      %v1172 = vpop.f32.mrf.mxu0
      %1173 = vdwg.mxu0
      %v1174 = vadd.f32 %v1022, %v1144
      %v1175 = vadd.f32 %v1025, %v1147
      %v1176 = vadd.f32 %v1030, %v1152
      %v1177 = vadd.f32 %v1033, %v1155
      %v1178 = vadd.f32 %v1038, %v1160
      %v1179 = vadd.f32 %v1041, %v1163
      %v1180 = vadd.f32 %v1046, %v1168
      %v1181 = vadd.f32 %v1049, %v1171
      %v1182 = vld [vmem:[%s800] sm:$0xff]
      %v1183 = vld [vmem:[%s800 + $0x10] sm:$0xff]
      %v1184 = vld [vmem:[%s800 + $0x20] sm:$0xff]
      %v1185 = vld [vmem:[%s800 + $0x30] sm:$0xff]
      %v1186 = vld [vmem:[%s800 + $0x40] sm:$0xff]
      %v1187 = vld [vmem:[%s800 + $0x50] sm:$0xff]
      %v1188 = vld [vmem:[%s800 + $0x60] sm:$0xff]
      %v1189 = vld [vmem:[%s800 + $0x70] sm:$0xff]
      %v1190 = vpack.c.bf16 %v1183, %v1182
      %v1191 = vpack.c.bf16 %v1185, %v1184
      %v1192 = vpack.c.bf16 %v1187, %v1186
      %v1193 = vpack.c.bf16 %v1189, %v1188
      %s1194 = scalar_lea.vmem %s5, 96
      %v1195 = vld [vmem:[%s1194] sm:$0xf]
      %v1196 = vld [vmem:[%s1194 + $0x4] sm:$0xf]
      %v1197 = vld [vmem:[%s1194 + $0x8] sm:$0xf]
      %v1198 = vld [vmem:[%s1194 + $0xc] sm:$0xf]
      %v1199 = vld [vmem:[%s1194 + $0x10] sm:$0xf]
      %v1200 = vld [vmem:[%s1194 + $0x14] sm:$0xf]
      %v1201 = vld [vmem:[%s1194 + $0x18] sm:$0xf]
      %v1202 = vld [vmem:[%s1194 + $0x1c] sm:$0xf]
      %v1211 = vunpack.c.l.b16 %v1195
      %v1212 = vunpack.c.l.b16 %v1196
      %v1213 = vunpack.c.l.b16 %v1197
      %v1214 = vunpack.c.l.b16 %v1198
      %v1215 = vunpack.c.l.b16 %v1199
      %v1216 = vunpack.c.l.b16 %v1200
      %v1217 = vunpack.c.l.b16 %v1201
      %v1218 = vunpack.c.l.b16 %v1202
      %v1219 = vpack.c.b16 %v1212, %v1211
      %v1220 = vpack.c.b16 %v1214, %v1213
      %v1221 = vpack.c.b16 %v1216, %v1215
      %v1222 = vpack.c.b16 %v1218, %v1217
      %v1228 = vsel %vm778, %v1190, 0
      %v1231 = vsel %vm778, %v1191, 0
      %v1234 = vsel %vm778, %v1192, 0
      %v1237 = vsel %vm778, %v1193, 0
      %1239 = vmatprep.subr.bf16.mxu0 0
      %1240 = vmatpush1.bf16.msra.mxu0 0
      %1241 = vmatprep.subr.bf16.mxu0 0
      %1242 = vmatpush1.bf16.msra.mxu0 0
      %1243 = vmatprep.subr.bf16.mxu0 0
      %1244 = vmatpush1.bf16.msra.mxu0 0
      %1245 = vmatprep.subr.bf16.mxu0 0
      %1246 = vmatpush1.bf16.msra.mxu0 0
      %1247 = vmatprep.subr.bf16.mxu0 0
      %1248 = vmatpush1.bf16.msra.mxu0 %v1222
      %1249 = vmatprep.subr.bf16.mxu0 0
      %1250 = vmatpush1.bf16.msra.mxu0 %v1221
      %1251 = vmatprep.subr.bf16.mxu0 0
      %1252 = vmatpush1.bf16.msra.mxu0 %v1220
      %1253 = vmatprep.subr.bf16.mxu0 0
      %1254 = vmatpush1.bf16.msra.mxu0 %v1219
      %1255 = vmatprep.subr.bf16.mxu0 0
      %1256 = vmatpush2.bf16.msra.mxu0 0
      %1257 = vmatprep.subr.bf16.mxu0 0
      %1258 = vmatpush2.bf16.msra.mxu0 0
      %1259 = vmatprep.subr.bf16.mxu0 0
      %1260 = vmatpush2.bf16.msra.mxu0 0
      %1261 = vmatprep.subr.bf16.mxu0 0
      %1262 = vmatpush2.bf16.msra.mxu0 0
      %1263 = vmatprep.subr.bf16.mxu0 0
      %1264 = vmatpush2.bf16.msra.mxu0 0
      %1265 = vmatprep.subr.bf16.mxu0 0
      %1266 = vmatpush2.bf16.msra.mxu0 0
      %1267 = vmatprep.subr.bf16.mxu0 0
      %1268 = vmatpush2.bf16.msra.mxu0 0
      %1269 = vmatprep.subr.bf16.mxu0 0
      %1270 = vmatpush2.bf16.msra.mxu0 0
      %1271 = vmatprep.mubr.bf16.mxu0 0
      %1272 = vmatmul.mubr.bf16.gmra.mxu0 %v1228
      %v1273 = vpop.f32.mrf.mxu0
      %v1274 = vadd.f32 0.0, %v1273
      %v1275 = vpop.f32.mrf.mxu0
      %v1276 = vpop.f32.mrf.mxu0
      %v1277 = vadd.f32 0.0, %v1276
      %v1278 = vpop.f32.mrf.mxu0
      %1279 = vmatprep.mubr.bf16.mxu0 0
      %1280 = vmatmul.mubr.bf16.gmra.mxu0 %v1231
      %v1281 = vpop.f32.mrf.mxu0
      %v1282 = vadd.f32 0.0, %v1281
      %v1283 = vpop.f32.mrf.mxu0
      %v1284 = vpop.f32.mrf.mxu0
      %v1285 = vadd.f32 0.0, %v1284
      %v1286 = vpop.f32.mrf.mxu0
      %1287 = vmatprep.mubr.bf16.mxu0 0
      %1288 = vmatmul.mubr.bf16.gmra.mxu0 %v1234
      %v1289 = vpop.f32.mrf.mxu0
      %v1290 = vadd.f32 0.0, %v1289
      %v1291 = vpop.f32.mrf.mxu0
      %v1292 = vpop.f32.mrf.mxu0
      %v1293 = vadd.f32 0.0, %v1292
      %v1294 = vpop.f32.mrf.mxu0
      %1295 = vmatprep.mubr.bf16.mxu0 0
      %1296 = vmatmul.mubr.bf16.gmra.mxu0 %v1237
      %v1297 = vpop.f32.mrf.mxu0
      %v1298 = vadd.f32 0.0, %v1297
      %v1299 = vpop.f32.mrf.mxu0
      %v1300 = vpop.f32.mrf.mxu0
      %v1301 = vadd.f32 0.0, %v1300
      %v1302 = vpop.f32.mrf.mxu0
      %1303 = vdwg.mxu0
      %v1304 = vadd.f32 %v1174, %v1274
      %v1305 = vadd.f32 %v1175, %v1277
      %v1306 = vadd.f32 %v1176, %v1282
      %v1307 = vadd.f32 %v1177, %v1285
      %v1308 = vadd.f32 %v1178, %v1290
      %v1309 = vadd.f32 %v1179, %v1293
      %v1310 = vadd.f32 %v1180, %v1298
      %v1311 = vadd.f32 %v1181, %v1301
      %v1312 = vld [vmem:[%s800 + $0x1] sm:$0xff]
      %v1313 = vld [vmem:[%s800 + $0x11] sm:$0xff]
      %v1314 = vld [vmem:[%s800 + $0x21] sm:$0xff]
      %v1315 = vld [vmem:[%s800 + $0x31] sm:$0xff]
      %v1316 = vld [vmem:[%s800 + $0x41] sm:$0xff]
      %v1317 = vld [vmem:[%s800 + $0x51] sm:$0xff]
      %v1318 = vld [vmem:[%s800 + $0x61] sm:$0xff]
      %v1319 = vld [vmem:[%s800 + $0x71] sm:$0xff]
      %v1320 = vpack.c.bf16 %v1313, %v1312
      %v1321 = vpack.c.bf16 %v1315, %v1314
      %v1322 = vpack.c.bf16 %v1317, %v1316
      %v1323 = vpack.c.bf16 %v1319, %v1318
      %s1324 = scalar_lea.vmem %s5, 128
      %v1325 = vld [vmem:[%s1324] sm:$0xf]
      %v1326 = vld [vmem:[%s1324 + $0x4] sm:$0xf]
      %v1327 = vld [vmem:[%s1324 + $0x8] sm:$0xf]
      %v1328 = vld [vmem:[%s1324 + $0xc] sm:$0xf]
      %v1329 = vld [vmem:[%s1324 + $0x10] sm:$0xf]
      %v1330 = vld [vmem:[%s1324 + $0x14] sm:$0xf]
      %v1331 = vld [vmem:[%s1324 + $0x18] sm:$0xf]
      %v1332 = vld [vmem:[%s1324 + $0x1c] sm:$0xf]
      %v1341 = vunpack.c.l.b16 %v1325
      %v1342 = vunpack.c.l.b16 %v1326
      %v1343 = vunpack.c.l.b16 %v1327
      %v1344 = vunpack.c.l.b16 %v1328
      %v1345 = vunpack.c.l.b16 %v1329
      %v1346 = vunpack.c.l.b16 %v1330
      %v1347 = vunpack.c.l.b16 %v1331
      %v1348 = vunpack.c.l.b16 %v1332
      %v1349 = vpack.c.b16 %v1342, %v1341
      %v1350 = vpack.c.b16 %v1344, %v1343
      %v1351 = vpack.c.b16 %v1346, %v1345
      %v1352 = vpack.c.b16 %v1348, %v1347
      %v1358 = vsel %vm778, %v1320, 0
      %v1361 = vsel %vm778, %v1321, 0
      %v1364 = vsel %vm778, %v1322, 0
      %v1367 = vsel %vm778, %v1323, 0
      %1369 = vmatprep.subr.bf16.mxu0 0
      %1370 = vmatpush1.bf16.msra.mxu0 0
      %1371 = vmatprep.subr.bf16.mxu0 0
      %1372 = vmatpush1.bf16.msra.mxu0 0
      %1373 = vmatprep.subr.bf16.mxu0 0
      %1374 = vmatpush1.bf16.msra.mxu0 0
      %1375 = vmatprep.subr.bf16.mxu0 0
      %1376 = vmatpush1.bf16.msra.mxu0 0
      %1377 = vmatprep.subr.bf16.mxu0 0
      %1378 = vmatpush1.bf16.msra.mxu0 %v1352
      %1379 = vmatprep.subr.bf16.mxu0 0
      %1380 = vmatpush1.bf16.msra.mxu0 %v1351
      %1381 = vmatprep.subr.bf16.mxu0 0
      %1382 = vmatpush1.bf16.msra.mxu0 %v1350
      %1383 = vmatprep.subr.bf16.mxu0 0
      %1384 = vmatpush1.bf16.msra.mxu0 %v1349
      %1385 = vmatprep.subr.bf16.mxu0 0
      %1386 = vmatpush2.bf16.msra.mxu0 0
      %1387 = vmatprep.subr.bf16.mxu0 0
      %1388 = vmatpush2.bf16.msra.mxu0 0
      %1389 = vmatprep.subr.bf16.mxu0 0
      %1390 = vmatpush2.bf16.msra.mxu0 0
      %1391 = vmatprep.subr.bf16.mxu0 0
      %1392 = vmatpush2.bf16.msra.mxu0 0
      %1393 = vmatprep.subr.bf16.mxu0 0
      %1394 = vmatpush2.bf16.msra.mxu0 0
      %1395 = vmatprep.subr.bf16.mxu0 0
      %1396 = vmatpush2.bf16.msra.mxu0 0
      %1397 = vmatprep.subr.bf16.mxu0 0
      %1398 = vmatpush2.bf16.msra.mxu0 0
      %1399 = vmatprep.subr.bf16.mxu0 0
      %1400 = vmatpush2.bf16.msra.mxu0 0
      %1401 = vmatprep.mubr.bf16.mxu0 0
      %1402 = vmatmul.mubr.bf16.gmra.mxu0 %v1358
      %v1403 = vpop.f32.mrf.mxu0
      %v1404 = vadd.f32 0.0, %v1403
      %v1405 = vpop.f32.mrf.mxu0
      %v1406 = vpop.f32.mrf.mxu0
      %v1407 = vadd.f32 0.0, %v1406
      %v1408 = vpop.f32.mrf.mxu0
      %1409 = vmatprep.mubr.bf16.mxu0 0
      %1410 = vmatmul.mubr.bf16.gmra.mxu0 %v1361
      %v1411 = vpop.f32.mrf.mxu0
      %v1412 = vadd.f32 0.0, %v1411
      %v1413 = vpop.f32.mrf.mxu0
      %v1414 = vpop.f32.mrf.mxu0
      %v1415 = vadd.f32 0.0, %v1414
      %v1416 = vpop.f32.mrf.mxu0
      %1417 = vmatprep.mubr.bf16.mxu0 0
      %1418 = vmatmul.mubr.bf16.gmra.mxu0 %v1364
      %v1419 = vpop.f32.mrf.mxu0
      %v1420 = vadd.f32 0.0, %v1419
      %v1421 = vpop.f32.mrf.mxu0
      %v1422 = vpop.f32.mrf.mxu0
      %v1423 = vadd.f32 0.0, %v1422
      %v1424 = vpop.f32.mrf.mxu0
      %1425 = vmatprep.mubr.bf16.mxu0 0
      %1426 = vmatmul.mubr.bf16.gmra.mxu0 %v1367
      %v1427 = vpop.f32.mrf.mxu0
      %v1428 = vadd.f32 0.0, %v1427
      %v1429 = vpop.f32.mrf.mxu0
      %v1430 = vpop.f32.mrf.mxu0
      %v1431 = vadd.f32 0.0, %v1430
      %v1432 = vpop.f32.mrf.mxu0
      %1433 = vdwg.mxu0
      %v1434 = vadd.f32 %v1304, %v1404
      %v1435 = vadd.f32 %v1305, %v1407
      %v1436 = vadd.f32 %v1306, %v1412
      %v1437 = vadd.f32 %v1307, %v1415
      %v1438 = vadd.f32 %v1308, %v1420
      %v1439 = vadd.f32 %v1309, %v1423
      %v1440 = vadd.f32 %v1310, %v1428
      %v1441 = vadd.f32 %v1311, %v1431
      %v1442 = vld [vmem:[%s800 + $0x2] sm:$0xff]
      %v1443 = vld [vmem:[%s800 + $0x12] sm:$0xff]
      %v1444 = vld [vmem:[%s800 + $0x22] sm:$0xff]
      %v1445 = vld [vmem:[%s800 + $0x32] sm:$0xff]
      %v1446 = vld [vmem:[%s800 + $0x42] sm:$0xff]
      %v1447 = vld [vmem:[%s800 + $0x52] sm:$0xff]
      %v1448 = vld [vmem:[%s800 + $0x62] sm:$0xff]
      %v1449 = vld [vmem:[%s800 + $0x72] sm:$0xff]
      %v1450 = vpack.c.bf16 %v1443, %v1442
      %v1451 = vpack.c.bf16 %v1445, %v1444
      %v1452 = vpack.c.bf16 %v1447, %v1446
      %v1453 = vpack.c.bf16 %v1449, %v1448
      %s1454 = scalar_lea.vmem %s5, 160
      %v1455 = vld [vmem:[%s1454] sm:$0xf]
      %v1456 = vld [vmem:[%s1454 + $0x4] sm:$0xf]
      %v1457 = vld [vmem:[%s1454 + $0x8] sm:$0xf]
      %v1458 = vld [vmem:[%s1454 + $0xc] sm:$0xf]
      %v1459 = vld [vmem:[%s1454 + $0x10] sm:$0xf]
      %v1460 = vld [vmem:[%s1454 + $0x14] sm:$0xf]
      %v1461 = vld [vmem:[%s1454 + $0x18] sm:$0xf]
      %v1462 = vld [vmem:[%s1454 + $0x1c] sm:$0xf]
      %v1471 = vunpack.c.l.b16 %v1455
      %v1472 = vunpack.c.l.b16 %v1456
      %v1473 = vunpack.c.l.b16 %v1457
      %v1474 = vunpack.c.l.b16 %v1458
      %v1475 = vunpack.c.l.b16 %v1459
      %v1476 = vunpack.c.l.b16 %v1460
      %v1477 = vunpack.c.l.b16 %v1461
      %v1478 = vunpack.c.l.b16 %v1462
      %v1479 = vpack.c.b16 %v1472, %v1471
      %v1480 = vpack.c.b16 %v1474, %v1473
      %v1481 = vpack.c.b16 %v1476, %v1475
      %v1482 = vpack.c.b16 %v1478, %v1477
      %v1488 = vsel %vm778, %v1450, 0
      %v1491 = vsel %vm778, %v1451, 0
      %v1494 = vsel %vm778, %v1452, 0
      %v1497 = vsel %vm778, %v1453, 0
      %1499 = vmatprep.subr.bf16.mxu0 0
      %1500 = vmatpush1.bf16.msra.mxu0 0
      %1501 = vmatprep.subr.bf16.mxu0 0
      %1502 = vmatpush1.bf16.msra.mxu0 0
      %1503 = vmatprep.subr.bf16.mxu0 0
      %1504 = vmatpush1.bf16.msra.mxu0 0
      %1505 = vmatprep.subr.bf16.mxu0 0
      %1506 = vmatpush1.bf16.msra.mxu0 0
      %1507 = vmatprep.subr.bf16.mxu0 0
      %1508 = vmatpush1.bf16.msra.mxu0 %v1482
      %1509 = vmatprep.subr.bf16.mxu0 0
      %1510 = vmatpush1.bf16.msra.mxu0 %v1481
      %1511 = vmatprep.subr.bf16.mxu0 0
      %1512 = vmatpush1.bf16.msra.mxu0 %v1480
      %1513 = vmatprep.subr.bf16.mxu0 0
      %1514 = vmatpush1.bf16.msra.mxu0 %v1479
      %1515 = vmatprep.subr.bf16.mxu0 0
      %1516 = vmatpush2.bf16.msra.mxu0 0
      %1517 = vmatprep.subr.bf16.mxu0 0
      %1518 = vmatpush2.bf16.msra.mxu0 0
      %1519 = vmatprep.subr.bf16.mxu0 0
      %1520 = vmatpush2.bf16.msra.mxu0 0
      %1521 = vmatprep.subr.bf16.mxu0 0
      %1522 = vmatpush2.bf16.msra.mxu0 0
      %1523 = vmatprep.subr.bf16.mxu0 0
      %1524 = vmatpush2.bf16.msra.mxu0 0
      %1525 = vmatprep.subr.bf16.mxu0 0
      %1526 = vmatpush2.bf16.msra.mxu0 0
      %1527 = vmatprep.subr.bf16.mxu0 0
      %1528 = vmatpush2.bf16.msra.mxu0 0
      %1529 = vmatprep.subr.bf16.mxu0 0
      %1530 = vmatpush2.bf16.msra.mxu0 0
      %1531 = vmatprep.mubr.bf16.mxu0 0
      %1532 = vmatmul.mubr.bf16.gmra.mxu0 %v1488
      %v1533 = vpop.f32.mrf.mxu0
      %v1534 = vadd.f32 0.0, %v1533
      %v1535 = vpop.f32.mrf.mxu0
      %v1536 = vpop.f32.mrf.mxu0
      %v1537 = vadd.f32 0.0, %v1536
      %v1538 = vpop.f32.mrf.mxu0
      %1539 = vmatprep.mubr.bf16.mxu0 0
      %1540 = vmatmul.mubr.bf16.gmra.mxu0 %v1491
      %v1541 = vpop.f32.mrf.mxu0
      %v1542 = vadd.f32 0.0, %v1541
      %v1543 = vpop.f32.mrf.mxu0
      %v1544 = vpop.f32.mrf.mxu0
      %v1545 = vadd.f32 0.0, %v1544
      %v1546 = vpop.f32.mrf.mxu0
      %1547 = vmatprep.mubr.bf16.mxu0 0
      %1548 = vmatmul.mubr.bf16.gmra.mxu0 %v1494
      %v1549 = vpop.f32.mrf.mxu0
      %v1550 = vadd.f32 0.0, %v1549
      %v1551 = vpop.f32.mrf.mxu0
      %v1552 = vpop.f32.mrf.mxu0
      %v1553 = vadd.f32 0.0, %v1552
      %v1554 = vpop.f32.mrf.mxu0
      %1555 = vmatprep.mubr.bf16.mxu0 0
      %1556 = vmatmul.mubr.bf16.gmra.mxu0 %v1497
      %v1557 = vpop.f32.mrf.mxu0
      %v1558 = vadd.f32 0.0, %v1557
      %v1559 = vpop.f32.mrf.mxu0
      %v1560 = vpop.f32.mrf.mxu0
      %v1561 = vadd.f32 0.0, %v1560
      %v1562 = vpop.f32.mrf.mxu0
      %1563 = vdwg.mxu0
      %v1564 = vadd.f32 %v1434, %v1534
      %v1565 = vadd.f32 %v1435, %v1537
      %v1566 = vadd.f32 %v1436, %v1542
      %v1567 = vadd.f32 %v1437, %v1545
      %v1568 = vadd.f32 %v1438, %v1550
      %v1569 = vadd.f32 %v1439, %v1553
      %v1570 = vadd.f32 %v1440, %v1558
      %v1571 = vadd.f32 %v1441, %v1561
      %s1572 = scalar_lea.vmem [#allocation2], 32
      %v1573 = vld [vmem:[%s1572] sm:$0xff]
      %v1574 = vld [vmem:[%s1572 + $0x10] sm:$0xff]
      %v1575 = vld [vmem:[%s1572 + $0x20] sm:$0xff]
      %v1576 = vld [vmem:[%s1572 + $0x30] sm:$0xff]
      %v1577 = vld [vmem:[%s1572 + $0x40] sm:$0xff]
      %v1578 = vld [vmem:[%s1572 + $0x50] sm:$0xff]
      %v1579 = vld [vmem:[%s1572 + $0x60] sm:$0xff]
      %v1580 = vld [vmem:[%s1572 + $0x70] sm:$0xff]
      %v1581 = vpack.c.bf16 %v1574, %v1573
      %v1582 = vpack.c.bf16 %v1576, %v1575
      %v1583 = vpack.c.bf16 %v1578, %v1577
      %v1584 = vpack.c.bf16 %v1580, %v1579
      %s1585 = scalar_lea.vmem %s5, 192
      %v1586 = vld [vmem:[%s1585] sm:$0xf]
      %v1587 = vld [vmem:[%s1585 + $0x4] sm:$0xf]
      %v1588 = vld [vmem:[%s1585 + $0x8] sm:$0xf]
      %v1589 = vld [vmem:[%s1585 + $0xc] sm:$0xf]
      %v1590 = vld [vmem:[%s1585 + $0x10] sm:$0xf]
      %v1591 = vld [vmem:[%s1585 + $0x14] sm:$0xf]
      %v1592 = vld [vmem:[%s1585 + $0x18] sm:$0xf]
      %v1593 = vld [vmem:[%s1585 + $0x1c] sm:$0xf]
      %v1602 = vunpack.c.l.b16 %v1586
      %v1603 = vunpack.c.l.b16 %v1587
      %v1604 = vunpack.c.l.b16 %v1588
      %v1605 = vunpack.c.l.b16 %v1589
      %v1606 = vunpack.c.l.b16 %v1590
      %v1607 = vunpack.c.l.b16 %v1591
      %v1608 = vunpack.c.l.b16 %v1592
      %v1609 = vunpack.c.l.b16 %v1593
      %v1610 = vpack.c.b16 %v1603, %v1602
      %v1611 = vpack.c.b16 %v1605, %v1604
      %v1612 = vpack.c.b16 %v1607, %v1606
      %v1613 = vpack.c.b16 %v1609, %v1608
      %v1619 = vsel %vm778, %v1581, 0
      %v1622 = vsel %vm778, %v1582, 0
      %v1625 = vsel %vm778, %v1583, 0
      %v1628 = vsel %vm778, %v1584, 0
      %1630 = vmatprep.subr.bf16.mxu0 0
      %1631 = vmatpush1.bf16.msra.mxu0 0
      %1632 = vmatprep.subr.bf16.mxu0 0
      %1633 = vmatpush1.bf16.msra.mxu0 0
      %1634 = vmatprep.subr.bf16.mxu0 0
      %1635 = vmatpush1.bf16.msra.mxu0 0
      %1636 = vmatprep.subr.bf16.mxu0 0
      %1637 = vmatpush1.bf16.msra.mxu0 0
      %1638 = vmatprep.subr.bf16.mxu0 0
      %1639 = vmatpush1.bf16.msra.mxu0 %v1613
      %1640 = vmatprep.subr.bf16.mxu0 0
      %1641 = vmatpush1.bf16.msra.mxu0 %v1612
      %1642 = vmatprep.subr.bf16.mxu0 0
      %1643 = vmatpush1.bf16.msra.mxu0 %v1611
      %1644 = vmatprep.subr.bf16.mxu0 0
      %1645 = vmatpush1.bf16.msra.mxu0 %v1610
      %1646 = vmatprep.subr.bf16.mxu0 0
      %1647 = vmatpush2.bf16.msra.mxu0 0
      %1648 = vmatprep.subr.bf16.mxu0 0
      %1649 = vmatpush2.bf16.msra.mxu0 0
      %1650 = vmatprep.subr.bf16.mxu0 0
      %1651 = vmatpush2.bf16.msra.mxu0 0
      %1652 = vmatprep.subr.bf16.mxu0 0
      %1653 = vmatpush2.bf16.msra.mxu0 0
      %1654 = vmatprep.subr.bf16.mxu0 0
      %1655 = vmatpush2.bf16.msra.mxu0 0
      %1656 = vmatprep.subr.bf16.mxu0 0
      %1657 = vmatpush2.bf16.msra.mxu0 0
      %1658 = vmatprep.subr.bf16.mxu0 0
      %1659 = vmatpush2.bf16.msra.mxu0 0
      %1660 = vmatprep.subr.bf16.mxu0 0
      %1661 = vmatpush2.bf16.msra.mxu0 0
      %1662 = vmatprep.mubr.bf16.mxu0 0
      %1663 = vmatmul.mubr.bf16.gmra.mxu0 %v1619
      %v1664 = vpop.f32.mrf.mxu0
      %v1665 = vadd.f32 0.0, %v1664
      %v1666 = vpop.f32.mrf.mxu0
      %v1667 = vpop.f32.mrf.mxu0
      %v1668 = vadd.f32 0.0, %v1667
      %v1669 = vpop.f32.mrf.mxu0
      %1670 = vmatprep.mubr.bf16.mxu0 0
      %1671 = vmatmul.mubr.bf16.gmra.mxu0 %v1622
      %v1672 = vpop.f32.mrf.mxu0
      %v1673 = vadd.f32 0.0, %v1672
      %v1674 = vpop.f32.mrf.mxu0
      %v1675 = vpop.f32.mrf.mxu0
      %v1676 = vadd.f32 0.0, %v1675
      %v1677 = vpop.f32.mrf.mxu0
      %1678 = vmatprep.mubr.bf16.mxu0 0
      %1679 = vmatmul.mubr.bf16.gmra.mxu0 %v1625
      %v1680 = vpop.f32.mrf.mxu0
      %v1681 = vadd.f32 0.0, %v1680
      %v1682 = vpop.f32.mrf.mxu0
      %v1683 = vpop.f32.mrf.mxu0
      %v1684 = vadd.f32 0.0, %v1683
      %v1685 = vpop.f32.mrf.mxu0
      %1686 = vmatprep.mubr.bf16.mxu0 0
      %1687 = vmatmul.mubr.bf16.gmra.mxu0 %v1628
      %v1688 = vpop.f32.mrf.mxu0
      %v1689 = vadd.f32 0.0, %v1688
      %v1690 = vpop.f32.mrf.mxu0
      %v1691 = vpop.f32.mrf.mxu0
      %v1692 = vadd.f32 0.0, %v1691
      %v1693 = vpop.f32.mrf.mxu0
      %1694 = vdwg.mxu0
      %v1695 = vadd.f32 %v1564, %v1665
      %v1696 = vadd.f32 %v1565, %v1668
      %v1697 = vadd.f32 %v1566, %v1673
      %v1698 = vadd.f32 %v1567, %v1676
      %v1699 = vadd.f32 %v1568, %v1681
      %v1700 = vadd.f32 %v1569, %v1684
      %v1701 = vadd.f32 %v1570, %v1689
      %v1702 = vadd.f32 %v1571, %v1692
      %v1703 = vld [vmem:[%s1572 + $0x1] sm:$0xff]
      %v1704 = vld [vmem:[%s1572 + $0x11] sm:$0xff]
      %v1705 = vld [vmem:[%s1572 + $0x21] sm:$0xff]
      %v1706 = vld [vmem:[%s1572 + $0x31] sm:$0xff]
      %v1707 = vld [vmem:[%s1572 + $0x41] sm:$0xff]
      %v1708 = vld [vmem:[%s1572 + $0x51] sm:$0xff]
      %v1709 = vld [vmem:[%s1572 + $0x61] sm:$0xff]
      %v1710 = vld [vmem:[%s1572 + $0x71] sm:$0xff]
      %v1711 = vpack.c.bf16 %v1704, %v1703
      %v1712 = vpack.c.bf16 %v1706, %v1705
      %v1713 = vpack.c.bf16 %v1708, %v1707
      %v1714 = vpack.c.bf16 %v1710, %v1709
      %s1715 = scalar_lea.vmem %s5, 224
      %v1716 = vld [vmem:[%s1715] sm:$0xf]
      %v1717 = vld [vmem:[%s1715 + $0x4] sm:$0xf]
      %v1718 = vld [vmem:[%s1715 + $0x8] sm:$0xf]
      %v1719 = vld [vmem:[%s1715 + $0xc] sm:$0xf]
      %v1720 = vld [vmem:[%s1715 + $0x10] sm:$0xf]
      %v1721 = vld [vmem:[%s1715 + $0x14] sm:$0xf]
      %v1722 = vld [vmem:[%s1715 + $0x18] sm:$0xf]
      %v1723 = vld [vmem:[%s1715 + $0x1c] sm:$0xf]
      %v1732 = vunpack.c.l.b16 %v1716
      %v1733 = vunpack.c.l.b16 %v1717
      %v1734 = vunpack.c.l.b16 %v1718
      %v1735 = vunpack.c.l.b16 %v1719
      %v1736 = vunpack.c.l.b16 %v1720
      %v1737 = vunpack.c.l.b16 %v1721
      %v1738 = vunpack.c.l.b16 %v1722
      %v1739 = vunpack.c.l.b16 %v1723
      %v1740 = vpack.c.b16 %v1733, %v1732
      %v1741 = vpack.c.b16 %v1735, %v1734
      %v1742 = vpack.c.b16 %v1737, %v1736
      %v1743 = vpack.c.b16 %v1739, %v1738
      %v1749 = vsel %vm778, %v1711, 0
      %v1752 = vsel %vm778, %v1712, 0
      %v1755 = vsel %vm778, %v1713, 0
      %v1758 = vsel %vm778, %v1714, 0
      %1760 = vmatprep.subr.bf16.mxu0 0
      %1761 = vmatpush1.bf16.msra.mxu0 0
      %1762 = vmatprep.subr.bf16.mxu0 0
      %1763 = vmatpush1.bf16.msra.mxu0 0
      %1764 = vmatprep.subr.bf16.mxu0 0
      %1765 = vmatpush1.bf16.msra.mxu0 0
      %1766 = vmatprep.subr.bf16.mxu0 0
      %1767 = vmatpush1.bf16.msra.mxu0 0
      %1768 = vmatprep.subr.bf16.mxu0 0
      %1769 = vmatpush1.bf16.msra.mxu0 %v1743
      %1770 = vmatprep.subr.bf16.mxu0 0
      %1771 = vmatpush1.bf16.msra.mxu0 %v1742
      %1772 = vmatprep.subr.bf16.mxu0 0
      %1773 = vmatpush1.bf16.msra.mxu0 %v1741
      %1774 = vmatprep.subr.bf16.mxu0 0
      %1775 = vmatpush1.bf16.msra.mxu0 %v1740
      %1776 = vmatprep.subr.bf16.mxu0 0
      %1777 = vmatpush2.bf16.msra.mxu0 0
      %1778 = vmatprep.subr.bf16.mxu0 0
      %1779 = vmatpush2.bf16.msra.mxu0 0
      %1780 = vmatprep.subr.bf16.mxu0 0
      %1781 = vmatpush2.bf16.msra.mxu0 0
      %1782 = vmatprep.subr.bf16.mxu0 0
      %1783 = vmatpush2.bf16.msra.mxu0 0
      %1784 = vmatprep.subr.bf16.mxu0 0
      %1785 = vmatpush2.bf16.msra.mxu0 0
      %1786 = vmatprep.subr.bf16.mxu0 0
      %1787 = vmatpush2.bf16.msra.mxu0 0
      %1788 = vmatprep.subr.bf16.mxu0 0
      %1789 = vmatpush2.bf16.msra.mxu0 0
      %1790 = vmatprep.subr.bf16.mxu0 0
      %1791 = vmatpush2.bf16.msra.mxu0 0
      %1792 = vmatprep.mubr.bf16.mxu0 0
      %1793 = vmatmul.mubr.bf16.gmra.mxu0 %v1749
      %v1794 = vpop.f32.mrf.mxu0
      %v1795 = vadd.f32 0.0, %v1794
      %v1796 = vpop.f32.mrf.mxu0
      %v1797 = vpop.f32.mrf.mxu0
      %v1798 = vadd.f32 0.0, %v1797
      %v1799 = vpop.f32.mrf.mxu0
      %1800 = vmatprep.mubr.bf16.mxu0 0
      %1801 = vmatmul.mubr.bf16.gmra.mxu0 %v1752
      %v1802 = vpop.f32.mrf.mxu0
      %v1803 = vadd.f32 0.0, %v1802
      %v1804 = vpop.f32.mrf.mxu0
      %v1805 = vpop.f32.mrf.mxu0
      %v1806 = vadd.f32 0.0, %v1805
      %v1807 = vpop.f32.mrf.mxu0
      %1808 = vmatprep.mubr.bf16.mxu0 0
      %1809 = vmatmul.mubr.bf16.gmra.mxu0 %v1755
      %v1810 = vpop.f32.mrf.mxu0
      %v1811 = vadd.f32 0.0, %v1810
      %v1812 = vpop.f32.mrf.mxu0
      %v1813 = vpop.f32.mrf.mxu0
      %v1814 = vadd.f32 0.0, %v1813
      %v1815 = vpop.f32.mrf.mxu0
      %1816 = vmatprep.mubr.bf16.mxu0 0
      %1817 = vmatmul.mubr.bf16.gmra.mxu0 %v1758
      %v1818 = vpop.f32.mrf.mxu0
      %v1819 = vadd.f32 0.0, %v1818
      %v1820 = vpop.f32.mrf.mxu0
      %v1821 = vpop.f32.mrf.mxu0
      %v1822 = vadd.f32 0.0, %v1821
      %v1823 = vpop.f32.mrf.mxu0
      %1824 = vdwg.mxu0
      %v1825 = vadd.f32 %v1695, %v1795
      %v1826 = vadd.f32 %v1696, %v1798
      %v1827 = vadd.f32 %v1697, %v1803
      %v1828 = vadd.f32 %v1698, %v1806
      %v1829 = vadd.f32 %v1699, %v1811
      %v1830 = vadd.f32 %v1700, %v1814
      %v1831 = vadd.f32 %v1701, %v1819
      %v1832 = vadd.f32 %v1702, %v1822
      %v1833 = vld [vmem:[%s1572 + $0x2] sm:$0xff]
      %v1834 = vld [vmem:[%s1572 + $0x12] sm:$0xff]
      %v1835 = vld [vmem:[%s1572 + $0x22] sm:$0xff]
      %v1836 = vld [vmem:[%s1572 + $0x32] sm:$0xff]
      %v1837 = vld [vmem:[%s1572 + $0x42] sm:$0xff]
      %v1838 = vld [vmem:[%s1572 + $0x52] sm:$0xff]
      %v1839 = vld [vmem:[%s1572 + $0x62] sm:$0xff]
      %v1840 = vld [vmem:[%s1572 + $0x72] sm:$0xff]
      %v1841 = vpack.c.bf16 %v1834, %v1833
      %v1842 = vpack.c.bf16 %v1836, %v1835
      %v1843 = vpack.c.bf16 %v1838, %v1837
      %v1844 = vpack.c.bf16 %v1840, %v1839
      %s1845 = scalar_lea.vmem %s5, 256
      %v1846 = vld [vmem:[%s1845] sm:$0xf]
      %v1847 = vld [vmem:[%s1845 + $0x4] sm:$0xf]
      %v1848 = vld [vmem:[%s1845 + $0x8] sm:$0xf]
      %v1849 = vld [vmem:[%s1845 + $0xc] sm:$0xf]
      %v1850 = vld [vmem:[%s1845 + $0x10] sm:$0xf]
      %v1851 = vld [vmem:[%s1845 + $0x14] sm:$0xf]
      %v1852 = vld [vmem:[%s1845 + $0x18] sm:$0xf]
      %v1853 = vld [vmem:[%s1845 + $0x1c] sm:$0xf]
      %v1862 = vunpack.c.l.b16 %v1846
      %v1863 = vunpack.c.l.b16 %v1847
      %v1864 = vunpack.c.l.b16 %v1848
      %v1865 = vunpack.c.l.b16 %v1849
      %v1866 = vunpack.c.l.b16 %v1850
      %v1867 = vunpack.c.l.b16 %v1851
      %v1868 = vunpack.c.l.b16 %v1852
      %v1869 = vunpack.c.l.b16 %v1853
      %v1870 = vpack.c.b16 %v1863, %v1862
      %v1871 = vpack.c.b16 %v1865, %v1864
      %v1872 = vpack.c.b16 %v1867, %v1866
      %v1873 = vpack.c.b16 %v1869, %v1868
      %v1879 = vsel %vm778, %v1841, 0
      %v1882 = vsel %vm778, %v1842, 0
      %v1885 = vsel %vm778, %v1843, 0
      %v1888 = vsel %vm778, %v1844, 0
      %1890 = vmatprep.subr.bf16.mxu0 0
      %1891 = vmatpush1.bf16.msra.mxu0 0
      %1892 = vmatprep.subr.bf16.mxu0 0
      %1893 = vmatpush1.bf16.msra.mxu0 0
      %1894 = vmatprep.subr.bf16.mxu0 0
      %1895 = vmatpush1.bf16.msra.mxu0 0
      %1896 = vmatprep.subr.bf16.mxu0 0
      %1897 = vmatpush1.bf16.msra.mxu0 0
      %1898 = vmatprep.subr.bf16.mxu0 0
      %1899 = vmatpush1.bf16.msra.mxu0 %v1873
      %1900 = vmatprep.subr.bf16.mxu0 0
      %1901 = vmatpush1.bf16.msra.mxu0 %v1872
      %1902 = vmatprep.subr.bf16.mxu0 0
      %1903 = vmatpush1.bf16.msra.mxu0 %v1871
      %1904 = vmatprep.subr.bf16.mxu0 0
      %1905 = vmatpush1.bf16.msra.mxu0 %v1870
      %1906 = vmatprep.subr.bf16.mxu0 0
      %1907 = vmatpush2.bf16.msra.mxu0 0
      %1908 = vmatprep.subr.bf16.mxu0 0
      %1909 = vmatpush2.bf16.msra.mxu0 0
      %1910 = vmatprep.subr.bf16.mxu0 0
      %1911 = vmatpush2.bf16.msra.mxu0 0
      %1912 = vmatprep.subr.bf16.mxu0 0
      %1913 = vmatpush2.bf16.msra.mxu0 0
      %1914 = vmatprep.subr.bf16.mxu0 0
      %1915 = vmatpush2.bf16.msra.mxu0 0
      %1916 = vmatprep.subr.bf16.mxu0 0
      %1917 = vmatpush2.bf16.msra.mxu0 0
      %1918 = vmatprep.subr.bf16.mxu0 0
      %1919 = vmatpush2.bf16.msra.mxu0 0
      %1920 = vmatprep.subr.bf16.mxu0 0
      %1921 = vmatpush2.bf16.msra.mxu0 0
      %1922 = vmatprep.mubr.bf16.mxu0 0
      %1923 = vmatmul.mubr.bf16.gmra.mxu0 %v1879
      %v1924 = vpop.f32.mrf.mxu0
      %v1925 = vadd.f32 0.0, %v1924
      %v1926 = vpop.f32.mrf.mxu0
      %v1927 = vpop.f32.mrf.mxu0
      %v1928 = vadd.f32 0.0, %v1927
      %v1929 = vpop.f32.mrf.mxu0
      %1930 = vmatprep.mubr.bf16.mxu0 0
      %1931 = vmatmul.mubr.bf16.gmra.mxu0 %v1882
      %v1932 = vpop.f32.mrf.mxu0
      %v1933 = vadd.f32 0.0, %v1932
      %v1934 = vpop.f32.mrf.mxu0
      %v1935 = vpop.f32.mrf.mxu0
      %v1936 = vadd.f32 0.0, %v1935
      %v1937 = vpop.f32.mrf.mxu0
      %1938 = vmatprep.mubr.bf16.mxu0 0
      %1939 = vmatmul.mubr.bf16.gmra.mxu0 %v1885
      %v1940 = vpop.f32.mrf.mxu0
      %v1941 = vadd.f32 0.0, %v1940
      %v1942 = vpop.f32.mrf.mxu0
      %v1943 = vpop.f32.mrf.mxu0
      %v1944 = vadd.f32 0.0, %v1943
      %v1945 = vpop.f32.mrf.mxu0
      %1946 = vmatprep.mubr.bf16.mxu0 0
      %1947 = vmatmul.mubr.bf16.gmra.mxu0 %v1888
      %v1948 = vpop.f32.mrf.mxu0
      %v1949 = vadd.f32 0.0, %v1948
      %v1950 = vpop.f32.mrf.mxu0
      %v1951 = vpop.f32.mrf.mxu0
      %v1952 = vadd.f32 0.0, %v1951
      %v1953 = vpop.f32.mrf.mxu0
      %1954 = vdwg.mxu0
      %v1955 = vadd.f32 %v1825, %v1925
      %v1956 = vadd.f32 %v1826, %v1928
      %v1957 = vadd.f32 %v1827, %v1933
      %v1958 = vadd.f32 %v1828, %v1936
      %v1959 = vadd.f32 %v1829, %v1941
      %v1960 = vadd.f32 %v1830, %v1944
      %v1961 = vadd.f32 %v1831, %v1949
      %v1962 = vadd.f32 %v1832, %v1952
      %v1963 = vld [vmem:[%s6] sm:$0x1]
      %v1965 = vlaneseq
      %v1966 = vshrl.u32 %v1965, 7
      %v1967 = vsub.s32 0, %v1966
      %v1968 = vrot.slane %v1963, %v1967
      %v1970 = vmul.f32 %v1955, %v1968
      %v1971 = vmul.f32 %v1956, %v1968
      %v1972 = vmul.f32 %v1957, %v1968
      %v1973 = vmul.f32 %v1958, %v1968
      %v1974 = vmul.f32 %v1959, %v1968
      %v1975 = vmul.f32 %v1960, %v1968
      %v1976 = vmul.f32 %v1961, %v1968
      %v1977 = vmul.f32 %v1962, %v1968
      %v1978 = vld [vmem:[%s7] sm:$0x1]
      %v1980 = vlaneseq
      %v1981 = vshrl.u32 %v1980, 7
      %v1982 = vsub.s32 0, %v1981
      %v1983 = vrot.slane %v1978, %v1982
      %v1985 = vadd.f32 %v1970, %v1983
      %v1986 = vadd.f32 %v1971, %v1983
      %v1987 = vadd.f32 %v1972, %v1983
      %v1988 = vadd.f32 %v1973, %v1983
      %v1989 = vadd.f32 %v1974, %v1983
      %v1990 = vadd.f32 %v1975, %v1983
      %v1991 = vadd.f32 %v1976, %v1983
      %v1992 = vadd.f32 %v1977, %v1983
      %v1993 = vmax.f32 %v1985, 0.0
      %v1994 = vmax.f32 %v1986, 0.0
      %v1995 = vmax.f32 %v1987, 0.0
      %v1996 = vmax.f32 %v1988, 0.0
      %v1997 = vmax.f32 %v1989, 0.0
      %v1998 = vmax.f32 %v1990, 0.0
      %v1999 = vmax.f32 %v1991, 0.0
      %v2000 = vmax.f32 %v1992, 0.0
      %v2001 = vld [vmem:[%s569] sm:$0xf]
      %v2002 = vld [vmem:[%s569 + $0x4] sm:$0xf]
      %v2003 = vld [vmem:[%s569 + $0x8] sm:$0xf]
      %v2004 = vld [vmem:[%s569 + $0xc] sm:$0xf]
      %v2005 = vld [vmem:[%s569 + $0x10] sm:$0xf]
      %v2006 = vld [vmem:[%s569 + $0x14] sm:$0xf]
      %v2007 = vld [vmem:[%s569 + $0x18] sm:$0xf]
      %v2008 = vld [vmem:[%s569 + $0x1c] sm:$0xf]
      %v2009 = vld [vmem:[%s8] sm:$0xf]
      %v2010 = vld [vmem:[%s8 + $0x4] sm:$0xf]
      %v2011 = vld [vmem:[%s8 + $0x8] sm:$0xf]
      %v2012 = vld [vmem:[%s8 + $0xc] sm:$0xf]
      %v2013 = vld [vmem:[%s8 + $0x10] sm:$0xf]
      %v2014 = vld [vmem:[%s8 + $0x14] sm:$0xf]
      %v2015 = vld [vmem:[%s8 + $0x18] sm:$0xf]
      %v2016 = vld [vmem:[%s8 + $0x1c] sm:$0xf]
      %v2017 = vld [vmem:[%s8 + $0x20] sm:$0xf]
      %v2018 = vld [vmem:[%s8 + $0x24] sm:$0xf]
      %v2019 = vld [vmem:[%s8 + $0x28] sm:$0xf]
      %v2020 = vld [vmem:[%s8 + $0x2c] sm:$0xf]
      %v2021 = vld [vmem:[%s8 + $0x30] sm:$0xf]
      %v2022 = vld [vmem:[%s8 + $0x34] sm:$0xf]
      %v2023 = vld [vmem:[%s8 + $0x38] sm:$0xf]
      %v2024 = vld [vmem:[%s8 + $0x3c] sm:$0xf]
      %v2033 = vunpack.c.l.b16 %v2001
      %v2034 = vunpack.c.l.b16 %v2002
      %v2035 = vunpack.c.l.b16 %v2003
      %v2036 = vunpack.c.l.b16 %v2004
      %v2037 = vunpack.c.l.b16 %v2005
      %v2038 = vunpack.c.l.b16 %v2006
      %v2039 = vunpack.c.l.b16 %v2007
      %v2040 = vunpack.c.l.b16 %v2008
      %v2041 = vpack.c.b16 %v2034, %v2033
      %v2042 = vpack.c.b16 %v2036, %v2035
      %v2043 = vpack.c.b16 %v2038, %v2037
      %v2044 = vpack.c.b16 %v2040, %v2039
      %v2065 = vunpack.c.l.b16 %v2009
      %v2066 = vunpack.c.l.b16 %v2010
      %v2067 = vunpack.c.l.b16 %v2011
      %v2068 = vunpack.c.l.b16 %v2012
      %v2069 = vunpack.c.l.b16 %v2013
      %v2070 = vunpack.c.l.b16 %v2014
      %v2071 = vunpack.c.l.b16 %v2015
      %v2072 = vunpack.c.l.b16 %v2016
      %v2073 = vunpack.c.l.b16 %v2017
      %v2074 = vunpack.c.l.b16 %v2018
      %v2075 = vunpack.c.l.b16 %v2019
      %v2076 = vunpack.c.l.b16 %v2020
      %v2077 = vunpack.c.l.b16 %v2021
      %v2078 = vunpack.c.l.b16 %v2022
      %v2079 = vunpack.c.l.b16 %v2023
      %v2080 = vunpack.c.l.b16 %v2024
      %v2081 = vpack.c.b16 %v2066, %v2065
      %v2082 = vpack.c.b16 %v2068, %v2067
      %v2083 = vpack.c.b16 %v2070, %v2069
      %v2084 = vpack.c.b16 %v2072, %v2071
      %v2085 = vpack.c.b16 %v2074, %v2073
      %v2086 = vpack.c.b16 %v2076, %v2075
      %v2087 = vpack.c.b16 %v2078, %v2077
      %v2088 = vpack.c.b16 %v2080, %v2079
      %2097 = vmatprep.subr.bf16.mxu0 0
      %2098 = vmatpush1.bf16.msra.mxu0 %v2088
      %2099 = vmatprep.subr.bf16.mxu0 0
      %2100 = vmatpush1.bf16.msra.mxu0 %v2087
      %2101 = vmatprep.subr.bf16.mxu0 0
      %2102 = vmatpush1.bf16.msra.mxu0 %v2086
      %2103 = vmatprep.subr.bf16.mxu0 0
      %2104 = vmatpush1.bf16.msra.mxu0 %v2085
      %2105 = vmatprep.subr.bf16.mxu0 0
      %2106 = vmatpush1.bf16.msra.mxu0 %v2084
      %2107 = vmatprep.subr.bf16.mxu0 0
      %2108 = vmatpush1.bf16.msra.mxu0 %v2083
      %2109 = vmatprep.subr.bf16.mxu0 0
      %2110 = vmatpush1.bf16.msra.mxu0 %v2082
      %2111 = vmatprep.subr.bf16.mxu0 0
      %2112 = vmatpush1.bf16.msra.mxu0 %v2081
      %2113 = vmatprep.subr.bf16.mxu0 0
      %2114 = vmatpush2.bf16.msra.mxu0 0
      %2115 = vmatprep.subr.bf16.mxu0 0
      %2116 = vmatpush2.bf16.msra.mxu0 0
      %2117 = vmatprep.subr.bf16.mxu0 0
      %2118 = vmatpush2.bf16.msra.mxu0 0
      %2119 = vmatprep.subr.bf16.mxu0 0
      %2120 = vmatpush2.bf16.msra.mxu0 0
      %2121 = vmatprep.subr.bf16.mxu0 0
      %2122 = vmatpush2.bf16.msra.mxu0 0
      %2123 = vmatprep.subr.bf16.mxu0 0
      %2124 = vmatpush2.bf16.msra.mxu0 0
      %2125 = vmatprep.subr.bf16.mxu0 0
      %2126 = vmatpush2.bf16.msra.mxu0 0
      %2127 = vmatprep.subr.bf16.mxu0 0
      %2128 = vmatpush2.bf16.msra.mxu0 0
      %2129 = vmatprep.mubr.bf16.mxu0 0
      %2130 = vmatmul.mubr.bf16.gmra.mxu0 %v2041
      %v2131 = vpop.f32.mrf.mxu0
      %v2132 = vadd.f32 0.0, %v2131
      %v2133 = vpop.f32.mrf.mxu0
      %v2134 = vpop.f32.mrf.mxu0
      %v2135 = vadd.f32 0.0, %v2134
      %v2136 = vpop.f32.mrf.mxu0
      %2137 = vmatprep.mubr.bf16.mxu0 0
      %2138 = vmatmul.mubr.bf16.gmra.mxu0 %v2042
      %v2139 = vpop.f32.mrf.mxu0
      %v2140 = vadd.f32 0.0, %v2139
      %v2141 = vpop.f32.mrf.mxu0
      %v2142 = vpop.f32.mrf.mxu0
      %v2143 = vadd.f32 0.0, %v2142
      %v2144 = vpop.f32.mrf.mxu0
      %2145 = vmatprep.mubr.bf16.mxu0 0
      %2146 = vmatmul.mubr.bf16.gmra.mxu0 %v2043
      %v2147 = vpop.f32.mrf.mxu0
      %v2148 = vadd.f32 0.0, %v2147
      %v2149 = vpop.f32.mrf.mxu0
      %v2150 = vpop.f32.mrf.mxu0
      %v2151 = vadd.f32 0.0, %v2150
      %v2152 = vpop.f32.mrf.mxu0
      %2153 = vmatprep.mubr.bf16.mxu0 0
      %2154 = vmatmul.mubr.bf16.gmra.mxu0 %v2044
      %v2155 = vpop.f32.mrf.mxu0
      %v2156 = vadd.f32 0.0, %v2155
      %v2157 = vpop.f32.mrf.mxu0
      %v2158 = vpop.f32.mrf.mxu0
      %v2159 = vadd.f32 0.0, %v2158
      %v2160 = vpop.f32.mrf.mxu0
      %2161 = vdwg.mxu0
      %v2162 = vld [vmem:[%s9] sm:$0x1]
      %v2164 = vlaneseq
      %v2165 = vshrl.u32 %v2164, 7
      %v2166 = vsub.s32 0, %v2165
      %v2167 = vrot.slane %v2162, %v2166
      %v2169 = vmul.f32 %v2132, %v2167
      %v2170 = vmul.f32 %v2135, %v2167
      %v2171 = vmul.f32 %v2140, %v2167
      %v2172 = vmul.f32 %v2143, %v2167
      %v2173 = vmul.f32 %v2148, %v2167
      %v2174 = vmul.f32 %v2151, %v2167
      %v2175 = vmul.f32 %v2156, %v2167
      %v2176 = vmul.f32 %v2159, %v2167
      %v2177 = vld [vmem:[%s10] sm:$0x1]
      %v2179 = vlaneseq
      %v2180 = vshrl.u32 %v2179, 7
      %v2181 = vsub.s32 0, %v2180
      %v2182 = vrot.slane %v2177, %v2181
      %v2184 = vadd.f32 %v2169, %v2182
      %v2185 = vadd.f32 %v2170, %v2182
      %v2186 = vadd.f32 %v2171, %v2182
      %v2187 = vadd.f32 %v2172, %v2182
      %v2188 = vadd.f32 %v2173, %v2182
      %v2189 = vadd.f32 %v2174, %v2182
      %v2190 = vadd.f32 %v2175, %v2182
      %v2191 = vadd.f32 %v2176, %v2182
      %v2192 = vmax.f32 %v2184, 0.0
      %v2193 = vmax.f32 %v2185, 0.0
      %v2194 = vmax.f32 %v2186, 0.0
      %v2195 = vmax.f32 %v2187, 0.0
      %v2196 = vmax.f32 %v2188, 0.0
      %v2197 = vmax.f32 %v2189, 0.0
      %v2198 = vmax.f32 %v2190, 0.0
      %v2199 = vmax.f32 %v2191, 0.0
      %vm2200 = vcmask 130048
      %2201 = vst.msk [vmem:[#allocation3] sm:$0xff] %vm2200, 0.0
      %vm2202 = vcmask 123904
      %2203 = vst.msk [vmem:[#allocation3 + $0x8] sm:$0x3] %vm2202, 0.0
      %2204 = vst.msk [vmem:[#allocation3 + $0x10] sm:$0xff] %vm2200, 0.0
      %2205 = vst.msk [vmem:[#allocation3 + $0x18] sm:$0x3] %vm2202, 0.0
      %2206 = vst.msk [vmem:[#allocation3 + $0x20] sm:$0xff] %vm2200, 0.0
      %2207 = vst.msk [vmem:[#allocation3 + $0x28] sm:$0x3] %vm2202, 0.0
      %2208 = vst.msk [vmem:[#allocation3 + $0x30] sm:$0xff] %vm2200, 0.0
      %2209 = vst.msk [vmem:[#allocation3 + $0x38] sm:$0x3] %vm2202, 0.0
      %2210 = vst.msk [vmem:[#allocation3 + $0x40] sm:$0xff] %vm2200, 0.0
      %2211 = vst.msk [vmem:[#allocation3 + $0x48] sm:$0x3] %vm2202, 0.0
      %2212 = vst.msk [vmem:[#allocation3 + $0x50] sm:$0xff] %vm2200, 0.0
      %2213 = vst.msk [vmem:[#allocation3 + $0x58] sm:$0x3] %vm2202, 0.0
      %2214 = vst.msk [vmem:[#allocation3 + $0x60] sm:$0xff] %vm2200, 0.0
      %2215 = vst.msk [vmem:[#allocation3 + $0x68] sm:$0x3] %vm2202, 0.0
      %2216 = vst.msk [vmem:[#allocation3 + $0x70] sm:$0xff] %vm2200, 0.0
      %2217 = vst.msk [vmem:[#allocation3 + $0x78] sm:$0x3] %vm2202, 0.0
      %2218 = vst.msk [vmem:[#allocation3 + $0x80] sm:$0xff] %vm2200, 0.0
      %2219 = vst.msk [vmem:[#allocation3 + $0x88] sm:$0x3] %vm2202, 0.0
      %2220 = vst.msk [vmem:[#allocation3 + $0x90] sm:$0xff] %vm2200, 0.0
      %2221 = vst.msk [vmem:[#allocation3 + $0x98] sm:$0x3] %vm2202, 0.0
      %s2222 = scalar_lea.vmem [#allocation3], 16
      %2223 = vst.msk [vmem:[%s2222 + $0x1] sm:$0xff] %vm2200, %v2192
      %2224 = vst.msk [vmem:[%s2222 + $0x11] sm:$0xff] %vm2200, %v2193
      %2225 = vst.msk [vmem:[%s2222 + $0x21] sm:$0xff] %vm2200, %v2194
      %2226 = vst.msk [vmem:[%s2222 + $0x31] sm:$0xff] %vm2200, %v2195
      %2227 = vst.msk [vmem:[%s2222 + $0x41] sm:$0xff] %vm2200, %v2196
      %2228 = vst.msk [vmem:[%s2222 + $0x51] sm:$0xff] %vm2200, %v2197
      %2229 = vst.msk [vmem:[%s2222 + $0x61] sm:$0xff] %vm2200, %v2198
      %2230 = vst.msk [vmem:[%s2222 + $0x71] sm:$0xff] %vm2200, %v2199
      %v2231 = vld [vmem:[#allocation3] sm:$0xff]
      %v2232 = vld [vmem:[#allocation3 + $0x10] sm:$0xff]
      %v2233 = vld [vmem:[#allocation3 + $0x20] sm:$0xff]
      %v2234 = vld [vmem:[#allocation3 + $0x30] sm:$0xff]
      %v2235 = vld [vmem:[#allocation3 + $0x40] sm:$0xff]
      %v2236 = vld [vmem:[#allocation3 + $0x50] sm:$0xff]
      %v2237 = vld [vmem:[#allocation3 + $0x60] sm:$0xff]
      %v2238 = vld [vmem:[#allocation3 + $0x70] sm:$0xff]
      %v2239 = vpack.c.bf16 %v2232, %v2231
      %v2240 = vpack.c.bf16 %v2234, %v2233
      %v2241 = vpack.c.bf16 %v2236, %v2235
      %v2242 = vpack.c.bf16 %v2238, %v2237
      %v2243 = vld [vmem:[%s11] sm:$0xf]
      %v2244 = vld [vmem:[%s11 + $0x4] sm:$0xf]
      %v2245 = vld [vmem:[#allocation3 + $0x1] sm:$0xff]
      %v2246 = vld [vmem:[#allocation3 + $0x11] sm:$0xff]
      %v2247 = vld [vmem:[#allocation3 + $0x21] sm:$0xff]
      %v2248 = vld [vmem:[#allocation3 + $0x31] sm:$0xff]
      %v2249 = vld [vmem:[#allocation3 + $0x41] sm:$0xff]
      %v2250 = vld [vmem:[#allocation3 + $0x51] sm:$0xff]
      %v2251 = vld [vmem:[#allocation3 + $0x61] sm:$0xff]
      %v2252 = vld [vmem:[#allocation3 + $0x71] sm:$0xff]
      %v2253 = vpack.c.bf16 %v2246, %v2245
      %v2254 = vpack.c.bf16 %v2248, %v2247
      %v2255 = vpack.c.bf16 %v2250, %v2249
      %v2256 = vpack.c.bf16 %v2252, %v2251
      %s2257 = scalar_lea.vmem %s11, 8
      %v2258 = vld [vmem:[%s2257] sm:$0xf]
      %v2259 = vld [vmem:[%s2257 + $0x4] sm:$0xf]
      %v2262 = vunpack.c.l.b16 %v2258
      %v2263 = vunpack.c.l.b16 %v2259
      %v2264 = vpack.c.b16 %v2263, %v2262
      %v2267 = vsel %vm2200, %v2253, 0
      %v2270 = vsel %vm2200, %v2254, 0
      %v2273 = vsel %vm2200, %v2255, 0
      %v2276 = vsel %vm2200, %v2256, 0
      %2278 = vmatprep.subr.bf16.mxu0 0
      %2279 = vmatpush1.bf16.msra.mxu0 0
      %2280 = vmatprep.subr.bf16.mxu0 0
      %2281 = vmatpush1.bf16.msra.mxu0 0
      %2282 = vmatprep.subr.bf16.mxu0 0
      %2283 = vmatpush1.bf16.msra.mxu0 0
      %2284 = vmatprep.subr.bf16.mxu0 0
      %2285 = vmatpush1.bf16.msra.mxu0 0
      %2286 = vmatprep.subr.bf16.mxu0 0
      %2287 = vmatpush1.bf16.msra.mxu0 0
      %2288 = vmatprep.subr.bf16.mxu0 0
      %2289 = vmatpush1.bf16.msra.mxu0 0
      %2290 = vmatprep.subr.bf16.mxu0 0
      %2291 = vmatpush1.bf16.msra.mxu0 0
      %2292 = vmatprep.subr.bf16.mxu0 0
      %2293 = vmatpush1.bf16.msra.mxu0 %v2264
      %2294 = vmatprep.subr.bf16.mxu0 0
      %2295 = vmatpush2.bf16.msra.mxu0 0
      %2296 = vmatprep.subr.bf16.mxu0 0
      %2297 = vmatpush2.bf16.msra.mxu0 0
      %2298 = vmatprep.subr.bf16.mxu0 0
      %2299 = vmatpush2.bf16.msra.mxu0 0
      %2300 = vmatprep.subr.bf16.mxu0 0
      %2301 = vmatpush2.bf16.msra.mxu0 0
      %2302 = vmatprep.subr.bf16.mxu0 0
      %2303 = vmatpush2.bf16.msra.mxu0 0
      %2304 = vmatprep.subr.bf16.mxu0 0
      %2305 = vmatpush2.bf16.msra.mxu0 0
      %2306 = vmatprep.subr.bf16.mxu0 0
      %2307 = vmatpush2.bf16.msra.mxu0 0
      %2308 = vmatprep.subr.bf16.mxu0 0
      %2309 = vmatpush2.bf16.msra.mxu0 0
      %2310 = vmatprep.mubr.bf16.mxu0 0
      %2311 = vmatmul.mubr.bf16.gmra.mxu0 %v2267
      %v2312 = vpop.f32.mrf.mxu0
      %v2313 = vadd.f32 0.0, %v2312
      %v2314 = vpop.f32.mrf.mxu0
      %v2315 = vpop.f32.mrf.mxu0
      %v2316 = vadd.f32 0.0, %v2315
      %v2317 = vpop.f32.mrf.mxu0
      %2318 = vmatprep.mubr.bf16.mxu0 0
      %2319 = vmatmul.mubr.bf16.gmra.mxu0 %v2270
      %v2320 = vpop.f32.mrf.mxu0
      %v2321 = vadd.f32 0.0, %v2320
      %v2322 = vpop.f32.mrf.mxu0
      %v2323 = vpop.f32.mrf.mxu0
      %v2324 = vadd.f32 0.0, %v2323
      %v2325 = vpop.f32.mrf.mxu0
      %2326 = vmatprep.mubr.bf16.mxu0 0
      %2327 = vmatmul.mubr.bf16.gmra.mxu0 %v2273
      %v2328 = vpop.f32.mrf.mxu0
      %v2329 = vadd.f32 0.0, %v2328
      %v2330 = vpop.f32.mrf.mxu0
      %v2331 = vpop.f32.mrf.mxu0
      %v2332 = vadd.f32 0.0, %v2331
      %v2333 = vpop.f32.mrf.mxu0
      %2334 = vmatprep.mubr.bf16.mxu0 0
      %2335 = vmatmul.mubr.bf16.gmra.mxu0 %v2276
      %v2336 = vpop.f32.mrf.mxu0
      %v2337 = vadd.f32 0.0, %v2336
      %v2338 = vpop.f32.mrf.mxu0
      %v2339 = vpop.f32.mrf.mxu0
      %v2340 = vadd.f32 0.0, %v2339
      %v2341 = vpop.f32.mrf.mxu0
      %2342 = vdwg.mxu0
      %v2345 = vunpack.c.l.b16 %v2243
      %v2346 = vunpack.c.l.b16 %v2244
      %v2347 = vpack.c.b16 %v2346, %v2345
      %v2350 = vsel %vm2200, %v2239, 0
      %v2353 = vsel %vm2200, %v2240, 0
      %v2356 = vsel %vm2200, %v2241, 0
      %v2359 = vsel %vm2200, %v2242, 0
      %2361 = vmatprep.subr.bf16.mxu0 0
      %2362 = vmatpush1.bf16.msra.mxu0 0
      %2363 = vmatprep.subr.bf16.mxu0 0
      %2364 = vmatpush1.bf16.msra.mxu0 0
      %2365 = vmatprep.subr.bf16.mxu0 0
      %2366 = vmatpush1.bf16.msra.mxu0 0
      %2367 = vmatprep.subr.bf16.mxu0 0
      %2368 = vmatpush1.bf16.msra.mxu0 0
      %2369 = vmatprep.subr.bf16.mxu0 0
      %2370 = vmatpush1.bf16.msra.mxu0 0
      %2371 = vmatprep.subr.bf16.mxu0 0
      %2372 = vmatpush1.bf16.msra.mxu0 0
      %2373 = vmatprep.subr.bf16.mxu0 0
      %2374 = vmatpush1.bf16.msra.mxu0 0
      %2375 = vmatprep.subr.bf16.mxu0 0
      %2376 = vmatpush1.bf16.msra.mxu0 %v2347
      %2377 = vmatprep.subr.bf16.mxu0 0
      %2378 = vmatpush2.bf16.msra.mxu0 0
      %2379 = vmatprep.subr.bf16.mxu0 0
      %2380 = vmatpush2.bf16.msra.mxu0 0
      %2381 = vmatprep.subr.bf16.mxu0 0
      %2382 = vmatpush2.bf16.msra.mxu0 0
      %2383 = vmatprep.subr.bf16.mxu0 0
      %2384 = vmatpush2.bf16.msra.mxu0 0
      %2385 = vmatprep.subr.bf16.mxu0 0
      %2386 = vmatpush2.bf16.msra.mxu0 0
      %2387 = vmatprep.subr.bf16.mxu0 0
      %2388 = vmatpush2.bf16.msra.mxu0 0
      %2389 = vmatprep.subr.bf16.mxu0 0
      %2390 = vmatpush2.bf16.msra.mxu0 0
      %2391 = vmatprep.subr.bf16.mxu0 0
      %2392 = vmatpush2.bf16.msra.mxu0 0
      %2393 = vmatprep.mubr.bf16.mxu0 0
      %2394 = vmatmul.mubr.bf16.gmra.mxu0 %v2350
      %v2395 = vpop.f32.mrf.mxu0
      %v2396 = vadd.f32 %v2313, %v2395
      %v2397 = vpop.f32.mrf.mxu0
      %v2398 = vpop.f32.mrf.mxu0
      %v2399 = vadd.f32 %v2316, %v2398
      %v2400 = vpop.f32.mrf.mxu0
      %2401 = vmatprep.mubr.bf16.mxu0 0
      %2402 = vmatmul.mubr.bf16.gmra.mxu0 %v2353
      %v2403 = vpop.f32.mrf.mxu0
      %v2404 = vadd.f32 %v2321, %v2403
      %v2405 = vpop.f32.mrf.mxu0
      %v2406 = vpop.f32.mrf.mxu0
      %v2407 = vadd.f32 %v2324, %v2406
      %v2408 = vpop.f32.mrf.mxu0
      %2409 = vmatprep.mubr.bf16.mxu0 0
      %2410 = vmatmul.mubr.bf16.gmra.mxu0 %v2356
      %v2411 = vpop.f32.mrf.mxu0
      %v2412 = vadd.f32 %v2329, %v2411
      %v2413 = vpop.f32.mrf.mxu0
      %v2414 = vpop.f32.mrf.mxu0
      %v2415 = vadd.f32 %v2332, %v2414
      %v2416 = vpop.f32.mrf.mxu0
      %2417 = vmatprep.mubr.bf16.mxu0 0
      %2418 = vmatmul.mubr.bf16.gmra.mxu0 %v2359
      %v2419 = vpop.f32.mrf.mxu0
      %v2420 = vadd.f32 %v2337, %v2419
      %v2421 = vpop.f32.mrf.mxu0
      %v2422 = vpop.f32.mrf.mxu0
      %v2423 = vadd.f32 %v2340, %v2422
      %v2424 = vpop.f32.mrf.mxu0
      %2425 = vdwg.mxu0
      %v2426 = vld [vmem:[#allocation3 + $0x2] sm:$0xff]
      %v2427 = vld [vmem:[#allocation3 + $0x12] sm:$0xff]
      %v2428 = vld [vmem:[#allocation3 + $0x22] sm:$0xff]
      %v2429 = vld [vmem:[#allocation3 + $0x32] sm:$0xff]
      %v2430 = vld [vmem:[#allocation3 + $0x42] sm:$0xff]
      %v2431 = vld [vmem:[#allocation3 + $0x52] sm:$0xff]
      %v2432 = vld [vmem:[#allocation3 + $0x62] sm:$0xff]
      %v2433 = vld [vmem:[#allocation3 + $0x72] sm:$0xff]
      %v2434 = vpack.c.bf16 %v2427, %v2426
      %v2435 = vpack.c.bf16 %v2429, %v2428
      %v2436 = vpack.c.bf16 %v2431, %v2430
      %v2437 = vpack.c.bf16 %v2433, %v2432
      %s2438 = scalar_lea.vmem %s11, 16
      %v2439 = vld [vmem:[%s2438] sm:$0xf]
      %v2440 = vld [vmem:[%s2438 + $0x4] sm:$0xf]
      %v2443 = vunpack.c.l.b16 %v2439
      %v2444 = vunpack.c.l.b16 %v2440
      %v2445 = vpack.c.b16 %v2444, %v2443
      %v2448 = vsel %vm2200, %v2434, 0
      %v2451 = vsel %vm2200, %v2435, 0
      %v2454 = vsel %vm2200, %v2436, 0
      %v2457 = vsel %vm2200, %v2437, 0
      %2459 = vmatprep.subr.bf16.mxu0 0
      %2460 = vmatpush1.bf16.msra.mxu0 0
      %2461 = vmatprep.subr.bf16.mxu0 0
      %2462 = vmatpush1.bf16.msra.mxu0 0
      %2463 = vmatprep.subr.bf16.mxu0 0
      %2464 = vmatpush1.bf16.msra.mxu0 0
      %2465 = vmatprep.subr.bf16.mxu0 0
      %2466 = vmatpush1.bf16.msra.mxu0 0
      %2467 = vmatprep.subr.bf16.mxu0 0
      %2468 = vmatpush1.bf16.msra.mxu0 0
      %2469 = vmatprep.subr.bf16.mxu0 0
      %2470 = vmatpush1.bf16.msra.mxu0 0
      %2471 = vmatprep.subr.bf16.mxu0 0
      %2472 = vmatpush1.bf16.msra.mxu0 0
      %2473 = vmatprep.subr.bf16.mxu0 0
      %2474 = vmatpush1.bf16.msra.mxu0 %v2445
      %2475 = vmatprep.subr.bf16.mxu0 0
      %2476 = vmatpush2.bf16.msra.mxu0 0
      %2477 = vmatprep.subr.bf16.mxu0 0
      %2478 = vmatpush2.bf16.msra.mxu0 0
      %2479 = vmatprep.subr.bf16.mxu0 0
      %2480 = vmatpush2.bf16.msra.mxu0 0
      %2481 = vmatprep.subr.bf16.mxu0 0
      %2482 = vmatpush2.bf16.msra.mxu0 0
      %2483 = vmatprep.subr.bf16.mxu0 0
      %2484 = vmatpush2.bf16.msra.mxu0 0
      %2485 = vmatprep.subr.bf16.mxu0 0
      %2486 = vmatpush2.bf16.msra.mxu0 0
      %2487 = vmatprep.subr.bf16.mxu0 0
      %2488 = vmatpush2.bf16.msra.mxu0 0
      %2489 = vmatprep.subr.bf16.mxu0 0
      %2490 = vmatpush2.bf16.msra.mxu0 0
      %2491 = vmatprep.mubr.bf16.mxu0 0
      %2492 = vmatmul.mubr.bf16.gmra.mxu0 %v2448
      %v2493 = vpop.f32.mrf.mxu0
      %v2494 = vadd.f32 0.0, %v2493
      %v2495 = vpop.f32.mrf.mxu0
      %v2496 = vpop.f32.mrf.mxu0
      %v2497 = vadd.f32 0.0, %v2496
      %v2498 = vpop.f32.mrf.mxu0
      %2499 = vmatprep.mubr.bf16.mxu0 0
      %2500 = vmatmul.mubr.bf16.gmra.mxu0 %v2451
      %v2501 = vpop.f32.mrf.mxu0
      %v2502 = vadd.f32 0.0, %v2501
      %v2503 = vpop.f32.mrf.mxu0
      %v2504 = vpop.f32.mrf.mxu0
      %v2505 = vadd.f32 0.0, %v2504
      %v2506 = vpop.f32.mrf.mxu0
      %2507 = vmatprep.mubr.bf16.mxu0 0
      %2508 = vmatmul.mubr.bf16.gmra.mxu0 %v2454
      %v2509 = vpop.f32.mrf.mxu0
      %v2510 = vadd.f32 0.0, %v2509
      %v2511 = vpop.f32.mrf.mxu0
      %v2512 = vpop.f32.mrf.mxu0
      %v2513 = vadd.f32 0.0, %v2512
      %v2514 = vpop.f32.mrf.mxu0
      %2515 = vmatprep.mubr.bf16.mxu0 0
      %2516 = vmatmul.mubr.bf16.gmra.mxu0 %v2457
      %v2517 = vpop.f32.mrf.mxu0
      %v2518 = vadd.f32 0.0, %v2517
      %v2519 = vpop.f32.mrf.mxu0
      %v2520 = vpop.f32.mrf.mxu0
      %v2521 = vadd.f32 0.0, %v2520
      %v2522 = vpop.f32.mrf.mxu0
      %2523 = vdwg.mxu0
      %v2524 = vadd.f32 %v2396, %v2494
      %v2525 = vadd.f32 %v2399, %v2497
      %v2526 = vadd.f32 %v2404, %v2502
      %v2527 = vadd.f32 %v2407, %v2505
      %v2528 = vadd.f32 %v2412, %v2510
      %v2529 = vadd.f32 %v2415, %v2513
      %v2530 = vadd.f32 %v2420, %v2518
      %v2531 = vadd.f32 %v2423, %v2521
      %v2532 = vld [vmem:[%s2222] sm:$0xff]
      %v2533 = vld [vmem:[%s2222 + $0x10] sm:$0xff]
      %v2534 = vld [vmem:[%s2222 + $0x20] sm:$0xff]
      %v2535 = vld [vmem:[%s2222 + $0x30] sm:$0xff]
      %v2536 = vld [vmem:[%s2222 + $0x40] sm:$0xff]
      %v2537 = vld [vmem:[%s2222 + $0x50] sm:$0xff]
      %v2538 = vld [vmem:[%s2222 + $0x60] sm:$0xff]
      %v2539 = vld [vmem:[%s2222 + $0x70] sm:$0xff]
      %v2540 = vpack.c.bf16 %v2533, %v2532
      %v2541 = vpack.c.bf16 %v2535, %v2534
      %v2542 = vpack.c.bf16 %v2537, %v2536
      %v2543 = vpack.c.bf16 %v2539, %v2538
      %s2544 = scalar_lea.vmem %s11, 24
      %v2545 = vld [vmem:[%s2544] sm:$0xf]
      %v2546 = vld [vmem:[%s2544 + $0x4] sm:$0xf]
      %v2549 = vunpack.c.l.b16 %v2545
      %v2550 = vunpack.c.l.b16 %v2546
      %v2551 = vpack.c.b16 %v2550, %v2549
      %v2554 = vsel %vm2200, %v2540, 0
      %v2557 = vsel %vm2200, %v2541, 0
      %v2560 = vsel %vm2200, %v2542, 0
      %v2563 = vsel %vm2200, %v2543, 0
      %2565 = vmatprep.subr.bf16.mxu0 0
      %2566 = vmatpush1.bf16.msra.mxu0 0
      %2567 = vmatprep.subr.bf16.mxu0 0
      %2568 = vmatpush1.bf16.msra.mxu0 0
      %2569 = vmatprep.subr.bf16.mxu0 0
      %2570 = vmatpush1.bf16.msra.mxu0 0
      %2571 = vmatprep.subr.bf16.mxu0 0
      %2572 = vmatpush1.bf16.msra.mxu0 0
      %2573 = vmatprep.subr.bf16.mxu0 0
      %2574 = vmatpush1.bf16.msra.mxu0 0
      %2575 = vmatprep.subr.bf16.mxu0 0
      %2576 = vmatpush1.bf16.msra.mxu0 0
      %2577 = vmatprep.subr.bf16.mxu0 0
      %2578 = vmatpush1.bf16.msra.mxu0 0
      %2579 = vmatprep.subr.bf16.mxu0 0
      %2580 = vmatpush1.bf16.msra.mxu0 %v2551
      %2581 = vmatprep.subr.bf16.mxu0 0
      %2582 = vmatpush2.bf16.msra.mxu0 0
      %2583 = vmatprep.subr.bf16.mxu0 0
      %2584 = vmatpush2.bf16.msra.mxu0 0
      %2585 = vmatprep.subr.bf16.mxu0 0
      %2586 = vmatpush2.bf16.msra.mxu0 0
      %2587 = vmatprep.subr.bf16.mxu0 0
      %2588 = vmatpush2.bf16.msra.mxu0 0
      %2589 = vmatprep.subr.bf16.mxu0 0
      %2590 = vmatpush2.bf16.msra.mxu0 0
      %2591 = vmatprep.subr.bf16.mxu0 0
      %2592 = vmatpush2.bf16.msra.mxu0 0
      %2593 = vmatprep.subr.bf16.mxu0 0
      %2594 = vmatpush2.bf16.msra.mxu0 0
      %2595 = vmatprep.subr.bf16.mxu0 0
      %2596 = vmatpush2.bf16.msra.mxu0 0
      %2597 = vmatprep.mubr.bf16.mxu0 0
      %2598 = vmatmul.mubr.bf16.gmra.mxu0 %v2554
      %v2599 = vpop.f32.mrf.mxu0
      %v2600 = vadd.f32 0.0, %v2599
      %v2601 = vpop.f32.mrf.mxu0
      %v2602 = vpop.f32.mrf.mxu0
      %v2603 = vadd.f32 0.0, %v2602
      %v2604 = vpop.f32.mrf.mxu0
      %2605 = vmatprep.mubr.bf16.mxu0 0
      %2606 = vmatmul.mubr.bf16.gmra.mxu0 %v2557
      %v2607 = vpop.f32.mrf.mxu0
      %v2608 = vadd.f32 0.0, %v2607
      %v2609 = vpop.f32.mrf.mxu0
      %v2610 = vpop.f32.mrf.mxu0
      %v2611 = vadd.f32 0.0, %v2610
      %v2612 = vpop.f32.mrf.mxu0
      %2613 = vmatprep.mubr.bf16.mxu0 0
      %2614 = vmatmul.mubr.bf16.gmra.mxu0 %v2560
      %v2615 = vpop.f32.mrf.mxu0
      %v2616 = vadd.f32 0.0, %v2615
      %v2617 = vpop.f32.mrf.mxu0
      %v2618 = vpop.f32.mrf.mxu0
      %v2619 = vadd.f32 0.0, %v2618
      %v2620 = vpop.f32.mrf.mxu0
      %2621 = vmatprep.mubr.bf16.mxu0 0
      %2622 = vmatmul.mubr.bf16.gmra.mxu0 %v2563
      %v2623 = vpop.f32.mrf.mxu0
      %v2624 = vadd.f32 0.0, %v2623
      %v2625 = vpop.f32.mrf.mxu0
      %v2626 = vpop.f32.mrf.mxu0
      %v2627 = vadd.f32 0.0, %v2626
      %v2628 = vpop.f32.mrf.mxu0
      %2629 = vdwg.mxu0
      %v2630 = vadd.f32 %v2524, %v2600
      %v2631 = vadd.f32 %v2525, %v2603
      %v2632 = vadd.f32 %v2526, %v2608
      %v2633 = vadd.f32 %v2527, %v2611
      %v2634 = vadd.f32 %v2528, %v2616
      %v2635 = vadd.f32 %v2529, %v2619
      %v2636 = vadd.f32 %v2530, %v2624
      %v2637 = vadd.f32 %v2531, %v2627
      %v2638 = vld [vmem:[%s2222 + $0x1] sm:$0xff]
      %v2639 = vld [vmem:[%s2222 + $0x11] sm:$0xff]
      %v2640 = vld [vmem:[%s2222 + $0x21] sm:$0xff]
      %v2641 = vld [vmem:[%s2222 + $0x31] sm:$0xff]
      %v2642 = vld [vmem:[%s2222 + $0x41] sm:$0xff]
      %v2643 = vld [vmem:[%s2222 + $0x51] sm:$0xff]
      %v2644 = vld [vmem:[%s2222 + $0x61] sm:$0xff]
      %v2645 = vld [vmem:[%s2222 + $0x71] sm:$0xff]
      %v2646 = vpack.c.bf16 %v2639, %v2638
      %v2647 = vpack.c.bf16 %v2641, %v2640
      %v2648 = vpack.c.bf16 %v2643, %v2642
      %v2649 = vpack.c.bf16 %v2645, %v2644
      %s2650 = scalar_lea.vmem %s11, 32
      %v2651 = vld [vmem:[%s2650] sm:$0xf]
      %v2652 = vld [vmem:[%s2650 + $0x4] sm:$0xf]
      %v2655 = vunpack.c.l.b16 %v2651
      %v2656 = vunpack.c.l.b16 %v2652
      %v2657 = vpack.c.b16 %v2656, %v2655
      %v2660 = vsel %vm2200, %v2646, 0
      %v2663 = vsel %vm2200, %v2647, 0
      %v2666 = vsel %vm2200, %v2648, 0
      %v2669 = vsel %vm2200, %v2649, 0
      %2671 = vmatprep.subr.bf16.mxu0 0
      %2672 = vmatpush1.bf16.msra.mxu0 0
      %2673 = vmatprep.subr.bf16.mxu0 0
      %2674 = vmatpush1.bf16.msra.mxu0 0
      %2675 = vmatprep.subr.bf16.mxu0 0
      %2676 = vmatpush1.bf16.msra.mxu0 0
      %2677 = vmatprep.subr.bf16.mxu0 0
      %2678 = vmatpush1.bf16.msra.mxu0 0
      %2679 = vmatprep.subr.bf16.mxu0 0
      %2680 = vmatpush1.bf16.msra.mxu0 0
      %2681 = vmatprep.subr.bf16.mxu0 0
      %2682 = vmatpush1.bf16.msra.mxu0 0
      %2683 = vmatprep.subr.bf16.mxu0 0
      %2684 = vmatpush1.bf16.msra.mxu0 0
      %2685 = vmatprep.subr.bf16.mxu0 0
      %2686 = vmatpush1.bf16.msra.mxu0 %v2657
      %2687 = vmatprep.subr.bf16.mxu0 0
      %2688 = vmatpush2.bf16.msra.mxu0 0
      %2689 = vmatprep.subr.bf16.mxu0 0
      %2690 = vmatpush2.bf16.msra.mxu0 0
      %2691 = vmatprep.subr.bf16.mxu0 0
      %2692 = vmatpush2.bf16.msra.mxu0 0
      %2693 = vmatprep.subr.bf16.mxu0 0
      %2694 = vmatpush2.bf16.msra.mxu0 0
      %2695 = vmatprep.subr.bf16.mxu0 0
      %2696 = vmatpush2.bf16.msra.mxu0 0
      %2697 = vmatprep.subr.bf16.mxu0 0
      %2698 = vmatpush2.bf16.msra.mxu0 0
      %2699 = vmatprep.subr.bf16.mxu0 0
      %2700 = vmatpush2.bf16.msra.mxu0 0
      %2701 = vmatprep.subr.bf16.mxu0 0
      %2702 = vmatpush2.bf16.msra.mxu0 0
      %2703 = vmatprep.mubr.bf16.mxu0 0
      %2704 = vmatmul.mubr.bf16.gmra.mxu0 %v2660
      %v2705 = vpop.f32.mrf.mxu0
      %v2706 = vadd.f32 0.0, %v2705
      %v2707 = vpop.f32.mrf.mxu0
      %v2708 = vpop.f32.mrf.mxu0
      %v2709 = vadd.f32 0.0, %v2708
      %v2710 = vpop.f32.mrf.mxu0
      %2711 = vmatprep.mubr.bf16.mxu0 0
      %2712 = vmatmul.mubr.bf16.gmra.mxu0 %v2663
      %v2713 = vpop.f32.mrf.mxu0
      %v2714 = vadd.f32 0.0, %v2713
      %v2715 = vpop.f32.mrf.mxu0
      %v2716 = vpop.f32.mrf.mxu0
      %v2717 = vadd.f32 0.0, %v2716
      %v2718 = vpop.f32.mrf.mxu0
      %2719 = vmatprep.mubr.bf16.mxu0 0
      %2720 = vmatmul.mubr.bf16.gmra.mxu0 %v2666
      %v2721 = vpop.f32.mrf.mxu0
      %v2722 = vadd.f32 0.0, %v2721
      %v2723 = vpop.f32.mrf.mxu0
      %v2724 = vpop.f32.mrf.mxu0
      %v2725 = vadd.f32 0.0, %v2724
      %v2726 = vpop.f32.mrf.mxu0
      %2727 = vmatprep.mubr.bf16.mxu0 0
      %2728 = vmatmul.mubr.bf16.gmra.mxu0 %v2669
      %v2729 = vpop.f32.mrf.mxu0
      %v2730 = vadd.f32 0.0, %v2729
      %v2731 = vpop.f32.mrf.mxu0
      %v2732 = vpop.f32.mrf.mxu0
      %v2733 = vadd.f32 0.0, %v2732
      %v2734 = vpop.f32.mrf.mxu0
      %2735 = vdwg.mxu0
      %v2736 = vadd.f32 %v2630, %v2706
      %v2737 = vadd.f32 %v2631, %v2709
      %v2738 = vadd.f32 %v2632, %v2714
      %v2739 = vadd.f32 %v2633, %v2717
      %v2740 = vadd.f32 %v2634, %v2722
      %v2741 = vadd.f32 %v2635, %v2725
      %v2742 = vadd.f32 %v2636, %v2730
      %v2743 = vadd.f32 %v2637, %v2733
      %v2744 = vld [vmem:[%s2222 + $0x2] sm:$0xff]
      %v2745 = vld [vmem:[%s2222 + $0x12] sm:$0xff]
      %v2746 = vld [vmem:[%s2222 + $0x22] sm:$0xff]
      %v2747 = vld [vmem:[%s2222 + $0x32] sm:$0xff]
      %v2748 = vld [vmem:[%s2222 + $0x42] sm:$0xff]
      %v2749 = vld [vmem:[%s2222 + $0x52] sm:$0xff]
      %v2750 = vld [vmem:[%s2222 + $0x62] sm:$0xff]
      %v2751 = vld [vmem:[%s2222 + $0x72] sm:$0xff]
      %v2752 = vpack.c.bf16 %v2745, %v2744
      %v2753 = vpack.c.bf16 %v2747, %v2746
      %v2754 = vpack.c.bf16 %v2749, %v2748
      %v2755 = vpack.c.bf16 %v2751, %v2750
      %s2756 = scalar_lea.vmem %s11, 40
      %v2757 = vld [vmem:[%s2756] sm:$0xf]
      %v2758 = vld [vmem:[%s2756 + $0x4] sm:$0xf]
      %v2761 = vunpack.c.l.b16 %v2757
      %v2762 = vunpack.c.l.b16 %v2758
      %v2763 = vpack.c.b16 %v2762, %v2761
      %v2766 = vsel %vm2200, %v2752, 0
      %v2769 = vsel %vm2200, %v2753, 0
      %v2772 = vsel %vm2200, %v2754, 0
      %v2775 = vsel %vm2200, %v2755, 0
      %2777 = vmatprep.subr.bf16.mxu0 0
      %2778 = vmatpush1.bf16.msra.mxu0 0
      %2779 = vmatprep.subr.bf16.mxu0 0
      %2780 = vmatpush1.bf16.msra.mxu0 0
      %2781 = vmatprep.subr.bf16.mxu0 0
      %2782 = vmatpush1.bf16.msra.mxu0 0
      %2783 = vmatprep.subr.bf16.mxu0 0
      %2784 = vmatpush1.bf16.msra.mxu0 0
      %2785 = vmatprep.subr.bf16.mxu0 0
      %2786 = vmatpush1.bf16.msra.mxu0 0
      %2787 = vmatprep.subr.bf16.mxu0 0
      %2788 = vmatpush1.bf16.msra.mxu0 0
      %2789 = vmatprep.subr.bf16.mxu0 0
      %2790 = vmatpush1.bf16.msra.mxu0 0
      %2791 = vmatprep.subr.bf16.mxu0 0
      %2792 = vmatpush1.bf16.msra.mxu0 %v2763
      %2793 = vmatprep.subr.bf16.mxu0 0
      %2794 = vmatpush2.bf16.msra.mxu0 0
      %2795 = vmatprep.subr.bf16.mxu0 0
      %2796 = vmatpush2.bf16.msra.mxu0 0
      %2797 = vmatprep.subr.bf16.mxu0 0
      %2798 = vmatpush2.bf16.msra.mxu0 0
      %2799 = vmatprep.subr.bf16.mxu0 0
      %2800 = vmatpush2.bf16.msra.mxu0 0
      %2801 = vmatprep.subr.bf16.mxu0 0
      %2802 = vmatpush2.bf16.msra.mxu0 0
      %2803 = vmatprep.subr.bf16.mxu0 0
      %2804 = vmatpush2.bf16.msra.mxu0 0
      %2805 = vmatprep.subr.bf16.mxu0 0
      %2806 = vmatpush2.bf16.msra.mxu0 0
      %2807 = vmatprep.subr.bf16.mxu0 0
      %2808 = vmatpush2.bf16.msra.mxu0 0
      %2809 = vmatprep.mubr.bf16.mxu0 0
      %2810 = vmatmul.mubr.bf16.gmra.mxu0 %v2766
      %v2811 = vpop.f32.mrf.mxu0
      %v2812 = vadd.f32 0.0, %v2811
      %v2813 = vpop.f32.mrf.mxu0
      %v2814 = vpop.f32.mrf.mxu0
      %v2815 = vadd.f32 0.0, %v2814
      %v2816 = vpop.f32.mrf.mxu0
      %2817 = vmatprep.mubr.bf16.mxu0 0
      %2818 = vmatmul.mubr.bf16.gmra.mxu0 %v2769
      %v2819 = vpop.f32.mrf.mxu0
      %v2820 = vadd.f32 0.0, %v2819
      %v2821 = vpop.f32.mrf.mxu0
      %v2822 = vpop.f32.mrf.mxu0
      %v2823 = vadd.f32 0.0, %v2822
      %v2824 = vpop.f32.mrf.mxu0
      %2825 = vmatprep.mubr.bf16.mxu0 0
      %2826 = vmatmul.mubr.bf16.gmra.mxu0 %v2772
      %v2827 = vpop.f32.mrf.mxu0
      %v2828 = vadd.f32 0.0, %v2827
      %v2829 = vpop.f32.mrf.mxu0
      %v2830 = vpop.f32.mrf.mxu0
      %v2831 = vadd.f32 0.0, %v2830
      %v2832 = vpop.f32.mrf.mxu0
      %2833 = vmatprep.mubr.bf16.mxu0 0
      %2834 = vmatmul.mubr.bf16.gmra.mxu0 %v2775
      %v2835 = vpop.f32.mrf.mxu0
      %v2836 = vadd.f32 0.0, %v2835
      %v2837 = vpop.f32.mrf.mxu0
      %v2838 = vpop.f32.mrf.mxu0
      %v2839 = vadd.f32 0.0, %v2838
      %v2840 = vpop.f32.mrf.mxu0
      %2841 = vdwg.mxu0
      %v2842 = vadd.f32 %v2736, %v2812
      %v2843 = vadd.f32 %v2737, %v2815
      %v2844 = vadd.f32 %v2738, %v2820
      %v2845 = vadd.f32 %v2739, %v2823
      %v2846 = vadd.f32 %v2740, %v2828
      %v2847 = vadd.f32 %v2741, %v2831
      %v2848 = vadd.f32 %v2742, %v2836
      %v2849 = vadd.f32 %v2743, %v2839
      %s2850 = scalar_lea.vmem [#allocation3], 32
      %v2851 = vld [vmem:[%s2850] sm:$0xff]
      %v2852 = vld [vmem:[%s2850 + $0x10] sm:$0xff]
      %v2853 = vld [vmem:[%s2850 + $0x20] sm:$0xff]
      %v2854 = vld [vmem:[%s2850 + $0x30] sm:$0xff]
      %v2855 = vld [vmem:[%s2850 + $0x40] sm:$0xff]
      %v2856 = vld [vmem:[%s2850 + $0x50] sm:$0xff]
      %v2857 = vld [vmem:[%s2850 + $0x60] sm:$0xff]
      %v2858 = vld [vmem:[%s2850 + $0x70] sm:$0xff]
      %v2859 = vpack.c.bf16 %v2852, %v2851
      %v2860 = vpack.c.bf16 %v2854, %v2853
      %v2861 = vpack.c.bf16 %v2856, %v2855
      %v2862 = vpack.c.bf16 %v2858, %v2857
      %s2863 = scalar_lea.vmem %s11, 48
      %v2864 = vld [vmem:[%s2863] sm:$0xf]
      %v2865 = vld [vmem:[%s2863 + $0x4] sm:$0xf]
      %v2868 = vunpack.c.l.b16 %v2864
      %v2869 = vunpack.c.l.b16 %v2865
      %v2870 = vpack.c.b16 %v2869, %v2868
      %v2873 = vsel %vm2200, %v2859, 0
      %v2876 = vsel %vm2200, %v2860, 0
      %v2879 = vsel %vm2200, %v2861, 0
      %v2882 = vsel %vm2200, %v2862, 0
      %2884 = vmatprep.subr.bf16.mxu0 0
      %2885 = vmatpush1.bf16.msra.mxu0 0
      %2886 = vmatprep.subr.bf16.mxu0 0
      %2887 = vmatpush1.bf16.msra.mxu0 0
      %2888 = vmatprep.subr.bf16.mxu0 0
      %2889 = vmatpush1.bf16.msra.mxu0 0
      %2890 = vmatprep.subr.bf16.mxu0 0
      %2891 = vmatpush1.bf16.msra.mxu0 0
      %2892 = vmatprep.subr.bf16.mxu0 0
      %2893 = vmatpush1.bf16.msra.mxu0 0
      %2894 = vmatprep.subr.bf16.mxu0 0
      %2895 = vmatpush1.bf16.msra.mxu0 0
      %2896 = vmatprep.subr.bf16.mxu0 0
      %2897 = vmatpush1.bf16.msra.mxu0 0
      %2898 = vmatprep.subr.bf16.mxu0 0
      %2899 = vmatpush1.bf16.msra.mxu0 %v2870
      %2900 = vmatprep.subr.bf16.mxu0 0
      %2901 = vmatpush2.bf16.msra.mxu0 0
      %2902 = vmatprep.subr.bf16.mxu0 0
      %2903 = vmatpush2.bf16.msra.mxu0 0
      %2904 = vmatprep.subr.bf16.mxu0 0
      %2905 = vmatpush2.bf16.msra.mxu0 0
      %2906 = vmatprep.subr.bf16.mxu0 0
      %2907 = vmatpush2.bf16.msra.mxu0 0
      %2908 = vmatprep.subr.bf16.mxu0 0
      %2909 = vmatpush2.bf16.msra.mxu0 0
      %2910 = vmatprep.subr.bf16.mxu0 0
      %2911 = vmatpush2.bf16.msra.mxu0 0
      %2912 = vmatprep.subr.bf16.mxu0 0
      %2913 = vmatpush2.bf16.msra.mxu0 0
      %2914 = vmatprep.subr.bf16.mxu0 0
      %2915 = vmatpush2.bf16.msra.mxu0 0
      %2916 = vmatprep.mubr.bf16.mxu0 0
      %2917 = vmatmul.mubr.bf16.gmra.mxu0 %v2873
      %v2918 = vpop.f32.mrf.mxu0
      %v2919 = vadd.f32 0.0, %v2918
      %v2920 = vpop.f32.mrf.mxu0
      %v2921 = vpop.f32.mrf.mxu0
      %v2922 = vadd.f32 0.0, %v2921
      %v2923 = vpop.f32.mrf.mxu0
      %2924 = vmatprep.mubr.bf16.mxu0 0
      %2925 = vmatmul.mubr.bf16.gmra.mxu0 %v2876
      %v2926 = vpop.f32.mrf.mxu0
      %v2927 = vadd.f32 0.0, %v2926
      %v2928 = vpop.f32.mrf.mxu0
      %v2929 = vpop.f32.mrf.mxu0
      %v2930 = vadd.f32 0.0, %v2929
      %v2931 = vpop.f32.mrf.mxu0
      %2932 = vmatprep.mubr.bf16.mxu0 0
      %2933 = vmatmul.mubr.bf16.gmra.mxu0 %v2879
      %v2934 = vpop.f32.mrf.mxu0
      %v2935 = vadd.f32 0.0, %v2934
      %v2936 = vpop.f32.mrf.mxu0
      %v2937 = vpop.f32.mrf.mxu0
      %v2938 = vadd.f32 0.0, %v2937
      %v2939 = vpop.f32.mrf.mxu0
      %2940 = vmatprep.mubr.bf16.mxu0 0
      %2941 = vmatmul.mubr.bf16.gmra.mxu0 %v2882
      %v2942 = vpop.f32.mrf.mxu0
      %v2943 = vadd.f32 0.0, %v2942
      %v2944 = vpop.f32.mrf.mxu0
      %v2945 = vpop.f32.mrf.mxu0
      %v2946 = vadd.f32 0.0, %v2945
      %v2947 = vpop.f32.mrf.mxu0
      %2948 = vdwg.mxu0
      %v2949 = vadd.f32 %v2842, %v2919
      %v2950 = vadd.f32 %v2843, %v2922
      %v2951 = vadd.f32 %v2844, %v2927
      %v2952 = vadd.f32 %v2845, %v2930
      %v2953 = vadd.f32 %v2846, %v2935
      %v2954 = vadd.f32 %v2847, %v2938
      %v2955 = vadd.f32 %v2848, %v2943
      %v2956 = vadd.f32 %v2849, %v2946
      %v2957 = vld [vmem:[%s2850 + $0x1] sm:$0xff]
      %v2958 = vld [vmem:[%s2850 + $0x11] sm:$0xff]
      %v2959 = vld [vmem:[%s2850 + $0x21] sm:$0xff]
      %v2960 = vld [vmem:[%s2850 + $0x31] sm:$0xff]
      %v2961 = vld [vmem:[%s2850 + $0x41] sm:$0xff]
      %v2962 = vld [vmem:[%s2850 + $0x51] sm:$0xff]
      %v2963 = vld [vmem:[%s2850 + $0x61] sm:$0xff]
      %v2964 = vld [vmem:[%s2850 + $0x71] sm:$0xff]
      %v2965 = vpack.c.bf16 %v2958, %v2957
      %v2966 = vpack.c.bf16 %v2960, %v2959
      %v2967 = vpack.c.bf16 %v2962, %v2961
      %v2968 = vpack.c.bf16 %v2964, %v2963
      %s2969 = scalar_lea.vmem %s11, 56
      %v2970 = vld [vmem:[%s2969] sm:$0xf]
      %v2971 = vld [vmem:[%s2969 + $0x4] sm:$0xf]
      %v2974 = vunpack.c.l.b16 %v2970
      %v2975 = vunpack.c.l.b16 %v2971
      %v2976 = vpack.c.b16 %v2975, %v2974
      %v2979 = vsel %vm2200, %v2965, 0
      %v2982 = vsel %vm2200, %v2966, 0
      %v2985 = vsel %vm2200, %v2967, 0
      %v2988 = vsel %vm2200, %v2968, 0
      %2990 = vmatprep.subr.bf16.mxu0 0
      %2991 = vmatpush1.bf16.msra.mxu0 0
      %2992 = vmatprep.subr.bf16.mxu0 0
      %2993 = vmatpush1.bf16.msra.mxu0 0
      %2994 = vmatprep.subr.bf16.mxu0 0
      %2995 = vmatpush1.bf16.msra.mxu0 0
      %2996 = vmatprep.subr.bf16.mxu0 0
      %2997 = vmatpush1.bf16.msra.mxu0 0
      %2998 = vmatprep.subr.bf16.mxu0 0
      %2999 = vmatpush1.bf16.msra.mxu0 0
      %3000 = vmatprep.subr.bf16.mxu0 0
      %3001 = vmatpush1.bf16.msra.mxu0 0
      %3002 = vmatprep.subr.bf16.mxu0 0
      %3003 = vmatpush1.bf16.msra.mxu0 0
      %3004 = vmatprep.subr.bf16.mxu0 0
      %3005 = vmatpush1.bf16.msra.mxu0 %v2976
      %3006 = vmatprep.subr.bf16.mxu0 0
      %3007 = vmatpush2.bf16.msra.mxu0 0
      %3008 = vmatprep.subr.bf16.mxu0 0
      %3009 = vmatpush2.bf16.msra.mxu0 0
      %3010 = vmatprep.subr.bf16.mxu0 0
      %3011 = vmatpush2.bf16.msra.mxu0 0
      %3012 = vmatprep.subr.bf16.mxu0 0
      %3013 = vmatpush2.bf16.msra.mxu0 0
      %3014 = vmatprep.subr.bf16.mxu0 0
      %3015 = vmatpush2.bf16.msra.mxu0 0
      %3016 = vmatprep.subr.bf16.mxu0 0
      %3017 = vmatpush2.bf16.msra.mxu0 0
      %3018 = vmatprep.subr.bf16.mxu0 0
      %3019 = vmatpush2.bf16.msra.mxu0 0
      %3020 = vmatprep.subr.bf16.mxu0 0
      %3021 = vmatpush2.bf16.msra.mxu0 0
      %3022 = vmatprep.mubr.bf16.mxu0 0
      %3023 = vmatmul.mubr.bf16.gmra.mxu0 %v2979
      %v3024 = vpop.f32.mrf.mxu0
      %v3025 = vadd.f32 0.0, %v3024
      %v3026 = vpop.f32.mrf.mxu0
      %v3027 = vpop.f32.mrf.mxu0
      %v3028 = vadd.f32 0.0, %v3027
      %v3029 = vpop.f32.mrf.mxu0
      %3030 = vmatprep.mubr.bf16.mxu0 0
      %3031 = vmatmul.mubr.bf16.gmra.mxu0 %v2982
      %v3032 = vpop.f32.mrf.mxu0
      %v3033 = vadd.f32 0.0, %v3032
      %v3034 = vpop.f32.mrf.mxu0
      %v3035 = vpop.f32.mrf.mxu0
      %v3036 = vadd.f32 0.0, %v3035
      %v3037 = vpop.f32.mrf.mxu0
      %3038 = vmatprep.mubr.bf16.mxu0 0
      %3039 = vmatmul.mubr.bf16.gmra.mxu0 %v2985
      %v3040 = vpop.f32.mrf.mxu0
      %v3041 = vadd.f32 0.0, %v3040
      %v3042 = vpop.f32.mrf.mxu0
      %v3043 = vpop.f32.mrf.mxu0
      %v3044 = vadd.f32 0.0, %v3043
      %v3045 = vpop.f32.mrf.mxu0
      %3046 = vmatprep.mubr.bf16.mxu0 0
      %3047 = vmatmul.mubr.bf16.gmra.mxu0 %v2988
      %v3048 = vpop.f32.mrf.mxu0
      %v3049 = vadd.f32 0.0, %v3048
      %v3050 = vpop.f32.mrf.mxu0
      %v3051 = vpop.f32.mrf.mxu0
      %v3052 = vadd.f32 0.0, %v3051
      %v3053 = vpop.f32.mrf.mxu0
      %3054 = vdwg.mxu0
      %v3055 = vadd.f32 %v2949, %v3025
      %v3056 = vadd.f32 %v2950, %v3028
      %v3057 = vadd.f32 %v2951, %v3033
      %v3058 = vadd.f32 %v2952, %v3036
      %v3059 = vadd.f32 %v2953, %v3041
      %v3060 = vadd.f32 %v2954, %v3044
      %v3061 = vadd.f32 %v2955, %v3049
      %v3062 = vadd.f32 %v2956, %v3052
      %v3063 = vld [vmem:[%s2850 + $0x2] sm:$0xff]
      %v3064 = vld [vmem:[%s2850 + $0x12] sm:$0xff]
      %v3065 = vld [vmem:[%s2850 + $0x22] sm:$0xff]
      %v3066 = vld [vmem:[%s2850 + $0x32] sm:$0xff]
      %v3067 = vld [vmem:[%s2850 + $0x42] sm:$0xff]
      %v3068 = vld [vmem:[%s2850 + $0x52] sm:$0xff]
      %v3069 = vld [vmem:[%s2850 + $0x62] sm:$0xff]
      %v3070 = vld [vmem:[%s2850 + $0x72] sm:$0xff]
      %v3071 = vpack.c.bf16 %v3064, %v3063
      %v3072 = vpack.c.bf16 %v3066, %v3065
      %v3073 = vpack.c.bf16 %v3068, %v3067
      %v3074 = vpack.c.bf16 %v3070, %v3069
      %s3075 = scalar_lea.vmem %s11, 64
      %v3076 = vld [vmem:[%s3075] sm:$0xf]
      %v3077 = vld [vmem:[%s3075 + $0x4] sm:$0xf]
      %v3080 = vunpack.c.l.b16 %v3076
      %v3081 = vunpack.c.l.b16 %v3077
      %v3082 = vpack.c.b16 %v3081, %v3080
      %v3085 = vsel %vm2200, %v3071, 0
      %v3088 = vsel %vm2200, %v3072, 0
      %v3091 = vsel %vm2200, %v3073, 0
      %v3094 = vsel %vm2200, %v3074, 0
      %3096 = vmatprep.subr.bf16.mxu0 0
      %3097 = vmatpush1.bf16.msra.mxu0 0
      %3098 = vmatprep.subr.bf16.mxu0 0
      %3099 = vmatpush1.bf16.msra.mxu0 0
      %3100 = vmatprep.subr.bf16.mxu0 0
      %3101 = vmatpush1.bf16.msra.mxu0 0
      %3102 = vmatprep.subr.bf16.mxu0 0
      %3103 = vmatpush1.bf16.msra.mxu0 0
      %3104 = vmatprep.subr.bf16.mxu0 0
      %3105 = vmatpush1.bf16.msra.mxu0 0
      %3106 = vmatprep.subr.bf16.mxu0 0
      %3107 = vmatpush1.bf16.msra.mxu0 0
      %3108 = vmatprep.subr.bf16.mxu0 0
      %3109 = vmatpush1.bf16.msra.mxu0 0
      %3110 = vmatprep.subr.bf16.mxu0 0
      %3111 = vmatpush1.bf16.msra.mxu0 %v3082
      %3112 = vmatprep.subr.bf16.mxu0 0
      %3113 = vmatpush2.bf16.msra.mxu0 0
      %3114 = vmatprep.subr.bf16.mxu0 0
      %3115 = vmatpush2.bf16.msra.mxu0 0
      %3116 = vmatprep.subr.bf16.mxu0 0
      %3117 = vmatpush2.bf16.msra.mxu0 0
      %3118 = vmatprep.subr.bf16.mxu0 0
      %3119 = vmatpush2.bf16.msra.mxu0 0
      %3120 = vmatprep.subr.bf16.mxu0 0
      %3121 = vmatpush2.bf16.msra.mxu0 0
      %3122 = vmatprep.subr.bf16.mxu0 0
      %3123 = vmatpush2.bf16.msra.mxu0 0
      %3124 = vmatprep.subr.bf16.mxu0 0
      %3125 = vmatpush2.bf16.msra.mxu0 0
      %3126 = vmatprep.subr.bf16.mxu0 0
      %3127 = vmatpush2.bf16.msra.mxu0 0
      %3128 = vmatprep.mubr.bf16.mxu0 0
      %3129 = vmatmul.mubr.bf16.gmra.mxu0 %v3085
      %v3130 = vpop.f32.mrf.mxu0
      %v3131 = vadd.f32 0.0, %v3130
      %v3132 = vpop.f32.mrf.mxu0
      %v3133 = vpop.f32.mrf.mxu0
      %v3134 = vadd.f32 0.0, %v3133
      %v3135 = vpop.f32.mrf.mxu0
      %3136 = vmatprep.mubr.bf16.mxu0 0
      %3137 = vmatmul.mubr.bf16.gmra.mxu0 %v3088
      %v3138 = vpop.f32.mrf.mxu0
      %v3139 = vadd.f32 0.0, %v3138
      %v3140 = vpop.f32.mrf.mxu0
      %v3141 = vpop.f32.mrf.mxu0
      %v3142 = vadd.f32 0.0, %v3141
      %v3143 = vpop.f32.mrf.mxu0
      %3144 = vmatprep.mubr.bf16.mxu0 0
      %3145 = vmatmul.mubr.bf16.gmra.mxu0 %v3091
      %v3146 = vpop.f32.mrf.mxu0
      %v3147 = vadd.f32 0.0, %v3146
      %v3148 = vpop.f32.mrf.mxu0
      %v3149 = vpop.f32.mrf.mxu0
      %v3150 = vadd.f32 0.0, %v3149
      %v3151 = vpop.f32.mrf.mxu0
      %3152 = vmatprep.mubr.bf16.mxu0 0
      %3153 = vmatmul.mubr.bf16.gmra.mxu0 %v3094
      %v3154 = vpop.f32.mrf.mxu0
      %v3155 = vadd.f32 0.0, %v3154
      %v3156 = vpop.f32.mrf.mxu0
      %v3157 = vpop.f32.mrf.mxu0
      %v3158 = vadd.f32 0.0, %v3157
      %v3159 = vpop.f32.mrf.mxu0
      %3160 = vdwg.mxu0
      %v3161 = vadd.f32 %v3055, %v3131
      %v3162 = vadd.f32 %v3056, %v3134
      %v3163 = vadd.f32 %v3057, %v3139
      %v3164 = vadd.f32 %v3058, %v3142
      %v3165 = vadd.f32 %v3059, %v3147
      %v3166 = vadd.f32 %v3060, %v3150
      %v3167 = vadd.f32 %v3061, %v3155
      %v3168 = vadd.f32 %v3062, %v3158
      %v3169 = vld [vmem:[%s12] sm:$0x1]
      %v3171 = vlaneseq
      %v3172 = vshrl.u32 %v3171, 7
      %v3173 = vsub.s32 0, %v3172
      %v3174 = vrot.slane %v3169, %v3173
      %v3176 = vmul.f32 %v3161, %v3174
      %v3177 = vmul.f32 %v3162, %v3174
      %v3178 = vmul.f32 %v3163, %v3174
      %v3179 = vmul.f32 %v3164, %v3174
      %v3180 = vmul.f32 %v3165, %v3174
      %v3181 = vmul.f32 %v3166, %v3174
      %v3182 = vmul.f32 %v3167, %v3174
      %v3183 = vmul.f32 %v3168, %v3174
      %v3184 = vld [vmem:[%s13] sm:$0x1]
      %v3186 = vlaneseq
      %v3187 = vshrl.u32 %v3186, 7
      %v3188 = vsub.s32 0, %v3187
      %v3189 = vrot.slane %v3184, %v3188
      %v3191 = vadd.f32 %v3176, %v3189
      %v3192 = vadd.f32 %v3177, %v3189
      %v3193 = vadd.f32 %v3178, %v3189
      %v3194 = vadd.f32 %v3179, %v3189
      %v3195 = vadd.f32 %v3180, %v3189
      %v3196 = vadd.f32 %v3181, %v3189
      %v3197 = vadd.f32 %v3182, %v3189
      %v3198 = vadd.f32 %v3183, %v3189
      %v3199 = vmax.f32 %v3191, 0.0
      %v3200 = vmax.f32 %v3192, 0.0
      %v3201 = vmax.f32 %v3193, 0.0
      %v3202 = vmax.f32 %v3194, 0.0
      %v3203 = vmax.f32 %v3195, 0.0
      %v3204 = vmax.f32 %v3196, 0.0
      %v3205 = vmax.f32 %v3197, 0.0
      %v3206 = vmax.f32 %v3198, 0.0
      %v3207 = vpack.c.bf16 %v1994, %v1993
      %v3208 = vpack.c.bf16 %v1996, %v1995
      %v3209 = vpack.c.bf16 %v1998, %v1997
      %v3210 = vpack.c.bf16 %v2000, %v1999
      %v3215 = vunpack.c.l.b16 %v3207
      %v3216 = vunpack.c.h.b16 %v3207
      %v3217 = vunpack.c.l.b16 %v3208
      %v3218 = vunpack.c.h.b16 %v3208
      %v3219 = vunpack.c.l.b16 %v3209
      %v3220 = vunpack.c.h.b16 %v3209
      %v3221 = vunpack.c.l.b16 %v3210
      %v3222 = vunpack.c.h.b16 %v3210
      %v3223 = vpack.c.b16 %v3215, %v3215
      %v3224 = vpack.c.b16 %v3216, %v3216
      %v3225 = vpack.c.b16 %v3217, %v3217
      %v3226 = vpack.c.b16 %v3218, %v3218
      %v3227 = vpack.c.b16 %v3219, %v3219
      %v3228 = vpack.c.b16 %v3220, %v3220
      %v3229 = vpack.c.b16 %v3221, %v3221
      %v3230 = vpack.c.b16 %v3222, %v3222
      %vm3239 = vcmask 519168
      %3240 = vst.msk [vmem:[%s574] sm:$0xf] %vm3239, %v3223
      %3241 = vst.msk [vmem:[%s574 + $0x4] sm:$0xf] %vm3239, %v3224
      %3242 = vst.msk [vmem:[%s574 + $0x8] sm:$0xf] %vm3239, %v3225
      %3243 = vst.msk [vmem:[%s574 + $0xc] sm:$0xf] %vm3239, %v3226
      %3244 = vst.msk [vmem:[%s574 + $0x10] sm:$0xf] %vm3239, %v3227
      %3245 = vst.msk [vmem:[%s574 + $0x14] sm:$0xf] %vm3239, %v3228
      %3246 = vst.msk [vmem:[%s574 + $0x18] sm:$0xf] %vm3239, %v3229
      %3247 = vst.msk [vmem:[%s574 + $0x1c] sm:$0xf] %vm3239, %v3230
      %v3248 = vpack.c.bf16 %v3200, %v3199
      %v3249 = vpack.c.bf16 %v3202, %v3201
      %v3250 = vpack.c.bf16 %v3204, %v3203
      %v3251 = vpack.c.bf16 %v3206, %v3205
      %v3256 = vunpack.c.l.b16 %v3248
      %v3257 = vunpack.c.h.b16 %v3248
      %v3258 = vunpack.c.l.b16 %v3249
      %v3259 = vunpack.c.h.b16 %v3249
      %v3260 = vunpack.c.l.b16 %v3250
      %v3261 = vunpack.c.h.b16 %v3250
      %v3262 = vunpack.c.l.b16 %v3251
      %v3263 = vunpack.c.h.b16 %v3251
      %v3264 = vpack.c.b16 %v3256, %v3256
      %v3265 = vpack.c.b16 %v3257, %v3257
      %v3266 = vpack.c.b16 %v3258, %v3258
      %v3267 = vpack.c.b16 %v3259, %v3259
      %v3268 = vpack.c.b16 %v3260, %v3260
      %v3269 = vpack.c.b16 %v3261, %v3261
      %v3270 = vpack.c.b16 %v3262, %v3262
      %v3271 = vpack.c.b16 %v3263, %v3263
      %3272 = vrot.lane.b32.xlu0 %v3264, 64
      %v3273 = vpop.permute.xlu0 %3272
      %3274 = vrot.lane.b32.xlu0 %v3265, 64
      %v3275 = vpop.permute.xlu0 %3274
      %3276 = vrot.lane.b32.xlu0 %v3266, 64
      %v3277 = vpop.permute.xlu0 %3276
      %3278 = vrot.lane.b32.xlu0 %v3267, 64
      %v3279 = vpop.permute.xlu0 %3278
      %3280 = vrot.lane.b32.xlu0 %v3268, 64
      %v3281 = vpop.permute.xlu0 %3280
      %3282 = vrot.lane.b32.xlu0 %v3269, 64
      %v3283 = vpop.permute.xlu0 %3282
      %3284 = vrot.lane.b32.xlu0 %v3270, 64
      %v3285 = vpop.permute.xlu0 %3284
      %3286 = vrot.lane.b32.xlu0 %v3271, 64
      %v3287 = vpop.permute.xlu0 %3286
      %vm3296 = vcmask 1043968
      %3297 = vst.msk [vmem:[%s574] sm:$0xf] %vm3296, %v3273
      %3298 = vst.msk [vmem:[%s574 + $0x4] sm:$0xf] %vm3296, %v3275
      %3299 = vst.msk [vmem:[%s574 + $0x8] sm:$0xf] %vm3296, %v3277
      %3300 = vst.msk [vmem:[%s574 + $0xc] sm:$0xf] %vm3296, %v3279
      %3301 = vst.msk [vmem:[%s574 + $0x10] sm:$0xf] %vm3296, %v3281
      %3302 = vst.msk [vmem:[%s574 + $0x14] sm:$0xf] %vm3296, %v3283
      %3303 = vst.msk [vmem:[%s574 + $0x18] sm:$0xf] %vm3296, %v3285
      %3304 = vst.msk [vmem:[%s574 + $0x1c] sm:$0xf] %vm3296, %v3287
      %v3305 = vsel %vm778, %v1993, 0.0
      %v3306 = vsel %vm778, %v1994, 0.0
      %v3307 = vadd.f32 %v3305, %v3306
      %v3308 = vsel %vm778, %v1995, 0.0
      %v3309 = vadd.f32 %v3307, %v3308
      %v3310 = vsel %vm778, %v1996, 0.0
      %v3311 = vadd.f32 %v3309, %v3310
      %v3312 = vsel %vm778, %v1997, 0.0
      %v3313 = vadd.f32 %v3311, %v3312
      %v3314 = vsel %vm778, %v1998, 0.0
      %v3315 = vadd.f32 %v3313, %v3314
      %v3316 = vsel %vm778, %v1999, 0.0
      %v3317 = vadd.f32 %v3315, %v3316
      %v3318 = vsel %vm778, %v2000, 0.0
      %v3319 = vadd.f32 %v3317, %v3318
      %v3320 = vrot.slane %v3319, 4
      %v3321 = vadd.f32 %v3319, %v3320
      %v3322 = vrot.slane %v3321, 2
      %v3323 = vadd.f32 %v3321, %v3322
      %v3324 = vrot.slane %v3323, 1
      %v3325 = vadd.f32 %v3323, %v3324
      %v3326 = vrcp.pop 64.0
      %v3327 = vmul.f32 %v3325, %v3326
      %v3328 = vsel %vm778, %v3199, 0.0
      %v3329 = vsel %vm778, %v3200, 0.0
      %v3330 = vadd.f32 %v3328, %v3329
      %v3331 = vsel %vm778, %v3201, 0.0
      %v3332 = vadd.f32 %v3330, %v3331
      %v3333 = vsel %vm778, %v3202, 0.0
      %v3334 = vadd.f32 %v3332, %v3333
      %v3335 = vsel %vm778, %v3203, 0.0
      %v3336 = vadd.f32 %v3334, %v3335
      %v3337 = vsel %vm778, %v3204, 0.0
      %v3338 = vadd.f32 %v3336, %v3337
      %v3339 = vsel %vm778, %v3205, 0.0
      %v3340 = vadd.f32 %v3338, %v3339
      %v3341 = vsel %vm778, %v3206, 0.0
      %v3342 = vadd.f32 %v3340, %v3341
      %v3343 = vrot.slane %v3342, 4
      %v3344 = vadd.f32 %v3342, %v3343
      %v3345 = vrot.slane %v3344, 2
      %v3346 = vadd.f32 %v3344, %v3345
      %v3347 = vrot.slane %v3346, 1
      %v3348 = vadd.f32 %v3346, %v3347
      %v3349 = vmul.f32 %v3348, %v3326
      %v3350 = vadd.f32 %v3327, %v3349
      %v3351 = vld [vmem:[%s14] sm:$0xff]
      %v3352 = vld [vmem:[%s14 + $0x8] sm:$0xff]
      %v3353 = vld [vmem:[%s14 + $0x10] sm:$0xff]
      %v3354 = vld [vmem:[%s14 + $0x18] sm:$0xff]
      %v3355 = vld [vmem:[%s14 + $0x20] sm:$0xff]
      %v3356 = vld [vmem:[%s14 + $0x28] sm:$0xff]
      %v3357 = vld [vmem:[%s14 + $0x30] sm:$0xff]
      %v3358 = vld [vmem:[%s14 + $0x38] sm:$0xff]
      %v3359 = vld [vmem:[%s15] sm:$0x1]
      %v3360 = vmul.f32 %v3359, 2.0
      %v3362 = vsel %vm778, %v3350, 0
      %3364 = vmatprep.subr.mxu0 0.0
      %3365 = vmatpush1.msra.mxu0 0.0
      %3366 = vmatprep.subr.mxu0 0.0
      %3367 = vmatpush1.msra.mxu0 0.0
      %3368 = vmatprep.subr.mxu0 0.0
      %3369 = vmatpush1.msra.mxu0 0.0
      %3370 = vmatprep.subr.mxu0 0.0
      %3371 = vmatpush1.msra.mxu0 0.0
      %3372 = vmatprep.subr.mxu0 0.0
      %3373 = vmatpush1.msra.mxu0 0.0
      %3374 = vmatprep.subr.mxu0 0.0
      %3375 = vmatpush1.msra.mxu0 0.0
      %3376 = vmatprep.subr.mxu0 0.0
      %3377 = vmatpush1.msra.mxu0 0.0
      %3378 = vmatprep.subr.mxu0 0.0
      %3379 = vmatpush1.msra.mxu0 0.0
      %3380 = vmatprep.subr.mxu0 0.0
      %3381 = vmatpush1.msra.mxu0 %v3358
      %3382 = vmatprep.subr.mxu0 0.0
      %3383 = vmatpush1.msra.mxu0 %v3357
      %3384 = vmatprep.subr.mxu0 0.0
      %3385 = vmatpush1.msra.mxu0 %v3356
      %3386 = vmatprep.subr.mxu0 0.0
      %3387 = vmatpush1.msra.mxu0 %v3355
      %3388 = vmatprep.subr.mxu0 0.0
      %3389 = vmatpush1.msra.mxu0 %v3354
      %3390 = vmatprep.subr.mxu0 0.0
      %3391 = vmatpush1.msra.mxu0 %v3353
      %3392 = vmatprep.subr.mxu0 0.0
      %3393 = vmatpush1.msra.mxu0 %v3352
      %3394 = vmatprep.subr.mxu0 0.0
      %3395 = vmatpush1.msra.mxu0 %v3351
      %3396 = vmatprep.subr.mxu0 0.0
      %3397 = vmatpush2.msra.mxu0 0.0
      %3398 = vmatprep.subr.mxu0 0.0
      %3399 = vmatpush2.msra.mxu0 0.0
      %3400 = vmatprep.subr.mxu0 0.0
      %3401 = vmatpush2.msra.mxu0 0.0
      %3402 = vmatprep.subr.mxu0 0.0
      %3403 = vmatpush2.msra.mxu0 0.0
      %3404 = vmatprep.subr.mxu0 0.0
      %3405 = vmatpush2.msra.mxu0 0.0
      %3406 = vmatprep.subr.mxu0 0.0
      %3407 = vmatpush2.msra.mxu0 0.0
      %3408 = vmatprep.subr.mxu0 0.0
      %3409 = vmatpush2.msra.mxu0 0.0
      %3410 = vmatprep.subr.mxu0 0.0
      %3411 = vmatpush2.msra.mxu0 0.0
      %3412 = vmatprep.subr.mxu0 0.0
      %3413 = vmatpush2.msra.mxu0 0.0
      %3414 = vmatprep.subr.mxu0 0.0
      %3415 = vmatpush2.msra.mxu0 0.0
      %3416 = vmatprep.subr.mxu0 0.0
      %3417 = vmatpush2.msra.mxu0 0.0
      %3418 = vmatprep.subr.mxu0 0.0
      %3419 = vmatpush2.msra.mxu0 0.0
      %3420 = vmatprep.subr.mxu0 0.0
      %3421 = vmatpush2.msra.mxu0 0.0
      %3422 = vmatprep.subr.mxu0 0.0
      %3423 = vmatpush2.msra.mxu0 0.0
      %3424 = vmatprep.subr.mxu0 0.0
      %3425 = vmatpush2.msra.mxu0 0.0
      %3426 = vmatprep.subr.mxu0 0.0
      %3427 = vmatpush2.msra.mxu0 0.0
      %3428 = vmatprep.mubr.f32.mxu0 0.0
      %3429 = vmatmul.mubr.f32.gmra.mxu0 %v3362
      %v3430 = vpop.f32.mrf.mxu0
      %v3431 = vadd.f32 %v3360, %v3430
      %v3432 = vpop.f32.mrf.mxu0
      %3433 = vdwg.mxu0
      %3434 = vst [vmem:[%s577] sm:$0x1] %v3431
      %p3435 = scmp.lt.s32.totalorder %s29, 1
      %s3436 = scalar_select %p3435, %s29, 1
      %s3437 = smul.addr %s3436, 8
      %s3438 = smul.addr %s3437, 4
      %s3439 = scalar_lea.vmem %s16, %s3438
      %p3440 = scmp.lt.s32.totalorder %s29, 1
      %s3441 = scalar_select %p3440, %s29, 1
      %s3442 = scalar_lea.vmem %s17, %s3441
      // Predicated region
      $region85: #{lxnet_forward.2} parent=83 // pred_check
        %p3443 = pneg %p393
      $region86: #{lxnet_forward.2} parent=83 // pred_check_branch
        %3445 = sbr.rel (%p3443) target = $region88
      $region87: #{lxnet_forward.2} parent=83 // pred_region
        _
      $region88: #{lxnet_forward.2} parent=83 // pred_fallthru
        _
      // Predicated region
      $region89: #{lxnet_forward.2} parent=83 // pred_check
        %p3446 = pneg %p419
      $region90: #{lxnet_forward.2} parent=83 // pred_check_branch
        %3448 = sbr.rel (%p3446) target = $region92
      $region91: #{lxnet_forward.2} parent=83 // pred_region
        _
      $region92: #{lxnet_forward.2} parent=83 // pred_fallthru
        _
    $region84: #{lxnet_forward.2} parent=5 // pred_fallthru
      _
    %p3449 = scmp.le.s32.totalorder 2, %s24
    // Predicated region
    $region93: #{lxnet_forward.2} parent=5 // pred_check
      %p3450 = pneg %p3449
    $region94: #{lxnet_forward.2} parent=5 // pred_check_branch
      %3452 = sbr.rel (%p3450) target = $region96
    $region95: #{lxnet_forward.2} parent=5 // pred_region
      %s3453 = ssub.s32 %s24, 2
      // Predicated region
      $region97: #{lxnet_forward.2} parent=95 // pred_check
        %p3454 = pneg %p399
      $region98: #{lxnet_forward.2} parent=95 // pred_check_branch
        %3456 = sbr.rel (%p3454) target = $region100
      $region99: #{lxnet_forward.2} parent=95 // pred_region
        %p3457 = scmp.lt.s32.totalorder %s30, 1
        %s3458 = scalar_select %p3457, %s30, 1
        %s3459 = smul.addr %s3458, 8
        %s3460 = smul.addr %s3459, 4
        %s3461 = scalar_lea.vmem %s16, %s3460
      $region100: #{lxnet_forward.2} parent=95 // pred_fallthru
        _
      // Predicated region
      $region101: #{lxnet_forward.2} parent=95 // pred_check
        %p3462 = pneg %p425
      $region102: #{lxnet_forward.2} parent=95 // pred_check_branch
        %3464 = sbr.rel (%p3462) target = $region104
      $region103: #{lxnet_forward.2} parent=95 // pred_region
        %p3465 = scmp.lt.s32.totalorder %s30, 1
        %s3466 = scalar_select %p3465, %s30, 1
        %s3467 = scalar_lea.vmem %s17, %s3466
      $region104: #{lxnet_forward.2} parent=95 // pred_fallthru
        _
    $region96: #{lxnet_forward.2} parent=5 // pred_fallthru
      _
  $region6: #{lxnet_forward.2} parent=0 // loop_footer
    %s28 = sadd.s32 1, %s24
  $region7: #{lxnet_forward.2} parent=0 // loop_footer_branch
    %23 = sbr.rel target = $region3
  $region8: #{lxnet_forward.2} parent=0 // loop_exit
    _

// kernel: lxnet_forward.3
$region0: #{lxnet_forward.3}
  #allocation0 [shape = 'u32[]', space=smem, size = 0x4, offset = 0x4, fixed_abs, tag = 'smem constant byte address 0x4 - core index']
  #allocation1 [shape = 'u32[144,128]{1,0:T(1,128)}', space=vmem, size = 0x12000, scoped, tag = 'internal scratch']
  #allocation2 [shape = 'f32[8,64]{1,0:T(8,128)}', space=vmem, size = 0x1000, scoped, tag = 'scratch operand']
  %s0 = inlined_call_operand.vmem [shape: bf16[2,64,128], index: 0, kind: input, shape index: {}]
  %s1 = inlined_call_operand.vmem [shape: bf16[64,5], index: 1, kind: input, shape index: {}]
  %s2 = inlined_call_operand.vmem [shape: bf16[64,64], index: 2, kind: input, shape index: {}]
  %s3 = inlined_call_operand.vmem [shape: f32[1,64], index: 3, kind: input, shape index: {}]
  %s4 = inlined_call_operand.vmem [shape: f32[8,64], index: 4, kind: input, shape index: {}]
  %s5 = inlined_call_operand.vmem [shape: f32[2,1,64], index: 5, kind: input, shape index: {}]
  %s6 = inlined_call_operand.vmem [shape: f32[2,1,64], index: 6, kind: input, shape index: {}]
  %s7 = inlined_call_operand.vmem [shape: bf16[2,64,256], index: 7, kind: input, shape index: {}]
  %s8 = inlined_call_operand.vmem [shape: f32[2,1,256], index: 8, kind: input, shape index: {}]
  %s9 = inlined_call_operand.vmem [shape: bf16[2,64,256], index: 9, kind: input, shape index: {}]
  %s10 = inlined_call_operand.vmem [shape: f32[2,1,256], index: 10, kind: input, shape index: {}]
  %s11 = inlined_call_operand.vmem [shape: bf16[2,64,256], index: 11, kind: input, shape index: {}]
  %s12 = inlined_call_operand.vmem [shape: f32[2,1,256], index: 12, kind: input, shape index: {}]
  %s13 = inlined_call_operand.vmem [shape: bf16[2,256,64], index: 13, kind: input, shape index: {}]
  %s14 = inlined_call_operand.vmem [shape: f32[2,1,64], index: 14, kind: input, shape index: {}]
  %s15 = inlined_call_operand.vmem [shape: f32[2,1,64], index: 15, kind: input, shape index: {}]
  %s16 = inlined_call_operand.vmem [shape: f32[2,1,64], index: 16, kind: input, shape index: {}]
  %s17 = inlined_call_operand.vmem [shape: bf16[2,64,32], index: 17, kind: input, shape index: {}]
  %s18 = inlined_call_operand.vmem [shape: f32[2,1,32], index: 18, kind: input, shape index: {}]
  %s19 = inlined_call_operand.vmem [shape: bf16[2,32,64], index: 19, kind: input, shape index: {}]
  %s20 = inlined_call_operand.vmem [shape: f32[2,1,64], index: 20, kind: input, shape index: {}]
  %s21 = inlined_call_operand.vmem [shape: f32[256,4], index: 21, kind: input, shape index: {}]
  %s22 = inlined_call_operand.vmem [shape: f32[4,256], index: 22, kind: input, shape index: {}]
  %s23 = inlined_call_operand.vmem [shape: f32[64,128], index: 23, kind: input, shape index: {}]
  %s24 = inlined_call_operand.vmem [shape: f32[1,128], index: 24, kind: input, shape index: {}]
  %s25 = inlined_call_operand.vmem [shape: f32[2,1,128], index: 25, kind: output, shape index: {}]
  %s26 = sld [smem:[#allocation0]]
  $region133: #{lxnet_forward.3} parent=0
    _
  %s28 = ssub.s32 1, %s26
  %s29 = scalar_select 0, %s28, %s26
  loop: start=0, step=1, limit=4
  $region2: #{lxnet_forward.3} parent=0 // loop_pre_header
    _
  $region3: #{lxnet_forward.3} parent=0 // loop_header
    %s31 = sphi 0, %s35
    %p32 = scmp.ge.s32.totalorder %s31, 4
    %s41 = sphi 0, %s43
    %s44 = sphi 0, %s41
    %s45 = sphi 0, %s44
    %s61 = sphi 0, %s45
    %s65 = sphi 0, %s65
    %s67 = sphi 0, %s65
    %s68 = sphi 0, %s67
    %s82 = sphi 0, %s68
    %s86 = sphi 0, %s86
    %s88 = sphi 0, %s86
    %s89 = sphi 0, %s88
    %s103 = sphi 0, %s89
    %s107 = sphi 0, %s107
    %s109 = sphi 0, %s107
    %s110 = sphi 0, %s109
    %s124 = sphi 0, %s110
    %s128 = sphi 0, %s128
    %s130 = sphi 0, %s128
    %s131 = sphi 0, %s130
    %s145 = sphi 0, %s131
    %s149 = sphi 0, %s149
    %s151 = sphi 0, %s149
    %s152 = sphi 0, %s151
    %s166 = sphi 0, %s152
    %s170 = sphi 0, %s170
    %s172 = sphi 0, %s170
    %s173 = sphi 0, %s172
    %s187 = sphi 0, %s173
    %s191 = sphi 0, %s191
    %s193 = sphi 0, %s191
    %s194 = sphi 0, %s193
    %s208 = sphi 0, %s194
    %s212 = sphi 0, %s212
    %s214 = sphi 0, %s212
    %s215 = sphi 0, %s214
    %s229 = sphi 0, %s215
    %s233 = sphi 0, %s233
    %s235 = sphi 0, %s233
    %s236 = sphi 0, %s235
    %s250 = sphi 0, %s236
    %s254 = sphi 0, %s254
    %s256 = sphi 0, %s254
    %s257 = sphi 0, %s256
    %s271 = sphi 0, %s257
    %s275 = sphi 0, %s275
    %s277 = sphi 0, %s275
    %s278 = sphi 0, %s277
    %s292 = sphi 0, %s278
    %s296 = sphi 0, %s296
    %s298 = sphi 0, %s296
    %s299 = sphi 0, %s298
    %s313 = sphi 0, %s299
    %s317 = sphi 0, %s317
    %s319 = sphi 0, %s317
    %s320 = sphi 0, %s319
    %s334 = sphi 0, %s320
    %s338 = sphi 0, %s338
    %s340 = sphi 0, %s338
    %s341 = sphi 0, %s340
    %s355 = sphi 0, %s341
    %s359 = sphi 0, %s359
    %s361 = sphi 0, %s359
    %s362 = sphi 0, %s361
    %s376 = sphi 0, %s362
    %s380 = sphi 0, %s380
    %s382 = sphi 0, %s380
    %s383 = sphi 0, %s382
    %s397 = sphi 0, %s383
    %s401 = sphi 0, %s401
    %s403 = sphi 0, %s401
    %s404 = sphi 0, %s403
    %s418 = sphi 0, %s404
    %s422 = sphi 0, %s422
    %s424 = sphi 0, %s422
    %s425 = sphi 0, %s424
    %s439 = sphi 0, %s425
    %s443 = sphi 0, %s443
    %s445 = sphi 0, %s443
    %s446 = sphi 0, %s445
    %s460 = sphi 0, %s446
    %s464 = sphi 0, %s464
    %s466 = sphi 0, %s464
    %s467 = sphi 0, %s466
    %s481 = sphi 0, %s467
    %s485 = sphi 0, %s485
    %s487 = sphi 0, %s485
    %s488 = sphi 0, %s487
    %s502 = sphi 0, %s488
    %s506 = sphi 0, %s506
    %s508 = sphi 0, %s506
    %s509 = sphi 0, %s508
    %s523 = sphi 0, %s509
    %s527 = sphi 0, %s527
    %s529 = sphi 0, %s527
    %s530 = sphi 0, %s529
    %s544 = sphi 0, %s530
    %s548 = sphi 0, %s548
    %s550 = sphi 0, %s548
    %s551 = sphi 0, %s550
    %s565 = sphi 0, %s551
    %s571 = sphi 0, %s573
    %s574 = sphi 0, %s571
    %s575 = sphi 0, %s574
    %s591 = sphi 0, %s575
  $region4: #{lxnet_forward.3} parent=0 // loop_header_branch
    %34 = sbr.rel (%p32) target = $region8
  $region5: #{lxnet_forward.3} parent=0 // loop_body
    %s36 = ssub.s32 %s31, 1
    %s37 = ssub.s32 %s31, 2
    %s38 = sadd.s32 %s31, 1
    %s39 = ssub.s32 %s31, %s38
    %p40 = scmp.eq.s32.totalorder %s39, 0
    %s42 = sadd.s32 %s41, 1
    %s43 = scalar_select %p40, %s41, %s42
    %p46 = pneg %p40
    %p47 = scmp.eq.s32.totalorder %s31, 1
    %p48 = por %p46, %p47
    %p49 = scmp.ne.s32.totalorder %s41, %s44
    %p50 = scmp.eq.s32.totalorder %s31, 0
    %p51 = por %p49, %p50
    %p52 = scmp.ne.s32.totalorder %s41, %s44
    %p53 = scmp.eq.s32.totalorder %s36, 1
    %p54 = por %p52, %p53
    %p55 = scmp.ne.s32.totalorder %s44, %s45
    %p56 = scmp.eq.s32.totalorder %s36, 0
    %p57 = por %p55, %p56
    %p58 = scmp.ne.s32.totalorder %s44, %s45
    %p59 = scmp.eq.s32.totalorder %s37, 1
    %p60 = por %p58, %p59
    %p62 = scmp.ne.s32.totalorder %s45, %s61
    %p63 = scmp.eq.s32.totalorder %s37, 0
    %p64 = por %p62, %p63
    %s66 = sadd.s32 %s65, 1
    %p69 = scmp.eq.s32.totalorder %s31, 1
    %p70 = scmp.ne.s32.totalorder %s65, %s67
    %p71 = scmp.eq.s32.totalorder %s31, 0
    %p72 = por %p70, %p71
    %p73 = scmp.ne.s32.totalorder %s65, %s67
    %p74 = scmp.eq.s32.totalorder %s36, 1
    %p75 = por %p73, %p74
    %p76 = scmp.ne.s32.totalorder %s67, %s68
    %p77 = scmp.eq.s32.totalorder %s36, 0
    %p78 = por %p76, %p77
    %p79 = scmp.ne.s32.totalorder %s67, %s68
    %p80 = scmp.eq.s32.totalorder %s37, 1
    %p81 = por %p79, %p80
    %p83 = scmp.ne.s32.totalorder %s68, %s82
    %p84 = scmp.eq.s32.totalorder %s37, 0
    %p85 = por %p83, %p84
    %s87 = sadd.s32 %s86, 1
    %p90 = scmp.eq.s32.totalorder %s31, 1
    %p91 = scmp.ne.s32.totalorder %s86, %s88
    %p92 = scmp.eq.s32.totalorder %s31, 0
    %p93 = por %p91, %p92
    %p94 = scmp.ne.s32.totalorder %s86, %s88
    %p95 = scmp.eq.s32.totalorder %s36, 1
    %p96 = por %p94, %p95
    %p97 = scmp.ne.s32.totalorder %s88, %s89
    %p98 = scmp.eq.s32.totalorder %s36, 0
    %p99 = por %p97, %p98
    %p100 = scmp.ne.s32.totalorder %s88, %s89
    %p101 = scmp.eq.s32.totalorder %s37, 1
    %p102 = por %p100, %p101
    %p104 = scmp.ne.s32.totalorder %s89, %s103
    %p105 = scmp.eq.s32.totalorder %s37, 0
    %p106 = por %p104, %p105
    %s108 = sadd.s32 %s107, 1
    %p111 = scmp.eq.s32.totalorder %s31, 1
    %p112 = scmp.ne.s32.totalorder %s107, %s109
    %p113 = scmp.eq.s32.totalorder %s31, 0
    %p114 = por %p112, %p113
    %p115 = scmp.ne.s32.totalorder %s107, %s109
    %p116 = scmp.eq.s32.totalorder %s36, 1
    %p117 = por %p115, %p116
    %p118 = scmp.ne.s32.totalorder %s109, %s110
    %p119 = scmp.eq.s32.totalorder %s36, 0
    %p120 = por %p118, %p119
    %p121 = scmp.ne.s32.totalorder %s109, %s110
    %p122 = scmp.eq.s32.totalorder %s37, 1
    %p123 = por %p121, %p122
    %p125 = scmp.ne.s32.totalorder %s110, %s124
    %p126 = scmp.eq.s32.totalorder %s37, 0
    %p127 = por %p125, %p126
    %s129 = sadd.s32 %s128, 1
    %p132 = scmp.eq.s32.totalorder %s31, 1
    %p133 = scmp.ne.s32.totalorder %s128, %s130
    %p134 = scmp.eq.s32.totalorder %s31, 0
    %p135 = por %p133, %p134
    %p136 = scmp.ne.s32.totalorder %s128, %s130
    %p137 = scmp.eq.s32.totalorder %s36, 1
    %p138 = por %p136, %p137
    %p139 = scmp.ne.s32.totalorder %s130, %s131
    %p140 = scmp.eq.s32.totalorder %s36, 0
    %p141 = por %p139, %p140
    %p142 = scmp.ne.s32.totalorder %s130, %s131
    %p143 = scmp.eq.s32.totalorder %s37, 1
    %p144 = por %p142, %p143
    %p146 = scmp.ne.s32.totalorder %s131, %s145
    %p147 = scmp.eq.s32.totalorder %s37, 0
    %p148 = por %p146, %p147
    %s150 = sadd.s32 %s149, 1
    %p153 = scmp.eq.s32.totalorder %s31, 1
    %p154 = scmp.ne.s32.totalorder %s149, %s151
    %p155 = scmp.eq.s32.totalorder %s31, 0
    %p156 = por %p154, %p155
    %p157 = scmp.ne.s32.totalorder %s149, %s151
    %p158 = scmp.eq.s32.totalorder %s36, 1
    %p159 = por %p157, %p158
    %p160 = scmp.ne.s32.totalorder %s151, %s152
    %p161 = scmp.eq.s32.totalorder %s36, 0
    %p162 = por %p160, %p161
    %p163 = scmp.ne.s32.totalorder %s151, %s152
    %p164 = scmp.eq.s32.totalorder %s37, 1
    %p165 = por %p163, %p164
    %p167 = scmp.ne.s32.totalorder %s152, %s166
    %p168 = scmp.eq.s32.totalorder %s37, 0
    %p169 = por %p167, %p168
    %s171 = sadd.s32 %s170, 1
    %p174 = scmp.eq.s32.totalorder %s31, 1
    %p175 = scmp.ne.s32.totalorder %s170, %s172
    %p176 = scmp.eq.s32.totalorder %s31, 0
    %p177 = por %p175, %p176
    %p178 = scmp.ne.s32.totalorder %s170, %s172
    %p179 = scmp.eq.s32.totalorder %s36, 1
    %p180 = por %p178, %p179
    %p181 = scmp.ne.s32.totalorder %s172, %s173
    %p182 = scmp.eq.s32.totalorder %s36, 0
    %p183 = por %p181, %p182
    %p184 = scmp.ne.s32.totalorder %s172, %s173
    %p185 = scmp.eq.s32.totalorder %s37, 1
    %p186 = por %p184, %p185
    %p188 = scmp.ne.s32.totalorder %s173, %s187
    %p189 = scmp.eq.s32.totalorder %s37, 0
    %p190 = por %p188, %p189
    %s192 = sadd.s32 %s191, 1
    %p195 = scmp.eq.s32.totalorder %s31, 1
    %p196 = scmp.ne.s32.totalorder %s191, %s193
    %p197 = scmp.eq.s32.totalorder %s31, 0
    %p198 = por %p196, %p197
    %p199 = scmp.ne.s32.totalorder %s191, %s193
    %p200 = scmp.eq.s32.totalorder %s36, 1
    %p201 = por %p199, %p200
    %p202 = scmp.ne.s32.totalorder %s193, %s194
    %p203 = scmp.eq.s32.totalorder %s36, 0
    %p204 = por %p202, %p203
    %p205 = scmp.ne.s32.totalorder %s193, %s194
    %p206 = scmp.eq.s32.totalorder %s37, 1
    %p207 = por %p205, %p206
    %p209 = scmp.ne.s32.totalorder %s194, %s208
    %p210 = scmp.eq.s32.totalorder %s37, 0
    %p211 = por %p209, %p210
    %s213 = sadd.s32 %s212, 1
    %p216 = scmp.eq.s32.totalorder %s31, 1
    %p217 = scmp.ne.s32.totalorder %s212, %s214
    %p218 = scmp.eq.s32.totalorder %s31, 0
    %p219 = por %p217, %p218
    %p220 = scmp.ne.s32.totalorder %s212, %s214
    %p221 = scmp.eq.s32.totalorder %s36, 1
    %p222 = por %p220, %p221
    %p223 = scmp.ne.s32.totalorder %s214, %s215
    %p224 = scmp.eq.s32.totalorder %s36, 0
    %p225 = por %p223, %p224
    %p226 = scmp.ne.s32.totalorder %s214, %s215
    %p227 = scmp.eq.s32.totalorder %s37, 1
    %p228 = por %p226, %p227
    %p230 = scmp.ne.s32.totalorder %s215, %s229
    %p231 = scmp.eq.s32.totalorder %s37, 0
    %p232 = por %p230, %p231
    %s234 = sadd.s32 %s233, 1
    %p237 = scmp.eq.s32.totalorder %s31, 1
    %p238 = scmp.ne.s32.totalorder %s233, %s235
    %p239 = scmp.eq.s32.totalorder %s31, 0
    %p240 = por %p238, %p239
    %p241 = scmp.ne.s32.totalorder %s233, %s235
    %p242 = scmp.eq.s32.totalorder %s36, 1
    %p243 = por %p241, %p242
    %p244 = scmp.ne.s32.totalorder %s235, %s236
    %p245 = scmp.eq.s32.totalorder %s36, 0
    %p246 = por %p244, %p245
    %p247 = scmp.ne.s32.totalorder %s235, %s236
    %p248 = scmp.eq.s32.totalorder %s37, 1
    %p249 = por %p247, %p248
    %p251 = scmp.ne.s32.totalorder %s236, %s250
    %p252 = scmp.eq.s32.totalorder %s37, 0
    %p253 = por %p251, %p252
    %s255 = sadd.s32 %s254, 1
    %p258 = scmp.eq.s32.totalorder %s31, 1
    %p259 = scmp.ne.s32.totalorder %s254, %s256
    %p260 = scmp.eq.s32.totalorder %s31, 0
    %p261 = por %p259, %p260
    %p262 = scmp.ne.s32.totalorder %s254, %s256
    %p263 = scmp.eq.s32.totalorder %s36, 1
    %p264 = por %p262, %p263
    %p265 = scmp.ne.s32.totalorder %s256, %s257
    %p266 = scmp.eq.s32.totalorder %s36, 0
    %p267 = por %p265, %p266
    %p268 = scmp.ne.s32.totalorder %s256, %s257
    %p269 = scmp.eq.s32.totalorder %s37, 1
    %p270 = por %p268, %p269
    %p272 = scmp.ne.s32.totalorder %s257, %s271
    %p273 = scmp.eq.s32.totalorder %s37, 0
    %p274 = por %p272, %p273
    %s276 = sadd.s32 %s275, 1
    %p279 = scmp.eq.s32.totalorder %s31, 1
    %p280 = scmp.ne.s32.totalorder %s275, %s277
    %p281 = scmp.eq.s32.totalorder %s31, 0
    %p282 = por %p280, %p281
    %p283 = scmp.ne.s32.totalorder %s275, %s277
    %p284 = scmp.eq.s32.totalorder %s36, 1
    %p285 = por %p283, %p284
    %p286 = scmp.ne.s32.totalorder %s277, %s278
    %p287 = scmp.eq.s32.totalorder %s36, 0
    %p288 = por %p286, %p287
    %p289 = scmp.ne.s32.totalorder %s277, %s278
    %p290 = scmp.eq.s32.totalorder %s37, 1
    %p291 = por %p289, %p290
    %p293 = scmp.ne.s32.totalorder %s278, %s292
    %p294 = scmp.eq.s32.totalorder %s37, 0
    %p295 = por %p293, %p294
    %s297 = sadd.s32 %s296, 1
    %p300 = scmp.eq.s32.totalorder %s31, 1
    %p301 = scmp.ne.s32.totalorder %s296, %s298
    %p302 = scmp.eq.s32.totalorder %s31, 0
    %p303 = por %p301, %p302
    %p304 = scmp.ne.s32.totalorder %s296, %s298
    %p305 = scmp.eq.s32.totalorder %s36, 1
    %p306 = por %p304, %p305
    %p307 = scmp.ne.s32.totalorder %s298, %s299
    %p308 = scmp.eq.s32.totalorder %s36, 0
    %p309 = por %p307, %p308
    %p310 = scmp.ne.s32.totalorder %s298, %s299
    %p311 = scmp.eq.s32.totalorder %s37, 1
    %p312 = por %p310, %p311
    %p314 = scmp.ne.s32.totalorder %s299, %s313
    %p315 = scmp.eq.s32.totalorder %s37, 0
    %p316 = por %p314, %p315
    %s318 = sadd.s32 %s317, 1
    %p321 = scmp.eq.s32.totalorder %s31, 1
    %p322 = scmp.ne.s32.totalorder %s317, %s319
    %p323 = scmp.eq.s32.totalorder %s31, 0
    %p324 = por %p322, %p323
    %p325 = scmp.ne.s32.totalorder %s317, %s319
    %p326 = scmp.eq.s32.totalorder %s36, 1
    %p327 = por %p325, %p326
    %p328 = scmp.ne.s32.totalorder %s319, %s320
    %p329 = scmp.eq.s32.totalorder %s36, 0
    %p330 = por %p328, %p329
    %p331 = scmp.ne.s32.totalorder %s319, %s320
    %p332 = scmp.eq.s32.totalorder %s37, 1
    %p333 = por %p331, %p332
    %p335 = scmp.ne.s32.totalorder %s320, %s334
    %p336 = scmp.eq.s32.totalorder %s37, 0
    %p337 = por %p335, %p336
    %s339 = sadd.s32 %s338, 1
    %p342 = scmp.eq.s32.totalorder %s31, 1
    %p343 = scmp.ne.s32.totalorder %s338, %s340
    %p344 = scmp.eq.s32.totalorder %s31, 0
    %p345 = por %p343, %p344
    %p346 = scmp.ne.s32.totalorder %s338, %s340
    %p347 = scmp.eq.s32.totalorder %s36, 1
    %p348 = por %p346, %p347
    %p349 = scmp.ne.s32.totalorder %s340, %s341
    %p350 = scmp.eq.s32.totalorder %s36, 0
    %p351 = por %p349, %p350
    %p352 = scmp.ne.s32.totalorder %s340, %s341
    %p353 = scmp.eq.s32.totalorder %s37, 1
    %p354 = por %p352, %p353
    %p356 = scmp.ne.s32.totalorder %s341, %s355
    %p357 = scmp.eq.s32.totalorder %s37, 0
    %p358 = por %p356, %p357
    %s360 = sadd.s32 %s359, 1
    %p363 = scmp.eq.s32.totalorder %s31, 1
    %p364 = scmp.ne.s32.totalorder %s359, %s361
    %p365 = scmp.eq.s32.totalorder %s31, 0
    %p366 = por %p364, %p365
    %p367 = scmp.ne.s32.totalorder %s359, %s361
    %p368 = scmp.eq.s32.totalorder %s36, 1
    %p369 = por %p367, %p368
    %p370 = scmp.ne.s32.totalorder %s361, %s362
    %p371 = scmp.eq.s32.totalorder %s36, 0
    %p372 = por %p370, %p371
    %p373 = scmp.ne.s32.totalorder %s361, %s362
    %p374 = scmp.eq.s32.totalorder %s37, 1
    %p375 = por %p373, %p374
    %p377 = scmp.ne.s32.totalorder %s362, %s376
    %p378 = scmp.eq.s32.totalorder %s37, 0
    %p379 = por %p377, %p378
    %s381 = sadd.s32 %s380, 1
    %p384 = scmp.eq.s32.totalorder %s31, 1
    %p385 = scmp.ne.s32.totalorder %s380, %s382
    %p386 = scmp.eq.s32.totalorder %s31, 0
    %p387 = por %p385, %p386
    %p388 = scmp.ne.s32.totalorder %s380, %s382
    %p389 = scmp.eq.s32.totalorder %s36, 1
    %p390 = por %p388, %p389
    %p391 = scmp.ne.s32.totalorder %s382, %s383
    %p392 = scmp.eq.s32.totalorder %s36, 0
    %p393 = por %p391, %p392
    %p394 = scmp.ne.s32.totalorder %s382, %s383
    %p395 = scmp.eq.s32.totalorder %s37, 1
    %p396 = por %p394, %p395
    %p398 = scmp.ne.s32.totalorder %s383, %s397
    %p399 = scmp.eq.s32.totalorder %s37, 0
    %p400 = por %p398, %p399
    %s402 = sadd.s32 %s401, 1
    %p405 = scmp.eq.s32.totalorder %s31, 1
    %p406 = scmp.ne.s32.totalorder %s401, %s403
    %p407 = scmp.eq.s32.totalorder %s31, 0
    %p408 = por %p406, %p407
    %p409 = scmp.ne.s32.totalorder %s401, %s403
    %p410 = scmp.eq.s32.totalorder %s36, 1
    %p411 = por %p409, %p410
    %p412 = scmp.ne.s32.totalorder %s403, %s404
    %p413 = scmp.eq.s32.totalorder %s36, 0
    %p414 = por %p412, %p413
    %p415 = scmp.ne.s32.totalorder %s403, %s404
    %p416 = scmp.eq.s32.totalorder %s37, 1
    %p417 = por %p415, %p416
    %p419 = scmp.ne.s32.totalorder %s404, %s418
    %p420 = scmp.eq.s32.totalorder %s37, 0
    %p421 = por %p419, %p420
    %s423 = sadd.s32 %s422, 1
    %p426 = scmp.eq.s32.totalorder %s31, 1
    %p427 = scmp.ne.s32.totalorder %s422, %s424
    %p428 = scmp.eq.s32.totalorder %s31, 0
    %p429 = por %p427, %p428
    %p430 = scmp.ne.s32.totalorder %s422, %s424
    %p431 = scmp.eq.s32.totalorder %s36, 1
    %p432 = por %p430, %p431
    %p433 = scmp.ne.s32.totalorder %s424, %s425
    %p434 = scmp.eq.s32.totalorder %s36, 0
    %p435 = por %p433, %p434
    %p436 = scmp.ne.s32.totalorder %s424, %s425
    %p437 = scmp.eq.s32.totalorder %s37, 1
    %p438 = por %p436, %p437
    %p440 = scmp.ne.s32.totalorder %s425, %s439
    %p441 = scmp.eq.s32.totalorder %s37, 0
    %p442 = por %p440, %p441
    %s444 = sadd.s32 %s443, 1
    %p447 = scmp.eq.s32.totalorder %s31, 1
    %p448 = scmp.ne.s32.totalorder %s443, %s445
    %p449 = scmp.eq.s32.totalorder %s31, 0
    %p450 = por %p448, %p449
    %p451 = scmp.ne.s32.totalorder %s443, %s445
    %p452 = scmp.eq.s32.totalorder %s36, 1
    %p453 = por %p451, %p452
    %p454 = scmp.ne.s32.totalorder %s445, %s446
    %p455 = scmp.eq.s32.totalorder %s36, 0
    %p456 = por %p454, %p455
    %p457 = scmp.ne.s32.totalorder %s445, %s446
    %p458 = scmp.eq.s32.totalorder %s37, 1
    %p459 = por %p457, %p458
    %p461 = scmp.ne.s32.totalorder %s446, %s460
    %p462 = scmp.eq.s32.totalorder %s37, 0
    %p463 = por %p461, %p462
    %s465 = sadd.s32 %s464, 1
    %p468 = scmp.eq.s32.totalorder %s31, 1
    %p469 = scmp.ne.s32.totalorder %s464, %s466
    %p470 = scmp.eq.s32.totalorder %s31, 0
    %p471 = por %p469, %p470
    %p472 = scmp.ne.s32.totalorder %s464, %s466
    %p473 = scmp.eq.s32.totalorder %s36, 1
    %p474 = por %p472, %p473
    %p475 = scmp.ne.s32.totalorder %s466, %s467
    %p476 = scmp.eq.s32.totalorder %s36, 0
    %p477 = por %p475, %p476
    %p478 = scmp.ne.s32.totalorder %s466, %s467
    %p479 = scmp.eq.s32.totalorder %s37, 1
    %p480 = por %p478, %p479
    %p482 = scmp.ne.s32.totalorder %s467, %s481
    %p483 = scmp.eq.s32.totalorder %s37, 0
    %p484 = por %p482, %p483
    %s486 = sadd.s32 %s485, 1
    %p489 = scmp.eq.s32.totalorder %s31, 1
    %p490 = scmp.ne.s32.totalorder %s485, %s487
    %p491 = scmp.eq.s32.totalorder %s31, 0
    %p492 = por %p490, %p491
    %p493 = scmp.ne.s32.totalorder %s485, %s487
    %p494 = scmp.eq.s32.totalorder %s36, 1
    %p495 = por %p493, %p494
    %p496 = scmp.ne.s32.totalorder %s487, %s488
    %p497 = scmp.eq.s32.totalorder %s36, 0
    %p498 = por %p496, %p497
    %p499 = scmp.ne.s32.totalorder %s487, %s488
    %p500 = scmp.eq.s32.totalorder %s37, 1
    %p501 = por %p499, %p500
    %p503 = scmp.ne.s32.totalorder %s488, %s502
    %p504 = scmp.eq.s32.totalorder %s37, 0
    %p505 = por %p503, %p504
    %s507 = sadd.s32 %s506, 1
    %p510 = scmp.eq.s32.totalorder %s31, 1
    %p511 = scmp.ne.s32.totalorder %s506, %s508
    %p512 = scmp.eq.s32.totalorder %s31, 0
    %p513 = por %p511, %p512
    %p514 = scmp.ne.s32.totalorder %s506, %s508
    %p515 = scmp.eq.s32.totalorder %s36, 1
    %p516 = por %p514, %p515
    %p517 = scmp.ne.s32.totalorder %s508, %s509
    %p518 = scmp.eq.s32.totalorder %s36, 0
    %p519 = por %p517, %p518
    %p520 = scmp.ne.s32.totalorder %s508, %s509
    %p521 = scmp.eq.s32.totalorder %s37, 1
    %p522 = por %p520, %p521
    %p524 = scmp.ne.s32.totalorder %s509, %s523
    %p525 = scmp.eq.s32.totalorder %s37, 0
    %p526 = por %p524, %p525
    %s528 = sadd.s32 %s527, 1
    %p531 = scmp.eq.s32.totalorder %s31, 1
    %p532 = scmp.ne.s32.totalorder %s527, %s529
    %p533 = scmp.eq.s32.totalorder %s31, 0
    %p534 = por %p532, %p533
    %p535 = scmp.ne.s32.totalorder %s527, %s529
    %p536 = scmp.eq.s32.totalorder %s36, 1
    %p537 = por %p535, %p536
    %p538 = scmp.ne.s32.totalorder %s529, %s530
    %p539 = scmp.eq.s32.totalorder %s36, 0
    %p540 = por %p538, %p539
    %p541 = scmp.ne.s32.totalorder %s529, %s530
    %p542 = scmp.eq.s32.totalorder %s37, 1
    %p543 = por %p541, %p542
    %p545 = scmp.ne.s32.totalorder %s530, %s544
    %p546 = scmp.eq.s32.totalorder %s37, 0
    %p547 = por %p545, %p546
    %s549 = sadd.s32 %s548, 1
    %p552 = scmp.eq.s32.totalorder %s31, 1
    %p553 = scmp.ne.s32.totalorder %s548, %s550
    %p554 = scmp.eq.s32.totalorder %s31, 0
    %p555 = por %p553, %p554
    %p556 = scmp.ne.s32.totalorder %s548, %s550
    %p557 = scmp.eq.s32.totalorder %s36, 1
    %p558 = por %p556, %p557
    %p559 = scmp.ne.s32.totalorder %s550, %s551
    %p560 = scmp.eq.s32.totalorder %s36, 0
    %p561 = por %p559, %p560
    %p562 = scmp.ne.s32.totalorder %s550, %s551
    %p563 = scmp.eq.s32.totalorder %s37, 1
    %p564 = por %p562, %p563
    %p566 = scmp.ne.s32.totalorder %s551, %s565
    %p567 = scmp.eq.s32.totalorder %s37, 0
    %p568 = por %p566, %p567
    %s569 = ssub.s32 %s31, %s38
    %p570 = scmp.eq.s32.totalorder %s569, 0
    %s572 = sadd.s32 %s571, 1
    %s573 = scalar_select %p570, %s571, %s572
    %p576 = pneg %p570
    %p577 = scmp.eq.s32.totalorder %s31, 1
    %p578 = por %p576, %p577
    %p579 = scmp.ne.s32.totalorder %s571, %s574
    %p580 = scmp.eq.s32.totalorder %s31, 0
    %p581 = por %p579, %p580
    %p582 = scmp.ne.s32.totalorder %s571, %s574
    %p583 = scmp.eq.s32.totalorder %s36, 1
    %p584 = por %p582, %p583
    %p585 = scmp.ne.s32.totalorder %s574, %s575
    %p586 = scmp.eq.s32.totalorder %s36, 0
    %p587 = por %p585, %p586
    %p588 = scmp.ne.s32.totalorder %s574, %s575
    %p589 = scmp.eq.s32.totalorder %s37, 1
    %p590 = por %p588, %p589
    %p592 = scmp.ne.s32.totalorder %s575, %s591
    %p593 = scmp.eq.s32.totalorder %s37, 0
    %p594 = por %p592, %p593
    %p595 = scmp.le.s32.totalorder 1, %s31
    %p596 = scmp.lt.s32.totalorder %s31, 3
    %p597 = pnand %p595, %p596
    %p598 = pneg %p597
    // Predicated region
    $region9: #{lxnet_forward.3} parent=5 // pred_check
      _
    $region10: #{lxnet_forward.3} parent=5 // pred_check_branch
      %600 = sbr.rel (%p597) target = $region12
    $region11: #{lxnet_forward.3} parent=5 // pred_region
      %s601 = ssub.s32 %s31, 1
      // Predicated region
      $region13: #{lxnet_forward.3} parent=11 // pred_check
        %p602 = pneg %p78
      $region14: #{lxnet_forward.3} parent=11 // pred_check_branch
        %604 = sbr.rel (%p602) target = $region16
      $region15: #{lxnet_forward.3} parent=11 // pred_region
        _
      $region16: #{lxnet_forward.3} parent=11 // pred_fallthru
        _
      // Predicated region
      $region17: #{lxnet_forward.3} parent=11 // pred_check
        %p605 = pneg %p99
      $region18: #{lxnet_forward.3} parent=11 // pred_check_branch
        %607 = sbr.rel (%p605) target = $region20
      $region19: #{lxnet_forward.3} parent=11 // pred_region
        _
      $region20: #{lxnet_forward.3} parent=11 // pred_fallthru
        _
      // Predicated region
      $region21: #{lxnet_forward.3} parent=11 // pred_check
        %p608 = pneg %p120
      $region22: #{lxnet_forward.3} parent=11 // pred_check_branch
        %610 = sbr.rel (%p608) target = $region24
      $region23: #{lxnet_forward.3} parent=11 // pred_region
        _
      $region24: #{lxnet_forward.3} parent=11 // pred_fallthru
        _
      // Predicated region
      $region25: #{lxnet_forward.3} parent=11 // pred_check
        %p611 = pneg %p141
      $region26: #{lxnet_forward.3} parent=11 // pred_check_branch
        %613 = sbr.rel (%p611) target = $region28
      $region27: #{lxnet_forward.3} parent=11 // pred_region
        _
      $region28: #{lxnet_forward.3} parent=11 // pred_fallthru
        _
      // Predicated region
      $region29: #{lxnet_forward.3} parent=11 // pred_check
        %p614 = pneg %p162
      $region30: #{lxnet_forward.3} parent=11 // pred_check_branch
        %616 = sbr.rel (%p614) target = $region32
      $region31: #{lxnet_forward.3} parent=11 // pred_region
        _
      $region32: #{lxnet_forward.3} parent=11 // pred_fallthru
        _
      // Predicated region
      $region33: #{lxnet_forward.3} parent=11 // pred_check
        %p617 = pneg %p183
      $region34: #{lxnet_forward.3} parent=11 // pred_check_branch
        %619 = sbr.rel (%p617) target = $region36
      $region35: #{lxnet_forward.3} parent=11 // pred_region
        _
      $region36: #{lxnet_forward.3} parent=11 // pred_fallthru
        _
      // Predicated region
      $region37: #{lxnet_forward.3} parent=11 // pred_check
        %p620 = pneg %p204
      $region38: #{lxnet_forward.3} parent=11 // pred_check_branch
        %622 = sbr.rel (%p620) target = $region40
      $region39: #{lxnet_forward.3} parent=11 // pred_region
        _
      $region40: #{lxnet_forward.3} parent=11 // pred_fallthru
        _
      // Predicated region
      $region41: #{lxnet_forward.3} parent=11 // pred_check
        %p623 = pneg %p225
      $region42: #{lxnet_forward.3} parent=11 // pred_check_branch
        %625 = sbr.rel (%p623) target = $region44
      $region43: #{lxnet_forward.3} parent=11 // pred_region
        _
      $region44: #{lxnet_forward.3} parent=11 // pred_fallthru
        _
      // Predicated region
      $region45: #{lxnet_forward.3} parent=11 // pred_check
        %p626 = pneg %p246
      $region46: #{lxnet_forward.3} parent=11 // pred_check_branch
        %628 = sbr.rel (%p626) target = $region48
      $region47: #{lxnet_forward.3} parent=11 // pred_region
        _
      $region48: #{lxnet_forward.3} parent=11 // pred_fallthru
        _
      // Predicated region
      $region49: #{lxnet_forward.3} parent=11 // pred_check
        %p629 = pneg %p267
      $region50: #{lxnet_forward.3} parent=11 // pred_check_branch
        %631 = sbr.rel (%p629) target = $region52
      $region51: #{lxnet_forward.3} parent=11 // pred_region
        _
      $region52: #{lxnet_forward.3} parent=11 // pred_fallthru
        _
      // Predicated region
      $region53: #{lxnet_forward.3} parent=11 // pred_check
        %p632 = pneg %p288
      $region54: #{lxnet_forward.3} parent=11 // pred_check_branch
        %634 = sbr.rel (%p632) target = $region56
      $region55: #{lxnet_forward.3} parent=11 // pred_region
        _
      $region56: #{lxnet_forward.3} parent=11 // pred_fallthru
        _
      // Predicated region
      $region57: #{lxnet_forward.3} parent=11 // pred_check
        %p635 = pneg %p309
      $region58: #{lxnet_forward.3} parent=11 // pred_check_branch
        %637 = sbr.rel (%p635) target = $region60
      $region59: #{lxnet_forward.3} parent=11 // pred_region
        _
      $region60: #{lxnet_forward.3} parent=11 // pred_fallthru
        _
      // Predicated region
      $region61: #{lxnet_forward.3} parent=11 // pred_check
        %p638 = pneg %p330
      $region62: #{lxnet_forward.3} parent=11 // pred_check_branch
        %640 = sbr.rel (%p638) target = $region64
      $region63: #{lxnet_forward.3} parent=11 // pred_region
        _
      $region64: #{lxnet_forward.3} parent=11 // pred_fallthru
        _
      // Predicated region
      $region65: #{lxnet_forward.3} parent=11 // pred_check
        %p641 = pneg %p351
      $region66: #{lxnet_forward.3} parent=11 // pred_check_branch
        %643 = sbr.rel (%p641) target = $region68
      $region67: #{lxnet_forward.3} parent=11 // pred_region
        _
      $region68: #{lxnet_forward.3} parent=11 // pred_fallthru
        _
      // Predicated region
      $region69: #{lxnet_forward.3} parent=11 // pred_check
        %p644 = pneg %p372
      $region70: #{lxnet_forward.3} parent=11 // pred_check_branch
        %646 = sbr.rel (%p644) target = $region72
      $region71: #{lxnet_forward.3} parent=11 // pred_region
        _
      $region72: #{lxnet_forward.3} parent=11 // pred_fallthru
        _
      // Predicated region
      $region73: #{lxnet_forward.3} parent=11 // pred_check
        %p647 = pneg %p393
      $region74: #{lxnet_forward.3} parent=11 // pred_check_branch
        %649 = sbr.rel (%p647) target = $region76
      $region75: #{lxnet_forward.3} parent=11 // pred_region
        _
      $region76: #{lxnet_forward.3} parent=11 // pred_fallthru
        _
      // Predicated region
      $region77: #{lxnet_forward.3} parent=11 // pred_check
        %p650 = pneg %p414
      $region78: #{lxnet_forward.3} parent=11 // pred_check_branch
        %652 = sbr.rel (%p650) target = $region80
      $region79: #{lxnet_forward.3} parent=11 // pred_region
        _
      $region80: #{lxnet_forward.3} parent=11 // pred_fallthru
        _
      // Predicated region
      $region81: #{lxnet_forward.3} parent=11 // pred_check
        %p653 = pneg %p435
      $region82: #{lxnet_forward.3} parent=11 // pred_check_branch
        %655 = sbr.rel (%p653) target = $region84
      $region83: #{lxnet_forward.3} parent=11 // pred_region
        _
      $region84: #{lxnet_forward.3} parent=11 // pred_fallthru
        _
      // Predicated region
      $region85: #{lxnet_forward.3} parent=11 // pred_check
        %p656 = pneg %p456
      $region86: #{lxnet_forward.3} parent=11 // pred_check_branch
        %658 = sbr.rel (%p656) target = $region88
      $region87: #{lxnet_forward.3} parent=11 // pred_region
        _
      $region88: #{lxnet_forward.3} parent=11 // pred_fallthru
        _
      // Predicated region
      $region89: #{lxnet_forward.3} parent=11 // pred_check
        %p659 = pneg %p477
      $region90: #{lxnet_forward.3} parent=11 // pred_check_branch
        %661 = sbr.rel (%p659) target = $region92
      $region91: #{lxnet_forward.3} parent=11 // pred_region
        _
      $region92: #{lxnet_forward.3} parent=11 // pred_fallthru
        _
      // Predicated region
      $region93: #{lxnet_forward.3} parent=11 // pred_check
        %p662 = pneg %p498
      $region94: #{lxnet_forward.3} parent=11 // pred_check_branch
        %664 = sbr.rel (%p662) target = $region96
      $region95: #{lxnet_forward.3} parent=11 // pred_region
        _
      $region96: #{lxnet_forward.3} parent=11 // pred_fallthru
        _
      // Predicated region
      $region97: #{lxnet_forward.3} parent=11 // pred_check
        %p665 = pneg %p519
      $region98: #{lxnet_forward.3} parent=11 // pred_check_branch
        %667 = sbr.rel (%p665) target = $region100
      $region99: #{lxnet_forward.3} parent=11 // pred_region
        _
      $region100: #{lxnet_forward.3} parent=11 // pred_fallthru
        _
      // Predicated region
      $region101: #{lxnet_forward.3} parent=11 // pred_check
        %p668 = pneg %p540
      $region102: #{lxnet_forward.3} parent=11 // pred_check_branch
        %670 = sbr.rel (%p668) target = $region104
      $region103: #{lxnet_forward.3} parent=11 // pred_region
        _
      $region104: #{lxnet_forward.3} parent=11 // pred_fallthru
        _
      // Predicated region
      $region105: #{lxnet_forward.3} parent=11 // pred_check
        %p671 = pneg %p561
      $region106: #{lxnet_forward.3} parent=11 // pred_check_branch
        %673 = sbr.rel (%p671) target = $region108
      $region107: #{lxnet_forward.3} parent=11 // pred_region
        _
      $region108: #{lxnet_forward.3} parent=11 // pred_fallthru
        _
    $region12: #{lxnet_forward.3} parent=5 // pred_fallthru
      _
    %p674 = scmp.lt.s32.totalorder %s31, 2
    // Predicated region
    $region109: #{lxnet_forward.3} parent=5 // pred_check
      %p675 = pneg %p674
    $region110: #{lxnet_forward.3} parent=5 // pred_check_branch
      %677 = sbr.rel (%p675) target = $region112
    $region111: #{lxnet_forward.3} parent=5 // pred_region
      // Predicated region
      $region113: #{lxnet_forward.3} parent=111 // pred_check
        %p678 = pneg %p51
      $region114: #{lxnet_forward.3} parent=111 // pred_check_branch
        %680 = sbr.rel (%p678) target = $region116
      $region115: #{lxnet_forward.3} parent=111 // pred_region
        %p681 = scmp.lt.s32.totalorder %s31, 1
        %s682 = scalar_select %p681, %s31, 1
        %s683 = smul.addr %s682, 8
        %s684 = smul.addr %s683, 4
        %s685 = scalar_lea.vmem %s0, %s684
      $region116: #{lxnet_forward.3} parent=111 // pred_fallthru
        _
    $region112: #{lxnet_forward.3} parent=5 // pred_fallthru
      _
    %p686 = scmp.le.s32.totalorder 1, %s31
    %p687 = scmp.lt.s32.totalorder %s31, 3
    %p688 = pnand %p686, %p687
    %p689 = pneg %p688
    // Predicated region
    $region117: #{lxnet_forward.3} parent=5 // pred_check
      _
    $region118: #{lxnet_forward.3} parent=5 // pred_check_branch
      %691 = sbr.rel (%p688) target = $region120
    $region119: #{lxnet_forward.3} parent=5 // pred_region
      %s692 = ssub.s32 %s31, 1
      %p693 = scmp.lt.s32.totalorder %s36, 1
      %s694 = scalar_select %p693, %s36, 1
      %s695 = smul.addr %s694, 8
      %s696 = smul.addr %s695, 4
      %s697 = scalar_lea.vmem %s0, %s696
      %p698 = pneg %p57
      %p699 = pneg %p54
      %p700 = pneg %p78
      %p701 = pneg %p75
      %p702 = pneg %p99
      %p703 = pneg %p96
      %p704 = pneg %p120
      %p705 = pneg %p117
      %p706 = pneg %p141
      %p707 = pneg %p138
      %p708 = pneg %p162
      %p709 = pneg %p159
      %p710 = pneg %p183
      %p711 = pneg %p180
      %p712 = pneg %p204
      %p713 = pneg %p201
      %p714 = pneg %p225
      %p715 = pneg %p222
      %p716 = pneg %p246
      %p717 = pneg %p243
      %p718 = pneg %p267
      %p719 = pneg %p264
      %p720 = pneg %p288
      %p721 = pneg %p285
      %p722 = pneg %p309
      %p723 = pneg %p306
      %p724 = pneg %p330
      %p725 = pneg %p327
      %p726 = pneg %p351
      %p727 = pneg %p348
      %p728 = pneg %p372
      %p729 = pneg %p369
      %p730 = pneg %p393
      %p731 = pneg %p390
      %p732 = pneg %p414
      %p733 = pneg %p411
      %p734 = pneg %p435
      %p735 = pneg %p432
      %p736 = pneg %p456
      %p737 = pneg %p453
      %p738 = pneg %p477
      %p739 = pneg %p474
      %p740 = pneg %p498
      %p741 = pneg %p495
      %p742 = pneg %p519
      %p743 = pneg %p516
      %p744 = pneg %p540
      %p745 = pneg %p537
      %p746 = pneg %p561
      %p747 = pneg %p558
      %p748 = pneg %p587
      %p749 = pneg %p584
      %p750 = scmp.lt.s32.totalorder %s36, 1
      %s751 = scalar_select %p750, %s36, 1
      %s752 = scalar_lea.vmem %s25, %s751
      %p753 = scmp.lt.s32.totalorder %s36, 1
      %s754 = scalar_select %p753, %s36, 1
      %s755 = smul.addr %s754, 8
      %s756 = smul.addr %s755, 4
      %s757 = scalar_lea.vmem %s0, %s756
      %p758 = scmp.lt.s32.totalorder %s36, 1
      %s759 = scalar_select %p758, %s36, 1
      %s760 = scalar_lea.vmem %s25, %s759
      %v762 = vld [vmem:[%s757] sm:$0xf]
      %v763 = vld [vmem:[%s757 + $0x4] sm:$0xf]
      %v764 = vld [vmem:[%s757 + $0x8] sm:$0xf]
      %v765 = vld [vmem:[%s757 + $0xc] sm:$0xf]
      %v766 = vld [vmem:[%s757 + $0x10] sm:$0xf]
      %v767 = vld [vmem:[%s757 + $0x14] sm:$0xf]
      %v768 = vld [vmem:[%s757 + $0x18] sm:$0xf]
      %v769 = vld [vmem:[%s757 + $0x1c] sm:$0xf]
      %v770 = vld [vmem:[%s1] sm:$0xf]
      %v771 = vld [vmem:[%s1 + $0x4] sm:$0xf]
      %v772 = vld [vmem:[%s1 + $0x8] sm:$0xf]
      %v773 = vld [vmem:[%s1 + $0xc] sm:$0xf]
      %v774 = vld [vmem:[%s1 + $0x10] sm:$0xf]
      %v775 = vld [vmem:[%s1 + $0x14] sm:$0xf]
      %v776 = vld [vmem:[%s1 + $0x18] sm:$0xf]
      %v777 = vld [vmem:[%s1 + $0x1c] sm:$0xf]
      %v786 = vunpack.c.l.b16 %v762
      %v787 = vunpack.c.l.b16 %v763
      %v788 = vunpack.c.l.b16 %v764
      %v789 = vunpack.c.l.b16 %v765
      %v790 = vunpack.c.l.b16 %v766
      %v791 = vunpack.c.l.b16 %v767
      %v792 = vunpack.c.l.b16 %v768
      %v793 = vunpack.c.l.b16 %v769
      %v794 = vpack.c.b16 %v787, %v786
      %v795 = vpack.c.b16 %v789, %v788
      %v796 = vpack.c.b16 %v791, %v790
      %v797 = vpack.c.b16 %v793, %v792
      %v806 = vunpack.c.l.b16 %v770
      %v807 = vunpack.c.l.b16 %v771
      %v808 = vunpack.c.l.b16 %v772
      %v809 = vunpack.c.l.b16 %v773
      %v810 = vunpack.c.l.b16 %v774
      %v811 = vunpack.c.l.b16 %v775
      %v812 = vunpack.c.l.b16 %v776
      %v813 = vunpack.c.l.b16 %v777
      %v814 = vpack.c.b16 %v807, %v806
      %v815 = vpack.c.b16 %v809, %v808
      %v816 = vpack.c.b16 %v811, %v810
      %v817 = vpack.c.b16 %v813, %v812
      %vm822 = vcmask 523264
      %v824 = vsel %vm822, %v794, 0
      %v827 = vsel %vm822, %v795, 0
      %v830 = vsel %vm822, %v796, 0
      %v833 = vsel %vm822, %v797, 0
      %835 = vmatprep.subr.bf16.mxu0 0
      %836 = vmatpush1.bf16.msra.mxu0 0
      %837 = vmatprep.subr.bf16.mxu0 0
      %838 = vmatpush1.bf16.msra.mxu0 0
      %839 = vmatprep.subr.bf16.mxu0 0
      %840 = vmatpush1.bf16.msra.mxu0 0
      %841 = vmatprep.subr.bf16.mxu0 0
      %842 = vmatpush1.bf16.msra.mxu0 0
      %843 = vmatprep.subr.bf16.mxu0 0
      %844 = vmatpush1.bf16.msra.mxu0 %v817
      %845 = vmatprep.subr.bf16.mxu0 0
      %846 = vmatpush1.bf16.msra.mxu0 %v816
      %847 = vmatprep.subr.bf16.mxu0 0
      %848 = vmatpush1.bf16.msra.mxu0 %v815
      %849 = vmatprep.subr.bf16.mxu0 0
      %850 = vmatpush1.bf16.msra.mxu0 %v814
      %851 = vmatprep.subr.bf16.mxu0 0
      %852 = vmatpush2.bf16.msra.mxu0 0
      %853 = vmatprep.subr.bf16.mxu0 0
      %854 = vmatpush2.bf16.msra.mxu0 0
      %855 = vmatprep.subr.bf16.mxu0 0
      %856 = vmatpush2.bf16.msra.mxu0 0
      %857 = vmatprep.subr.bf16.mxu0 0
      %858 = vmatpush2.bf16.msra.mxu0 0
      %859 = vmatprep.subr.bf16.mxu0 0
      %860 = vmatpush2.bf16.msra.mxu0 0
      %861 = vmatprep.subr.bf16.mxu0 0
      %862 = vmatpush2.bf16.msra.mxu0 0
      %863 = vmatprep.subr.bf16.mxu0 0
      %864 = vmatpush2.bf16.msra.mxu0 0
      %865 = vmatprep.subr.bf16.mxu0 0
      %866 = vmatpush2.bf16.msra.mxu0 0
      %867 = vmatprep.mubr.bf16.mxu0 0
      %868 = vmatmul.mubr.bf16.gmra.mxu0 %v824
      %v869 = vpop.f32.mrf.mxu0
      %v870 = vadd.f32 0.0, %v869
      %v871 = vpop.f32.mrf.mxu0
      %v872 = vpop.f32.mrf.mxu0
      %v873 = vadd.f32 0.0, %v872
      %v874 = vpop.f32.mrf.mxu0
      %875 = vmatprep.mubr.bf16.mxu0 0
      %876 = vmatmul.mubr.bf16.gmra.mxu0 %v827
      %v877 = vpop.f32.mrf.mxu0
      %v878 = vadd.f32 0.0, %v877
      %v879 = vpop.f32.mrf.mxu0
      %v880 = vpop.f32.mrf.mxu0
      %v881 = vadd.f32 0.0, %v880
      %v882 = vpop.f32.mrf.mxu0
      %883 = vmatprep.mubr.bf16.mxu0 0
      %884 = vmatmul.mubr.bf16.gmra.mxu0 %v830
      %v885 = vpop.f32.mrf.mxu0
      %v886 = vadd.f32 0.0, %v885
      %v887 = vpop.f32.mrf.mxu0
      %v888 = vpop.f32.mrf.mxu0
      %v889 = vadd.f32 0.0, %v888
      %v890 = vpop.f32.mrf.mxu0
      %891 = vmatprep.mubr.bf16.mxu0 0
      %892 = vmatmul.mubr.bf16.gmra.mxu0 %v833
      %v893 = vpop.f32.mrf.mxu0
      %v894 = vadd.f32 0.0, %v893
      %v895 = vpop.f32.mrf.mxu0
      %v896 = vpop.f32.mrf.mxu0
      %v897 = vadd.f32 0.0, %v896
      %v898 = vpop.f32.mrf.mxu0
      %899 = vdwg.mxu0
      %vm900 = vcmask 39936
      %v901 = vsel %vm900, %v870, -inf
      %v902 = vsel %vm900, %v873, -inf
      %v903 = vsel %vm900, %v878, -inf
      %v904 = vsel %vm900, %v881, -inf
      %v905 = vsel %vm900, %v886, -inf
      %v906 = vmax.f32 %v901, %v905
      %v907 = vsel %vm900, %v889, -inf
      %v908 = vmax.f32 %v902, %v907
      %v909 = vsel %vm900, %v894, -inf
      %v910 = vmax.f32 %v903, %v909
      %v911 = vsel %vm900, %v897, -inf
      %v912 = vmax.f32 %v904, %v911
      %v913 = vmax.f32 %v906, %v908
      %v914 = vmax.f32 %v910, %v912
      %v915 = vmax.f32 %v913, %v914
      %v916 = vrot.slane %v915, 4
      %v917 = vmax.f32 %v915, %v916
      %v918 = vrot.slane %v917, 2
      %v919 = vmax.f32 %v917, %v918
      %v920 = vrot.slane %v919, 1
      %v921 = vmax.f32 %v919, %v920
      %v922 = vsub.f32 %v870, %v921
      %v923 = vsub.f32 %v873, %v921
      %v924 = vsub.f32 %v878, %v921
      %v925 = vsub.f32 %v881, %v921
      %v926 = vsub.f32 %v886, %v921
      %v927 = vsub.f32 %v889, %v921
      %v928 = vsub.f32 %v894, %v921
      %v929 = vsub.f32 %v897, %v921
      %v930 = vmul.f32 %v922, 1.442695
      %v931 = vpow.pop %v930
      %v932 = vmul.f32 %v923, 1.442695
      %v933 = vpow.pop %v932
      %v934 = vmul.f32 %v924, 1.442695
      %v935 = vpow.pop %v934
      %v936 = vmul.f32 %v925, 1.442695
      %v937 = vpow.pop %v936
      %v938 = vmul.f32 %v926, 1.442695
      %v939 = vpow.pop %v938
      %v940 = vmul.f32 %v927, 1.442695
      %v941 = vpow.pop %v940
      %v942 = vmul.f32 %v928, 1.442695
      %v943 = vpow.pop %v942
      %v944 = vmul.f32 %v929, 1.442695
      %v945 = vpow.pop %v944
      %v946 = vsel %vm900, %v931, 0.0
      %v947 = vsel %vm900, %v933, 0.0
      %v948 = vadd.f32 %v946, %v947
      %v949 = vsel %vm900, %v935, 0.0
      %v950 = vadd.f32 %v948, %v949
      %v951 = vsel %vm900, %v937, 0.0
      %v952 = vadd.f32 %v950, %v951
      %v953 = vsel %vm900, %v939, 0.0
      %v954 = vadd.f32 %v952, %v953
      %v955 = vsel %vm900, %v941, 0.0
      %v956 = vadd.f32 %v954, %v955
      %v957 = vsel %vm900, %v943, 0.0
      %v958 = vadd.f32 %v956, %v957
      %v959 = vsel %vm900, %v945, 0.0
      %v960 = vadd.f32 %v958, %v959
      %v961 = vrot.slane %v960, 4
      %v962 = vadd.f32 %v960, %v961
      %v963 = vrot.slane %v962, 2
      %v964 = vadd.f32 %v962, %v963
      %v965 = vrot.slane %v964, 1
      %v966 = vadd.f32 %v964, %v965
      %v967 = vrcp.pop %v966
      %v968 = vmul.f32 %v931, %v967
      %v969 = vmul.f32 %v933, %v967
      %v970 = vmul.f32 %v935, %v967
      %v971 = vmul.f32 %v937, %v967
      %v972 = vmul.f32 %v939, %v967
      %v973 = vmul.f32 %v941, %v967
      %v974 = vmul.f32 %v943, %v967
      %v975 = vmul.f32 %v945, %v967
      %v976 = vunpack.c.l.bf16 %v762
      %v977 = vunpack.c.l.bf16 %v763
      %v978 = vunpack.c.l.bf16 %v764
      %v979 = vunpack.c.l.bf16 %v765
      %v980 = vunpack.c.l.bf16 %v766
      %v981 = vunpack.c.l.bf16 %v767
      %v982 = vunpack.c.l.bf16 %v768
      %v983 = vunpack.c.l.bf16 %v769
      %v984 = vsel %vm822, %v976, 0.0
      %985 = vadd.xlane.f32.xlu0 %v984
      %v986 = vpop.xlane.xlu0 %985
      %v987 = vsel %vm822, %v977, 0.0
      %988 = vadd.xlane.f32.xlu0 %v987
      %v989 = vpop.xlane.xlu0 %988
      %v990 = vsel %vm822, %v978, 0.0
      %991 = vadd.xlane.f32.xlu0 %v990
      %v992 = vpop.xlane.xlu0 %991
      %v993 = vsel %vm822, %v979, 0.0
      %994 = vadd.xlane.f32.xlu0 %v993
      %v995 = vpop.xlane.xlu0 %994
      %v996 = vsel %vm822, %v980, 0.0
      %997 = vadd.xlane.f32.xlu0 %v996
      %v998 = vpop.xlane.xlu0 %997
      %v999 = vsel %vm822, %v981, 0.0
      %1000 = vadd.xlane.f32.xlu0 %v999
      %v1001 = vpop.xlane.xlu0 %1000
      %v1002 = vsel %vm822, %v982, 0.0
      %1003 = vadd.xlane.f32.xlu0 %v1002
      %v1004 = vpop.xlane.xlu0 %1003
      %v1005 = vsel %vm822, %v983, 0.0
      %1006 = vadd.xlane.f32.xlu0 %v1005
      %v1007 = vpop.xlane.xlu0 %1006
      %v1008 = vmul.f32 %v968, %v986
      %v1009 = vmul.f32 %v969, %v989
      %v1010 = vmul.f32 %v970, %v992
      %v1011 = vmul.f32 %v971, %v995
      %v1012 = vmul.f32 %v972, %v998
      %v1013 = vmul.f32 %v973, %v1001
      %v1014 = vmul.f32 %v974, %v1004
      %v1015 = vmul.f32 %v975, %v1007
      %vm1016 = vcmask 7168
      %v1017 = vsel %vm1016, %v1008, 0.0
      %v1018 = vsel %vm1016, %v1009, 0.0
      %v1019 = vadd.f32 %v1017, %v1018
      %v1020 = vsel %vm1016, %v1010, 0.0
      %v1021 = vadd.f32 %v1019, %v1020
      %v1022 = vsel %vm1016, %v1011, 0.0
      %v1023 = vadd.f32 %v1021, %v1022
      %v1024 = vsel %vm1016, %v1012, 0.0
      %v1025 = vadd.f32 %v1023, %v1024
      %v1026 = vsel %vm1016, %v1013, 0.0
      %v1027 = vadd.f32 %v1025, %v1026
      %v1028 = vsel %vm1016, %v1014, 0.0
      %v1029 = vadd.f32 %v1027, %v1028
      %v1030 = vsel %vm1016, %v1015, 0.0
      %v1031 = vadd.f32 %v1029, %v1030
      %v1032 = vrot.slane %v1031, 4
      %v1033 = vadd.f32 %v1031, %v1032
      %v1034 = vrot.slane %v1033, 2
      %v1035 = vadd.f32 %v1033, %v1034
      %v1036 = vrot.slane %v1035, 1
      %v1037 = vadd.f32 %v1035, %v1036
      %v1038 = vld [vmem:[%s3] sm:$0x1]
      %1040 = vset.pattern.permute.xlu0 0
      %1041 = vperm.xlu0 %1040, %v1037
      %v1042 = vpop.permute.xlu0 %1041
      %v1044 = vmul.f32 %v1038, %v1042
      %v1045 = vld [vmem:[%s2] sm:$0xf]
      %v1046 = vld [vmem:[%s2 + $0x4] sm:$0xf]
      %v1047 = vld [vmem:[%s2 + $0x8] sm:$0xf]
      %v1048 = vld [vmem:[%s2 + $0xc] sm:$0xf]
      %v1049 = vld [vmem:[%s2 + $0x10] sm:$0xf]
      %v1050 = vld [vmem:[%s2 + $0x14] sm:$0xf]
      %v1051 = vld [vmem:[%s2 + $0x18] sm:$0xf]
      %v1052 = vld [vmem:[%s2 + $0x1c] sm:$0xf]
      %v1061 = vunpack.c.l.b16 %v1045
      %v1062 = vunpack.c.l.b16 %v1046
      %v1063 = vunpack.c.l.b16 %v1047
      %v1064 = vunpack.c.l.b16 %v1048
      %v1065 = vunpack.c.l.b16 %v1049
      %v1066 = vunpack.c.l.b16 %v1050
      %v1067 = vunpack.c.l.b16 %v1051
      %v1068 = vunpack.c.l.b16 %v1052
      %v1069 = vpack.c.b16 %v1062, %v1061
      %v1070 = vpack.c.b16 %v1064, %v1063
      %v1071 = vpack.c.b16 %v1066, %v1065
      %v1072 = vpack.c.b16 %v1068, %v1067
      %1077 = vmatprep.subr.bf16.mxu0 0
      %1078 = vmatpush1.bf16.msra.mxu0 0
      %1079 = vmatprep.subr.bf16.mxu0 0
      %1080 = vmatpush1.bf16.msra.mxu0 0
      %1081 = vmatprep.subr.bf16.mxu0 0
      %1082 = vmatpush1.bf16.msra.mxu0 0
      %1083 = vmatprep.subr.bf16.mxu0 0
      %1084 = vmatpush1.bf16.msra.mxu0 0
      %1085 = vmatprep.subr.bf16.mxu0 0
      %1086 = vmatpush1.bf16.msra.mxu0 %v1072
      %1087 = vmatprep.subr.bf16.mxu0 0
      %1088 = vmatpush1.bf16.msra.mxu0 %v1071
      %1089 = vmatprep.subr.bf16.mxu0 0
      %1090 = vmatpush1.bf16.msra.mxu0 %v1070
      %1091 = vmatprep.subr.bf16.mxu0 0
      %1092 = vmatpush1.bf16.msra.mxu0 %v1069
      %1093 = vmatprep.subr.bf16.mxu0 0
      %1094 = vmatpush2.bf16.msra.mxu0 0
      %1095 = vmatprep.subr.bf16.mxu0 0
      %1096 = vmatpush2.bf16.msra.mxu0 0
      %1097 = vmatprep.subr.bf16.mxu0 0
      %1098 = vmatpush2.bf16.msra.mxu0 0
      %1099 = vmatprep.subr.bf16.mxu0 0
      %1100 = vmatpush2.bf16.msra.mxu0 0
      %1101 = vmatprep.subr.bf16.mxu0 0
      %1102 = vmatpush2.bf16.msra.mxu0 0
      %1103 = vmatprep.subr.bf16.mxu0 0
      %1104 = vmatpush2.bf16.msra.mxu0 0
      %1105 = vmatprep.subr.bf16.mxu0 0
      %1106 = vmatpush2.bf16.msra.mxu0 0
      %1107 = vmatprep.subr.bf16.mxu0 0
      %1108 = vmatpush2.bf16.msra.mxu0 0
      %1109 = vmatprep.mubr.bf16.mxu0 0
      %1110 = vmatmul.mubr.bf16.gmra.mxu0 %v824
      %v1111 = vpop.f32.mrf.mxu0
      %v1112 = vadd.f32 0.0, %v1111
      %v1113 = vpop.f32.mrf.mxu0
      %v1114 = vpop.f32.mrf.mxu0
      %v1115 = vadd.f32 0.0, %v1114
      %v1116 = vpop.f32.mrf.mxu0
      %1117 = vmatprep.mubr.bf16.mxu0 0
      %1118 = vmatmul.mubr.bf16.gmra.mxu0 %v827
      %v1119 = vpop.f32.mrf.mxu0
      %v1120 = vadd.f32 0.0, %v1119
      %v1121 = vpop.f32.mrf.mxu0
      %v1122 = vpop.f32.mrf.mxu0
      %v1123 = vadd.f32 0.0, %v1122
      %v1124 = vpop.f32.mrf.mxu0
      %1125 = vmatprep.mubr.bf16.mxu0 0
      %1126 = vmatmul.mubr.bf16.gmra.mxu0 %v830
      %v1127 = vpop.f32.mrf.mxu0
      %v1128 = vadd.f32 0.0, %v1127
      %v1129 = vpop.f32.mrf.mxu0
      %v1130 = vpop.f32.mrf.mxu0
      %v1131 = vadd.f32 0.0, %v1130
      %v1132 = vpop.f32.mrf.mxu0
      %1133 = vmatprep.mubr.bf16.mxu0 0
      %1134 = vmatmul.mubr.bf16.gmra.mxu0 %v833
      %v1135 = vpop.f32.mrf.mxu0
      %v1136 = vadd.f32 0.0, %v1135
      %v1137 = vpop.f32.mrf.mxu0
      %v1138 = vpop.f32.mrf.mxu0
      %v1139 = vadd.f32 0.0, %v1138
      %v1140 = vpop.f32.mrf.mxu0
      %1141 = vdwg.mxu0
      %1150 = vrot.lane.b32.xlu0 %v968, 127
      %v1151 = vpop.permute.xlu0 %1150
      %1152 = vrot.lane.b32.xlu0 %v969, 127
      %v1153 = vpop.permute.xlu0 %1152
      %1154 = vrot.lane.b32.xlu0 %v970, 127
      %v1155 = vpop.permute.xlu0 %1154
      %1156 = vrot.lane.b32.xlu0 %v971, 127
      %v1157 = vpop.permute.xlu0 %1156
      %1158 = vrot.lane.b32.xlu0 %v972, 127
      %v1159 = vpop.permute.xlu0 %1158
      %1160 = vrot.lane.b32.xlu0 %v973, 127
      %v1161 = vpop.permute.xlu0 %1160
      %1162 = vrot.lane.b32.xlu0 %v974, 127
      %v1163 = vpop.permute.xlu0 %1162
      %1164 = vrot.lane.b32.xlu0 %v975, 127
      %v1165 = vpop.permute.xlu0 %1164
      %1174 = vxpose.xlu0.b32.start [1/16] %v1151, 128
      %1175 = vxpose.xlu0.b32.cont [2/16] %v1153, 128
      %1176 = vxpose.xlu0.b32.cont [3/16] %v1155, 128
      %1177 = vxpose.xlu0.b32.cont [4/16] %v1157, 128
      %1178 = vxpose.xlu0.b32.cont [5/16] %v1159, 128
      %1179 = vxpose.xlu0.b32.cont [6/16] %v1161, 128
      %1180 = vxpose.xlu0.b32.cont [7/16] %v1163, 128
      %1181 = vxpose.xlu0.b32.cont [8/16] %v1165, 128
      %1182 = vxpose.xlu0.b32.cont [9/16] 0.0, 128
      %1183 = vxpose.xlu0.b32.cont [10/16] 0.0, 128
      %1184 = vxpose.xlu0.b32.cont [11/16] 0.0, 128
      %1185 = vxpose.xlu0.b32.cont [12/16] 0.0, 128
      %1186 = vxpose.xlu0.b32.cont [13/16] 0.0, 128
      %1187 = vxpose.xlu0.b32.cont [14/16] 0.0, 128
      %1188 = vxpose.xlu0.b32.cont [15/16] 0.0, 128
      %1189 = vxpose.xlu0.b32.end [16/16] 0.0, 128
      %v1190 = vpop.trf.xlu0
      %v1191 = vpop.trf.xlu0
      %v1192 = vpop.trf.xlu0
      %v1193 = vpop.trf.xlu0
      %v1194 = vpop.trf.xlu0
      %v1195 = vpop.trf.xlu0
      %v1196 = vpop.trf.xlu0
      %v1197 = vpop.trf.xlu0
      %v1198 = vpop.trf.xlu0
      %v1199 = vpop.trf.xlu0
      %v1200 = vpop.trf.xlu0
      %v1201 = vpop.trf.xlu0
      %v1202 = vpop.trf.xlu0
      %v1203 = vpop.trf.xlu0
      %v1204 = vpop.trf.xlu0
      %v1205 = vpop.trf.xlu0
      %v1207 = vsel %vm822, %v1190, 0
      %1209 = vmatprep.subr.mxu0 0.0
      %1210 = vmatpush1.msra.mxu0 0.0
      %1211 = vmatprep.subr.mxu0 0.0
      %1212 = vmatpush1.msra.mxu0 0.0
      %1213 = vmatprep.subr.mxu0 0.0
      %1214 = vmatpush1.msra.mxu0 0.0
      %1215 = vmatprep.subr.mxu0 0.0
      %1216 = vmatpush1.msra.mxu0 0.0
      %1217 = vmatprep.subr.mxu0 0.0
      %1218 = vmatpush1.msra.mxu0 0.0
      %1219 = vmatprep.subr.mxu0 0.0
      %1220 = vmatpush1.msra.mxu0 0.0
      %1221 = vmatprep.subr.mxu0 0.0
      %1222 = vmatpush1.msra.mxu0 0.0
      %1223 = vmatprep.subr.mxu0 0.0
      %1224 = vmatpush1.msra.mxu0 0.0
      %1225 = vmatprep.subr.mxu0 0.0
      %1226 = vmatpush1.msra.mxu0 %v1139
      %1227 = vmatprep.subr.mxu0 0.0
      %1228 = vmatpush1.msra.mxu0 %v1136
      %1229 = vmatprep.subr.mxu0 0.0
      %1230 = vmatpush1.msra.mxu0 %v1131
      %1231 = vmatprep.subr.mxu0 0.0
      %1232 = vmatpush1.msra.mxu0 %v1128
      %1233 = vmatprep.subr.mxu0 0.0
      %1234 = vmatpush1.msra.mxu0 %v1123
      %1235 = vmatprep.subr.mxu0 0.0
      %1236 = vmatpush1.msra.mxu0 %v1120
      %1237 = vmatprep.subr.mxu0 0.0
      %1238 = vmatpush1.msra.mxu0 %v1115
      %1239 = vmatprep.subr.mxu0 0.0
      %1240 = vmatpush1.msra.mxu0 %v1112
      %1241 = vmatprep.subr.mxu0 0.0
      %1242 = vmatpush2.msra.mxu0 0.0
      %1243 = vmatprep.subr.mxu0 0.0
      %1244 = vmatpush2.msra.mxu0 0.0
      %1245 = vmatprep.subr.mxu0 0.0
      %1246 = vmatpush2.msra.mxu0 0.0
      %1247 = vmatprep.subr.mxu0 0.0
      %1248 = vmatpush2.msra.mxu0 0.0
      %1249 = vmatprep.subr.mxu0 0.0
      %1250 = vmatpush2.msra.mxu0 0.0
      %1251 = vmatprep.subr.mxu0 0.0
      %1252 = vmatpush2.msra.mxu0 0.0
      %1253 = vmatprep.subr.mxu0 0.0
      %1254 = vmatpush2.msra.mxu0 0.0
      %1255 = vmatprep.subr.mxu0 0.0
      %1256 = vmatpush2.msra.mxu0 0.0
      %1257 = vmatprep.subr.mxu0 0.0
      %1258 = vmatpush2.msra.mxu0 0.0
      %1259 = vmatprep.subr.mxu0 0.0
      %1260 = vmatpush2.msra.mxu0 0.0
      %1261 = vmatprep.subr.mxu0 0.0
      %1262 = vmatpush2.msra.mxu0 0.0
      %1263 = vmatprep.subr.mxu0 0.0
      %1264 = vmatpush2.msra.mxu0 0.0
      %1265 = vmatprep.subr.mxu0 0.0
      %1266 = vmatpush2.msra.mxu0 0.0
      %1267 = vmatprep.subr.mxu0 0.0
      %1268 = vmatpush2.msra.mxu0 0.0
      %1269 = vmatprep.subr.mxu0 0.0
      %1270 = vmatpush2.msra.mxu0 0.0
      %1271 = vmatprep.subr.mxu0 0.0
      %1272 = vmatpush2.msra.mxu0 0.0
      %1273 = vmatprep.mubr.f32.mxu0 0.0
      %1274 = vmatmul.mubr.f32.gmra.mxu0 %v1207
      %v1275 = vpop.f32.mrf.mxu0
      %v1276 = vadd.f32 0.0, %v1275
      %v1277 = vpop.f32.mrf.mxu0
      %1278 = vdwg.mxu0
      %1279 = vrot.lane.b32.xlu0 %v794, 64
      %v1280 = vpop.permute.xlu0 %1279
      %1281 = vrot.lane.b32.xlu0 %v795, 64
      %v1282 = vpop.permute.xlu0 %1281
      %1283 = vrot.lane.b32.xlu0 %v796, 64
      %v1284 = vpop.permute.xlu0 %1283
      %1285 = vrot.lane.b32.xlu0 %v797, 64
      %v1286 = vpop.permute.xlu0 %1285
      %v1288 = vsel %vm822, %v1280, 0
      %v1291 = vsel %vm822, %v1282, 0
      %v1294 = vsel %vm822, %v1284, 0
      %v1297 = vsel %vm822, %v1286, 0
      %1299 = vmatprep.subr.bf16.mxu0 0
      %1300 = vmatpush1.bf16.msra.mxu0 0
      %1301 = vmatprep.subr.bf16.mxu0 0
      %1302 = vmatpush1.bf16.msra.mxu0 0
      %1303 = vmatprep.subr.bf16.mxu0 0
      %1304 = vmatpush1.bf16.msra.mxu0 0
      %1305 = vmatprep.subr.bf16.mxu0 0
      %1306 = vmatpush1.bf16.msra.mxu0 0
      %1307 = vmatprep.subr.bf16.mxu0 0
      %1308 = vmatpush1.bf16.msra.mxu0 %v817
      %1309 = vmatprep.subr.bf16.mxu0 0
      %1310 = vmatpush1.bf16.msra.mxu0 %v816
      %1311 = vmatprep.subr.bf16.mxu0 0
      %1312 = vmatpush1.bf16.msra.mxu0 %v815
      %1313 = vmatprep.subr.bf16.mxu0 0
      %1314 = vmatpush1.bf16.msra.mxu0 %v814
      %1315 = vmatprep.subr.bf16.mxu0 0
      %1316 = vmatpush2.bf16.msra.mxu0 0
      %1317 = vmatprep.subr.bf16.mxu0 0
      %1318 = vmatpush2.bf16.msra.mxu0 0
      %1319 = vmatprep.subr.bf16.mxu0 0
      %1320 = vmatpush2.bf16.msra.mxu0 0
      %1321 = vmatprep.subr.bf16.mxu0 0
      %1322 = vmatpush2.bf16.msra.mxu0 0
      %1323 = vmatprep.subr.bf16.mxu0 0
      %1324 = vmatpush2.bf16.msra.mxu0 0
      %1325 = vmatprep.subr.bf16.mxu0 0
      %1326 = vmatpush2.bf16.msra.mxu0 0
      %1327 = vmatprep.subr.bf16.mxu0 0
      %1328 = vmatpush2.bf16.msra.mxu0 0
      %1329 = vmatprep.subr.bf16.mxu0 0
      %1330 = vmatpush2.bf16.msra.mxu0 0
      %1331 = vmatprep.mubr.bf16.mxu0 0
      %1332 = vmatmul.mubr.bf16.gmra.mxu0 %v1288
      %v1333 = vpop.f32.mrf.mxu0
      %v1334 = vadd.f32 0.0, %v1333
      %v1335 = vpop.f32.mrf.mxu0
      %v1336 = vpop.f32.mrf.mxu0
      %v1337 = vadd.f32 0.0, %v1336
      %v1338 = vpop.f32.mrf.mxu0
      %1339 = vmatprep.mubr.bf16.mxu0 0
      %1340 = vmatmul.mubr.bf16.gmra.mxu0 %v1291
      %v1341 = vpop.f32.mrf.mxu0
      %v1342 = vadd.f32 0.0, %v1341
      %v1343 = vpop.f32.mrf.mxu0
      %v1344 = vpop.f32.mrf.mxu0
      %v1345 = vadd.f32 0.0, %v1344
      %v1346 = vpop.f32.mrf.mxu0
      %1347 = vmatprep.mubr.bf16.mxu0 0
      %1348 = vmatmul.mubr.bf16.gmra.mxu0 %v1294
      %v1349 = vpop.f32.mrf.mxu0
      %v1350 = vadd.f32 0.0, %v1349
      %v1351 = vpop.f32.mrf.mxu0
      %v1352 = vpop.f32.mrf.mxu0
      %v1353 = vadd.f32 0.0, %v1352
      %v1354 = vpop.f32.mrf.mxu0
      %1355 = vmatprep.mubr.bf16.mxu0 0
      %1356 = vmatmul.mubr.bf16.gmra.mxu0 %v1297
      %v1357 = vpop.f32.mrf.mxu0
      %v1358 = vadd.f32 0.0, %v1357
      %v1359 = vpop.f32.mrf.mxu0
      %v1360 = vpop.f32.mrf.mxu0
      %v1361 = vadd.f32 0.0, %v1360
      %v1362 = vpop.f32.mrf.mxu0
      %1363 = vdwg.mxu0
      %v1364 = vsel %vm900, %v1334, -inf
      %v1365 = vsel %vm900, %v1337, -inf
      %v1366 = vsel %vm900, %v1342, -inf
      %v1367 = vsel %vm900, %v1345, -inf
      %v1368 = vsel %vm900, %v1350, -inf
      %v1369 = vmax.f32 %v1364, %v1368
      %v1370 = vsel %vm900, %v1353, -inf
      %v1371 = vmax.f32 %v1365, %v1370
      %v1372 = vsel %vm900, %v1358, -inf
      %v1373 = vmax.f32 %v1366, %v1372
      %v1374 = vsel %vm900, %v1361, -inf
      %v1375 = vmax.f32 %v1367, %v1374
      %v1376 = vmax.f32 %v1369, %v1371
      %v1377 = vmax.f32 %v1373, %v1375
      %v1378 = vmax.f32 %v1376, %v1377
      %v1379 = vrot.slane %v1378, 4
      %v1380 = vmax.f32 %v1378, %v1379
      %v1381 = vrot.slane %v1380, 2
      %v1382 = vmax.f32 %v1380, %v1381
      %v1383 = vrot.slane %v1382, 1
      %v1384 = vmax.f32 %v1382, %v1383
      %v1385 = vsub.f32 %v1334, %v1384
      %v1386 = vsub.f32 %v1337, %v1384
      %v1387 = vsub.f32 %v1342, %v1384
      %v1388 = vsub.f32 %v1345, %v1384
      %v1389 = vsub.f32 %v1350, %v1384
      %v1390 = vsub.f32 %v1353, %v1384
      %v1391 = vsub.f32 %v1358, %v1384
      %v1392 = vsub.f32 %v1361, %v1384
      %v1393 = vmul.f32 %v1385, 1.442695
      %v1394 = vpow.pop %v1393
      %v1395 = vmul.f32 %v1386, 1.442695
      %v1396 = vpow.pop %v1395
      %v1397 = vmul.f32 %v1387, 1.442695
      %v1398 = vpow.pop %v1397
      %v1399 = vmul.f32 %v1388, 1.442695
      %v1400 = vpow.pop %v1399
      %v1401 = vmul.f32 %v1389, 1.442695
      %v1402 = vpow.pop %v1401
      %v1403 = vmul.f32 %v1390, 1.442695
      %v1404 = vpow.pop %v1403
      %v1405 = vmul.f32 %v1391, 1.442695
      %v1406 = vpow.pop %v1405
      %v1407 = vmul.f32 %v1392, 1.442695
      %v1408 = vpow.pop %v1407
      %v1409 = vsel %vm900, %v1394, 0.0
      %v1410 = vsel %vm900, %v1396, 0.0
      %v1411 = vadd.f32 %v1409, %v1410
      %v1412 = vsel %vm900, %v1398, 0.0
      %v1413 = vadd.f32 %v1411, %v1412
      %v1414 = vsel %vm900, %v1400, 0.0
      %v1415 = vadd.f32 %v1413, %v1414
      %v1416 = vsel %vm900, %v1402, 0.0
      %v1417 = vadd.f32 %v1415, %v1416
      %v1418 = vsel %vm900, %v1404, 0.0
      %v1419 = vadd.f32 %v1417, %v1418
      %v1420 = vsel %vm900, %v1406, 0.0
      %v1421 = vadd.f32 %v1419, %v1420
      %v1422 = vsel %vm900, %v1408, 0.0
      %v1423 = vadd.f32 %v1421, %v1422
      %v1424 = vrot.slane %v1423, 4
      %v1425 = vadd.f32 %v1423, %v1424
      %v1426 = vrot.slane %v1425, 2
      %v1427 = vadd.f32 %v1425, %v1426
      %v1428 = vrot.slane %v1427, 1
      %v1429 = vadd.f32 %v1427, %v1428
      %v1430 = vrcp.pop %v1429
      %v1431 = vmul.f32 %v1394, %v1430
      %v1432 = vmul.f32 %v1396, %v1430
      %v1433 = vmul.f32 %v1398, %v1430
      %v1434 = vmul.f32 %v1400, %v1430
      %v1435 = vmul.f32 %v1402, %v1430
      %v1436 = vmul.f32 %v1404, %v1430
      %v1437 = vmul.f32 %v1406, %v1430
      %v1438 = vmul.f32 %v1408, %v1430
      %1447 = vrot.lane.b32.xlu0 %v976, 64
      %v1448 = vpop.permute.xlu0 %1447
      %1449 = vrot.lane.b32.xlu0 %v977, 64
      %v1450 = vpop.permute.xlu0 %1449
      %1451 = vrot.lane.b32.xlu0 %v978, 64
      %v1452 = vpop.permute.xlu0 %1451
      %1453 = vrot.lane.b32.xlu0 %v979, 64
      %v1454 = vpop.permute.xlu0 %1453
      %1455 = vrot.lane.b32.xlu0 %v980, 64
      %v1456 = vpop.permute.xlu0 %1455
      %1457 = vrot.lane.b32.xlu0 %v981, 64
      %v1458 = vpop.permute.xlu0 %1457
      %1459 = vrot.lane.b32.xlu0 %v982, 64
      %v1460 = vpop.permute.xlu0 %1459
      %1461 = vrot.lane.b32.xlu0 %v983, 64
      %v1462 = vpop.permute.xlu0 %1461
      %v1471 = vsel %vm822, %v1448, 0.0
      %1472 = vadd.xlane.f32.xlu0 %v1471
      %v1473 = vpop.xlane.xlu0 %1472
      %v1474 = vsel %vm822, %v1450, 0.0
      %1475 = vadd.xlane.f32.xlu0 %v1474
      %v1476 = vpop.xlane.xlu0 %1475
      %v1477 = vsel %vm822, %v1452, 0.0
      %1478 = vadd.xlane.f32.xlu0 %v1477
      %v1479 = vpop.xlane.xlu0 %1478
      %v1480 = vsel %vm822, %v1454, 0.0
      %1481 = vadd.xlane.f32.xlu0 %v1480
      %v1482 = vpop.xlane.xlu0 %1481
      %v1483 = vsel %vm822, %v1456, 0.0
      %1484 = vadd.xlane.f32.xlu0 %v1483
      %v1485 = vpop.xlane.xlu0 %1484
      %v1486 = vsel %vm822, %v1458, 0.0
      %1487 = vadd.xlane.f32.xlu0 %v1486
      %v1488 = vpop.xlane.xlu0 %1487
      %v1489 = vsel %vm822, %v1460, 0.0
      %1490 = vadd.xlane.f32.xlu0 %v1489
      %v1491 = vpop.xlane.xlu0 %1490
      %v1492 = vsel %vm822, %v1462, 0.0
      %1493 = vadd.xlane.f32.xlu0 %v1492
      %v1494 = vpop.xlane.xlu0 %1493
      %v1495 = vmul.f32 %v1431, %v1473
      %v1496 = vmul.f32 %v1432, %v1476
      %v1497 = vmul.f32 %v1433, %v1479
      %v1498 = vmul.f32 %v1434, %v1482
      %v1499 = vmul.f32 %v1435, %v1485
      %v1500 = vmul.f32 %v1436, %v1488
      %v1501 = vmul.f32 %v1437, %v1491
      %v1502 = vmul.f32 %v1438, %v1494
      %v1503 = vsel %vm1016, %v1495, 0.0
      %v1504 = vsel %vm1016, %v1496, 0.0
      %v1505 = vadd.f32 %v1503, %v1504
      %v1506 = vsel %vm1016, %v1497, 0.0
      %v1507 = vadd.f32 %v1505, %v1506
      %v1508 = vsel %vm1016, %v1498, 0.0
      %v1509 = vadd.f32 %v1507, %v1508
      %v1510 = vsel %vm1016, %v1499, 0.0
      %v1511 = vadd.f32 %v1509, %v1510
      %v1512 = vsel %vm1016, %v1500, 0.0
      %v1513 = vadd.f32 %v1511, %v1512
      %v1514 = vsel %vm1016, %v1501, 0.0
      %v1515 = vadd.f32 %v1513, %v1514
      %v1516 = vsel %vm1016, %v1502, 0.0
      %v1517 = vadd.f32 %v1515, %v1516
      %v1518 = vrot.slane %v1517, 4
      %v1519 = vadd.f32 %v1517, %v1518
      %v1520 = vrot.slane %v1519, 2
      %v1521 = vadd.f32 %v1519, %v1520
      %v1522 = vrot.slane %v1521, 1
      %v1523 = vadd.f32 %v1521, %v1522
      %1525 = vset.pattern.permute.xlu0 0
      %1526 = vperm.xlu0 %1525, %v1523
      %v1527 = vpop.permute.xlu0 %1526
      %v1529 = vmul.f32 %v1038, %v1527
      %1530 = vmatprep.subr.bf16.mxu0 0
      %1531 = vmatpush1.bf16.msra.mxu0 0
      %1532 = vmatprep.subr.bf16.mxu0 0
      %1533 = vmatpush1.bf16.msra.mxu0 0
      %1534 = vmatprep.subr.bf16.mxu0 0
      %1535 = vmatpush1.bf16.msra.mxu0 0
      %1536 = vmatprep.subr.bf16.mxu0 0
      %1537 = vmatpush1.bf16.msra.mxu0 0
      %1538 = vmatprep.subr.bf16.mxu0 0
      %1539 = vmatpush1.bf16.msra.mxu0 %v1072
      %1540 = vmatprep.subr.bf16.mxu0 0
      %1541 = vmatpush1.bf16.msra.mxu0 %v1071
      %1542 = vmatprep.subr.bf16.mxu0 0
      %1543 = vmatpush1.bf16.msra.mxu0 %v1070
      %1544 = vmatprep.subr.bf16.mxu0 0
      %1545 = vmatpush1.bf16.msra.mxu0 %v1069
      %1546 = vmatprep.subr.bf16.mxu0 0
      %1547 = vmatpush2.bf16.msra.mxu0 0
      %1548 = vmatprep.subr.bf16.mxu0 0
      %1549 = vmatpush2.bf16.msra.mxu0 0
      %1550 = vmatprep.subr.bf16.mxu0 0
      %1551 = vmatpush2.bf16.msra.mxu0 0
      %1552 = vmatprep.subr.bf16.mxu0 0
      %1553 = vmatpush2.bf16.msra.mxu0 0
      %1554 = vmatprep.subr.bf16.mxu0 0
      %1555 = vmatpush2.bf16.msra.mxu0 0
      %1556 = vmatprep.subr.bf16.mxu0 0
      %1557 = vmatpush2.bf16.msra.mxu0 0
      %1558 = vmatprep.subr.bf16.mxu0 0
      %1559 = vmatpush2.bf16.msra.mxu0 0
      %1560 = vmatprep.subr.bf16.mxu0 0
      %1561 = vmatpush2.bf16.msra.mxu0 0
      %1562 = vmatprep.mubr.bf16.mxu0 0
      %1563 = vmatmul.mubr.bf16.gmra.mxu0 %v1288
      %v1564 = vpop.f32.mrf.mxu0
      %v1565 = vadd.f32 0.0, %v1564
      %v1566 = vpop.f32.mrf.mxu0
      %v1567 = vpop.f32.mrf.mxu0
      %v1568 = vadd.f32 0.0, %v1567
      %v1569 = vpop.f32.mrf.mxu0
      %1570 = vmatprep.mubr.bf16.mxu0 0
      %1571 = vmatmul.mubr.bf16.gmra.mxu0 %v1291
      %v1572 = vpop.f32.mrf.mxu0
      %v1573 = vadd.f32 0.0, %v1572
      %v1574 = vpop.f32.mrf.mxu0
      %v1575 = vpop.f32.mrf.mxu0
      %v1576 = vadd.f32 0.0, %v1575
      %v1577 = vpop.f32.mrf.mxu0
      %1578 = vmatprep.mubr.bf16.mxu0 0
      %1579 = vmatmul.mubr.bf16.gmra.mxu0 %v1294
      %v1580 = vpop.f32.mrf.mxu0
      %v1581 = vadd.f32 0.0, %v1580
      %v1582 = vpop.f32.mrf.mxu0
      %v1583 = vpop.f32.mrf.mxu0
      %v1584 = vadd.f32 0.0, %v1583
      %v1585 = vpop.f32.mrf.mxu0
      %1586 = vmatprep.mubr.bf16.mxu0 0
      %1587 = vmatmul.mubr.bf16.gmra.mxu0 %v1297
      %v1588 = vpop.f32.mrf.mxu0
      %v1589 = vadd.f32 0.0, %v1588
      %v1590 = vpop.f32.mrf.mxu0
      %v1591 = vpop.f32.mrf.mxu0
      %v1592 = vadd.f32 0.0, %v1591
      %v1593 = vpop.f32.mrf.mxu0
      %1594 = vdwg.mxu0
      %1603 = vrot.lane.b32.xlu0 %v1431, 127
      %v1604 = vpop.permute.xlu0 %1603
      %1605 = vrot.lane.b32.xlu0 %v1432, 127
      %v1606 = vpop.permute.xlu0 %1605
      %1607 = vrot.lane.b32.xlu0 %v1433, 127
      %v1608 = vpop.permute.xlu0 %1607
      %1609 = vrot.lane.b32.xlu0 %v1434, 127
      %v1610 = vpop.permute.xlu0 %1609
      %1611 = vrot.lane.b32.xlu0 %v1435, 127
      %v1612 = vpop.permute.xlu0 %1611
      %1613 = vrot.lane.b32.xlu0 %v1436, 127
      %v1614 = vpop.permute.xlu0 %1613
      %1615 = vrot.lane.b32.xlu0 %v1437, 127
      %v1616 = vpop.permute.xlu0 %1615
      %1617 = vrot.lane.b32.xlu0 %v1438, 127
      %v1618 = vpop.permute.xlu0 %1617
      %1627 = vxpose.xlu0.b32.start [1/16] %v1604, 128
      %1628 = vxpose.xlu0.b32.cont [2/16] %v1606, 128
      %1629 = vxpose.xlu0.b32.cont [3/16] %v1608, 128
      %1630 = vxpose.xlu0.b32.cont [4/16] %v1610, 128
      %1631 = vxpose.xlu0.b32.cont [5/16] %v1612, 128
      %1632 = vxpose.xlu0.b32.cont [6/16] %v1614, 128
      %1633 = vxpose.xlu0.b32.cont [7/16] %v1616, 128
      %1634 = vxpose.xlu0.b32.cont [8/16] %v1618, 128
      %1635 = vxpose.xlu0.b32.cont [9/16] 0.0, 128
      %1636 = vxpose.xlu0.b32.cont [10/16] 0.0, 128
      %1637 = vxpose.xlu0.b32.cont [11/16] 0.0, 128
      %1638 = vxpose.xlu0.b32.cont [12/16] 0.0, 128
      %1639 = vxpose.xlu0.b32.cont [13/16] 0.0, 128
      %1640 = vxpose.xlu0.b32.cont [14/16] 0.0, 128
      %1641 = vxpose.xlu0.b32.cont [15/16] 0.0, 128
      %1642 = vxpose.xlu0.b32.end [16/16] 0.0, 128
      %v1643 = vpop.trf.xlu0
      %v1644 = vpop.trf.xlu0
      %v1645 = vpop.trf.xlu0
      %v1646 = vpop.trf.xlu0
      %v1647 = vpop.trf.xlu0
      %v1648 = vpop.trf.xlu0
      %v1649 = vpop.trf.xlu0
      %v1650 = vpop.trf.xlu0
      %v1651 = vpop.trf.xlu0
      %v1652 = vpop.trf.xlu0
      %v1653 = vpop.trf.xlu0
      %v1654 = vpop.trf.xlu0
      %v1655 = vpop.trf.xlu0
      %v1656 = vpop.trf.xlu0
      %v1657 = vpop.trf.xlu0
      %v1658 = vpop.trf.xlu0
      %v1660 = vsel %vm822, %v1643, 0
      %1662 = vmatprep.subr.mxu0 0.0
      %1663 = vmatpush1.msra.mxu0 0.0
      %1664 = vmatprep.subr.mxu0 0.0
      %1665 = vmatpush1.msra.mxu0 0.0
      %1666 = vmatprep.subr.mxu0 0.0
      %1667 = vmatpush1.msra.mxu0 0.0
      %1668 = vmatprep.subr.mxu0 0.0
      %1669 = vmatpush1.msra.mxu0 0.0
      %1670 = vmatprep.subr.mxu0 0.0
      %1671 = vmatpush1.msra.mxu0 0.0
      %1672 = vmatprep.subr.mxu0 0.0
      %1673 = vmatpush1.msra.mxu0 0.0
      %1674 = vmatprep.subr.mxu0 0.0
      %1675 = vmatpush1.msra.mxu0 0.0
      %1676 = vmatprep.subr.mxu0 0.0
      %1677 = vmatpush1.msra.mxu0 0.0
      %1678 = vmatprep.subr.mxu0 0.0
      %1679 = vmatpush1.msra.mxu0 %v1592
      %1680 = vmatprep.subr.mxu0 0.0
      %1681 = vmatpush1.msra.mxu0 %v1589
      %1682 = vmatprep.subr.mxu0 0.0
      %1683 = vmatpush1.msra.mxu0 %v1584
      %1684 = vmatprep.subr.mxu0 0.0
      %1685 = vmatpush1.msra.mxu0 %v1581
      %1686 = vmatprep.subr.mxu0 0.0
      %1687 = vmatpush1.msra.mxu0 %v1576
      %1688 = vmatprep.subr.mxu0 0.0
      %1689 = vmatpush1.msra.mxu0 %v1573
      %1690 = vmatprep.subr.mxu0 0.0
      %1691 = vmatpush1.msra.mxu0 %v1568
      %1692 = vmatprep.subr.mxu0 0.0
      %1693 = vmatpush1.msra.mxu0 %v1565
      %1694 = vmatprep.subr.mxu0 0.0
      %1695 = vmatpush2.msra.mxu0 0.0
      %1696 = vmatprep.subr.mxu0 0.0
      %1697 = vmatpush2.msra.mxu0 0.0
      %1698 = vmatprep.subr.mxu0 0.0
      %1699 = vmatpush2.msra.mxu0 0.0
      %1700 = vmatprep.subr.mxu0 0.0
      %1701 = vmatpush2.msra.mxu0 0.0
      %1702 = vmatprep.subr.mxu0 0.0
      %1703 = vmatpush2.msra.mxu0 0.0
      %1704 = vmatprep.subr.mxu0 0.0
      %1705 = vmatpush2.msra.mxu0 0.0
      %1706 = vmatprep.subr.mxu0 0.0
      %1707 = vmatpush2.msra.mxu0 0.0
      %1708 = vmatprep.subr.mxu0 0.0
      %1709 = vmatpush2.msra.mxu0 0.0
      %1710 = vmatprep.subr.mxu0 0.0
      %1711 = vmatpush2.msra.mxu0 0.0
      %1712 = vmatprep.subr.mxu0 0.0
      %1713 = vmatpush2.msra.mxu0 0.0
      %1714 = vmatprep.subr.mxu0 0.0
      %1715 = vmatpush2.msra.mxu0 0.0
      %1716 = vmatprep.subr.mxu0 0.0
      %1717 = vmatpush2.msra.mxu0 0.0
      %1718 = vmatprep.subr.mxu0 0.0
      %1719 = vmatpush2.msra.mxu0 0.0
      %1720 = vmatprep.subr.mxu0 0.0
      %1721 = vmatpush2.msra.mxu0 0.0
      %1722 = vmatprep.subr.mxu0 0.0
      %1723 = vmatpush2.msra.mxu0 0.0
      %1724 = vmatprep.subr.mxu0 0.0
      %1725 = vmatpush2.msra.mxu0 0.0
      %1726 = vmatprep.mubr.f32.mxu0 0.0
      %1727 = vmatmul.mubr.f32.gmra.mxu0 %v1660
      %v1728 = vpop.f32.mrf.mxu0
      %v1729 = vadd.f32 0.0, %v1728
      %v1730 = vpop.f32.mrf.mxu0
      %1731 = vdwg.mxu0
      %v1732 = vlaneseq
      %v1733 = vshrl.u32 %v1732, 7
      %vm1734 = vcmp.lt.s32.totalorder %v1733, 5
      %v1735 = vsel %vm1734, 0.0, -1e+30
      %1736 = vst.msk [vmem:[#allocation2] sm:$0xff] %vm822, 0.0
      %vm1737 = vcmask 516096
      %1738 = vst.msk [vmem:[#allocation2] sm:$0x1] %vm1737, %v1044
      %vm1739 = vcmask 519168
      %1740 = vst.msk [vmem:[#allocation2 + $0x1] sm:$0xf] %vm1739, %v1729
      %v1741 = vld [vmem:[#allocation2] sm:$0xff]
      %v1742 = vld [vmem:[%s4] sm:$0xff]
      %v1743 = vadd.f32 %v1741, %v1742
      %v1744 = vld [vmem:[%s5] sm:$0x1]
      %v1745 = vld [vmem:[%s6] sm:$0x1]
      %v1746 = vsel %vm822, %v1743, 0.0
      %1747 = vadd.xlane.f32.xlu0 %v1746
      %v1748 = vpop.xlane.xlu0 %1747
      %v1749 = vrcp.pop 64.0
      %v1750 = vmul.f32 %v1748, %v1749
      %v1751 = vsub.f32 %v1743, %v1750
      %v1752 = vmul.f32 %v1751, %v1751
      %v1753 = vsel %vm822, %v1752, 0.0
      %1754 = vadd.xlane.f32.xlu0 %v1753
      %v1755 = vpop.xlane.xlu0 %1754
      %v1756 = vmul.f32 %v1755, %v1749
      %v1757 = vadd.f32 %v1756, 1e-06
      %v1758 = vrsqrt.pop %v1757
      %v1759 = vmul.f32 %v1751, %v1758
      %v1761 = vlaneseq
      %v1762 = vshrl.u32 %v1761, 7
      %v1763 = vsub.s32 0, %v1762
      %v1764 = vrot.slane %v1744, %v1763
      %v1766 = vmul.f32 %v1759, %v1764
      %v1768 = vlaneseq
      %v1769 = vshrl.u32 %v1768, 7
      %v1770 = vsub.s32 0, %v1769
      %v1771 = vrot.slane %v1745, %v1770
      %v1773 = vadd.f32 %v1766, %v1771
      %v1774 = vpack.c.bf16 %v1773, %v1773
      %v1775 = vld [vmem:[%s7] sm:$0xff]
      %v1776 = vld [vmem:[%s7 + $0x8] sm:$0xff]
      %v1777 = vld [vmem:[%s7 + $0x10] sm:$0xff]
      %v1778 = vld [vmem:[%s7 + $0x18] sm:$0xff]
      %v1779 = vld [vmem:[%s7 + $0x20] sm:$0xff]
      %v1780 = vld [vmem:[%s7 + $0x28] sm:$0xff]
      %v1781 = vld [vmem:[%s7 + $0x30] sm:$0xff]
      %v1782 = vld [vmem:[%s7 + $0x38] sm:$0xff]
      %v1783 = vld [vmem:[%s8] sm:$0x3]
      %v1792 = vunpack.c.l.b16 %v1775
      %v1793 = vunpack.c.h.b16 %v1775
      %v1794 = vunpack.c.l.b16 %v1776
      %v1795 = vunpack.c.h.b16 %v1776
      %v1796 = vunpack.c.l.b16 %v1777
      %v1797 = vunpack.c.h.b16 %v1777
      %v1798 = vunpack.c.l.b16 %v1778
      %v1799 = vunpack.c.h.b16 %v1778
      %v1800 = vunpack.c.l.b16 %v1779
      %v1801 = vunpack.c.h.b16 %v1779
      %v1802 = vunpack.c.l.b16 %v1780
      %v1803 = vunpack.c.h.b16 %v1780
      %v1804 = vunpack.c.l.b16 %v1781
      %v1805 = vunpack.c.h.b16 %v1781
      %v1806 = vunpack.c.l.b16 %v1782
      %v1807 = vunpack.c.h.b16 %v1782
      %v1808 = vpack.c.b16 %v1794, %v1792
      %v1809 = vpack.c.b16 %v1795, %v1793
      %v1810 = vpack.c.b16 %v1798, %v1796
      %v1811 = vpack.c.b16 %v1799, %v1797
      %v1812 = vpack.c.b16 %v1802, %v1800
      %v1813 = vpack.c.b16 %v1803, %v1801
      %v1814 = vpack.c.b16 %v1806, %v1804
      %v1815 = vpack.c.b16 %v1807, %v1805
      %v1825 = vlaneseq
      %v1826 = vshrl.u32 %v1825, 7
      %v1827 = vsub.s32 0, %v1826
      %v1828 = vrot.slane %v1783, %v1827
      %v1829 = vlaneseq
      %v1830 = vshrl.u32 %v1829, 7
      %v1831 = vsub.s32 1, %v1830
      %v1832 = vrot.slane %v1783, %v1831
      %v1836 = vsel %vm822, %v1774, 0
      %1838 = vmatprep.subr.bf16.mxu0 0
      %1839 = vmatpush1.bf16.msra.mxu0 0
      %1840 = vmatprep.subr.bf16.mxu0 0
      %1841 = vmatpush1.bf16.msra.mxu0 0
      %1842 = vmatprep.subr.bf16.mxu0 0
      %1843 = vmatpush1.bf16.msra.mxu0 0
      %1844 = vmatprep.subr.bf16.mxu0 0
      %1845 = vmatpush1.bf16.msra.mxu0 0
      %1846 = vmatprep.subr.bf16.mxu0 %v1815
      %1847 = vmatpush1.bf16.msra.mxu0 %v1814
      %1848 = vmatprep.subr.bf16.mxu0 %v1813
      %1849 = vmatpush1.bf16.msra.mxu0 %v1812
      %1850 = vmatprep.subr.bf16.mxu0 %v1811
      %1851 = vmatpush1.bf16.msra.mxu0 %v1810
      %1852 = vmatprep.subr.bf16.mxu0 %v1809
      %1853 = vmatpush1.bf16.msra.mxu0 %v1808
      %1854 = vmatprep.subr.bf16.mxu0 0
      %1855 = vmatpush2.bf16.msra.mxu0 0
      %1856 = vmatprep.subr.bf16.mxu0 0
      %1857 = vmatpush2.bf16.msra.mxu0 0
      %1858 = vmatprep.subr.bf16.mxu0 0
      %1859 = vmatpush2.bf16.msra.mxu0 0
      %1860 = vmatprep.subr.bf16.mxu0 0
      %1861 = vmatpush2.bf16.msra.mxu0 0
      %1862 = vmatprep.subr.bf16.mxu0 0
      %1863 = vmatpush2.bf16.msra.mxu0 0
      %1864 = vmatprep.subr.bf16.mxu0 0
      %1865 = vmatpush2.bf16.msra.mxu0 0
      %1866 = vmatprep.subr.bf16.mxu0 0
      %1867 = vmatpush2.bf16.msra.mxu0 0
      %1868 = vmatprep.subr.bf16.mxu0 0
      %1869 = vmatpush2.bf16.msra.mxu0 0
      %1870 = vmatprep.mubr.bf16.mxu0 0
      %1871 = vmatmul.mubr.bf16.gmra.mxu0 %v1836
      %v1872 = vpop.f32.mrf.mxu0
      %v1873 = vadd.f32 %v1828, %v1872
      %v1874 = vpop.f32.mrf.mxu0
      %v1875 = vadd.f32 %v1832, %v1874
      %v1876 = vpop.f32.mrf.mxu0
      %v1877 = vpop.f32.mrf.mxu0
      %1878 = vdwg.mxu0
      %v1879 = vld [vmem:[%s9] sm:$0xff]
      %v1880 = vld [vmem:[%s9 + $0x8] sm:$0xff]
      %v1881 = vld [vmem:[%s9 + $0x10] sm:$0xff]
      %v1882 = vld [vmem:[%s9 + $0x18] sm:$0xff]
      %v1883 = vld [vmem:[%s9 + $0x20] sm:$0xff]
      %v1884 = vld [vmem:[%s9 + $0x28] sm:$0xff]
      %v1885 = vld [vmem:[%s9 + $0x30] sm:$0xff]
      %v1886 = vld [vmem:[%s9 + $0x38] sm:$0xff]
      %v1887 = vld [vmem:[%s10] sm:$0x3]
      %v1889 = vlaneseq
      %v1890 = vshrl.u32 %v1889, 7
      %v1891 = vsub.s32 0, %v1890
      %v1892 = vrot.slane %v1887, %v1891
      %v1893 = vlaneseq
      %v1894 = vshrl.u32 %v1893, 7
      %v1895 = vsub.s32 1, %v1894
      %v1896 = vrot.slane %v1887, %v1895
      %v1907 = vunpack.c.l.b16 %v1879
      %v1908 = vunpack.c.h.b16 %v1879
      %v1909 = vunpack.c.l.b16 %v1880
      %v1910 = vunpack.c.h.b16 %v1880
      %v1911 = vunpack.c.l.b16 %v1881
      %v1912 = vunpack.c.h.b16 %v1881
      %v1913 = vunpack.c.l.b16 %v1882
      %v1914 = vunpack.c.h.b16 %v1882
      %v1915 = vunpack.c.l.b16 %v1883
      %v1916 = vunpack.c.h.b16 %v1883
      %v1917 = vunpack.c.l.b16 %v1884
      %v1918 = vunpack.c.h.b16 %v1884
      %v1919 = vunpack.c.l.b16 %v1885
      %v1920 = vunpack.c.h.b16 %v1885
      %v1921 = vunpack.c.l.b16 %v1886
      %v1922 = vunpack.c.h.b16 %v1886
      %v1923 = vpack.c.b16 %v1909, %v1907
      %v1924 = vpack.c.b16 %v1910, %v1908
      %v1925 = vpack.c.b16 %v1913, %v1911
      %v1926 = vpack.c.b16 %v1914, %v1912
      %v1927 = vpack.c.b16 %v1917, %v1915
      %v1928 = vpack.c.b16 %v1918, %v1916
      %v1929 = vpack.c.b16 %v1921, %v1919
      %v1930 = vpack.c.b16 %v1922, %v1920
      %1939 = vmatprep.subr.bf16.mxu0 0
      %1940 = vmatpush1.bf16.msra.mxu0 0
      %1941 = vmatprep.subr.bf16.mxu0 0
      %1942 = vmatpush1.bf16.msra.mxu0 0
      %1943 = vmatprep.subr.bf16.mxu0 0
      %1944 = vmatpush1.bf16.msra.mxu0 0
      %1945 = vmatprep.subr.bf16.mxu0 0
      %1946 = vmatpush1.bf16.msra.mxu0 0
      %1947 = vmatprep.subr.bf16.mxu0 %v1930
      %1948 = vmatpush1.bf16.msra.mxu0 %v1929
      %1949 = vmatprep.subr.bf16.mxu0 %v1928
      %1950 = vmatpush1.bf16.msra.mxu0 %v1927
      %1951 = vmatprep.subr.bf16.mxu0 %v1926
      %1952 = vmatpush1.bf16.msra.mxu0 %v1925
      %1953 = vmatprep.subr.bf16.mxu0 %v1924
      %1954 = vmatpush1.bf16.msra.mxu0 %v1923
      %1955 = vmatprep.subr.bf16.mxu0 0
      %1956 = vmatpush2.bf16.msra.mxu0 0
      %1957 = vmatprep.subr.bf16.mxu0 0
      %1958 = vmatpush2.bf16.msra.mxu0 0
      %1959 = vmatprep.subr.bf16.mxu0 0
      %1960 = vmatpush2.bf16.msra.mxu0 0
      %1961 = vmatprep.subr.bf16.mxu0 0
      %1962 = vmatpush2.bf16.msra.mxu0 0
      %1963 = vmatprep.subr.bf16.mxu0 0
      %1964 = vmatpush2.bf16.msra.mxu0 0
      %1965 = vmatprep.subr.bf16.mxu0 0
      %1966 = vmatpush2.bf16.msra.mxu0 0
      %1967 = vmatprep.subr.bf16.mxu0 0
      %1968 = vmatpush2.bf16.msra.mxu0 0
      %1969 = vmatprep.subr.bf16.mxu0 0
      %1970 = vmatpush2.bf16.msra.mxu0 0
      %1971 = vmatprep.mubr.bf16.mxu0 0
      %1972 = vmatmul.mubr.bf16.gmra.mxu0 %v1836
      %v1973 = vpop.f32.mrf.mxu0
      %v1974 = vadd.f32 %v1892, %v1973
      %v1975 = vpop.f32.mrf.mxu0
      %v1976 = vadd.f32 %v1896, %v1975
      %v1977 = vpop.f32.mrf.mxu0
      %v1978 = vpop.f32.mrf.mxu0
      %1979 = vdwg.mxu0
      %v1980 = vld [vmem:[%s11] sm:$0xff]
      %v1981 = vld [vmem:[%s11 + $0x8] sm:$0xff]
      %v1982 = vld [vmem:[%s11 + $0x10] sm:$0xff]
      %v1983 = vld [vmem:[%s11 + $0x18] sm:$0xff]
      %v1984 = vld [vmem:[%s11 + $0x20] sm:$0xff]
      %v1985 = vld [vmem:[%s11 + $0x28] sm:$0xff]
      %v1986 = vld [vmem:[%s11 + $0x30] sm:$0xff]
      %v1987 = vld [vmem:[%s11 + $0x38] sm:$0xff]
      %v1988 = vld [vmem:[%s12] sm:$0x3]
      %v1990 = vlaneseq
      %v1991 = vshrl.u32 %v1990, 7
      %v1992 = vsub.s32 0, %v1991
      %v1993 = vrot.slane %v1988, %v1992
      %v1994 = vlaneseq
      %v1995 = vshrl.u32 %v1994, 7
      %v1996 = vsub.s32 1, %v1995
      %v1997 = vrot.slane %v1988, %v1996
      %v2008 = vunpack.c.l.b16 %v1980
      %v2009 = vunpack.c.h.b16 %v1980
      %v2010 = vunpack.c.l.b16 %v1981
      %v2011 = vunpack.c.h.b16 %v1981
      %v2012 = vunpack.c.l.b16 %v1982
      %v2013 = vunpack.c.h.b16 %v1982
      %v2014 = vunpack.c.l.b16 %v1983
      %v2015 = vunpack.c.h.b16 %v1983
      %v2016 = vunpack.c.l.b16 %v1984
      %v2017 = vunpack.c.h.b16 %v1984
      %v2018 = vunpack.c.l.b16 %v1985
      %v2019 = vunpack.c.h.b16 %v1985
      %v2020 = vunpack.c.l.b16 %v1986
      %v2021 = vunpack.c.h.b16 %v1986
      %v2022 = vunpack.c.l.b16 %v1987
      %v2023 = vunpack.c.h.b16 %v1987
      %v2024 = vpack.c.b16 %v2010, %v2008
      %v2025 = vpack.c.b16 %v2011, %v2009
      %v2026 = vpack.c.b16 %v2014, %v2012
      %v2027 = vpack.c.b16 %v2015, %v2013
      %v2028 = vpack.c.b16 %v2018, %v2016
      %v2029 = vpack.c.b16 %v2019, %v2017
      %v2030 = vpack.c.b16 %v2022, %v2020
      %v2031 = vpack.c.b16 %v2023, %v2021
      %2040 = vmatprep.subr.bf16.mxu0 0
      %2041 = vmatpush1.bf16.msra.mxu0 0
      %2042 = vmatprep.subr.bf16.mxu0 0
      %2043 = vmatpush1.bf16.msra.mxu0 0
      %2044 = vmatprep.subr.bf16.mxu0 0
      %2045 = vmatpush1.bf16.msra.mxu0 0
      %2046 = vmatprep.subr.bf16.mxu0 0
      %2047 = vmatpush1.bf16.msra.mxu0 0
      %2048 = vmatprep.subr.bf16.mxu0 %v2031
      %2049 = vmatpush1.bf16.msra.mxu0 %v2030
      %2050 = vmatprep.subr.bf16.mxu0 %v2029
      %2051 = vmatpush1.bf16.msra.mxu0 %v2028
      %2052 = vmatprep.subr.bf16.mxu0 %v2027
      %2053 = vmatpush1.bf16.msra.mxu0 %v2026
      %2054 = vmatprep.subr.bf16.mxu0 %v2025
      %2055 = vmatpush1.bf16.msra.mxu0 %v2024
      %2056 = vmatprep.subr.bf16.mxu0 0
      %2057 = vmatpush2.bf16.msra.mxu0 0
      %2058 = vmatprep.subr.bf16.mxu0 0
      %2059 = vmatpush2.bf16.msra.mxu0 0
      %2060 = vmatprep.subr.bf16.mxu0 0
      %2061 = vmatpush2.bf16.msra.mxu0 0
      %2062 = vmatprep.subr.bf16.mxu0 0
      %2063 = vmatpush2.bf16.msra.mxu0 0
      %2064 = vmatprep.subr.bf16.mxu0 0
      %2065 = vmatpush2.bf16.msra.mxu0 0
      %2066 = vmatprep.subr.bf16.mxu0 0
      %2067 = vmatpush2.bf16.msra.mxu0 0
      %2068 = vmatprep.subr.bf16.mxu0 0
      %2069 = vmatpush2.bf16.msra.mxu0 0
      %2070 = vmatprep.subr.bf16.mxu0 0
      %2071 = vmatpush2.bf16.msra.mxu0 0
      %2072 = vmatprep.mubr.bf16.mxu0 0
      %2073 = vmatmul.mubr.bf16.gmra.mxu0 %v1836
      %v2074 = vpop.f32.mrf.mxu0
      %v2075 = vadd.f32 %v1993, %v2074
      %v2076 = vpop.f32.mrf.mxu0
      %v2077 = vadd.f32 %v1997, %v2076
      %v2078 = vpop.f32.mrf.mxu0
      %v2079 = vpop.f32.mrf.mxu0
      %2080 = vdwg.mxu0
      %v2081 = vlaneseq
      %v2082 = vshrl.u32 %v2081, 7
      %v2083 = vsub.s32 0, %v2082
      %v2084 = vrot.slane %v1873, %v2083
      %v2085 = vlaneseq
      %v2086 = vshrl.u32 %v2085, 7
      %v2087 = vsub.s32 0, %v2086
      %v2088 = vrot.slane %v1875, %v2087
      %v2089 = vmul.f32 %v1974, %v2084
      %v2090 = vmul.f32 %v1976, %v2088
      %v2091 = vld [vmem:[%s21] sm:$0xff]
      %v2092 = vld [vmem:[%s21 + $0x8] sm:$0xff]
      %v2093 = vld [vmem:[%s21 + $0x10] sm:$0xff]
      %v2094 = vld [vmem:[%s21 + $0x18] sm:$0xff]
      %v2095 = vld [vmem:[%s21 + $0x20] sm:$0xff]
      %v2096 = vld [vmem:[%s21 + $0x28] sm:$0xff]
      %v2097 = vld [vmem:[%s21 + $0x30] sm:$0xff]
      %v2098 = vld [vmem:[%s21 + $0x38] sm:$0xff]
      %v2099 = vld [vmem:[%s21 + $0x40] sm:$0xff]
      %v2100 = vld [vmem:[%s21 + $0x48] sm:$0xff]
      %v2101 = vld [vmem:[%s21 + $0x50] sm:$0xff]
      %v2102 = vld [vmem:[%s21 + $0x58] sm:$0xff]
      %v2103 = vld [vmem:[%s21 + $0x60] sm:$0xff]
      %v2104 = vld [vmem:[%s21 + $0x68] sm:$0xff]
      %v2105 = vld [vmem:[%s21 + $0x70] sm:$0xff]
      %v2106 = vld [vmem:[%s21 + $0x78] sm:$0xff]
      %v2107 = vld [vmem:[%s21 + $0x80] sm:$0xff]
      %v2108 = vld [vmem:[%s21 + $0x88] sm:$0xff]
      %v2109 = vld [vmem:[%s21 + $0x90] sm:$0xff]
      %v2110 = vld [vmem:[%s21 + $0x98] sm:$0xff]
      %v2111 = vld [vmem:[%s21 + $0xa0] sm:$0xff]
      %v2112 = vld [vmem:[%s21 + $0xa8] sm:$0xff]
      %v2113 = vld [vmem:[%s21 + $0xb0] sm:$0xff]
      %v2114 = vld [vmem:[%s21 + $0xb8] sm:$0xff]
      %v2115 = vld [vmem:[%s21 + $0xc0] sm:$0xff]
      %v2116 = vld [vmem:[%s21 + $0xc8] sm:$0xff]
      %v2117 = vld [vmem:[%s21 + $0xd0] sm:$0xff]
      %v2118 = vld [vmem:[%s21 + $0xd8] sm:$0xff]
      %v2119 = vld [vmem:[%s21 + $0xe0] sm:$0xff]
      %v2120 = vld [vmem:[%s21 + $0xe8] sm:$0xff]
      %v2121 = vld [vmem:[%s21 + $0xf0] sm:$0xff]
      %v2122 = vld [vmem:[%s21 + $0xf8] sm:$0xff]
      %2123 = vmatprep.subr.mxu0 0.0
      %2124 = vmatpush1.msra.mxu0 %v2106
      %2125 = vmatprep.subr.mxu0 0.0
      %2126 = vmatpush1.msra.mxu0 %v2105
      %2127 = vmatprep.subr.mxu0 0.0
      %2128 = vmatpush1.msra.mxu0 %v2104
      %2129 = vmatprep.subr.mxu0 0.0
      %2130 = vmatpush1.msra.mxu0 %v2103
      %2131 = vmatprep.subr.mxu0 0.0
      %2132 = vmatpush1.msra.mxu0 %v2102
      %2133 = vmatprep.subr.mxu0 0.0
      %2134 = vmatpush1.msra.mxu0 %v2101
      %2135 = vmatprep.subr.mxu0 0.0
      %2136 = vmatpush1.msra.mxu0 %v2100
      %2137 = vmatprep.subr.mxu0 0.0
      %2138 = vmatpush1.msra.mxu0 %v2099
      %2139 = vmatprep.subr.mxu0 0.0
      %2140 = vmatpush1.msra.mxu0 %v2098
      %2141 = vmatprep.subr.mxu0 0.0
      %2142 = vmatpush1.msra.mxu0 %v2097
      %2143 = vmatprep.subr.mxu0 0.0
      %2144 = vmatpush1.msra.mxu0 %v2096
      %2145 = vmatprep.subr.mxu0 0.0
      %2146 = vmatpush1.msra.mxu0 %v2095
      %2147 = vmatprep.subr.mxu0 0.0
      %2148 = vmatpush1.msra.mxu0 %v2094
      %2149 = vmatprep.subr.mxu0 0.0
      %2150 = vmatpush1.msra.mxu0 %v2093
      %2151 = vmatprep.subr.mxu0 0.0
      %2152 = vmatpush1.msra.mxu0 %v2092
      %2153 = vmatprep.subr.mxu0 0.0
      %2154 = vmatpush1.msra.mxu0 %v2091
      %2155 = vmatprep.subr.mxu0 0.0
      %2156 = vmatpush2.msra.mxu0 %v2122
      %2157 = vmatprep.subr.mxu0 0.0
      %2158 = vmatpush2.msra.mxu0 %v2121
      %2159 = vmatprep.subr.mxu0 0.0
      %2160 = vmatpush2.msra.mxu0 %v2120
      %2161 = vmatprep.subr.mxu0 0.0
      %2162 = vmatpush2.msra.mxu0 %v2119
      %2163 = vmatprep.subr.mxu0 0.0
      %2164 = vmatpush2.msra.mxu0 %v2118
      %2165 = vmatprep.subr.mxu0 0.0
      %2166 = vmatpush2.msra.mxu0 %v2117
      %2167 = vmatprep.subr.mxu0 0.0
      %2168 = vmatpush2.msra.mxu0 %v2116
      %2169 = vmatprep.subr.mxu0 0.0
      %2170 = vmatpush2.msra.mxu0 %v2115
      %2171 = vmatprep.subr.mxu0 0.0
      %2172 = vmatpush2.msra.mxu0 %v2114
      %2173 = vmatprep.subr.mxu0 0.0
      %2174 = vmatpush2.msra.mxu0 %v2113
      %2175 = vmatprep.subr.mxu0 0.0
      %2176 = vmatpush2.msra.mxu0 %v2112
      %2177 = vmatprep.subr.mxu0 0.0
      %2178 = vmatpush2.msra.mxu0 %v2111
      %2179 = vmatprep.subr.mxu0 0.0
      %2180 = vmatpush2.msra.mxu0 %v2110
      %2181 = vmatprep.subr.mxu0 0.0
      %2182 = vmatpush2.msra.mxu0 %v2109
      %2183 = vmatprep.subr.mxu0 0.0
      %2184 = vmatpush2.msra.mxu0 %v2108
      %2185 = vmatprep.subr.mxu0 0.0
      %2186 = vmatpush2.msra.mxu0 %v2107
      %2187 = vmatprep.mubr.f32.mxu0 %v2090
      %2188 = vmatmul.mubr.f32.gmra.mxu0 %v2089
      %v2189 = vpop.f32.mrf.mxu0
      %v2190 = vadd.f32 0.0, %v2189
      %v2191 = vpop.f32.mrf.mxu0
      %2192 = vdwg.mxu0
      %v2193 = vmul.f32 %v2190, 0.125
      %v2194 = vadd.f32 %v2193, %v1735
      %vm2195 = vcmask 31744
      %v2196 = vsel %vm2195, %v2194, -inf
      %v2197 = vrot.slane %v2196, 4
      %v2198 = vmax.f32 %v2196, %v2197
      %v2199 = vrot.slane %v2198, 2
      %v2200 = vmax.f32 %v2198, %v2199
      %v2201 = vrot.slane %v2200, 1
      %v2202 = vmax.f32 %v2200, %v2201
      %v2203 = vsub.f32 %v2194, %v2202
      %v2204 = vmul.f32 %v2203, 1.442695
      %v2205 = vpow.pop %v2204
      %v2206 = vsel %vm2195, %v2205, 0.0
      %v2207 = vrot.slane %v2206, 4
      %v2208 = vadd.f32 %v2206, %v2207
      %v2209 = vrot.slane %v2208, 2
      %v2210 = vadd.f32 %v2208, %v2209
      %v2211 = vrot.slane %v2210, 1
      %v2212 = vadd.f32 %v2210, %v2211
      %v2213 = vrcp.pop %v2212
      %v2214 = vmul.f32 %v2205, %v2213
      %v2215 = vld [vmem:[%s22] sm:$0xff]
      %v2217 = vcombine.high %v2215, %v2215
      %v2219 = vsel %vm2195, %v2214, 0
      %vm2221 = vcmask 1043456
      %v2222 = vsel %vm2221, %v2215, 0
      %v2224 = vsel %vm2221, %v2217, 0
      %2226 = vmatprep.subr.mxu0 0.0
      %2227 = vmatpush1.msra.mxu0 0.0
      %2228 = vmatprep.subr.mxu0 0.0
      %2229 = vmatpush1.msra.mxu0 0.0
      %2230 = vmatprep.subr.mxu0 0.0
      %2231 = vmatpush1.msra.mxu0 0.0
      %2232 = vmatprep.subr.mxu0 0.0
      %2233 = vmatpush1.msra.mxu0 0.0
      %2234 = vmatprep.subr.mxu0 0.0
      %2235 = vmatpush1.msra.mxu0 0.0
      %2236 = vmatprep.subr.mxu0 0.0
      %2237 = vmatpush1.msra.mxu0 0.0
      %2238 = vmatprep.subr.mxu0 0.0
      %2239 = vmatpush1.msra.mxu0 0.0
      %2240 = vmatprep.subr.mxu0 0.0
      %2241 = vmatpush1.msra.mxu0 0.0
      %2242 = vmatprep.subr.mxu0 0.0
      %2243 = vmatpush1.msra.mxu0 0.0
      %2244 = vmatprep.subr.mxu0 0.0
      %2245 = vmatpush1.msra.mxu0 0.0
      %2246 = vmatprep.subr.mxu0 0.0
      %2247 = vmatpush1.msra.mxu0 0.0
      %2248 = vmatprep.subr.mxu0 0.0
      %2249 = vmatpush1.msra.mxu0 0.0
      %2250 = vmatprep.subr.mxu0 0.0
      %2251 = vmatpush1.msra.mxu0 0.0
      %2252 = vmatprep.subr.mxu0 0.0
      %2253 = vmatpush1.msra.mxu0 0.0
      %2254 = vmatprep.subr.mxu0 0.0
      %2255 = vmatpush1.msra.mxu0 0.0
      %2256 = vmatprep.subr.mxu0 %v2224
      %2257 = vmatpush1.msra.mxu0 %v2222
      %2258 = vmatprep.subr.mxu0 0.0
      %2259 = vmatpush2.msra.mxu0 0.0
      %2260 = vmatprep.subr.mxu0 0.0
      %2261 = vmatpush2.msra.mxu0 0.0
      %2262 = vmatprep.subr.mxu0 0.0
      %2263 = vmatpush2.msra.mxu0 0.0
      %2264 = vmatprep.subr.mxu0 0.0
      %2265 = vmatpush2.msra.mxu0 0.0
      %2266 = vmatprep.subr.mxu0 0.0
      %2267 = vmatpush2.msra.mxu0 0.0
      %2268 = vmatprep.subr.mxu0 0.0
      %2269 = vmatpush2.msra.mxu0 0.0
      %2270 = vmatprep.subr.mxu0 0.0
      %2271 = vmatpush2.msra.mxu0 0.0
      %2272 = vmatprep.subr.mxu0 0.0
      %2273 = vmatpush2.msra.mxu0 0.0
      %2274 = vmatprep.subr.mxu0 0.0
      %2275 = vmatpush2.msra.mxu0 0.0
      %2276 = vmatprep.subr.mxu0 0.0
      %2277 = vmatpush2.msra.mxu0 0.0
      %2278 = vmatprep.subr.mxu0 0.0
      %2279 = vmatpush2.msra.mxu0 0.0
      %2280 = vmatprep.subr.mxu0 0.0
      %2281 = vmatpush2.msra.mxu0 0.0
      %2282 = vmatprep.subr.mxu0 0.0
      %2283 = vmatpush2.msra.mxu0 0.0
      %2284 = vmatprep.subr.mxu0 0.0
      %2285 = vmatpush2.msra.mxu0 0.0
      %2286 = vmatprep.subr.mxu0 0.0
      %2287 = vmatpush2.msra.mxu0 0.0
      %2288 = vmatprep.subr.mxu0 0.0
      %2289 = vmatpush2.msra.mxu0 0.0
      %2290 = vmatprep.mubr.f32.mxu0 0.0
      %2291 = vmatmul.mubr.f32.gmra.mxu0 %v2219
      %v2292 = vpop.f32.mrf.mxu0
      %v2293 = vadd.f32 0.0, %v2292
      %v2294 = vpop.f32.mrf.mxu0
      %v2295 = vadd.f32 0.0, %v2294
      %2296 = vdwg.mxu0
      %v2297 = vmul.f32 %v2293, %v2075
      %v2298 = vmul.f32 %v2295, %v2077
      %v2299 = vrot.slane %v2297, 4
      %v2300 = vadd.f32 %v2297, %v2299
      %v2301 = vrot.slane %v2300, 2
      %v2302 = vadd.f32 %v2300, %v2301
      %v2303 = vrot.slane %v2302, 1
      %v2304 = vadd.f32 %v2302, %v2303
      %v2305 = vrot.slane %v2298, 4
      %v2306 = vadd.f32 %v2298, %v2305
      %v2307 = vrot.slane %v2306, 2
      %v2308 = vadd.f32 %v2306, %v2307
      %v2309 = vrot.slane %v2308, 1
      %v2310 = vadd.f32 %v2308, %v2309
      %v2311 = vpack.c.bf16 %v2304, %v2304
      %v2312 = vpack.c.bf16 %v2310, %v2310
      %v2313 = vld [vmem:[%s13] sm:$0xf]
      %v2314 = vld [vmem:[%s13 + $0x4] sm:$0xf]
      %v2315 = vld [vmem:[%s13 + $0x8] sm:$0xf]
      %v2316 = vld [vmem:[%s13 + $0xc] sm:$0xf]
      %v2317 = vld [vmem:[%s13 + $0x10] sm:$0xf]
      %v2318 = vld [vmem:[%s13 + $0x14] sm:$0xf]
      %v2319 = vld [vmem:[%s13 + $0x18] sm:$0xf]
      %v2320 = vld [vmem:[%s13 + $0x1c] sm:$0xf]
      %v2321 = vld [vmem:[%s13 + $0x20] sm:$0xf]
      %v2322 = vld [vmem:[%s13 + $0x24] sm:$0xf]
      %v2323 = vld [vmem:[%s13 + $0x28] sm:$0xf]
      %v2324 = vld [vmem:[%s13 + $0x2c] sm:$0xf]
      %v2325 = vld [vmem:[%s13 + $0x30] sm:$0xf]
      %v2326 = vld [vmem:[%s13 + $0x34] sm:$0xf]
      %v2327 = vld [vmem:[%s13 + $0x38] sm:$0xf]
      %v2328 = vld [vmem:[%s13 + $0x3c] sm:$0xf]
      %v2329 = vld [vmem:[%s13 + $0x40] sm:$0xf]
      %v2330 = vld [vmem:[%s13 + $0x44] sm:$0xf]
      %v2331 = vld [vmem:[%s13 + $0x48] sm:$0xf]
      %v2332 = vld [vmem:[%s13 + $0x4c] sm:$0xf]
      %v2333 = vld [vmem:[%s13 + $0x50] sm:$0xf]
      %v2334 = vld [vmem:[%s13 + $0x54] sm:$0xf]
      %v2335 = vld [vmem:[%s13 + $0x58] sm:$0xf]
      %v2336 = vld [vmem:[%s13 + $0x5c] sm:$0xf]
      %v2337 = vld [vmem:[%s13 + $0x60] sm:$0xf]
      %v2338 = vld [vmem:[%s13 + $0x64] sm:$0xf]
      %v2339 = vld [vmem:[%s13 + $0x68] sm:$0xf]
      %v2340 = vld [vmem:[%s13 + $0x6c] sm:$0xf]
      %v2341 = vld [vmem:[%s13 + $0x70] sm:$0xf]
      %v2342 = vld [vmem:[%s13 + $0x74] sm:$0xf]
      %v2343 = vld [vmem:[%s13 + $0x78] sm:$0xf]
      %v2344 = vld [vmem:[%s13 + $0x7c] sm:$0xf]
      %v2345 = vld [vmem:[%s14] sm:$0x1]
      %v2378 = vunpack.c.l.b16 %v2313
      %v2379 = vunpack.c.l.b16 %v2314
      %v2380 = vunpack.c.l.b16 %v2315
      %v2381 = vunpack.c.l.b16 %v2316
      %v2382 = vunpack.c.l.b16 %v2317
      %v2383 = vunpack.c.l.b16 %v2318
      %v2384 = vunpack.c.l.b16 %v2319
      %v2385 = vunpack.c.l.b16 %v2320
      %v2386 = vunpack.c.l.b16 %v2321
      %v2387 = vunpack.c.l.b16 %v2322
      %v2388 = vunpack.c.l.b16 %v2323
      %v2389 = vunpack.c.l.b16 %v2324
      %v2390 = vunpack.c.l.b16 %v2325
      %v2391 = vunpack.c.l.b16 %v2326
      %v2392 = vunpack.c.l.b16 %v2327
      %v2393 = vunpack.c.l.b16 %v2328
      %v2394 = vunpack.c.l.b16 %v2329
      %v2395 = vunpack.c.l.b16 %v2330
      %v2396 = vunpack.c.l.b16 %v2331
      %v2397 = vunpack.c.l.b16 %v2332
      %v2398 = vunpack.c.l.b16 %v2333
      %v2399 = vunpack.c.l.b16 %v2334
      %v2400 = vunpack.c.l.b16 %v2335
      %v2401 = vunpack.c.l.b16 %v2336
      %v2402 = vunpack.c.l.b16 %v2337
      %v2403 = vunpack.c.l.b16 %v2338
      %v2404 = vunpack.c.l.b16 %v2339
      %v2405 = vunpack.c.l.b16 %v2340
      %v2406 = vunpack.c.l.b16 %v2341
      %v2407 = vunpack.c.l.b16 %v2342
      %v2408 = vunpack.c.l.b16 %v2343
      %v2409 = vunpack.c.l.b16 %v2344
      %v2410 = vpack.c.b16 %v2379, %v2378
      %v2411 = vpack.c.b16 %v2381, %v2380
      %v2412 = vpack.c.b16 %v2383, %v2382
      %v2413 = vpack.c.b16 %v2385, %v2384
      %v2414 = vpack.c.b16 %v2387, %v2386
      %v2415 = vpack.c.b16 %v2389, %v2388
      %v2416 = vpack.c.b16 %v2391, %v2390
      %v2417 = vpack.c.b16 %v2393, %v2392
      %v2418 = vpack.c.b16 %v2395, %v2394
      %v2419 = vpack.c.b16 %v2397, %v2396
      %v2420 = vpack.c.b16 %v2399, %v2398
      %v2421 = vpack.c.b16 %v2401, %v2400
      %v2422 = vpack.c.b16 %v2403, %v2402
      %v2423 = vpack.c.b16 %v2405, %v2404
      %v2424 = vpack.c.b16 %v2407, %v2406
      %v2425 = vpack.c.b16 %v2409, %v2408
      %2442 = vmatprep.subr.bf16.mxu0 0
      %2443 = vmatpush1.bf16.msra.mxu0 %v2417
      %2444 = vmatprep.subr.bf16.mxu0 0
      %2445 = vmatpush1.bf16.msra.mxu0 %v2416
      %2446 = vmatprep.subr.bf16.mxu0 0
      %2447 = vmatpush1.bf16.msra.mxu0 %v2415
      %2448 = vmatprep.subr.bf16.mxu0 0
      %2449 = vmatpush1.bf16.msra.mxu0 %v2414
      %2450 = vmatprep.subr.bf16.mxu0 0
      %2451 = vmatpush1.bf16.msra.mxu0 %v2413
      %2452 = vmatprep.subr.bf16.mxu0 0
      %2453 = vmatpush1.bf16.msra.mxu0 %v2412
      %2454 = vmatprep.subr.bf16.mxu0 0
      %2455 = vmatpush1.bf16.msra.mxu0 %v2411
      %2456 = vmatprep.subr.bf16.mxu0 0
      %2457 = vmatpush1.bf16.msra.mxu0 %v2410
      %2458 = vmatprep.subr.bf16.mxu0 0
      %2459 = vmatpush2.bf16.msra.mxu0 %v2425
      %2460 = vmatprep.subr.bf16.mxu0 0
      %2461 = vmatpush2.bf16.msra.mxu0 %v2424
      %2462 = vmatprep.subr.bf16.mxu0 0
      %2463 = vmatpush2.bf16.msra.mxu0 %v2423
      %2464 = vmatprep.subr.bf16.mxu0 0
      %2465 = vmatpush2.bf16.msra.mxu0 %v2422
      %2466 = vmatprep.subr.bf16.mxu0 0
      %2467 = vmatpush2.bf16.msra.mxu0 %v2421
      %2468 = vmatprep.subr.bf16.mxu0 0
      %2469 = vmatpush2.bf16.msra.mxu0 %v2420
      %2470 = vmatprep.subr.bf16.mxu0 0
      %2471 = vmatpush2.bf16.msra.mxu0 %v2419
      %2472 = vmatprep.subr.bf16.mxu0 0
      %2473 = vmatpush2.bf16.msra.mxu0 %v2418
      %2474 = vmatprep.mubr.bf16.mxu0 %v2312
      %2475 = vmatmul.mubr.bf16.gmra.mxu0 %v2311
      %v2476 = vpop.f32.mrf.mxu0
      %v2477 = vadd.f32 %v2345, %v2476
      %v2478 = vpop.f32.mrf.mxu0
      %v2479 = vpop.f32.mrf.mxu0
      %v2480 = vpop.f32.mrf.mxu0
      %2481 = vdwg.mxu0
      %v2482 = vlaneseq
      %v2483 = vshrl.u32 %v2482, 7
      %v2484 = vsub.s32 0, %v2483
      %v2485 = vrot.slane %v2477, %v2484
      %v2486 = vadd.f32 %v1743, %v2485
      %v2487 = vld [vmem:[%s15] sm:$0x1]
      %v2488 = vld [vmem:[%s16] sm:$0x1]
      %v2489 = vsel %vm822, %v2486, 0.0
      %2490 = vadd.xlane.f32.xlu0 %v2489
      %v2491 = vpop.xlane.xlu0 %2490
      %v2492 = vmul.f32 %v2491, %v1749
      %v2493 = vsub.f32 %v2486, %v2492
      %v2494 = vmul.f32 %v2493, %v2493
      %v2495 = vsel %vm822, %v2494, 0.0
      %2496 = vadd.xlane.f32.xlu0 %v2495
      %v2497 = vpop.xlane.xlu0 %2496
      %v2498 = vmul.f32 %v2497, %v1749
      %v2499 = vadd.f32 %v2498, 1e-06
      %v2500 = vrsqrt.pop %v2499
      %v2501 = vmul.f32 %v2493, %v2500
      %v2503 = vlaneseq
      %v2504 = vshrl.u32 %v2503, 7
      %v2505 = vsub.s32 0, %v2504
      %v2506 = vrot.slane %v2487, %v2505
      %v2508 = vmul.f32 %v2501, %v2506
      %v2510 = vlaneseq
      %v2511 = vshrl.u32 %v2510, 7
      %v2512 = vsub.s32 0, %v2511
      %v2513 = vrot.slane %v2488, %v2512
      %v2515 = vadd.f32 %v2508, %v2513
      %v2516 = vpack.c.bf16 %v2515, %v2515
      %v2517 = vld [vmem:[%s17] sm:$0xf]
      %v2518 = vld [vmem:[%s17 + $0x4] sm:$0xf]
      %v2519 = vld [vmem:[%s17 + $0x8] sm:$0xf]
      %v2520 = vld [vmem:[%s17 + $0xc] sm:$0xf]
      %v2521 = vld [vmem:[%s17 + $0x10] sm:$0xf]
      %v2522 = vld [vmem:[%s17 + $0x14] sm:$0xf]
      %v2523 = vld [vmem:[%s17 + $0x18] sm:$0xf]
      %v2524 = vld [vmem:[%s17 + $0x1c] sm:$0xf]
      %v2525 = vld [vmem:[%s18] sm:$0x1]
      %v2527 = vlaneseq
      %v2528 = vshrl.u32 %v2527, 7
      %v2529 = vsub.s32 0, %v2528
      %v2530 = vrot.slane %v2525, %v2529
      %v2540 = vunpack.c.l.b16 %v2517
      %v2541 = vunpack.c.l.b16 %v2518
      %v2542 = vunpack.c.l.b16 %v2519
      %v2543 = vunpack.c.l.b16 %v2520
      %v2544 = vunpack.c.l.b16 %v2521
      %v2545 = vunpack.c.l.b16 %v2522
      %v2546 = vunpack.c.l.b16 %v2523
      %v2547 = vunpack.c.l.b16 %v2524
      %v2548 = vpack.c.b16 %v2541, %v2540
      %v2549 = vpack.c.b16 %v2543, %v2542
      %v2550 = vpack.c.b16 %v2545, %v2544
      %v2551 = vpack.c.b16 %v2547, %v2546
      %v2557 = vsel %vm822, %v2516, 0
      %2559 = vmatprep.subr.bf16.mxu0 0
      %2560 = vmatpush1.bf16.msra.mxu0 0
      %2561 = vmatprep.subr.bf16.mxu0 0
      %2562 = vmatpush1.bf16.msra.mxu0 0
      %2563 = vmatprep.subr.bf16.mxu0 0
      %2564 = vmatpush1.bf16.msra.mxu0 0
      %2565 = vmatprep.subr.bf16.mxu0 0
      %2566 = vmatpush1.bf16.msra.mxu0 0
      %2567 = vmatprep.subr.bf16.mxu0 0
      %2568 = vmatpush1.bf16.msra.mxu0 %v2551
      %2569 = vmatprep.subr.bf16.mxu0 0
      %2570 = vmatpush1.bf16.msra.mxu0 %v2550
      %2571 = vmatprep.subr.bf16.mxu0 0
      %2572 = vmatpush1.bf16.msra.mxu0 %v2549
      %2573 = vmatprep.subr.bf16.mxu0 0
      %2574 = vmatpush1.bf16.msra.mxu0 %v2548
      %2575 = vmatprep.subr.bf16.mxu0 0
      %2576 = vmatpush2.bf16.msra.mxu0 0
      %2577 = vmatprep.subr.bf16.mxu0 0
      %2578 = vmatpush2.bf16.msra.mxu0 0
      %2579 = vmatprep.subr.bf16.mxu0 0
      %2580 = vmatpush2.bf16.msra.mxu0 0
      %2581 = vmatprep.subr.bf16.mxu0 0
      %2582 = vmatpush2.bf16.msra.mxu0 0
      %2583 = vmatprep.subr.bf16.mxu0 0
      %2584 = vmatpush2.bf16.msra.mxu0 0
      %2585 = vmatprep.subr.bf16.mxu0 0
      %2586 = vmatpush2.bf16.msra.mxu0 0
      %2587 = vmatprep.subr.bf16.mxu0 0
      %2588 = vmatpush2.bf16.msra.mxu0 0
      %2589 = vmatprep.subr.bf16.mxu0 0
      %2590 = vmatpush2.bf16.msra.mxu0 0
      %2591 = vmatprep.mubr.bf16.mxu0 0
      %2592 = vmatmul.mubr.bf16.gmra.mxu0 %v2557
      %v2593 = vpop.f32.mrf.mxu0
      %v2594 = vadd.f32 %v2530, %v2593
      %v2595 = vpop.f32.mrf.mxu0
      %v2596 = vpop.f32.mrf.mxu0
      %v2597 = vpop.f32.mrf.mxu0
      %2598 = vdwg.mxu0
      %v2599 = vmul.f32 %v2594, 0.5
      %v2600 = vmul.f32 %v2594, 0.044715
      %v2601 = vmul.f32 %v2600, %v2594
      %v2602 = vmul.f32 %v2601, %v2594
      %v2603 = vadd.f32 %v2594, %v2602
      %v2604 = vmul.f32 %v2603, 0.7978846
      %v2605 = vtanh.pop %v2604
      %v2606 = vadd.f32 %v2605, 1.0
      %v2607 = vmul.f32 %v2599, %v2606
      %v2608 = vpack.c.bf16 %v2607, %v2607
      %v2609 = vld [vmem:[%s19] sm:$0xf]
      %v2610 = vld [vmem:[%s19 + $0x4] sm:$0xf]
      %v2611 = vld [vmem:[%s19 + $0x8] sm:$0xf]
      %v2612 = vld [vmem:[%s19 + $0xc] sm:$0xf]
      %v2613 = vld [vmem:[%s20] sm:$0x1]
      %v2615 = vlaneseq
      %v2616 = vshrl.u32 %v2615, 7
      %v2617 = vsub.s32 0, %v2616
      %v2618 = vrot.slane %v2613, %v2617
      %v2624 = vunpack.c.l.b16 %v2609
      %v2625 = vunpack.c.l.b16 %v2610
      %v2626 = vunpack.c.l.b16 %v2611
      %v2627 = vunpack.c.l.b16 %v2612
      %v2628 = vpack.c.b16 %v2625, %v2624
      %v2629 = vpack.c.b16 %v2627, %v2626
      %vm2632 = vcmask 261120
      %v2634 = vsel %vm2632, %v2608, 0
      %2636 = vmatprep.subr.bf16.mxu0 0
      %2637 = vmatpush1.bf16.msra.mxu0 0
      %2638 = vmatprep.subr.bf16.mxu0 0
      %2639 = vmatpush1.bf16.msra.mxu0 0
      %2640 = vmatprep.subr.bf16.mxu0 0
      %2641 = vmatpush1.bf16.msra.mxu0 0
      %2642 = vmatprep.subr.bf16.mxu0 0
      %2643 = vmatpush1.bf16.msra.mxu0 0
      %2644 = vmatprep.subr.bf16.mxu0 0
      %2645 = vmatpush1.bf16.msra.mxu0 0
      %2646 = vmatprep.subr.bf16.mxu0 0
      %2647 = vmatpush1.bf16.msra.mxu0 0
      %2648 = vmatprep.subr.bf16.mxu0 0
      %2649 = vmatpush1.bf16.msra.mxu0 %v2629
      %2650 = vmatprep.subr.bf16.mxu0 0
      %2651 = vmatpush1.bf16.msra.mxu0 %v2628
      %2652 = vmatprep.subr.bf16.mxu0 0
      %2653 = vmatpush2.bf16.msra.mxu0 0
      %2654 = vmatprep.subr.bf16.mxu0 0
      %2655 = vmatpush2.bf16.msra.mxu0 0
      %2656 = vmatprep.subr.bf16.mxu0 0
      %2657 = vmatpush2.bf16.msra.mxu0 0
      %2658 = vmatprep.subr.bf16.mxu0 0
      %2659 = vmatpush2.bf16.msra.mxu0 0
      %2660 = vmatprep.subr.bf16.mxu0 0
      %2661 = vmatpush2.bf16.msra.mxu0 0
      %2662 = vmatprep.subr.bf16.mxu0 0
      %2663 = vmatpush2.bf16.msra.mxu0 0
      %2664 = vmatprep.subr.bf16.mxu0 0
      %2665 = vmatpush2.bf16.msra.mxu0 0
      %2666 = vmatprep.subr.bf16.mxu0 0
      %2667 = vmatpush2.bf16.msra.mxu0 0
      %2668 = vmatprep.mubr.bf16.mxu0 0
      %2669 = vmatmul.mubr.bf16.gmra.mxu0 %v2634
      %v2670 = vpop.f32.mrf.mxu0
      %v2671 = vadd.f32 %v2618, %v2670
      %v2672 = vpop.f32.mrf.mxu0
      %v2673 = vpop.f32.mrf.mxu0
      %v2674 = vpop.f32.mrf.mxu0
      %2675 = vdwg.mxu0
      %v2676 = vadd.f32 %v2486, %v2671
      %s2677 = scalar_lea.vmem %s5, 1
      %v2678 = vld [vmem:[%s2677] sm:$0x1]
      %s2679 = scalar_lea.vmem %s6, 1
      %v2680 = vld [vmem:[%s2679] sm:$0x1]
      %v2681 = vsel %vm822, %v2676, 0.0
      %2682 = vadd.xlane.f32.xlu0 %v2681
      %v2683 = vpop.xlane.xlu0 %2682
      %v2684 = vmul.f32 %v2683, %v1749
      %v2685 = vsub.f32 %v2676, %v2684
      %v2686 = vmul.f32 %v2685, %v2685
      %v2687 = vsel %vm822, %v2686, 0.0
      %2688 = vadd.xlane.f32.xlu0 %v2687
      %v2689 = vpop.xlane.xlu0 %2688
      %v2690 = vmul.f32 %v2689, %v1749
      %v2691 = vadd.f32 %v2690, 1e-06
      %v2692 = vrsqrt.pop %v2691
      %v2693 = vmul.f32 %v2685, %v2692
      %v2695 = vlaneseq
      %v2696 = vshrl.u32 %v2695, 7
      %v2697 = vsub.s32 0, %v2696
      %v2698 = vrot.slane %v2678, %v2697
      %v2700 = vmul.f32 %v2693, %v2698
      %v2702 = vlaneseq
      %v2703 = vshrl.u32 %v2702, 7
      %v2704 = vsub.s32 0, %v2703
      %v2705 = vrot.slane %v2680, %v2704
      %v2707 = vadd.f32 %v2700, %v2705
      %v2708 = vpack.c.bf16 %v2707, %v2707
      %s2709 = scalar_lea.vmem %s7, 64
      %v2710 = vld [vmem:[%s2709] sm:$0xff]
      %v2711 = vld [vmem:[%s2709 + $0x8] sm:$0xff]
      %v2712 = vld [vmem:[%s2709 + $0x10] sm:$0xff]
      %v2713 = vld [vmem:[%s2709 + $0x18] sm:$0xff]
      %v2714 = vld [vmem:[%s2709 + $0x20] sm:$0xff]
      %v2715 = vld [vmem:[%s2709 + $0x28] sm:$0xff]
      %v2716 = vld [vmem:[%s2709 + $0x30] sm:$0xff]
      %v2717 = vld [vmem:[%s2709 + $0x38] sm:$0xff]
      %s2718 = scalar_lea.vmem %s8, 2
      %v2719 = vld [vmem:[%s2718] sm:$0x3]
      %v2728 = vunpack.c.l.b16 %v2710
      %v2729 = vunpack.c.h.b16 %v2710
      %v2730 = vunpack.c.l.b16 %v2711
      %v2731 = vunpack.c.h.b16 %v2711
      %v2732 = vunpack.c.l.b16 %v2712
      %v2733 = vunpack.c.h.b16 %v2712
      %v2734 = vunpack.c.l.b16 %v2713
      %v2735 = vunpack.c.h.b16 %v2713
      %v2736 = vunpack.c.l.b16 %v2714
      %v2737 = vunpack.c.h.b16 %v2714
      %v2738 = vunpack.c.l.b16 %v2715
      %v2739 = vunpack.c.h.b16 %v2715
      %v2740 = vunpack.c.l.b16 %v2716
      %v2741 = vunpack.c.h.b16 %v2716
      %v2742 = vunpack.c.l.b16 %v2717
      %v2743 = vunpack.c.h.b16 %v2717
      %v2744 = vpack.c.b16 %v2730, %v2728
      %v2745 = vpack.c.b16 %v2731, %v2729
      %v2746 = vpack.c.b16 %v2734, %v2732
      %v2747 = vpack.c.b16 %v2735, %v2733
      %v2748 = vpack.c.b16 %v2738, %v2736
      %v2749 = vpack.c.b16 %v2739, %v2737
      %v2750 = vpack.c.b16 %v2742, %v2740
      %v2751 = vpack.c.b16 %v2743, %v2741
      %v2761 = vlaneseq
      %v2762 = vshrl.u32 %v2761, 7
      %v2763 = vsub.s32 0, %v2762
      %v2764 = vrot.slane %v2719, %v2763
      %v2765 = vlaneseq
      %v2766 = vshrl.u32 %v2765, 7
      %v2767 = vsub.s32 1, %v2766
      %v2768 = vrot.slane %v2719, %v2767
      %v2772 = vsel %vm822, %v2708, 0
      %2774 = vmatprep.subr.bf16.mxu0 0
      %2775 = vmatpush1.bf16.msra.mxu0 0
      %2776 = vmatprep.subr.bf16.mxu0 0
      %2777 = vmatpush1.bf16.msra.mxu0 0
      %2778 = vmatprep.subr.bf16.mxu0 0
      %2779 = vmatpush1.bf16.msra.mxu0 0
      %2780 = vmatprep.subr.bf16.mxu0 0
      %2781 = vmatpush1.bf16.msra.mxu0 0
      %2782 = vmatprep.subr.bf16.mxu0 %v2751
      %2783 = vmatpush1.bf16.msra.mxu0 %v2750
      %2784 = vmatprep.subr.bf16.mxu0 %v2749
      %2785 = vmatpush1.bf16.msra.mxu0 %v2748
      %2786 = vmatprep.subr.bf16.mxu0 %v2747
      %2787 = vmatpush1.bf16.msra.mxu0 %v2746
      %2788 = vmatprep.subr.bf16.mxu0 %v2745
      %2789 = vmatpush1.bf16.msra.mxu0 %v2744
      %2790 = vmatprep.subr.bf16.mxu0 0
      %2791 = vmatpush2.bf16.msra.mxu0 0
      %2792 = vmatprep.subr.bf16.mxu0 0
      %2793 = vmatpush2.bf16.msra.mxu0 0
      %2794 = vmatprep.subr.bf16.mxu0 0
      %2795 = vmatpush2.bf16.msra.mxu0 0
      %2796 = vmatprep.subr.bf16.mxu0 0
      %2797 = vmatpush2.bf16.msra.mxu0 0
      %2798 = vmatprep.subr.bf16.mxu0 0
      %2799 = vmatpush2.bf16.msra.mxu0 0
      %2800 = vmatprep.subr.bf16.mxu0 0
      %2801 = vmatpush2.bf16.msra.mxu0 0
      %2802 = vmatprep.subr.bf16.mxu0 0
      %2803 = vmatpush2.bf16.msra.mxu0 0
      %2804 = vmatprep.subr.bf16.mxu0 0
      %2805 = vmatpush2.bf16.msra.mxu0 0
      %2806 = vmatprep.mubr.bf16.mxu0 0
      %2807 = vmatmul.mubr.bf16.gmra.mxu0 %v2772
      %v2808 = vpop.f32.mrf.mxu0
      %v2809 = vadd.f32 %v2764, %v2808
      %v2810 = vpop.f32.mrf.mxu0
      %v2811 = vadd.f32 %v2768, %v2810
      %v2812 = vpop.f32.mrf.mxu0
      %v2813 = vpop.f32.mrf.mxu0
      %2814 = vdwg.mxu0
      %s2815 = scalar_lea.vmem %s9, 64
      %v2816 = vld [vmem:[%s2815] sm:$0xff]
      %v2817 = vld [vmem:[%s2815 + $0x8] sm:$0xff]
      %v2818 = vld [vmem:[%s2815 + $0x10] sm:$0xff]
      %v2819 = vld [vmem:[%s2815 + $0x18] sm:$0xff]
      %v2820 = vld [vmem:[%s2815 + $0x20] sm:$0xff]
      %v2821 = vld [vmem:[%s2815 + $0x28] sm:$0xff]
      %v2822 = vld [vmem:[%s2815 + $0x30] sm:$0xff]
      %v2823 = vld [vmem:[%s2815 + $0x38] sm:$0xff]
      %s2824 = scalar_lea.vmem %s10, 2
      %v2825 = vld [vmem:[%s2824] sm:$0x3]
      %v2827 = vlaneseq
      %v2828 = vshrl.u32 %v2827, 7
      %v2829 = vsub.s32 0, %v2828
      %v2830 = vrot.slane %v2825, %v2829
      %v2831 = vlaneseq
      %v2832 = vshrl.u32 %v2831, 7
      %v2833 = vsub.s32 1, %v2832
      %v2834 = vrot.slane %v2825, %v2833
      %v2845 = vunpack.c.l.b16 %v2816
      %v2846 = vunpack.c.h.b16 %v2816
      %v2847 = vunpack.c.l.b16 %v2817
      %v2848 = vunpack.c.h.b16 %v2817
      %v2849 = vunpack.c.l.b16 %v2818
      %v2850 = vunpack.c.h.b16 %v2818
      %v2851 = vunpack.c.l.b16 %v2819
      %v2852 = vunpack.c.h.b16 %v2819
      %v2853 = vunpack.c.l.b16 %v2820
      %v2854 = vunpack.c.h.b16 %v2820
      %v2855 = vunpack.c.l.b16 %v2821
      %v2856 = vunpack.c.h.b16 %v2821
      %v2857 = vunpack.c.l.b16 %v2822
      %v2858 = vunpack.c.h.b16 %v2822
      %v2859 = vunpack.c.l.b16 %v2823
      %v2860 = vunpack.c.h.b16 %v2823
      %v2861 = vpack.c.b16 %v2847, %v2845
      %v2862 = vpack.c.b16 %v2848, %v2846
      %v2863 = vpack.c.b16 %v2851, %v2849
      %v2864 = vpack.c.b16 %v2852, %v2850
      %v2865 = vpack.c.b16 %v2855, %v2853
      %v2866 = vpack.c.b16 %v2856, %v2854
      %v2867 = vpack.c.b16 %v2859, %v2857
      %v2868 = vpack.c.b16 %v2860, %v2858
      %2877 = vmatprep.subr.bf16.mxu0 0
      %2878 = vmatpush1.bf16.msra.mxu0 0
      %2879 = vmatprep.subr.bf16.mxu0 0
      %2880 = vmatpush1.bf16.msra.mxu0 0
      %2881 = vmatprep.subr.bf16.mxu0 0
      %2882 = vmatpush1.bf16.msra.mxu0 0
      %2883 = vmatprep.subr.bf16.mxu0 0
      %2884 = vmatpush1.bf16.msra.mxu0 0
      %2885 = vmatprep.subr.bf16.mxu0 %v2868
      %2886 = vmatpush1.bf16.msra.mxu0 %v2867
      %2887 = vmatprep.subr.bf16.mxu0 %v2866
      %2888 = vmatpush1.bf16.msra.mxu0 %v2865
      %2889 = vmatprep.subr.bf16.mxu0 %v2864
      %2890 = vmatpush1.bf16.msra.mxu0 %v2863
      %2891 = vmatprep.subr.bf16.mxu0 %v2862
      %2892 = vmatpush1.bf16.msra.mxu0 %v2861
      %2893 = vmatprep.subr.bf16.mxu0 0
      %2894 = vmatpush2.bf16.msra.mxu0 0
      %2895 = vmatprep.subr.bf16.mxu0 0
      %2896 = vmatpush2.bf16.msra.mxu0 0
      %2897 = vmatprep.subr.bf16.mxu0 0
      %2898 = vmatpush2.bf16.msra.mxu0 0
      %2899 = vmatprep.subr.bf16.mxu0 0
      %2900 = vmatpush2.bf16.msra.mxu0 0
      %2901 = vmatprep.subr.bf16.mxu0 0
      %2902 = vmatpush2.bf16.msra.mxu0 0
      %2903 = vmatprep.subr.bf16.mxu0 0
      %2904 = vmatpush2.bf16.msra.mxu0 0
      %2905 = vmatprep.subr.bf16.mxu0 0
      %2906 = vmatpush2.bf16.msra.mxu0 0
      %2907 = vmatprep.subr.bf16.mxu0 0
      %2908 = vmatpush2.bf16.msra.mxu0 0
      %2909 = vmatprep.mubr.bf16.mxu0 0
      %2910 = vmatmul.mubr.bf16.gmra.mxu0 %v2772
      %v2911 = vpop.f32.mrf.mxu0
      %v2912 = vadd.f32 %v2830, %v2911
      %v2913 = vpop.f32.mrf.mxu0
      %v2914 = vadd.f32 %v2834, %v2913
      %v2915 = vpop.f32.mrf.mxu0
      %v2916 = vpop.f32.mrf.mxu0
      %2917 = vdwg.mxu0
      %s2918 = scalar_lea.vmem %s11, 64
      %v2919 = vld [vmem:[%s2918] sm:$0xff]
      %v2920 = vld [vmem:[%s2918 + $0x8] sm:$0xff]
      %v2921 = vld [vmem:[%s2918 + $0x10] sm:$0xff]
      %v2922 = vld [vmem:[%s2918 + $0x18] sm:$0xff]
      %v2923 = vld [vmem:[%s2918 + $0x20] sm:$0xff]
      %v2924 = vld [vmem:[%s2918 + $0x28] sm:$0xff]
      %v2925 = vld [vmem:[%s2918 + $0x30] sm:$0xff]
      %v2926 = vld [vmem:[%s2918 + $0x38] sm:$0xff]
      %s2927 = scalar_lea.vmem %s12, 2
      %v2928 = vld [vmem:[%s2927] sm:$0x3]
      %v2930 = vlaneseq
      %v2931 = vshrl.u32 %v2930, 7
      %v2932 = vsub.s32 0, %v2931
      %v2933 = vrot.slane %v2928, %v2932
      %v2934 = vlaneseq
      %v2935 = vshrl.u32 %v2934, 7
      %v2936 = vsub.s32 1, %v2935
      %v2937 = vrot.slane %v2928, %v2936
      %v2948 = vunpack.c.l.b16 %v2919
      %v2949 = vunpack.c.h.b16 %v2919
      %v2950 = vunpack.c.l.b16 %v2920
      %v2951 = vunpack.c.h.b16 %v2920
      %v2952 = vunpack.c.l.b16 %v2921
      %v2953 = vunpack.c.h.b16 %v2921
      %v2954 = vunpack.c.l.b16 %v2922
      %v2955 = vunpack.c.h.b16 %v2922
      %v2956 = vunpack.c.l.b16 %v2923
      %v2957 = vunpack.c.h.b16 %v2923
      %v2958 = vunpack.c.l.b16 %v2924
      %v2959 = vunpack.c.h.b16 %v2924
      %v2960 = vunpack.c.l.b16 %v2925
      %v2961 = vunpack.c.h.b16 %v2925
      %v2962 = vunpack.c.l.b16 %v2926
      %v2963 = vunpack.c.h.b16 %v2926
      %v2964 = vpack.c.b16 %v2950, %v2948
      %v2965 = vpack.c.b16 %v2951, %v2949
      %v2966 = vpack.c.b16 %v2954, %v2952
      %v2967 = vpack.c.b16 %v2955, %v2953
      %v2968 = vpack.c.b16 %v2958, %v2956
      %v2969 = vpack.c.b16 %v2959, %v2957
      %v2970 = vpack.c.b16 %v2962, %v2960
      %v2971 = vpack.c.b16 %v2963, %v2961
      %2980 = vmatprep.subr.bf16.mxu0 0
      %2981 = vmatpush1.bf16.msra.mxu0 0
      %2982 = vmatprep.subr.bf16.mxu0 0
      %2983 = vmatpush1.bf16.msra.mxu0 0
      %2984 = vmatprep.subr.bf16.mxu0 0
      %2985 = vmatpush1.bf16.msra.mxu0 0
      %2986 = vmatprep.subr.bf16.mxu0 0
      %2987 = vmatpush1.bf16.msra.mxu0 0
      %2988 = vmatprep.subr.bf16.mxu0 %v2971
      %2989 = vmatpush1.bf16.msra.mxu0 %v2970
      %2990 = vmatprep.subr.bf16.mxu0 %v2969
      %2991 = vmatpush1.bf16.msra.mxu0 %v2968
      %2992 = vmatprep.subr.bf16.mxu0 %v2967
      %2993 = vmatpush1.bf16.msra.mxu0 %v2966
      %2994 = vmatprep.subr.bf16.mxu0 %v2965
      %2995 = vmatpush1.bf16.msra.mxu0 %v2964
      %2996 = vmatprep.subr.bf16.mxu0 0
      %2997 = vmatpush2.bf16.msra.mxu0 0
      %2998 = vmatprep.subr.bf16.mxu0 0
      %2999 = vmatpush2.bf16.msra.mxu0 0
      %3000 = vmatprep.subr.bf16.mxu0 0
      %3001 = vmatpush2.bf16.msra.mxu0 0
      %3002 = vmatprep.subr.bf16.mxu0 0
      %3003 = vmatpush2.bf16.msra.mxu0 0
      %3004 = vmatprep.subr.bf16.mxu0 0
      %3005 = vmatpush2.bf16.msra.mxu0 0
      %3006 = vmatprep.subr.bf16.mxu0 0
      %3007 = vmatpush2.bf16.msra.mxu0 0
      %3008 = vmatprep.subr.bf16.mxu0 0
      %3009 = vmatpush2.bf16.msra.mxu0 0
      %3010 = vmatprep.subr.bf16.mxu0 0
      %3011 = vmatpush2.bf16.msra.mxu0 0
      %3012 = vmatprep.mubr.bf16.mxu0 0
      %3013 = vmatmul.mubr.bf16.gmra.mxu0 %v2772
      %v3014 = vpop.f32.mrf.mxu0
      %v3015 = vadd.f32 %v2933, %v3014
      %v3016 = vpop.f32.mrf.mxu0
      %v3017 = vadd.f32 %v2937, %v3016
      %v3018 = vpop.f32.mrf.mxu0
      %v3019 = vpop.f32.mrf.mxu0
      %3020 = vdwg.mxu0
      %v3021 = vlaneseq
      %v3022 = vshrl.u32 %v3021, 7
      %v3023 = vsub.s32 0, %v3022
      %v3024 = vrot.slane %v2809, %v3023
      %v3025 = vlaneseq
      %v3026 = vshrl.u32 %v3025, 7
      %v3027 = vsub.s32 0, %v3026
      %v3028 = vrot.slane %v2811, %v3027
      %v3029 = vmul.f32 %v2912, %v3024
      %v3030 = vmul.f32 %v2914, %v3028
      %3031 = vmatprep.subr.mxu0 0.0
      %3032 = vmatpush1.msra.mxu0 %v2106
      %3033 = vmatprep.subr.mxu0 0.0
      %3034 = vmatpush1.msra.mxu0 %v2105
      %3035 = vmatprep.subr.mxu0 0.0
      %3036 = vmatpush1.msra.mxu0 %v2104
      %3037 = vmatprep.subr.mxu0 0.0
      %3038 = vmatpush1.msra.mxu0 %v2103
      %3039 = vmatprep.subr.mxu0 0.0
      %3040 = vmatpush1.msra.mxu0 %v2102
      %3041 = vmatprep.subr.mxu0 0.0
      %3042 = vmatpush1.msra.mxu0 %v2101
      %3043 = vmatprep.subr.mxu0 0.0
      %3044 = vmatpush1.msra.mxu0 %v2100
      %3045 = vmatprep.subr.mxu0 0.0
      %3046 = vmatpush1.msra.mxu0 %v2099
      %3047 = vmatprep.subr.mxu0 0.0
      %3048 = vmatpush1.msra.mxu0 %v2098
      %3049 = vmatprep.subr.mxu0 0.0
      %3050 = vmatpush1.msra.mxu0 %v2097
      %3051 = vmatprep.subr.mxu0 0.0
      %3052 = vmatpush1.msra.mxu0 %v2096
      %3053 = vmatprep.subr.mxu0 0.0
      %3054 = vmatpush1.msra.mxu0 %v2095
      %3055 = vmatprep.subr.mxu0 0.0
      %3056 = vmatpush1.msra.mxu0 %v2094
      %3057 = vmatprep.subr.mxu0 0.0
      %3058 = vmatpush1.msra.mxu0 %v2093
      %3059 = vmatprep.subr.mxu0 0.0
      %3060 = vmatpush1.msra.mxu0 %v2092
      %3061 = vmatprep.subr.mxu0 0.0
      %3062 = vmatpush1.msra.mxu0 %v2091
      %3063 = vmatprep.subr.mxu0 0.0
      %3064 = vmatpush2.msra.mxu0 %v2122
      %3065 = vmatprep.subr.mxu0 0.0
      %3066 = vmatpush2.msra.mxu0 %v2121
      %3067 = vmatprep.subr.mxu0 0.0
      %3068 = vmatpush2.msra.mxu0 %v2120
      %3069 = vmatprep.subr.mxu0 0.0
      %3070 = vmatpush2.msra.mxu0 %v2119
      %3071 = vmatprep.subr.mxu0 0.0
      %3072 = vmatpush2.msra.mxu0 %v2118
      %3073 = vmatprep.subr.mxu0 0.0
      %3074 = vmatpush2.msra.mxu0 %v2117
      %3075 = vmatprep.subr.mxu0 0.0
      %3076 = vmatpush2.msra.mxu0 %v2116
      %3077 = vmatprep.subr.mxu0 0.0
      %3078 = vmatpush2.msra.mxu0 %v2115
      %3079 = vmatprep.subr.mxu0 0.0
      %3080 = vmatpush2.msra.mxu0 %v2114
      %3081 = vmatprep.subr.mxu0 0.0
      %3082 = vmatpush2.msra.mxu0 %v2113
      %3083 = vmatprep.subr.mxu0 0.0
      %3084 = vmatpush2.msra.mxu0 %v2112
      %3085 = vmatprep.subr.mxu0 0.0
      %3086 = vmatpush2.msra.mxu0 %v2111
      %3087 = vmatprep.subr.mxu0 0.0
      %3088 = vmatpush2.msra.mxu0 %v2110
      %3089 = vmatprep.subr.mxu0 0.0
      %3090 = vmatpush2.msra.mxu0 %v2109
      %3091 = vmatprep.subr.mxu0 0.0
      %3092 = vmatpush2.msra.mxu0 %v2108
      %3093 = vmatprep.subr.mxu0 0.0
      %3094 = vmatpush2.msra.mxu0 %v2107
      %3095 = vmatprep.mubr.f32.mxu0 %v3030
      %3096 = vmatmul.mubr.f32.gmra.mxu0 %v3029
      %v3097 = vpop.f32.mrf.mxu0
      %v3098 = vadd.f32 0.0, %v3097
      %v3099 = vpop.f32.mrf.mxu0
      %3100 = vdwg.mxu0
      %v3101 = vmul.f32 %v3098, 0.125
      %v3102 = vadd.f32 %v3101, %v1735
      %v3103 = vsel %vm2195, %v3102, -inf
      %v3104 = vrot.slane %v3103, 4
      %v3105 = vmax.f32 %v3103, %v3104
      %v3106 = vrot.slane %v3105, 2
      %v3107 = vmax.f32 %v3105, %v3106
      %v3108 = vrot.slane %v3107, 1
      %v3109 = vmax.f32 %v3107, %v3108
      %v3110 = vsub.f32 %v3102, %v3109
      %v3111 = vmul.f32 %v3110, 1.442695
      %v3112 = vpow.pop %v3111
      %v3113 = vsel %vm2195, %v3112, 0.0
      %v3114 = vrot.slane %v3113, 4
      %v3115 = vadd.f32 %v3113, %v3114
      %v3116 = vrot.slane %v3115, 2
      %v3117 = vadd.f32 %v3115, %v3116
      %v3118 = vrot.slane %v3117, 1
      %v3119 = vadd.f32 %v3117, %v3118
      %v3120 = vrcp.pop %v3119
      %v3121 = vmul.f32 %v3112, %v3120
      %v3123 = vsel %vm2195, %v3121, 0
      %3125 = vmatprep.subr.mxu0 0.0
      %3126 = vmatpush1.msra.mxu0 0.0
      %3127 = vmatprep.subr.mxu0 0.0
      %3128 = vmatpush1.msra.mxu0 0.0
      %3129 = vmatprep.subr.mxu0 0.0
      %3130 = vmatpush1.msra.mxu0 0.0
      %3131 = vmatprep.subr.mxu0 0.0
      %3132 = vmatpush1.msra.mxu0 0.0
      %3133 = vmatprep.subr.mxu0 0.0
      %3134 = vmatpush1.msra.mxu0 0.0
      %3135 = vmatprep.subr.mxu0 0.0
      %3136 = vmatpush1.msra.mxu0 0.0
      %3137 = vmatprep.subr.mxu0 0.0
      %3138 = vmatpush1.msra.mxu0 0.0
      %3139 = vmatprep.subr.mxu0 0.0
      %3140 = vmatpush1.msra.mxu0 0.0
      %3141 = vmatprep.subr.mxu0 0.0
      %3142 = vmatpush1.msra.mxu0 0.0
      %3143 = vmatprep.subr.mxu0 0.0
      %3144 = vmatpush1.msra.mxu0 0.0
      %3145 = vmatprep.subr.mxu0 0.0
      %3146 = vmatpush1.msra.mxu0 0.0
      %3147 = vmatprep.subr.mxu0 0.0
      %3148 = vmatpush1.msra.mxu0 0.0
      %3149 = vmatprep.subr.mxu0 0.0
      %3150 = vmatpush1.msra.mxu0 0.0
      %3151 = vmatprep.subr.mxu0 0.0
      %3152 = vmatpush1.msra.mxu0 0.0
      %3153 = vmatprep.subr.mxu0 0.0
      %3154 = vmatpush1.msra.mxu0 0.0
      %3155 = vmatprep.subr.mxu0 %v2224
      %3156 = vmatpush1.msra.mxu0 %v2222
      %3157 = vmatprep.subr.mxu0 0.0
      %3158 = vmatpush2.msra.mxu0 0.0
      %3159 = vmatprep.subr.mxu0 0.0
      %3160 = vmatpush2.msra.mxu0 0.0
      %3161 = vmatprep.subr.mxu0 0.0
      %3162 = vmatpush2.msra.mxu0 0.0
      %3163 = vmatprep.subr.mxu0 0.0
      %3164 = vmatpush2.msra.mxu0 0.0
      %3165 = vmatprep.subr.mxu0 0.0
      %3166 = vmatpush2.msra.mxu0 0.0
      %3167 = vmatprep.subr.mxu0 0.0
      %3168 = vmatpush2.msra.mxu0 0.0
      %3169 = vmatprep.subr.mxu0 0.0
      %3170 = vmatpush2.msra.mxu0 0.0
      %3171 = vmatprep.subr.mxu0 0.0
      %3172 = vmatpush2.msra.mxu0 0.0
      %3173 = vmatprep.subr.mxu0 0.0
      %3174 = vmatpush2.msra.mxu0 0.0
      %3175 = vmatprep.subr.mxu0 0.0
      %3176 = vmatpush2.msra.mxu0 0.0
      %3177 = vmatprep.subr.mxu0 0.0
      %3178 = vmatpush2.msra.mxu0 0.0
      %3179 = vmatprep.subr.mxu0 0.0
      %3180 = vmatpush2.msra.mxu0 0.0
      %3181 = vmatprep.subr.mxu0 0.0
      %3182 = vmatpush2.msra.mxu0 0.0
      %3183 = vmatprep.subr.mxu0 0.0
      %3184 = vmatpush2.msra.mxu0 0.0
      %3185 = vmatprep.subr.mxu0 0.0
      %3186 = vmatpush2.msra.mxu0 0.0
      %3187 = vmatprep.subr.mxu0 0.0
      %3188 = vmatpush2.msra.mxu0 0.0
      %3189 = vmatprep.mubr.f32.mxu0 0.0
      %3190 = vmatmul.mubr.f32.gmra.mxu0 %v3123
      %v3191 = vpop.f32.mrf.mxu0
      %v3192 = vadd.f32 0.0, %v3191
      %v3193 = vpop.f32.mrf.mxu0
      %v3194 = vadd.f32 0.0, %v3193
      %3195 = vdwg.mxu0
      %v3196 = vmul.f32 %v3192, %v3015
      %v3197 = vmul.f32 %v3194, %v3017
      %v3198 = vrot.slane %v3196, 4
      %v3199 = vadd.f32 %v3196, %v3198
      %v3200 = vrot.slane %v3199, 2
      %v3201 = vadd.f32 %v3199, %v3200
      %v3202 = vrot.slane %v3201, 1
      %v3203 = vadd.f32 %v3201, %v3202
      %v3204 = vrot.slane %v3197, 4
      %v3205 = vadd.f32 %v3197, %v3204
      %v3206 = vrot.slane %v3205, 2
      %v3207 = vadd.f32 %v3205, %v3206
      %v3208 = vrot.slane %v3207, 1
      %v3209 = vadd.f32 %v3207, %v3208
      %v3210 = vpack.c.bf16 %v3203, %v3203
      %v3211 = vpack.c.bf16 %v3209, %v3209
      %s3212 = scalar_lea.vmem %s13, 128
      %v3213 = vld [vmem:[%s3212] sm:$0xf]
      %v3214 = vld [vmem:[%s3212 + $0x4] sm:$0xf]
      %v3215 = vld [vmem:[%s3212 + $0x8] sm:$0xf]
      %v3216 = vld [vmem:[%s3212 + $0xc] sm:$0xf]
      %v3217 = vld [vmem:[%s3212 + $0x10] sm:$0xf]
      %v3218 = vld [vmem:[%s3212 + $0x14] sm:$0xf]
      %v3219 = vld [vmem:[%s3212 + $0x18] sm:$0xf]
      %v3220 = vld [vmem:[%s3212 + $0x1c] sm:$0xf]
      %v3221 = vld [vmem:[%s3212 + $0x20] sm:$0xf]
      %v3222 = vld [vmem:[%s3212 + $0x24] sm:$0xf]
      %v3223 = vld [vmem:[%s3212 + $0x28] sm:$0xf]
      %v3224 = vld [vmem:[%s3212 + $0x2c] sm:$0xf]
      %v3225 = vld [vmem:[%s3212 + $0x30] sm:$0xf]
      %v3226 = vld [vmem:[%s3212 + $0x34] sm:$0xf]
      %v3227 = vld [vmem:[%s3212 + $0x38] sm:$0xf]
      %v3228 = vld [vmem:[%s3212 + $0x3c] sm:$0xf]
      %v3229 = vld [vmem:[%s3212 + $0x40] sm:$0xf]
      %v3230 = vld [vmem:[%s3212 + $0x44] sm:$0xf]
      %v3231 = vld [vmem:[%s3212 + $0x48] sm:$0xf]
      %v3232 = vld [vmem:[%s3212 + $0x4c] sm:$0xf]
      %v3233 = vld [vmem:[%s3212 + $0x50] sm:$0xf]
      %v3234 = vld [vmem:[%s3212 + $0x54] sm:$0xf]
      %v3235 = vld [vmem:[%s3212 + $0x58] sm:$0xf]
      %v3236 = vld [vmem:[%s3212 + $0x5c] sm:$0xf]
      %v3237 = vld [vmem:[%s3212 + $0x60] sm:$0xf]
      %v3238 = vld [vmem:[%s3212 + $0x64] sm:$0xf]
      %v3239 = vld [vmem:[%s3212 + $0x68] sm:$0xf]
      %v3240 = vld [vmem:[%s3212 + $0x6c] sm:$0xf]
      %v3241 = vld [vmem:[%s3212 + $0x70] sm:$0xf]
      %v3242 = vld [vmem:[%s3212 + $0x74] sm:$0xf]
      %v3243 = vld [vmem:[%s3212 + $0x78] sm:$0xf]
      %v3244 = vld [vmem:[%s3212 + $0x7c] sm:$0xf]
      %s3245 = scalar_lea.vmem %s14, 1
      %v3246 = vld [vmem:[%s3245] sm:$0x1]
      %v3279 = vunpack.c.l.b16 %v3213
      %v3280 = vunpack.c.l.b16 %v3214
      %v3281 = vunpack.c.l.b16 %v3215
      %v3282 = vunpack.c.l.b16 %v3216
      %v3283 = vunpack.c.l.b16 %v3217
      %v3284 = vunpack.c.l.b16 %v3218
      %v3285 = vunpack.c.l.b16 %v3219
      %v3286 = vunpack.c.l.b16 %v3220
      %v3287 = vunpack.c.l.b16 %v3221
      %v3288 = vunpack.c.l.b16 %v3222
      %v3289 = vunpack.c.l.b16 %v3223
      %v3290 = vunpack.c.l.b16 %v3224
      %v3291 = vunpack.c.l.b16 %v3225
      %v3292 = vunpack.c.l.b16 %v3226
      %v3293 = vunpack.c.l.b16 %v3227
      %v3294 = vunpack.c.l.b16 %v3228
      %v3295 = vunpack.c.l.b16 %v3229
      %v3296 = vunpack.c.l.b16 %v3230
      %v3297 = vunpack.c.l.b16 %v3231
      %v3298 = vunpack.c.l.b16 %v3232
      %v3299 = vunpack.c.l.b16 %v3233
      %v3300 = vunpack.c.l.b16 %v3234
      %v3301 = vunpack.c.l.b16 %v3235
      %v3302 = vunpack.c.l.b16 %v3236
      %v3303 = vunpack.c.l.b16 %v3237
      %v3304 = vunpack.c.l.b16 %v3238
      %v3305 = vunpack.c.l.b16 %v3239
      %v3306 = vunpack.c.l.b16 %v3240
      %v3307 = vunpack.c.l.b16 %v3241
      %v3308 = vunpack.c.l.b16 %v3242
      %v3309 = vunpack.c.l.b16 %v3243
      %v3310 = vunpack.c.l.b16 %v3244
      %v3311 = vpack.c.b16 %v3280, %v3279
      %v3312 = vpack.c.b16 %v3282, %v3281
      %v3313 = vpack.c.b16 %v3284, %v3283
      %v3314 = vpack.c.b16 %v3286, %v3285
      %v3315 = vpack.c.b16 %v3288, %v3287
      %v3316 = vpack.c.b16 %v3290, %v3289
      %v3317 = vpack.c.b16 %v3292, %v3291
      %v3318 = vpack.c.b16 %v3294, %v3293
      %v3319 = vpack.c.b16 %v3296, %v3295
      %v3320 = vpack.c.b16 %v3298, %v3297
      %v3321 = vpack.c.b16 %v3300, %v3299
      %v3322 = vpack.c.b16 %v3302, %v3301
      %v3323 = vpack.c.b16 %v3304, %v3303
      %v3324 = vpack.c.b16 %v3306, %v3305
      %v3325 = vpack.c.b16 %v3308, %v3307
      %v3326 = vpack.c.b16 %v3310, %v3309
      %3343 = vmatprep.subr.bf16.mxu0 0
      %3344 = vmatpush1.bf16.msra.mxu0 %v3318
      %3345 = vmatprep.subr.bf16.mxu0 0
      %3346 = vmatpush1.bf16.msra.mxu0 %v3317
      %3347 = vmatprep.subr.bf16.mxu0 0
      %3348 = vmatpush1.bf16.msra.mxu0 %v3316
      %3349 = vmatprep.subr.bf16.mxu0 0
      %3350 = vmatpush1.bf16.msra.mxu0 %v3315
      %3351 = vmatprep.subr.bf16.mxu0 0
      %3352 = vmatpush1.bf16.msra.mxu0 %v3314
      %3353 = vmatprep.subr.bf16.mxu0 0
      %3354 = vmatpush1.bf16.msra.mxu0 %v3313
      %3355 = vmatprep.subr.bf16.mxu0 0
      %3356 = vmatpush1.bf16.msra.mxu0 %v3312
      %3357 = vmatprep.subr.bf16.mxu0 0
      %3358 = vmatpush1.bf16.msra.mxu0 %v3311
      %3359 = vmatprep.subr.bf16.mxu0 0
      %3360 = vmatpush2.bf16.msra.mxu0 %v3326
      %3361 = vmatprep.subr.bf16.mxu0 0
      %3362 = vmatpush2.bf16.msra.mxu0 %v3325
      %3363 = vmatprep.subr.bf16.mxu0 0
      %3364 = vmatpush2.bf16.msra.mxu0 %v3324
      %3365 = vmatprep.subr.bf16.mxu0 0
      %3366 = vmatpush2.bf16.msra.mxu0 %v3323
      %3367 = vmatprep.subr.bf16.mxu0 0
      %3368 = vmatpush2.bf16.msra.mxu0 %v3322
      %3369 = vmatprep.subr.bf16.mxu0 0
      %3370 = vmatpush2.bf16.msra.mxu0 %v3321
      %3371 = vmatprep.subr.bf16.mxu0 0
      %3372 = vmatpush2.bf16.msra.mxu0 %v3320
      %3373 = vmatprep.subr.bf16.mxu0 0
      %3374 = vmatpush2.bf16.msra.mxu0 %v3319
      %3375 = vmatprep.mubr.bf16.mxu0 %v3211
      %3376 = vmatmul.mubr.bf16.gmra.mxu0 %v3210
      %v3377 = vpop.f32.mrf.mxu0
      %v3378 = vadd.f32 %v3246, %v3377
      %v3379 = vpop.f32.mrf.mxu0
      %v3380 = vpop.f32.mrf.mxu0
      %v3381 = vpop.f32.mrf.mxu0
      %3382 = vdwg.mxu0
      %v3383 = vlaneseq
      %v3384 = vshrl.u32 %v3383, 7
      %v3385 = vsub.s32 0, %v3384
      %v3386 = vrot.slane %v3378, %v3385
      %v3387 = vadd.f32 %v2676, %v3386
      %s3388 = scalar_lea.vmem %s15, 1
      %v3389 = vld [vmem:[%s3388] sm:$0x1]
      %s3390 = scalar_lea.vmem %s16, 1
      %v3391 = vld [vmem:[%s3390] sm:$0x1]
      %v3392 = vsel %vm822, %v3387, 0.0
      %3393 = vadd.xlane.f32.xlu0 %v3392
      %v3394 = vpop.xlane.xlu0 %3393
      %v3395 = vmul.f32 %v3394, %v1749
      %v3396 = vsub.f32 %v3387, %v3395
      %v3397 = vmul.f32 %v3396, %v3396
      %v3398 = vsel %vm822, %v3397, 0.0
      %3399 = vadd.xlane.f32.xlu0 %v3398
      %v3400 = vpop.xlane.xlu0 %3399
      %v3401 = vmul.f32 %v3400, %v1749
      %v3402 = vadd.f32 %v3401, 1e-06
      %v3403 = vrsqrt.pop %v3402
      %v3404 = vmul.f32 %v3396, %v3403
      %v3406 = vlaneseq
      %v3407 = vshrl.u32 %v3406, 7
      %v3408 = vsub.s32 0, %v3407
      %v3409 = vrot.slane %v3389, %v3408
      %v3411 = vmul.f32 %v3404, %v3409
      %v3413 = vlaneseq
      %v3414 = vshrl.u32 %v3413, 7
      %v3415 = vsub.s32 0, %v3414
      %v3416 = vrot.slane %v3391, %v3415
      %v3418 = vadd.f32 %v3411, %v3416
      %v3419 = vpack.c.bf16 %v3418, %v3418
      %s3420 = scalar_lea.vmem %s17, 32
      %v3421 = vld [vmem:[%s3420] sm:$0xf]
      %v3422 = vld [vmem:[%s3420 + $0x4] sm:$0xf]
      %v3423 = vld [vmem:[%s3420 + $0x8] sm:$0xf]
      %v3424 = vld [vmem:[%s3420 + $0xc] sm:$0xf]
      %v3425 = vld [vmem:[%s3420 + $0x10] sm:$0xf]
      %v3426 = vld [vmem:[%s3420 + $0x14] sm:$0xf]
      %v3427 = vld [vmem:[%s3420 + $0x18] sm:$0xf]
      %v3428 = vld [vmem:[%s3420 + $0x1c] sm:$0xf]
      %s3429 = scalar_lea.vmem %s18, 1
      %v3430 = vld [vmem:[%s3429] sm:$0x1]
      %v3432 = vlaneseq
      %v3433 = vshrl.u32 %v3432, 7
      %v3434 = vsub.s32 0, %v3433
      %v3435 = vrot.slane %v3430, %v3434
      %v3445 = vunpack.c.l.b16 %v3421
      %v3446 = vunpack.c.l.b16 %v3422
      %v3447 = vunpack.c.l.b16 %v3423
      %v3448 = vunpack.c.l.b16 %v3424
      %v3449 = vunpack.c.l.b16 %v3425
      %v3450 = vunpack.c.l.b16 %v3426
      %v3451 = vunpack.c.l.b16 %v3427
      %v3452 = vunpack.c.l.b16 %v3428
      %v3453 = vpack.c.b16 %v3446, %v3445
      %v3454 = vpack.c.b16 %v3448, %v3447
      %v3455 = vpack.c.b16 %v3450, %v3449
      %v3456 = vpack.c.b16 %v3452, %v3451
      %v3462 = vsel %vm822, %v3419, 0
      %3464 = vmatprep.subr.bf16.mxu0 0
      %3465 = vmatpush1.bf16.msra.mxu0 0
      %3466 = vmatprep.subr.bf16.mxu0 0
      %3467 = vmatpush1.bf16.msra.mxu0 0
      %3468 = vmatprep.subr.bf16.mxu0 0
      %3469 = vmatpush1.bf16.msra.mxu0 0
      %3470 = vmatprep.subr.bf16.mxu0 0
      %3471 = vmatpush1.bf16.msra.mxu0 0
      %3472 = vmatprep.subr.bf16.mxu0 0
      %3473 = vmatpush1.bf16.msra.mxu0 %v3456
      %3474 = vmatprep.subr.bf16.mxu0 0
      %3475 = vmatpush1.bf16.msra.mxu0 %v3455
      %3476 = vmatprep.subr.bf16.mxu0 0
      %3477 = vmatpush1.bf16.msra.mxu0 %v3454
      %3478 = vmatprep.subr.bf16.mxu0 0
      %3479 = vmatpush1.bf16.msra.mxu0 %v3453
      %3480 = vmatprep.subr.bf16.mxu0 0
      %3481 = vmatpush2.bf16.msra.mxu0 0
      %3482 = vmatprep.subr.bf16.mxu0 0
      %3483 = vmatpush2.bf16.msra.mxu0 0
      %3484 = vmatprep.subr.bf16.mxu0 0
      %3485 = vmatpush2.bf16.msra.mxu0 0
      %3486 = vmatprep.subr.bf16.mxu0 0
      %3487 = vmatpush2.bf16.msra.mxu0 0
      %3488 = vmatprep.subr.bf16.mxu0 0
      %3489 = vmatpush2.bf16.msra.mxu0 0
      %3490 = vmatprep.subr.bf16.mxu0 0
      %3491 = vmatpush2.bf16.msra.mxu0 0
      %3492 = vmatprep.subr.bf16.mxu0 0
      %3493 = vmatpush2.bf16.msra.mxu0 0
      %3494 = vmatprep.subr.bf16.mxu0 0
      %3495 = vmatpush2.bf16.msra.mxu0 0
      %3496 = vmatprep.mubr.bf16.mxu0 0
      %3497 = vmatmul.mubr.bf16.gmra.mxu0 %v3462
      %v3498 = vpop.f32.mrf.mxu0
      %v3499 = vadd.f32 %v3435, %v3498
      %v3500 = vpop.f32.mrf.mxu0
      %v3501 = vpop.f32.mrf.mxu0
      %v3502 = vpop.f32.mrf.mxu0
      %3503 = vdwg.mxu0
      %v3504 = vmul.f32 %v3499, 0.5
      %v3505 = vmul.f32 %v3499, 0.044715
      %v3506 = vmul.f32 %v3505, %v3499
      %v3507 = vmul.f32 %v3506, %v3499
      %v3508 = vadd.f32 %v3499, %v3507
      %v3509 = vmul.f32 %v3508, 0.7978846
      %v3510 = vtanh.pop %v3509
      %v3511 = vadd.f32 %v3510, 1.0
      %v3512 = vmul.f32 %v3504, %v3511
      %v3513 = vpack.c.bf16 %v3512, %v3512
      %s3514 = scalar_lea.vmem %s19, 16
      %v3515 = vld [vmem:[%s3514] sm:$0xf]
      %v3516 = vld [vmem:[%s3514 + $0x4] sm:$0xf]
      %v3517 = vld [vmem:[%s3514 + $0x8] sm:$0xf]
      %v3518 = vld [vmem:[%s3514 + $0xc] sm:$0xf]
      %s3519 = scalar_lea.vmem %s20, 1
      %v3520 = vld [vmem:[%s3519] sm:$0x1]
      %v3522 = vlaneseq
      %v3523 = vshrl.u32 %v3522, 7
      %v3524 = vsub.s32 0, %v3523
      %v3525 = vrot.slane %v3520, %v3524
      %v3531 = vunpack.c.l.b16 %v3515
      %v3532 = vunpack.c.l.b16 %v3516
      %v3533 = vunpack.c.l.b16 %v3517
      %v3534 = vunpack.c.l.b16 %v3518
      %v3535 = vpack.c.b16 %v3532, %v3531
      %v3536 = vpack.c.b16 %v3534, %v3533
      %v3540 = vsel %vm2632, %v3513, 0
      %3542 = vmatprep.subr.bf16.mxu0 0
      %3543 = vmatpush1.bf16.msra.mxu0 0
      %3544 = vmatprep.subr.bf16.mxu0 0
      %3545 = vmatpush1.bf16.msra.mxu0 0
      %3546 = vmatprep.subr.bf16.mxu0 0
      %3547 = vmatpush1.bf16.msra.mxu0 0
      %3548 = vmatprep.subr.bf16.mxu0 0
      %3549 = vmatpush1.bf16.msra.mxu0 0
      %3550 = vmatprep.subr.bf16.mxu0 0
      %3551 = vmatpush1.bf16.msra.mxu0 0
      %3552 = vmatprep.subr.bf16.mxu0 0
      %3553 = vmatpush1.bf16.msra.mxu0 0
      %3554 = vmatprep.subr.bf16.mxu0 0
      %3555 = vmatpush1.bf16.msra.mxu0 %v3536
      %3556 = vmatprep.subr.bf16.mxu0 0
      %3557 = vmatpush1.bf16.msra.mxu0 %v3535
      %3558 = vmatprep.subr.bf16.mxu0 0
      %3559 = vmatpush2.bf16.msra.mxu0 0
      %3560 = vmatprep.subr.bf16.mxu0 0
      %3561 = vmatpush2.bf16.msra.mxu0 0
      %3562 = vmatprep.subr.bf16.mxu0 0
      %3563 = vmatpush2.bf16.msra.mxu0 0
      %3564 = vmatprep.subr.bf16.mxu0 0
      %3565 = vmatpush2.bf16.msra.mxu0 0
      %3566 = vmatprep.subr.bf16.mxu0 0
      %3567 = vmatpush2.bf16.msra.mxu0 0
      %3568 = vmatprep.subr.bf16.mxu0 0
      %3569 = vmatpush2.bf16.msra.mxu0 0
      %3570 = vmatprep.subr.bf16.mxu0 0
      %3571 = vmatpush2.bf16.msra.mxu0 0
      %3572 = vmatprep.subr.bf16.mxu0 0
      %3573 = vmatpush2.bf16.msra.mxu0 0
      %3574 = vmatprep.mubr.bf16.mxu0 0
      %3575 = vmatmul.mubr.bf16.gmra.mxu0 %v3540
      %v3576 = vpop.f32.mrf.mxu0
      %v3577 = vadd.f32 %v3525, %v3576
      %v3578 = vpop.f32.mrf.mxu0
      %v3579 = vpop.f32.mrf.mxu0
      %v3580 = vpop.f32.mrf.mxu0
      %3581 = vdwg.mxu0
      %v3582 = vadd.f32 %v3387, %v3577
      %3583 = vst.msk [vmem:[#allocation2] sm:$0xff] %vm822, 0.0
      %3584 = vst.msk [vmem:[#allocation2] sm:$0x1] %vm1737, %v1529
      %3585 = vst.msk [vmem:[#allocation2 + $0x1] sm:$0xf] %vm1739, %v1276
      %v3586 = vld [vmem:[#allocation2] sm:$0xff]
      %v3587 = vld [vmem:[%s4] sm:$0xff]
      %v3588 = vadd.f32 %v3586, %v3587
      %v3589 = vld [vmem:[%s5] sm:$0x1]
      %v3590 = vld [vmem:[%s6] sm:$0x1]
      %v3591 = vsel %vm822, %v3588, 0.0
      %3592 = vadd.xlane.f32.xlu0 %v3591
      %v3593 = vpop.xlane.xlu0 %3592
      %v3594 = vmul.f32 %v3593, %v1749
      %v3595 = vsub.f32 %v3588, %v3594
      %v3596 = vmul.f32 %v3595, %v3595
      %v3597 = vsel %vm822, %v3596, 0.0
      %3598 = vadd.xlane.f32.xlu0 %v3597
      %v3599 = vpop.xlane.xlu0 %3598
      %v3600 = vmul.f32 %v3599, %v1749
      %v3601 = vadd.f32 %v3600, 1e-06
      %v3602 = vrsqrt.pop %v3601
      %v3603 = vmul.f32 %v3595, %v3602
      %v3605 = vlaneseq
      %v3606 = vshrl.u32 %v3605, 7
      %v3607 = vsub.s32 0, %v3606
      %v3608 = vrot.slane %v3589, %v3607
      %v3610 = vmul.f32 %v3603, %v3608
      %v3612 = vlaneseq
      %v3613 = vshrl.u32 %v3612, 7
      %v3614 = vsub.s32 0, %v3613
      %v3615 = vrot.slane %v3590, %v3614
      %v3617 = vadd.f32 %v3610, %v3615
      %v3618 = vpack.c.bf16 %v3617, %v3617
      %v3619 = vld [vmem:[%s7] sm:$0xff]
      %v3620 = vld [vmem:[%s7 + $0x8] sm:$0xff]
      %v3621 = vld [vmem:[%s7 + $0x10] sm:$0xff]
      %v3622 = vld [vmem:[%s7 + $0x18] sm:$0xff]
      %v3623 = vld [vmem:[%s7 + $0x20] sm:$0xff]
      %v3624 = vld [vmem:[%s7 + $0x28] sm:$0xff]
      %v3625 = vld [vmem:[%s7 + $0x30] sm:$0xff]
      %v3626 = vld [vmem:[%s7 + $0x38] sm:$0xff]
      %v3627 = vld [vmem:[%s8] sm:$0x3]
      %v3636 = vunpack.c.l.b16 %v3619
      %v3637 = vunpack.c.h.b16 %v3619
      %v3638 = vunpack.c.l.b16 %v3620
      %v3639 = vunpack.c.h.b16 %v3620
      %v3640 = vunpack.c.l.b16 %v3621
      %v3641 = vunpack.c.h.b16 %v3621
      %v3642 = vunpack.c.l.b16 %v3622
      %v3643 = vunpack.c.h.b16 %v3622
      %v3644 = vunpack.c.l.b16 %v3623
      %v3645 = vunpack.c.h.b16 %v3623
      %v3646 = vunpack.c.l.b16 %v3624
      %v3647 = vunpack.c.h.b16 %v3624
      %v3648 = vunpack.c.l.b16 %v3625
      %v3649 = vunpack.c.h.b16 %v3625
      %v3650 = vunpack.c.l.b16 %v3626
      %v3651 = vunpack.c.h.b16 %v3626
      %v3652 = vpack.c.b16 %v3638, %v3636
      %v3653 = vpack.c.b16 %v3639, %v3637
      %v3654 = vpack.c.b16 %v3642, %v3640
      %v3655 = vpack.c.b16 %v3643, %v3641
      %v3656 = vpack.c.b16 %v3646, %v3644
      %v3657 = vpack.c.b16 %v3647, %v3645
      %v3658 = vpack.c.b16 %v3650, %v3648
      %v3659 = vpack.c.b16 %v3651, %v3649
      %v3669 = vlaneseq
      %v3670 = vshrl.u32 %v3669, 7
      %v3671 = vsub.s32 0, %v3670
      %v3672 = vrot.slane %v3627, %v3671
      %v3673 = vlaneseq
      %v3674 = vshrl.u32 %v3673, 7
      %v3675 = vsub.s32 1, %v3674
      %v3676 = vrot.slane %v3627, %v3675
      %v3680 = vsel %vm822, %v3618, 0
      %3682 = vmatprep.subr.bf16.mxu0 0
      %3683 = vmatpush1.bf16.msra.mxu0 0
      %3684 = vmatprep.subr.bf16.mxu0 0
      %3685 = vmatpush1.bf16.msra.mxu0 0
      %3686 = vmatprep.subr.bf16.mxu0 0
      %3687 = vmatpush1.bf16.msra.mxu0 0
      %3688 = vmatprep.subr.bf16.mxu0 0
      %3689 = vmatpush1.bf16.msra.mxu0 0
      %3690 = vmatprep.subr.bf16.mxu0 %v3659
      %3691 = vmatpush1.bf16.msra.mxu0 %v3658
      %3692 = vmatprep.subr.bf16.mxu0 %v3657
      %3693 = vmatpush1.bf16.msra.mxu0 %v3656
      %3694 = vmatprep.subr.bf16.mxu0 %v3655
      %3695 = vmatpush1.bf16.msra.mxu0 %v3654
      %3696 = vmatprep.subr.bf16.mxu0 %v3653
      %3697 = vmatpush1.bf16.msra.mxu0 %v3652
      %3698 = vmatprep.subr.bf16.mxu0 0
      %3699 = vmatpush2.bf16.msra.mxu0 0
      %3700 = vmatprep.subr.bf16.mxu0 0
      %3701 = vmatpush2.bf16.msra.mxu0 0
      %3702 = vmatprep.subr.bf16.mxu0 0
      %3703 = vmatpush2.bf16.msra.mxu0 0
      %3704 = vmatprep.subr.bf16.mxu0 0
      %3705 = vmatpush2.bf16.msra.mxu0 0
      %3706 = vmatprep.subr.bf16.mxu0 0
      %3707 = vmatpush2.bf16.msra.mxu0 0
      %3708 = vmatprep.subr.bf16.mxu0 0
      %3709 = vmatpush2.bf16.msra.mxu0 0
      %3710 = vmatprep.subr.bf16.mxu0 0
      %3711 = vmatpush2.bf16.msra.mxu0 0
      %3712 = vmatprep.subr.bf16.mxu0 0
      %3713 = vmatpush2.bf16.msra.mxu0 0
      %3714 = vmatprep.mubr.bf16.mxu0 0
      %3715 = vmatmul.mubr.bf16.gmra.mxu0 %v3680
      %v3716 = vpop.f32.mrf.mxu0
      %v3717 = vadd.f32 %v3672, %v3716
      %v3718 = vpop.f32.mrf.mxu0
      %v3719 = vadd.f32 %v3676, %v3718
      %v3720 = vpop.f32.mrf.mxu0
      %v3721 = vpop.f32.mrf.mxu0
      %3722 = vdwg.mxu0
      %v3723 = vld [vmem:[%s9] sm:$0xff]
      %v3724 = vld [vmem:[%s9 + $0x8] sm:$0xff]
      %v3725 = vld [vmem:[%s9 + $0x10] sm:$0xff]
      %v3726 = vld [vmem:[%s9 + $0x18] sm:$0xff]
      %v3727 = vld [vmem:[%s9 + $0x20] sm:$0xff]
      %v3728 = vld [vmem:[%s9 + $0x28] sm:$0xff]
      %v3729 = vld [vmem:[%s9 + $0x30] sm:$0xff]
      %v3730 = vld [vmem:[%s9 + $0x38] sm:$0xff]
      %v3731 = vld [vmem:[%s10] sm:$0x3]
      %v3733 = vlaneseq
      %v3734 = vshrl.u32 %v3733, 7
      %v3735 = vsub.s32 0, %v3734
      %v3736 = vrot.slane %v3731, %v3735
      %v3737 = vlaneseq
      %v3738 = vshrl.u32 %v3737, 7
      %v3739 = vsub.s32 1, %v3738
      %v3740 = vrot.slane %v3731, %v3739
      %v3751 = vunpack.c.l.b16 %v3723
      %v3752 = vunpack.c.h.b16 %v3723
      %v3753 = vunpack.c.l.b16 %v3724
      %v3754 = vunpack.c.h.b16 %v3724
      %v3755 = vunpack.c.l.b16 %v3725
      %v3756 = vunpack.c.h.b16 %v3725
      %v3757 = vunpack.c.l.b16 %v3726
      %v3758 = vunpack.c.h.b16 %v3726
      %v3759 = vunpack.c.l.b16 %v3727
      %v3760 = vunpack.c.h.b16 %v3727
      %v3761 = vunpack.c.l.b16 %v3728
      %v3762 = vunpack.c.h.b16 %v3728
      %v3763 = vunpack.c.l.b16 %v3729
      %v3764 = vunpack.c.h.b16 %v3729
      %v3765 = vunpack.c.l.b16 %v3730
      %v3766 = vunpack.c.h.b16 %v3730
      %v3767 = vpack.c.b16 %v3753, %v3751
      %v3768 = vpack.c.b16 %v3754, %v3752
      %v3769 = vpack.c.b16 %v3757, %v3755
      %v3770 = vpack.c.b16 %v3758, %v3756
      %v3771 = vpack.c.b16 %v3761, %v3759
      %v3772 = vpack.c.b16 %v3762, %v3760
      %v3773 = vpack.c.b16 %v3765, %v3763
      %v3774 = vpack.c.b16 %v3766, %v3764
      %3783 = vmatprep.subr.bf16.mxu0 0
      %3784 = vmatpush1.bf16.msra.mxu0 0
      %3785 = vmatprep.subr.bf16.mxu0 0
      %3786 = vmatpush1.bf16.msra.mxu0 0
      %3787 = vmatprep.subr.bf16.mxu0 0
      %3788 = vmatpush1.bf16.msra.mxu0 0
      %3789 = vmatprep.subr.bf16.mxu0 0
      %3790 = vmatpush1.bf16.msra.mxu0 0
      %3791 = vmatprep.subr.bf16.mxu0 %v3774
      %3792 = vmatpush1.bf16.msra.mxu0 %v3773
      %3793 = vmatprep.subr.bf16.mxu0 %v3772
      %3794 = vmatpush1.bf16.msra.mxu0 %v3771
      %3795 = vmatprep.subr.bf16.mxu0 %v3770
      %3796 = vmatpush1.bf16.msra.mxu0 %v3769
      %3797 = vmatprep.subr.bf16.mxu0 %v3768
      %3798 = vmatpush1.bf16.msra.mxu0 %v3767
      %3799 = vmatprep.subr.bf16.mxu0 0
      %3800 = vmatpush2.bf16.msra.mxu0 0
      %3801 = vmatprep.subr.bf16.mxu0 0
      %3802 = vmatpush2.bf16.msra.mxu0 0
      %3803 = vmatprep.subr.bf16.mxu0 0
      %3804 = vmatpush2.bf16.msra.mxu0 0
      %3805 = vmatprep.subr.bf16.mxu0 0
      %3806 = vmatpush2.bf16.msra.mxu0 0
      %3807 = vmatprep.subr.bf16.mxu0 0
      %3808 = vmatpush2.bf16.msra.mxu0 0
      %3809 = vmatprep.subr.bf16.mxu0 0
      %3810 = vmatpush2.bf16.msra.mxu0 0
      %3811 = vmatprep.subr.bf16.mxu0 0
      %3812 = vmatpush2.bf16.msra.mxu0 0
      %3813 = vmatprep.subr.bf16.mxu0 0
      %3814 = vmatpush2.bf16.msra.mxu0 0
      %3815 = vmatprep.mubr.bf16.mxu0 0
      %3816 = vmatmul.mubr.bf16.gmra.mxu0 %v3680
      %v3817 = vpop.f32.mrf.mxu0
      %v3818 = vadd.f32 %v3736, %v3817
      %v3819 = vpop.f32.mrf.mxu0
      %v3820 = vadd.f32 %v3740, %v3819
      %v3821 = vpop.f32.mrf.mxu0
      %v3822 = vpop.f32.mrf.mxu0
      %3823 = vdwg.mxu0
      %v3824 = vld [vmem:[%s11] sm:$0xff]
      %v3825 = vld [vmem:[%s11 + $0x8] sm:$0xff]
      %v3826 = vld [vmem:[%s11 + $0x10] sm:$0xff]
      %v3827 = vld [vmem:[%s11 + $0x18] sm:$0xff]
      %v3828 = vld [vmem:[%s11 + $0x20] sm:$0xff]
      %v3829 = vld [vmem:[%s11 + $0x28] sm:$0xff]
      %v3830 = vld [vmem:[%s11 + $0x30] sm:$0xff]
      %v3831 = vld [vmem:[%s11 + $0x38] sm:$0xff]
      %v3832 = vld [vmem:[%s12] sm:$0x3]
      %v3834 = vlaneseq
      %v3835 = vshrl.u32 %v3834, 7
      %v3836 = vsub.s32 0, %v3835
      %v3837 = vrot.slane %v3832, %v3836
      %v3838 = vlaneseq
      %v3839 = vshrl.u32 %v3838, 7
      %v3840 = vsub.s32 1, %v3839
      %v3841 = vrot.slane %v3832, %v3840
      %v3852 = vunpack.c.l.b16 %v3824
      %v3853 = vunpack.c.h.b16 %v3824
      %v3854 = vunpack.c.l.b16 %v3825
      %v3855 = vunpack.c.h.b16 %v3825
      %v3856 = vunpack.c.l.b16 %v3826
      %v3857 = vunpack.c.h.b16 %v3826
      %v3858 = vunpack.c.l.b16 %v3827
      %v3859 = vunpack.c.h.b16 %v3827
      %v3860 = vunpack.c.l.b16 %v3828
      %v3861 = vunpack.c.h.b16 %v3828
      %v3862 = vunpack.c.l.b16 %v3829
      %v3863 = vunpack.c.h.b16 %v3829
      %v3864 = vunpack.c.l.b16 %v3830
      %v3865 = vunpack.c.h.b16 %v3830
      %v3866 = vunpack.c.l.b16 %v3831
      %v3867 = vunpack.c.h.b16 %v3831
      %v3868 = vpack.c.b16 %v3854, %v3852
      %v3869 = vpack.c.b16 %v3855, %v3853
      %v3870 = vpack.c.b16 %v3858, %v3856
      %v3871 = vpack.c.b16 %v3859, %v3857
      %v3872 = vpack.c.b16 %v3862, %v3860
      %v3873 = vpack.c.b16 %v3863, %v3861
      %v3874 = vpack.c.b16 %v3866, %v3864
      %v3875 = vpack.c.b16 %v3867, %v3865
      %3884 = vmatprep.subr.bf16.mxu0 0
      %3885 = vmatpush1.bf16.msra.mxu0 0
      %3886 = vmatprep.subr.bf16.mxu0 0
      %3887 = vmatpush1.bf16.msra.mxu0 0
      %3888 = vmatprep.subr.bf16.mxu0 0
      %3889 = vmatpush1.bf16.msra.mxu0 0
      %3890 = vmatprep.subr.bf16.mxu0 0
      %3891 = vmatpush1.bf16.msra.mxu0 0
      %3892 = vmatprep.subr.bf16.mxu0 %v3875
      %3893 = vmatpush1.bf16.msra.mxu0 %v3874
      %3894 = vmatprep.subr.bf16.mxu0 %v3873
      %3895 = vmatpush1.bf16.msra.mxu0 %v3872
      %3896 = vmatprep.subr.bf16.mxu0 %v3871
      %3897 = vmatpush1.bf16.msra.mxu0 %v3870
      %3898 = vmatprep.subr.bf16.mxu0 %v3869
      %3899 = vmatpush1.bf16.msra.mxu0 %v3868
      %3900 = vmatprep.subr.bf16.mxu0 0
      %3901 = vmatpush2.bf16.msra.mxu0 0
      %3902 = vmatprep.subr.bf16.mxu0 0
      %3903 = vmatpush2.bf16.msra.mxu0 0
      %3904 = vmatprep.subr.bf16.mxu0 0
      %3905 = vmatpush2.bf16.msra.mxu0 0
      %3906 = vmatprep.subr.bf16.mxu0 0
      %3907 = vmatpush2.bf16.msra.mxu0 0
      %3908 = vmatprep.subr.bf16.mxu0 0
      %3909 = vmatpush2.bf16.msra.mxu0 0
      %3910 = vmatprep.subr.bf16.mxu0 0
      %3911 = vmatpush2.bf16.msra.mxu0 0
      %3912 = vmatprep.subr.bf16.mxu0 0
      %3913 = vmatpush2.bf16.msra.mxu0 0
      %3914 = vmatprep.subr.bf16.mxu0 0
      %3915 = vmatpush2.bf16.msra.mxu0 0
      %3916 = vmatprep.mubr.bf16.mxu0 0
      %3917 = vmatmul.mubr.bf16.gmra.mxu0 %v3680
      %v3918 = vpop.f32.mrf.mxu0
      %v3919 = vadd.f32 %v3837, %v3918
      %v3920 = vpop.f32.mrf.mxu0
      %v3921 = vadd.f32 %v3841, %v3920
      %v3922 = vpop.f32.mrf.mxu0
      %v3923 = vpop.f32.mrf.mxu0
      %3924 = vdwg.mxu0
      %v3925 = vlaneseq
      %v3926 = vshrl.u32 %v3925, 7
      %v3927 = vsub.s32 0, %v3926
      %v3928 = vrot.slane %v3717, %v3927
      %v3929 = vlaneseq
      %v3930 = vshrl.u32 %v3929, 7
      %v3931 = vsub.s32 0, %v3930
      %v3932 = vrot.slane %v3719, %v3931
      %v3933 = vmul.f32 %v3818, %v3928
      %v3934 = vmul.f32 %v3820, %v3932
      %v3935 = vld [vmem:[%s21] sm:$0xff]
      %v3936 = vld [vmem:[%s21 + $0x8] sm:$0xff]
      %v3937 = vld [vmem:[%s21 + $0x10] sm:$0xff]
      %v3938 = vld [vmem:[%s21 + $0x18] sm:$0xff]
      %v3939 = vld [vmem:[%s21 + $0x20] sm:$0xff]
      %v3940 = vld [vmem:[%s21 + $0x28] sm:$0xff]
      %v3941 = vld [vmem:[%s21 + $0x30] sm:$0xff]
      %v3942 = vld [vmem:[%s21 + $0x38] sm:$0xff]
      %v3943 = vld [vmem:[%s21 + $0x40] sm:$0xff]
      %v3944 = vld [vmem:[%s21 + $0x48] sm:$0xff]
      %v3945 = vld [vmem:[%s21 + $0x50] sm:$0xff]
      %v3946 = vld [vmem:[%s21 + $0x58] sm:$0xff]
      %v3947 = vld [vmem:[%s21 + $0x60] sm:$0xff]
      %v3948 = vld [vmem:[%s21 + $0x68] sm:$0xff]
      %v3949 = vld [vmem:[%s21 + $0x70] sm:$0xff]
      %v3950 = vld [vmem:[%s21 + $0x78] sm:$0xff]
      %v3951 = vld [vmem:[%s21 + $0x80] sm:$0xff]
      %v3952 = vld [vmem:[%s21 + $0x88] sm:$0xff]
      %v3953 = vld [vmem:[%s21 + $0x90] sm:$0xff]
      %v3954 = vld [vmem:[%s21 + $0x98] sm:$0xff]
      %v3955 = vld [vmem:[%s21 + $0xa0] sm:$0xff]
      %v3956 = vld [vmem:[%s21 + $0xa8] sm:$0xff]
      %v3957 = vld [vmem:[%s21 + $0xb0] sm:$0xff]
      %v3958 = vld [vmem:[%s21 + $0xb8] sm:$0xff]
      %v3959 = vld [vmem:[%s21 + $0xc0] sm:$0xff]
      %v3960 = vld [vmem:[%s21 + $0xc8] sm:$0xff]
      %v3961 = vld [vmem:[%s21 + $0xd0] sm:$0xff]
      %v3962 = vld [vmem:[%s21 + $0xd8] sm:$0xff]
      %v3963 = vld [vmem:[%s21 + $0xe0] sm:$0xff]
      %v3964 = vld [vmem:[%s21 + $0xe8] sm:$0xff]
      %v3965 = vld [vmem:[%s21 + $0xf0] sm:$0xff]
      %v3966 = vld [vmem:[%s21 + $0xf8] sm:$0xff]
      %3967 = vmatprep.subr.mxu0 0.0
      %3968 = vmatpush1.msra.mxu0 %v3950
      %3969 = vmatprep.subr.mxu0 0.0
      %3970 = vmatpush1.msra.mxu0 %v3949
      %3971 = vmatprep.subr.mxu0 0.0
      %3972 = vmatpush1.msra.mxu0 %v3948
      %3973 = vmatprep.subr.mxu0 0.0
      %3974 = vmatpush1.msra.mxu0 %v3947
      %3975 = vmatprep.subr.mxu0 0.0
      %3976 = vmatpush1.msra.mxu0 %v3946
      %3977 = vmatprep.subr.mxu0 0.0
      %3978 = vmatpush1.msra.mxu0 %v3945
      %3979 = vmatprep.subr.mxu0 0.0
      %3980 = vmatpush1.msra.mxu0 %v3944
      %3981 = vmatprep.subr.mxu0 0.0
      %3982 = vmatpush1.msra.mxu0 %v3943
      %3983 = vmatprep.subr.mxu0 0.0
      %3984 = vmatpush1.msra.mxu0 %v3942
      %3985 = vmatprep.subr.mxu0 0.0
      %3986 = vmatpush1.msra.mxu0 %v3941
      %3987 = vmatprep.subr.mxu0 0.0
      %3988 = vmatpush1.msra.mxu0 %v3940
      %3989 = vmatprep.subr.mxu0 0.0
      %3990 = vmatpush1.msra.mxu0 %v3939
      %3991 = vmatprep.subr.mxu0 0.0
      %3992 = vmatpush1.msra.mxu0 %v3938
      %3993 = vmatprep.subr.mxu0 0.0
      %3994 = vmatpush1.msra.mxu0 %v3937
      %3995 = vmatprep.subr.mxu0 0.0
      %3996 = vmatpush1.msra.mxu0 %v3936
      %3997 = vmatprep.subr.mxu0 0.0
      %3998 = vmatpush1.msra.mxu0 %v3935
      %3999 = vmatprep.subr.mxu0 0.0
      %4000 = vmatpush2.msra.mxu0 %v3966
      %4001 = vmatprep.subr.mxu0 0.0
      %4002 = vmatpush2.msra.mxu0 %v3965
      %4003 = vmatprep.subr.mxu0 0.0
      %4004 = vmatpush2.msra.mxu0 %v3964
      %4005 = vmatprep.subr.mxu0 0.0
      %4006 = vmatpush2.msra.mxu0 %v3963
      %4007 = vmatprep.subr.mxu0 0.0
      %4008 = vmatpush2.msra.mxu0 %v3962
      %4009 = vmatprep.subr.mxu0 0.0
      %4010 = vmatpush2.msra.mxu0 %v3961
      %4011 = vmatprep.subr.mxu0 0.0
      %4012 = vmatpush2.msra.mxu0 %v3960
      %4013 = vmatprep.subr.mxu0 0.0
      %4014 = vmatpush2.msra.mxu0 %v3959
      %4015 = vmatprep.subr.mxu0 0.0
      %4016 = vmatpush2.msra.mxu0 %v3958
      %4017 = vmatprep.subr.mxu0 0.0
      %4018 = vmatpush2.msra.mxu0 %v3957
      %4019 = vmatprep.subr.mxu0 0.0
      %4020 = vmatpush2.msra.mxu0 %v3956
      %4021 = vmatprep.subr.mxu0 0.0
      %4022 = vmatpush2.msra.mxu0 %v3955
      %4023 = vmatprep.subr.mxu0 0.0
      %4024 = vmatpush2.msra.mxu0 %v3954
      %4025 = vmatprep.subr.mxu0 0.0
      %4026 = vmatpush2.msra.mxu0 %v3953
      %4027 = vmatprep.subr.mxu0 0.0
      %4028 = vmatpush2.msra.mxu0 %v3952
      %4029 = vmatprep.subr.mxu0 0.0
      %4030 = vmatpush2.msra.mxu0 %v3951
      %4031 = vmatprep.mubr.f32.mxu0 %v3934
      %4032 = vmatmul.mubr.f32.gmra.mxu0 %v3933
      %v4033 = vpop.f32.mrf.mxu0
      %v4034 = vadd.f32 0.0, %v4033
      %v4035 = vpop.f32.mrf.mxu0
      %4036 = vdwg.mxu0
      %v4037 = vmul.f32 %v4034, 0.125
      %v4038 = vadd.f32 %v4037, %v1735
      %v4039 = vsel %vm2195, %v4038, -inf
      %v4040 = vrot.slane %v4039, 4
      %v4041 = vmax.f32 %v4039, %v4040
      %v4042 = vrot.slane %v4041, 2
      %v4043 = vmax.f32 %v4041, %v4042
      %v4044 = vrot.slane %v4043, 1
      %v4045 = vmax.f32 %v4043, %v4044
      %v4046 = vsub.f32 %v4038, %v4045
      %v4047 = vmul.f32 %v4046, 1.442695
      %v4048 = vpow.pop %v4047
      %v4049 = vsel %vm2195, %v4048, 0.0
      %v4050 = vrot.slane %v4049, 4
      %v4051 = vadd.f32 %v4049, %v4050
      %v4052 = vrot.slane %v4051, 2
      %v4053 = vadd.f32 %v4051, %v4052
      %v4054 = vrot.slane %v4053, 1
      %v4055 = vadd.f32 %v4053, %v4054
      %v4056 = vrcp.pop %v4055
      %v4057 = vmul.f32 %v4048, %v4056
      %v4058 = vld [vmem:[%s22] sm:$0xff]
      %v4060 = vcombine.high %v4058, %v4058
      %v4062 = vsel %vm2195, %v4057, 0
      %v4064 = vsel %vm2221, %v4058, 0
      %v4066 = vsel %vm2221, %v4060, 0
      %4068 = vmatprep.subr.mxu0 0.0
      %4069 = vmatpush1.msra.mxu0 0.0
      %4070 = vmatprep.subr.mxu0 0.0
      %4071 = vmatpush1.msra.mxu0 0.0
      %4072 = vmatprep.subr.mxu0 0.0
      %4073 = vmatpush1.msra.mxu0 0.0
      %4074 = vmatprep.subr.mxu0 0.0
      %4075 = vmatpush1.msra.mxu0 0.0
      %4076 = vmatprep.subr.mxu0 0.0
      %4077 = vmatpush1.msra.mxu0 0.0
      %4078 = vmatprep.subr.mxu0 0.0
      %4079 = vmatpush1.msra.mxu0 0.0
      %4080 = vmatprep.subr.mxu0 0.0
      %4081 = vmatpush1.msra.mxu0 0.0
      %4082 = vmatprep.subr.mxu0 0.0
      %4083 = vmatpush1.msra.mxu0 0.0
      %4084 = vmatprep.subr.mxu0 0.0
      %4085 = vmatpush1.msra.mxu0 0.0
      %4086 = vmatprep.subr.mxu0 0.0
      %4087 = vmatpush1.msra.mxu0 0.0
      %4088 = vmatprep.subr.mxu0 0.0
      %4089 = vmatpush1.msra.mxu0 0.0
      %4090 = vmatprep.subr.mxu0 0.0
      %4091 = vmatpush1.msra.mxu0 0.0
      %4092 = vmatprep.subr.mxu0 0.0
      %4093 = vmatpush1.msra.mxu0 0.0
      %4094 = vmatprep.subr.mxu0 0.0
      %4095 = vmatpush1.msra.mxu0 0.0
      %4096 = vmatprep.subr.mxu0 0.0
      %4097 = vmatpush1.msra.mxu0 0.0
      %4098 = vmatprep.subr.mxu0 %v4066
      %4099 = vmatpush1.msra.mxu0 %v4064
      %4100 = vmatprep.subr.mxu0 0.0
      %4101 = vmatpush2.msra.mxu0 0.0
      %4102 = vmatprep.subr.mxu0 0.0
      %4103 = vmatpush2.msra.mxu0 0.0
      %4104 = vmatprep.subr.mxu0 0.0
      %4105 = vmatpush2.msra.mxu0 0.0
      %4106 = vmatprep.subr.mxu0 0.0
      %4107 = vmatpush2.msra.mxu0 0.0
      %4108 = vmatprep.subr.mxu0 0.0
      %4109 = vmatpush2.msra.mxu0 0.0
      %4110 = vmatprep.subr.mxu0 0.0
      %4111 = vmatpush2.msra.mxu0 0.0
      %4112 = vmatprep.subr.mxu0 0.0
      %4113 = vmatpush2.msra.mxu0 0.0
      %4114 = vmatprep.subr.mxu0 0.0
      %4115 = vmatpush2.msra.mxu0 0.0
      %4116 = vmatprep.subr.mxu0 0.0
      %4117 = vmatpush2.msra.mxu0 0.0
      %4118 = vmatprep.subr.mxu0 0.0
      %4119 = vmatpush2.msra.mxu0 0.0
      %4120 = vmatprep.subr.mxu0 0.0
      %4121 = vmatpush2.msra.mxu0 0.0
      %4122 = vmatprep.subr.mxu0 0.0
      %4123 = vmatpush2.msra.mxu0 0.0
      %4124 = vmatprep.subr.mxu0 0.0
      %4125 = vmatpush2.msra.mxu0 0.0
      %4126 = vmatprep.subr.mxu0 0.0
      %4127 = vmatpush2.msra.mxu0 0.0
      %4128 = vmatprep.subr.mxu0 0.0
      %4129 = vmatpush2.msra.mxu0 0.0
      %4130 = vmatprep.subr.mxu0 0.0
      %4131 = vmatpush2.msra.mxu0 0.0
      %4132 = vmatprep.mubr.f32.mxu0 0.0
      %4133 = vmatmul.mubr.f32.gmra.mxu0 %v4062
      %v4134 = vpop.f32.mrf.mxu0
      %v4135 = vadd.f32 0.0, %v4134
      %v4136 = vpop.f32.mrf.mxu0
      %v4137 = vadd.f32 0.0, %v4136
      %4138 = vdwg.mxu0
      %v4139 = vmul.f32 %v4135, %v3919
      %v4140 = vmul.f32 %v4137, %v3921
      %v4141 = vrot.slane %v4139, 4
      %v4142 = vadd.f32 %v4139, %v4141
      %v4143 = vrot.slane %v4142, 2
      %v4144 = vadd.f32 %v4142, %v4143
      %v4145 = vrot.slane %v4144, 1
      %v4146 = vadd.f32 %v4144, %v4145
      %v4147 = vrot.slane %v4140, 4
      %v4148 = vadd.f32 %v4140, %v4147
      %v4149 = vrot.slane %v4148, 2
      %v4150 = vadd.f32 %v4148, %v4149
      %v4151 = vrot.slane %v4150, 1
      %v4152 = vadd.f32 %v4150, %v4151
      %v4153 = vpack.c.bf16 %v4146, %v4146
      %v4154 = vpack.c.bf16 %v4152, %v4152
      %v4155 = vld [vmem:[%s13] sm:$0xf]
      %v4156 = vld [vmem:[%s13 + $0x4] sm:$0xf]
      %v4157 = vld [vmem:[%s13 + $0x8] sm:$0xf]
      %v4158 = vld [vmem:[%s13 + $0xc] sm:$0xf]
      %v4159 = vld [vmem:[%s13 + $0x10] sm:$0xf]
      %v4160 = vld [vmem:[%s13 + $0x14] sm:$0xf]
      %v4161 = vld [vmem:[%s13 + $0x18] sm:$0xf]
      %v4162 = vld [vmem:[%s13 + $0x1c] sm:$0xf]
      %v4163 = vld [vmem:[%s13 + $0x20] sm:$0xf]
      %v4164 = vld [vmem:[%s13 + $0x24] sm:$0xf]
      %v4165 = vld [vmem:[%s13 + $0x28] sm:$0xf]
      %v4166 = vld [vmem:[%s13 + $0x2c] sm:$0xf]
      %v4167 = vld [vmem:[%s13 + $0x30] sm:$0xf]
      %v4168 = vld [vmem:[%s13 + $0x34] sm:$0xf]
      %v4169 = vld [vmem:[%s13 + $0x38] sm:$0xf]
      %v4170 = vld [vmem:[%s13 + $0x3c] sm:$0xf]
      %v4171 = vld [vmem:[%s13 + $0x40] sm:$0xf]
      %v4172 = vld [vmem:[%s13 + $0x44] sm:$0xf]
      %v4173 = vld [vmem:[%s13 + $0x48] sm:$0xf]
      %v4174 = vld [vmem:[%s13 + $0x4c] sm:$0xf]
      %v4175 = vld [vmem:[%s13 + $0x50] sm:$0xf]
      %v4176 = vld [vmem:[%s13 + $0x54] sm:$0xf]
      %v4177 = vld [vmem:[%s13 + $0x58] sm:$0xf]
      %v4178 = vld [vmem:[%s13 + $0x5c] sm:$0xf]
      %v4179 = vld [vmem:[%s13 + $0x60] sm:$0xf]
      %v4180 = vld [vmem:[%s13 + $0x64] sm:$0xf]
      %v4181 = vld [vmem:[%s13 + $0x68] sm:$0xf]
      %v4182 = vld [vmem:[%s13 + $0x6c] sm:$0xf]
      %v4183 = vld [vmem:[%s13 + $0x70] sm:$0xf]
      %v4184 = vld [vmem:[%s13 + $0x74] sm:$0xf]
      %v4185 = vld [vmem:[%s13 + $0x78] sm:$0xf]
      %v4186 = vld [vmem:[%s13 + $0x7c] sm:$0xf]
      %v4187 = vld [vmem:[%s14] sm:$0x1]
      %v4220 = vunpack.c.l.b16 %v4155
      %v4221 = vunpack.c.l.b16 %v4156
      %v4222 = vunpack.c.l.b16 %v4157
      %v4223 = vunpack.c.l.b16 %v4158
      %v4224 = vunpack.c.l.b16 %v4159
      %v4225 = vunpack.c.l.b16 %v4160
      %v4226 = vunpack.c.l.b16 %v4161
      %v4227 = vunpack.c.l.b16 %v4162
      %v4228 = vunpack.c.l.b16 %v4163
      %v4229 = vunpack.c.l.b16 %v4164
      %v4230 = vunpack.c.l.b16 %v4165
      %v4231 = vunpack.c.l.b16 %v4166
      %v4232 = vunpack.c.l.b16 %v4167
      %v4233 = vunpack.c.l.b16 %v4168
      %v4234 = vunpack.c.l.b16 %v4169
      %v4235 = vunpack.c.l.b16 %v4170
      %v4236 = vunpack.c.l.b16 %v4171
      %v4237 = vunpack.c.l.b16 %v4172
      %v4238 = vunpack.c.l.b16 %v4173
      %v4239 = vunpack.c.l.b16 %v4174
      %v4240 = vunpack.c.l.b16 %v4175
      %v4241 = vunpack.c.l.b16 %v4176
      %v4242 = vunpack.c.l.b16 %v4177
      %v4243 = vunpack.c.l.b16 %v4178
      %v4244 = vunpack.c.l.b16 %v4179
      %v4245 = vunpack.c.l.b16 %v4180
      %v4246 = vunpack.c.l.b16 %v4181
      %v4247 = vunpack.c.l.b16 %v4182
      %v4248 = vunpack.c.l.b16 %v4183
      %v4249 = vunpack.c.l.b16 %v4184
      %v4250 = vunpack.c.l.b16 %v4185
      %v4251 = vunpack.c.l.b16 %v4186
      %v4252 = vpack.c.b16 %v4221, %v4220
      %v4253 = vpack.c.b16 %v4223, %v4222
      %v4254 = vpack.c.b16 %v4225, %v4224
      %v4255 = vpack.c.b16 %v4227, %v4226
      %v4256 = vpack.c.b16 %v4229, %v4228
      %v4257 = vpack.c.b16 %v4231, %v4230
      %v4258 = vpack.c.b16 %v4233, %v4232
      %v4259 = vpack.c.b16 %v4235, %v4234
      %v4260 = vpack.c.b16 %v4237, %v4236
      %v4261 = vpack.c.b16 %v4239, %v4238
      %v4262 = vpack.c.b16 %v4241, %v4240
      %v4263 = vpack.c.b16 %v4243, %v4242
      %v4264 = vpack.c.b16 %v4245, %v4244
      %v4265 = vpack.c.b16 %v4247, %v4246
      %v4266 = vpack.c.b16 %v4249, %v4248
      %v4267 = vpack.c.b16 %v4251, %v4250
      %4284 = vmatprep.subr.bf16.mxu0 0
      %4285 = vmatpush1.bf16.msra.mxu0 %v4259
      %4286 = vmatprep.subr.bf16.mxu0 0
      %4287 = vmatpush1.bf16.msra.mxu0 %v4258
      %4288 = vmatprep.subr.bf16.mxu0 0
      %4289 = vmatpush1.bf16.msra.mxu0 %v4257
      %4290 = vmatprep.subr.bf16.mxu0 0
      %4291 = vmatpush1.bf16.msra.mxu0 %v4256
      %4292 = vmatprep.subr.bf16.mxu0 0
      %4293 = vmatpush1.bf16.msra.mxu0 %v4255
      %4294 = vmatprep.subr.bf16.mxu0 0
      %4295 = vmatpush1.bf16.msra.mxu0 %v4254
      %4296 = vmatprep.subr.bf16.mxu0 0
      %4297 = vmatpush1.bf16.msra.mxu0 %v4253
      %4298 = vmatprep.subr.bf16.mxu0 0
      %4299 = vmatpush1.bf16.msra.mxu0 %v4252
      %4300 = vmatprep.subr.bf16.mxu0 0
      %4301 = vmatpush2.bf16.msra.mxu0 %v4267
      %4302 = vmatprep.subr.bf16.mxu0 0
      %4303 = vmatpush2.bf16.msra.mxu0 %v4266
      %4304 = vmatprep.subr.bf16.mxu0 0
      %4305 = vmatpush2.bf16.msra.mxu0 %v4265
      %4306 = vmatprep.subr.bf16.mxu0 0
      %4307 = vmatpush2.bf16.msra.mxu0 %v4264
      %4308 = vmatprep.subr.bf16.mxu0 0
      %4309 = vmatpush2.bf16.msra.mxu0 %v4263
      %4310 = vmatprep.subr.bf16.mxu0 0
      %4311 = vmatpush2.bf16.msra.mxu0 %v4262
      %4312 = vmatprep.subr.bf16.mxu0 0
      %4313 = vmatpush2.bf16.msra.mxu0 %v4261
      %4314 = vmatprep.subr.bf16.mxu0 0
      %4315 = vmatpush2.bf16.msra.mxu0 %v4260
      %4316 = vmatprep.mubr.bf16.mxu0 %v4154
      %4317 = vmatmul.mubr.bf16.gmra.mxu0 %v4153
      %v4318 = vpop.f32.mrf.mxu0
      %v4319 = vadd.f32 %v4187, %v4318
      %v4320 = vpop.f32.mrf.mxu0
      %v4321 = vpop.f32.mrf.mxu0
      %v4322 = vpop.f32.mrf.mxu0
      %4323 = vdwg.mxu0
      %v4324 = vlaneseq
      %v4325 = vshrl.u32 %v4324, 7
      %v4326 = vsub.s32 0, %v4325
      %v4327 = vrot.slane %v4319, %v4326
      %v4328 = vadd.f32 %v3588, %v4327
      %v4329 = vld [vmem:[%s15] sm:$0x1]
      %v4330 = vld [vmem:[%s16] sm:$0x1]
      %v4331 = vsel %vm822, %v4328, 0.0
      %4332 = vadd.xlane.f32.xlu0 %v4331
      %v4333 = vpop.xlane.xlu0 %4332
      %v4334 = vmul.f32 %v4333, %v1749
      %v4335 = vsub.f32 %v4328, %v4334
      %v4336 = vmul.f32 %v4335, %v4335
      %v4337 = vsel %vm822, %v4336, 0.0
      %4338 = vadd.xlane.f32.xlu0 %v4337
      %v4339 = vpop.xlane.xlu0 %4338
      %v4340 = vmul.f32 %v4339, %v1749
      %v4341 = vadd.f32 %v4340, 1e-06
      %v4342 = vrsqrt.pop %v4341
      %v4343 = vmul.f32 %v4335, %v4342
      %v4345 = vlaneseq
      %v4346 = vshrl.u32 %v4345, 7
      %v4347 = vsub.s32 0, %v4346
      %v4348 = vrot.slane %v4329, %v4347
      %v4350 = vmul.f32 %v4343, %v4348
      %v4352 = vlaneseq
      %v4353 = vshrl.u32 %v4352, 7
      %v4354 = vsub.s32 0, %v4353
      %v4355 = vrot.slane %v4330, %v4354
      %v4357 = vadd.f32 %v4350, %v4355
      %v4358 = vpack.c.bf16 %v4357, %v4357
      %v4359 = vld [vmem:[%s17] sm:$0xf]
      %v4360 = vld [vmem:[%s17 + $0x4] sm:$0xf]
      %v4361 = vld [vmem:[%s17 + $0x8] sm:$0xf]
      %v4362 = vld [vmem:[%s17 + $0xc] sm:$0xf]
      %v4363 = vld [vmem:[%s17 + $0x10] sm:$0xf]
      %v4364 = vld [vmem:[%s17 + $0x14] sm:$0xf]
      %v4365 = vld [vmem:[%s17 + $0x18] sm:$0xf]
      %v4366 = vld [vmem:[%s17 + $0x1c] sm:$0xf]
      %v4367 = vld [vmem:[%s18] sm:$0x1]
      %v4369 = vlaneseq
      %v4370 = vshrl.u32 %v4369, 7
      %v4371 = vsub.s32 0, %v4370
      %v4372 = vrot.slane %v4367, %v4371
      %v4382 = vunpack.c.l.b16 %v4359
      %v4383 = vunpack.c.l.b16 %v4360
      %v4384 = vunpack.c.l.b16 %v4361
      %v4385 = vunpack.c.l.b16 %v4362
      %v4386 = vunpack.c.l.b16 %v4363
      %v4387 = vunpack.c.l.b16 %v4364
      %v4388 = vunpack.c.l.b16 %v4365
      %v4389 = vunpack.c.l.b16 %v4366
      %v4390 = vpack.c.b16 %v4383, %v4382
      %v4391 = vpack.c.b16 %v4385, %v4384
      %v4392 = vpack.c.b16 %v4387, %v4386
      %v4393 = vpack.c.b16 %v4389, %v4388
      %v4399 = vsel %vm822, %v4358, 0
      %4401 = vmatprep.subr.bf16.mxu0 0
      %4402 = vmatpush1.bf16.msra.mxu0 0
      %4403 = vmatprep.subr.bf16.mxu0 0
      %4404 = vmatpush1.bf16.msra.mxu0 0
      %4405 = vmatprep.subr.bf16.mxu0 0
      %4406 = vmatpush1.bf16.msra.mxu0 0
      %4407 = vmatprep.subr.bf16.mxu0 0
      %4408 = vmatpush1.bf16.msra.mxu0 0
      %4409 = vmatprep.subr.bf16.mxu0 0
      %4410 = vmatpush1.bf16.msra.mxu0 %v4393
      %4411 = vmatprep.subr.bf16.mxu0 0
      %4412 = vmatpush1.bf16.msra.mxu0 %v4392
      %4413 = vmatprep.subr.bf16.mxu0 0
      %4414 = vmatpush1.bf16.msra.mxu0 %v4391
      %4415 = vmatprep.subr.bf16.mxu0 0
      %4416 = vmatpush1.bf16.msra.mxu0 %v4390
      %4417 = vmatprep.subr.bf16.mxu0 0
      %4418 = vmatpush2.bf16.msra.mxu0 0
      %4419 = vmatprep.subr.bf16.mxu0 0
      %4420 = vmatpush2.bf16.msra.mxu0 0
      %4421 = vmatprep.subr.bf16.mxu0 0
      %4422 = vmatpush2.bf16.msra.mxu0 0
      %4423 = vmatprep.subr.bf16.mxu0 0
      %4424 = vmatpush2.bf16.msra.mxu0 0
      %4425 = vmatprep.subr.bf16.mxu0 0
      %4426 = vmatpush2.bf16.msra.mxu0 0
      %4427 = vmatprep.subr.bf16.mxu0 0
      %4428 = vmatpush2.bf16.msra.mxu0 0
      %4429 = vmatprep.subr.bf16.mxu0 0
      %4430 = vmatpush2.bf16.msra.mxu0 0
      %4431 = vmatprep.subr.bf16.mxu0 0
      %4432 = vmatpush2.bf16.msra.mxu0 0
      %4433 = vmatprep.mubr.bf16.mxu0 0
      %4434 = vmatmul.mubr.bf16.gmra.mxu0 %v4399
      %v4435 = vpop.f32.mrf.mxu0
      %v4436 = vadd.f32 %v4372, %v4435
      %v4437 = vpop.f32.mrf.mxu0
      %v4438 = vpop.f32.mrf.mxu0
      %v4439 = vpop.f32.mrf.mxu0
      %4440 = vdwg.mxu0
      %v4441 = vmul.f32 %v4436, 0.5
      %v4442 = vmul.f32 %v4436, 0.044715
      %v4443 = vmul.f32 %v4442, %v4436
      %v4444 = vmul.f32 %v4443, %v4436
      %v4445 = vadd.f32 %v4436, %v4444
      %v4446 = vmul.f32 %v4445, 0.7978846
      %v4447 = vtanh.pop %v4446
      %v4448 = vadd.f32 %v4447, 1.0
      %v4449 = vmul.f32 %v4441, %v4448
      %v4450 = vpack.c.bf16 %v4449, %v4449
      %v4451 = vld [vmem:[%s19] sm:$0xf]
      %v4452 = vld [vmem:[%s19 + $0x4] sm:$0xf]
      %v4453 = vld [vmem:[%s19 + $0x8] sm:$0xf]
      %v4454 = vld [vmem:[%s19 + $0xc] sm:$0xf]
      %v4455 = vld [vmem:[%s20] sm:$0x1]
      %v4457 = vlaneseq
      %v4458 = vshrl.u32 %v4457, 7
      %v4459 = vsub.s32 0, %v4458
      %v4460 = vrot.slane %v4455, %v4459
      %v4466 = vunpack.c.l.b16 %v4451
      %v4467 = vunpack.c.l.b16 %v4452
      %v4468 = vunpack.c.l.b16 %v4453
      %v4469 = vunpack.c.l.b16 %v4454
      %v4470 = vpack.c.b16 %v4467, %v4466
      %v4471 = vpack.c.b16 %v4469, %v4468
      %v4475 = vsel %vm2632, %v4450, 0
      %4477 = vmatprep.subr.bf16.mxu0 0
      %4478 = vmatpush1.bf16.msra.mxu0 0
      %4479 = vmatprep.subr.bf16.mxu0 0
      %4480 = vmatpush1.bf16.msra.mxu0 0
      %4481 = vmatprep.subr.bf16.mxu0 0
      %4482 = vmatpush1.bf16.msra.mxu0 0
      %4483 = vmatprep.subr.bf16.mxu0 0
      %4484 = vmatpush1.bf16.msra.mxu0 0
      %4485 = vmatprep.subr.bf16.mxu0 0
      %4486 = vmatpush1.bf16.msra.mxu0 0
      %4487 = vmatprep.subr.bf16.mxu0 0
      %4488 = vmatpush1.bf16.msra.mxu0 0
      %4489 = vmatprep.subr.bf16.mxu0 0
      %4490 = vmatpush1.bf16.msra.mxu0 %v4471
      %4491 = vmatprep.subr.bf16.mxu0 0
      %4492 = vmatpush1.bf16.msra.mxu0 %v4470
      %4493 = vmatprep.subr.bf16.mxu0 0
      %4494 = vmatpush2.bf16.msra.mxu0 0
      %4495 = vmatprep.subr.bf16.mxu0 0
      %4496 = vmatpush2.bf16.msra.mxu0 0
      %4497 = vmatprep.subr.bf16.mxu0 0
      %4498 = vmatpush2.bf16.msra.mxu0 0
      %4499 = vmatprep.subr.bf16.mxu0 0
      %4500 = vmatpush2.bf16.msra.mxu0 0
      %4501 = vmatprep.subr.bf16.mxu0 0
      %4502 = vmatpush2.bf16.msra.mxu0 0
      %4503 = vmatprep.subr.bf16.mxu0 0
      %4504 = vmatpush2.bf16.msra.mxu0 0
      %4505 = vmatprep.subr.bf16.mxu0 0
      %4506 = vmatpush2.bf16.msra.mxu0 0
      %4507 = vmatprep.subr.bf16.mxu0 0
      %4508 = vmatpush2.bf16.msra.mxu0 0
      %4509 = vmatprep.mubr.bf16.mxu0 0
      %4510 = vmatmul.mubr.bf16.gmra.mxu0 %v4475
      %v4511 = vpop.f32.mrf.mxu0
      %v4512 = vadd.f32 %v4460, %v4511
      %v4513 = vpop.f32.mrf.mxu0
      %v4514 = vpop.f32.mrf.mxu0
      %v4515 = vpop.f32.mrf.mxu0
      %4516 = vdwg.mxu0
      %v4517 = vadd.f32 %v4328, %v4512
      %v4518 = vld [vmem:[%s2677] sm:$0x1]
      %v4519 = vld [vmem:[%s2679] sm:$0x1]
      %v4520 = vsel %vm822, %v4517, 0.0
      %4521 = vadd.xlane.f32.xlu0 %v4520
      %v4522 = vpop.xlane.xlu0 %4521
      %v4523 = vmul.f32 %v4522, %v1749
      %v4524 = vsub.f32 %v4517, %v4523
      %v4525 = vmul.f32 %v4524, %v4524
      %v4526 = vsel %vm822, %v4525, 0.0
      %4527 = vadd.xlane.f32.xlu0 %v4526
      %v4528 = vpop.xlane.xlu0 %4527
      %v4529 = vmul.f32 %v4528, %v1749
      %v4530 = vadd.f32 %v4529, 1e-06
      %v4531 = vrsqrt.pop %v4530
      %v4532 = vmul.f32 %v4524, %v4531
      %v4534 = vlaneseq
      %v4535 = vshrl.u32 %v4534, 7
      %v4536 = vsub.s32 0, %v4535
      %v4537 = vrot.slane %v4518, %v4536
      %v4539 = vmul.f32 %v4532, %v4537
      %v4541 = vlaneseq
      %v4542 = vshrl.u32 %v4541, 7
      %v4543 = vsub.s32 0, %v4542
      %v4544 = vrot.slane %v4519, %v4543
      %v4546 = vadd.f32 %v4539, %v4544
      %v4547 = vpack.c.bf16 %v4546, %v4546
      %v4548 = vld [vmem:[%s2709] sm:$0xff]
      %v4549 = vld [vmem:[%s2709 + $0x8] sm:$0xff]
      %v4550 = vld [vmem:[%s2709 + $0x10] sm:$0xff]
      %v4551 = vld [vmem:[%s2709 + $0x18] sm:$0xff]
      %v4552 = vld [vmem:[%s2709 + $0x20] sm:$0xff]
      %v4553 = vld [vmem:[%s2709 + $0x28] sm:$0xff]
      %v4554 = vld [vmem:[%s2709 + $0x30] sm:$0xff]
      %v4555 = vld [vmem:[%s2709 + $0x38] sm:$0xff]
      %v4556 = vld [vmem:[%s2718] sm:$0x3]
      %v4565 = vunpack.c.l.b16 %v4548
      %v4566 = vunpack.c.h.b16 %v4548
      %v4567 = vunpack.c.l.b16 %v4549
      %v4568 = vunpack.c.h.b16 %v4549
      %v4569 = vunpack.c.l.b16 %v4550
      %v4570 = vunpack.c.h.b16 %v4550
      %v4571 = vunpack.c.l.b16 %v4551
      %v4572 = vunpack.c.h.b16 %v4551
      %v4573 = vunpack.c.l.b16 %v4552
      %v4574 = vunpack.c.h.b16 %v4552
      %v4575 = vunpack.c.l.b16 %v4553
      %v4576 = vunpack.c.h.b16 %v4553
      %v4577 = vunpack.c.l.b16 %v4554
      %v4578 = vunpack.c.h.b16 %v4554
      %v4579 = vunpack.c.l.b16 %v4555
      %v4580 = vunpack.c.h.b16 %v4555
      %v4581 = vpack.c.b16 %v4567, %v4565
      %v4582 = vpack.c.b16 %v4568, %v4566
      %v4583 = vpack.c.b16 %v4571, %v4569
      %v4584 = vpack.c.b16 %v4572, %v4570
      %v4585 = vpack.c.b16 %v4575, %v4573
      %v4586 = vpack.c.b16 %v4576, %v4574
      %v4587 = vpack.c.b16 %v4579, %v4577
      %v4588 = vpack.c.b16 %v4580, %v4578
      %v4598 = vlaneseq
      %v4599 = vshrl.u32 %v4598, 7
      %v4600 = vsub.s32 0, %v4599
      %v4601 = vrot.slane %v4556, %v4600
      %v4602 = vlaneseq
      %v4603 = vshrl.u32 %v4602, 7
      %v4604 = vsub.s32 1, %v4603
      %v4605 = vrot.slane %v4556, %v4604
      %v4609 = vsel %vm822, %v4547, 0
      %4611 = vmatprep.subr.bf16.mxu0 0
      %4612 = vmatpush1.bf16.msra.mxu0 0
      %4613 = vmatprep.subr.bf16.mxu0 0
      %4614 = vmatpush1.bf16.msra.mxu0 0
      %4615 = vmatprep.subr.bf16.mxu0 0
      %4616 = vmatpush1.bf16.msra.mxu0 0
      %4617 = vmatprep.subr.bf16.mxu0 0
      %4618 = vmatpush1.bf16.msra.mxu0 0
      %4619 = vmatprep.subr.bf16.mxu0 %v4588
      %4620 = vmatpush1.bf16.msra.mxu0 %v4587
      %4621 = vmatprep.subr.bf16.mxu0 %v4586
      %4622 = vmatpush1.bf16.msra.mxu0 %v4585
      %4623 = vmatprep.subr.bf16.mxu0 %v4584
      %4624 = vmatpush1.bf16.msra.mxu0 %v4583
      %4625 = vmatprep.subr.bf16.mxu0 %v4582
      %4626 = vmatpush1.bf16.msra.mxu0 %v4581
      %4627 = vmatprep.subr.bf16.mxu0 0
      %4628 = vmatpush2.bf16.msra.mxu0 0
      %4629 = vmatprep.subr.bf16.mxu0 0
      %4630 = vmatpush2.bf16.msra.mxu0 0
      %4631 = vmatprep.subr.bf16.mxu0 0
      %4632 = vmatpush2.bf16.msra.mxu0 0
      %4633 = vmatprep.subr.bf16.mxu0 0
      %4634 = vmatpush2.bf16.msra.mxu0 0
      %4635 = vmatprep.subr.bf16.mxu0 0
      %4636 = vmatpush2.bf16.msra.mxu0 0
      %4637 = vmatprep.subr.bf16.mxu0 0
      %4638 = vmatpush2.bf16.msra.mxu0 0
      %4639 = vmatprep.subr.bf16.mxu0 0
      %4640 = vmatpush2.bf16.msra.mxu0 0
      %4641 = vmatprep.subr.bf16.mxu0 0
      %4642 = vmatpush2.bf16.msra.mxu0 0
      %4643 = vmatprep.mubr.bf16.mxu0 0
      %4644 = vmatmul.mubr.bf16.gmra.mxu0 %v4609
      %v4645 = vpop.f32.mrf.mxu0
      %v4646 = vadd.f32 %v4601, %v4645
      %v4647 = vpop.f32.mrf.mxu0
      %v4648 = vadd.f32 %v4605, %v4647
      %v4649 = vpop.f32.mrf.mxu0
      %v4650 = vpop.f32.mrf.mxu0
      %4651 = vdwg.mxu0
      %v4652 = vld [vmem:[%s2815] sm:$0xff]
      %v4653 = vld [vmem:[%s2815 + $0x8] sm:$0xff]
      %v4654 = vld [vmem:[%s2815 + $0x10] sm:$0xff]
      %v4655 = vld [vmem:[%s2815 + $0x18] sm:$0xff]
      %v4656 = vld [vmem:[%s2815 + $0x20] sm:$0xff]
      %v4657 = vld [vmem:[%s2815 + $0x28] sm:$0xff]
      %v4658 = vld [vmem:[%s2815 + $0x30] sm:$0xff]
      %v4659 = vld [vmem:[%s2815 + $0x38] sm:$0xff]
      %v4660 = vld [vmem:[%s2824] sm:$0x3]
      %v4662 = vlaneseq
      %v4663 = vshrl.u32 %v4662, 7
      %v4664 = vsub.s32 0, %v4663
      %v4665 = vrot.slane %v4660, %v4664
      %v4666 = vlaneseq
      %v4667 = vshrl.u32 %v4666, 7
      %v4668 = vsub.s32 1, %v4667
      %v4669 = vrot.slane %v4660, %v4668
      %v4680 = vunpack.c.l.b16 %v4652
      %v4681 = vunpack.c.h.b16 %v4652
      %v4682 = vunpack.c.l.b16 %v4653
      %v4683 = vunpack.c.h.b16 %v4653
      %v4684 = vunpack.c.l.b16 %v4654
      %v4685 = vunpack.c.h.b16 %v4654
      %v4686 = vunpack.c.l.b16 %v4655
      %v4687 = vunpack.c.h.b16 %v4655
      %v4688 = vunpack.c.l.b16 %v4656
      %v4689 = vunpack.c.h.b16 %v4656
      %v4690 = vunpack.c.l.b16 %v4657
      %v4691 = vunpack.c.h.b16 %v4657
      %v4692 = vunpack.c.l.b16 %v4658
      %v4693 = vunpack.c.h.b16 %v4658
      %v4694 = vunpack.c.l.b16 %v4659
      %v4695 = vunpack.c.h.b16 %v4659
      %v4696 = vpack.c.b16 %v4682, %v4680
      %v4697 = vpack.c.b16 %v4683, %v4681
      %v4698 = vpack.c.b16 %v4686, %v4684
      %v4699 = vpack.c.b16 %v4687, %v4685
      %v4700 = vpack.c.b16 %v4690, %v4688
      %v4701 = vpack.c.b16 %v4691, %v4689
      %v4702 = vpack.c.b16 %v4694, %v4692
      %v4703 = vpack.c.b16 %v4695, %v4693
      %4712 = vmatprep.subr.bf16.mxu0 0
      %4713 = vmatpush1.bf16.msra.mxu0 0
      %4714 = vmatprep.subr.bf16.mxu0 0
      %4715 = vmatpush1.bf16.msra.mxu0 0
      %4716 = vmatprep.subr.bf16.mxu0 0
      %4717 = vmatpush1.bf16.msra.mxu0 0
      %4718 = vmatprep.subr.bf16.mxu0 0
      %4719 = vmatpush1.bf16.msra.mxu0 0
      %4720 = vmatprep.subr.bf16.mxu0 %v4703
      %4721 = vmatpush1.bf16.msra.mxu0 %v4702
      %4722 = vmatprep.subr.bf16.mxu0 %v4701
      %4723 = vmatpush1.bf16.msra.mxu0 %v4700
      %4724 = vmatprep.subr.bf16.mxu0 %v4699
      %4725 = vmatpush1.bf16.msra.mxu0 %v4698
      %4726 = vmatprep.subr.bf16.mxu0 %v4697
      %4727 = vmatpush1.bf16.msra.mxu0 %v4696
      %4728 = vmatprep.subr.bf16.mxu0 0
      %4729 = vmatpush2.bf16.msra.mxu0 0
      %4730 = vmatprep.subr.bf16.mxu0 0
      %4731 = vmatpush2.bf16.msra.mxu0 0
      %4732 = vmatprep.subr.bf16.mxu0 0
      %4733 = vmatpush2.bf16.msra.mxu0 0
      %4734 = vmatprep.subr.bf16.mxu0 0
      %4735 = vmatpush2.bf16.msra.mxu0 0
      %4736 = vmatprep.subr.bf16.mxu0 0
      %4737 = vmatpush2.bf16.msra.mxu0 0
      %4738 = vmatprep.subr.bf16.mxu0 0
      %4739 = vmatpush2.bf16.msra.mxu0 0
      %4740 = vmatprep.subr.bf16.mxu0 0
      %4741 = vmatpush2.bf16.msra.mxu0 0
      %4742 = vmatprep.subr.bf16.mxu0 0
      %4743 = vmatpush2.bf16.msra.mxu0 0
      %4744 = vmatprep.mubr.bf16.mxu0 0
      %4745 = vmatmul.mubr.bf16.gmra.mxu0 %v4609
      %v4746 = vpop.f32.mrf.mxu0
      %v4747 = vadd.f32 %v4665, %v4746
      %v4748 = vpop.f32.mrf.mxu0
      %v4749 = vadd.f32 %v4669, %v4748
      %v4750 = vpop.f32.mrf.mxu0
      %v4751 = vpop.f32.mrf.mxu0
      %4752 = vdwg.mxu0
      %v4753 = vld [vmem:[%s2918] sm:$0xff]
      %v4754 = vld [vmem:[%s2918 + $0x8] sm:$0xff]
      %v4755 = vld [vmem:[%s2918 + $0x10] sm:$0xff]
      %v4756 = vld [vmem:[%s2918 + $0x18] sm:$0xff]
      %v4757 = vld [vmem:[%s2918 + $0x20] sm:$0xff]
      %v4758 = vld [vmem:[%s2918 + $0x28] sm:$0xff]
      %v4759 = vld [vmem:[%s2918 + $0x30] sm:$0xff]
      %v4760 = vld [vmem:[%s2918 + $0x38] sm:$0xff]
      %v4761 = vld [vmem:[%s2927] sm:$0x3]
      %v4763 = vlaneseq
      %v4764 = vshrl.u32 %v4763, 7
      %v4765 = vsub.s32 0, %v4764
      %v4766 = vrot.slane %v4761, %v4765
      %v4767 = vlaneseq
      %v4768 = vshrl.u32 %v4767, 7
      %v4769 = vsub.s32 1, %v4768
      %v4770 = vrot.slane %v4761, %v4769
      %v4781 = vunpack.c.l.b16 %v4753
      %v4782 = vunpack.c.h.b16 %v4753
      %v4783 = vunpack.c.l.b16 %v4754
      %v4784 = vunpack.c.h.b16 %v4754
      %v4785 = vunpack.c.l.b16 %v4755
      %v4786 = vunpack.c.h.b16 %v4755
      %v4787 = vunpack.c.l.b16 %v4756
      %v4788 = vunpack.c.h.b16 %v4756
      %v4789 = vunpack.c.l.b16 %v4757
      %v4790 = vunpack.c.h.b16 %v4757
      %v4791 = vunpack.c.l.b16 %v4758
      %v4792 = vunpack.c.h.b16 %v4758
      %v4793 = vunpack.c.l.b16 %v4759
      %v4794 = vunpack.c.h.b16 %v4759
      %v4795 = vunpack.c.l.b16 %v4760
      %v4796 = vunpack.c.h.b16 %v4760
      %v4797 = vpack.c.b16 %v4783, %v4781
      %v4798 = vpack.c.b16 %v4784, %v4782
      %v4799 = vpack.c.b16 %v4787, %v4785
      %v4800 = vpack.c.b16 %v4788, %v4786
      %v4801 = vpack.c.b16 %v4791, %v4789
      %v4802 = vpack.c.b16 %v4792, %v4790
      %v4803 = vpack.c.b16 %v4795, %v4793
      %v4804 = vpack.c.b16 %v4796, %v4794
      %4813 = vmatprep.subr.bf16.mxu0 0
      %4814 = vmatpush1.bf16.msra.mxu0 0
      %4815 = vmatprep.subr.bf16.mxu0 0
      %4816 = vmatpush1.bf16.msra.mxu0 0
      %4817 = vmatprep.subr.bf16.mxu0 0
      %4818 = vmatpush1.bf16.msra.mxu0 0
      %4819 = vmatprep.subr.bf16.mxu0 0
      %4820 = vmatpush1.bf16.msra.mxu0 0
      %4821 = vmatprep.subr.bf16.mxu0 %v4804
      %4822 = vmatpush1.bf16.msra.mxu0 %v4803
      %4823 = vmatprep.subr.bf16.mxu0 %v4802
      %4824 = vmatpush1.bf16.msra.mxu0 %v4801
      %4825 = vmatprep.subr.bf16.mxu0 %v4800
      %4826 = vmatpush1.bf16.msra.mxu0 %v4799
      %4827 = vmatprep.subr.bf16.mxu0 %v4798
      %4828 = vmatpush1.bf16.msra.mxu0 %v4797
      %4829 = vmatprep.subr.bf16.mxu0 0
      %4830 = vmatpush2.bf16.msra.mxu0 0
      %4831 = vmatprep.subr.bf16.mxu0 0
      %4832 = vmatpush2.bf16.msra.mxu0 0
      %4833 = vmatprep.subr.bf16.mxu0 0
      %4834 = vmatpush2.bf16.msra.mxu0 0
      %4835 = vmatprep.subr.bf16.mxu0 0
      %4836 = vmatpush2.bf16.msra.mxu0 0
      %4837 = vmatprep.subr.bf16.mxu0 0
      %4838 = vmatpush2.bf16.msra.mxu0 0
      %4839 = vmatprep.subr.bf16.mxu0 0
      %4840 = vmatpush2.bf16.msra.mxu0 0
      %4841 = vmatprep.subr.bf16.mxu0 0
      %4842 = vmatpush2.bf16.msra.mxu0 0
      %4843 = vmatprep.subr.bf16.mxu0 0
      %4844 = vmatpush2.bf16.msra.mxu0 0
      %4845 = vmatprep.mubr.bf16.mxu0 0
      %4846 = vmatmul.mubr.bf16.gmra.mxu0 %v4609
      %v4847 = vpop.f32.mrf.mxu0
      %v4848 = vadd.f32 %v4766, %v4847
      %v4849 = vpop.f32.mrf.mxu0
      %v4850 = vadd.f32 %v4770, %v4849
      %v4851 = vpop.f32.mrf.mxu0
      %v4852 = vpop.f32.mrf.mxu0
      %4853 = vdwg.mxu0
      %v4854 = vlaneseq
      %v4855 = vshrl.u32 %v4854, 7
      %v4856 = vsub.s32 0, %v4855
      %v4857 = vrot.slane %v4646, %v4856
      %v4858 = vlaneseq
      %v4859 = vshrl.u32 %v4858, 7
      %v4860 = vsub.s32 0, %v4859
      %v4861 = vrot.slane %v4648, %v4860
      %v4862 = vmul.f32 %v4747, %v4857
      %v4863 = vmul.f32 %v4749, %v4861
      %4864 = vmatprep.subr.mxu0 0.0
      %4865 = vmatpush1.msra.mxu0 %v3950
      %4866 = vmatprep.subr.mxu0 0.0
      %4867 = vmatpush1.msra.mxu0 %v3949
      %4868 = vmatprep.subr.mxu0 0.0
      %4869 = vmatpush1.msra.mxu0 %v3948
      %4870 = vmatprep.subr.mxu0 0.0
      %4871 = vmatpush1.msra.mxu0 %v3947
      %4872 = vmatprep.subr.mxu0 0.0
      %4873 = vmatpush1.msra.mxu0 %v3946
      %4874 = vmatprep.subr.mxu0 0.0
      %4875 = vmatpush1.msra.mxu0 %v3945
      %4876 = vmatprep.subr.mxu0 0.0
      %4877 = vmatpush1.msra.mxu0 %v3944
      %4878 = vmatprep.subr.mxu0 0.0
      %4879 = vmatpush1.msra.mxu0 %v3943
      %4880 = vmatprep.subr.mxu0 0.0
      %4881 = vmatpush1.msra.mxu0 %v3942
      %4882 = vmatprep.subr.mxu0 0.0
      %4883 = vmatpush1.msra.mxu0 %v3941
      %4884 = vmatprep.subr.mxu0 0.0
      %4885 = vmatpush1.msra.mxu0 %v3940
      %4886 = vmatprep.subr.mxu0 0.0
      %4887 = vmatpush1.msra.mxu0 %v3939
      %4888 = vmatprep.subr.mxu0 0.0
      %4889 = vmatpush1.msra.mxu0 %v3938
      %4890 = vmatprep.subr.mxu0 0.0
      %4891 = vmatpush1.msra.mxu0 %v3937
      %4892 = vmatprep.subr.mxu0 0.0
      %4893 = vmatpush1.msra.mxu0 %v3936
      %4894 = vmatprep.subr.mxu0 0.0
      %4895 = vmatpush1.msra.mxu0 %v3935
      %4896 = vmatprep.subr.mxu0 0.0
      %4897 = vmatpush2.msra.mxu0 %v3966
      %4898 = vmatprep.subr.mxu0 0.0
      %4899 = vmatpush2.msra.mxu0 %v3965
      %4900 = vmatprep.subr.mxu0 0.0
      %4901 = vmatpush2.msra.mxu0 %v3964
      %4902 = vmatprep.subr.mxu0 0.0
      %4903 = vmatpush2.msra.mxu0 %v3963
      %4904 = vmatprep.subr.mxu0 0.0
      %4905 = vmatpush2.msra.mxu0 %v3962
      %4906 = vmatprep.subr.mxu0 0.0
      %4907 = vmatpush2.msra.mxu0 %v3961
      %4908 = vmatprep.subr.mxu0 0.0
      %4909 = vmatpush2.msra.mxu0 %v3960
      %4910 = vmatprep.subr.mxu0 0.0
      %4911 = vmatpush2.msra.mxu0 %v3959
      %4912 = vmatprep.subr.mxu0 0.0
      %4913 = vmatpush2.msra.mxu0 %v3958
      %4914 = vmatprep.subr.mxu0 0.0
      %4915 = vmatpush2.msra.mxu0 %v3957
      %4916 = vmatprep.subr.mxu0 0.0
      %4917 = vmatpush2.msra.mxu0 %v3956
      %4918 = vmatprep.subr.mxu0 0.0
      %4919 = vmatpush2.msra.mxu0 %v3955
      %4920 = vmatprep.subr.mxu0 0.0
      %4921 = vmatpush2.msra.mxu0 %v3954
      %4922 = vmatprep.subr.mxu0 0.0
      %4923 = vmatpush2.msra.mxu0 %v3953
      %4924 = vmatprep.subr.mxu0 0.0
      %4925 = vmatpush2.msra.mxu0 %v3952
      %4926 = vmatprep.subr.mxu0 0.0
      %4927 = vmatpush2.msra.mxu0 %v3951
      %4928 = vmatprep.mubr.f32.mxu0 %v4863
      %4929 = vmatmul.mubr.f32.gmra.mxu0 %v4862
      %v4930 = vpop.f32.mrf.mxu0
      %v4931 = vadd.f32 0.0, %v4930
      %v4932 = vpop.f32.mrf.mxu0
      %4933 = vdwg.mxu0
      %v4934 = vmul.f32 %v4931, 0.125
      %v4935 = vadd.f32 %v4934, %v1735
      %v4936 = vsel %vm2195, %v4935, -inf
      %v4937 = vrot.slane %v4936, 4
      %v4938 = vmax.f32 %v4936, %v4937
      %v4939 = vrot.slane %v4938, 2
      %v4940 = vmax.f32 %v4938, %v4939
      %v4941 = vrot.slane %v4940, 1
      %v4942 = vmax.f32 %v4940, %v4941
      %v4943 = vsub.f32 %v4935, %v4942
      %v4944 = vmul.f32 %v4943, 1.442695
      %v4945 = vpow.pop %v4944
      %v4946 = vsel %vm2195, %v4945, 0.0
      %v4947 = vrot.slane %v4946, 4
      %v4948 = vadd.f32 %v4946, %v4947
      %v4949 = vrot.slane %v4948, 2
      %v4950 = vadd.f32 %v4948, %v4949
      %v4951 = vrot.slane %v4950, 1
      %v4952 = vadd.f32 %v4950, %v4951
      %v4953 = vrcp.pop %v4952
      %v4954 = vmul.f32 %v4945, %v4953
      %v4956 = vsel %vm2195, %v4954, 0
      %4958 = vmatprep.subr.mxu0 0.0
      %4959 = vmatpush1.msra.mxu0 0.0
      %4960 = vmatprep.subr.mxu0 0.0
      %4961 = vmatpush1.msra.mxu0 0.0
      %4962 = vmatprep.subr.mxu0 0.0
      %4963 = vmatpush1.msra.mxu0 0.0
      %4964 = vmatprep.subr.mxu0 0.0
      %4965 = vmatpush1.msra.mxu0 0.0
      %4966 = vmatprep.subr.mxu0 0.0
      %4967 = vmatpush1.msra.mxu0 0.0
      %4968 = vmatprep.subr.mxu0 0.0
      %4969 = vmatpush1.msra.mxu0 0.0
      %4970 = vmatprep.subr.mxu0 0.0
      %4971 = vmatpush1.msra.mxu0 0.0
      %4972 = vmatprep.subr.mxu0 0.0
      %4973 = vmatpush1.msra.mxu0 0.0
      %4974 = vmatprep.subr.mxu0 0.0
      %4975 = vmatpush1.msra.mxu0 0.0
      %4976 = vmatprep.subr.mxu0 0.0
      %4977 = vmatpush1.msra.mxu0 0.0
      %4978 = vmatprep.subr.mxu0 0.0
      %4979 = vmatpush1.msra.mxu0 0.0
      %4980 = vmatprep.subr.mxu0 0.0
      %4981 = vmatpush1.msra.mxu0 0.0
      %4982 = vmatprep.subr.mxu0 0.0
      %4983 = vmatpush1.msra.mxu0 0.0
      %4984 = vmatprep.subr.mxu0 0.0
      %4985 = vmatpush1.msra.mxu0 0.0
      %4986 = vmatprep.subr.mxu0 0.0
      %4987 = vmatpush1.msra.mxu0 0.0
      %4988 = vmatprep.subr.mxu0 %v4066
      %4989 = vmatpush1.msra.mxu0 %v4064
      %4990 = vmatprep.subr.mxu0 0.0
      %4991 = vmatpush2.msra.mxu0 0.0
      %4992 = vmatprep.subr.mxu0 0.0
      %4993 = vmatpush2.msra.mxu0 0.0
      %4994 = vmatprep.subr.mxu0 0.0
      %4995 = vmatpush2.msra.mxu0 0.0
      %4996 = vmatprep.subr.mxu0 0.0
      %4997 = vmatpush2.msra.mxu0 0.0
      %4998 = vmatprep.subr.mxu0 0.0
      %4999 = vmatpush2.msra.mxu0 0.0
      %5000 = vmatprep.subr.mxu0 0.0
      %5001 = vmatpush2.msra.mxu0 0.0
      %5002 = vmatprep.subr.mxu0 0.0
      %5003 = vmatpush2.msra.mxu0 0.0
      %5004 = vmatprep.subr.mxu0 0.0
      %5005 = vmatpush2.msra.mxu0 0.0
      %5006 = vmatprep.subr.mxu0 0.0
      %5007 = vmatpush2.msra.mxu0 0.0
      %5008 = vmatprep.subr.mxu0 0.0
      %5009 = vmatpush2.msra.mxu0 0.0
      %5010 = vmatprep.subr.mxu0 0.0
      %5011 = vmatpush2.msra.mxu0 0.0
      %5012 = vmatprep.subr.mxu0 0.0
      %5013 = vmatpush2.msra.mxu0 0.0
      %5014 = vmatprep.subr.mxu0 0.0
      %5015 = vmatpush2.msra.mxu0 0.0
      %5016 = vmatprep.subr.mxu0 0.0
      %5017 = vmatpush2.msra.mxu0 0.0
      %5018 = vmatprep.subr.mxu0 0.0
      %5019 = vmatpush2.msra.mxu0 0.0
      %5020 = vmatprep.subr.mxu0 0.0
      %5021 = vmatpush2.msra.mxu0 0.0
      %5022 = vmatprep.mubr.f32.mxu0 0.0
      %5023 = vmatmul.mubr.f32.gmra.mxu0 %v4956
      %v5024 = vpop.f32.mrf.mxu0
      %v5025 = vadd.f32 0.0, %v5024
      %v5026 = vpop.f32.mrf.mxu0
      %v5027 = vadd.f32 0.0, %v5026
      %5028 = vdwg.mxu0
      %v5029 = vmul.f32 %v5025, %v4848
      %v5030 = vmul.f32 %v5027, %v4850
      %v5031 = vrot.slane %v5029, 4
      %v5032 = vadd.f32 %v5029, %v5031
      %v5033 = vrot.slane %v5032, 2
      %v5034 = vadd.f32 %v5032, %v5033
      %v5035 = vrot.slane %v5034, 1
      %v5036 = vadd.f32 %v5034, %v5035
      %v5037 = vrot.slane %v5030, 4
      %v5038 = vadd.f32 %v5030, %v5037
      %v5039 = vrot.slane %v5038, 2
      %v5040 = vadd.f32 %v5038, %v5039
      %v5041 = vrot.slane %v5040, 1
      %v5042 = vadd.f32 %v5040, %v5041
      %v5043 = vpack.c.bf16 %v5036, %v5036
      %v5044 = vpack.c.bf16 %v5042, %v5042
      %v5045 = vld [vmem:[%s3212] sm:$0xf]
      %v5046 = vld [vmem:[%s3212 + $0x4] sm:$0xf]
      %v5047 = vld [vmem:[%s3212 + $0x8] sm:$0xf]
      %v5048 = vld [vmem:[%s3212 + $0xc] sm:$0xf]
      %v5049 = vld [vmem:[%s3212 + $0x10] sm:$0xf]
      %v5050 = vld [vmem:[%s3212 + $0x14] sm:$0xf]
      %v5051 = vld [vmem:[%s3212 + $0x18] sm:$0xf]
      %v5052 = vld [vmem:[%s3212 + $0x1c] sm:$0xf]
      %v5053 = vld [vmem:[%s3212 + $0x20] sm:$0xf]
      %v5054 = vld [vmem:[%s3212 + $0x24] sm:$0xf]
      %v5055 = vld [vmem:[%s3212 + $0x28] sm:$0xf]
      %v5056 = vld [vmem:[%s3212 + $0x2c] sm:$0xf]
      %v5057 = vld [vmem:[%s3212 + $0x30] sm:$0xf]
      %v5058 = vld [vmem:[%s3212 + $0x34] sm:$0xf]
      %v5059 = vld [vmem:[%s3212 + $0x38] sm:$0xf]
      %v5060 = vld [vmem:[%s3212 + $0x3c] sm:$0xf]
      %v5061 = vld [vmem:[%s3212 + $0x40] sm:$0xf]
      %v5062 = vld [vmem:[%s3212 + $0x44] sm:$0xf]
      %v5063 = vld [vmem:[%s3212 + $0x48] sm:$0xf]
      %v5064 = vld [vmem:[%s3212 + $0x4c] sm:$0xf]
      %v5065 = vld [vmem:[%s3212 + $0x50] sm:$0xf]
      %v5066 = vld [vmem:[%s3212 + $0x54] sm:$0xf]
      %v5067 = vld [vmem:[%s3212 + $0x58] sm:$0xf]
      %v5068 = vld [vmem:[%s3212 + $0x5c] sm:$0xf]
      %v5069 = vld [vmem:[%s3212 + $0x60] sm:$0xf]
      %v5070 = vld [vmem:[%s3212 + $0x64] sm:$0xf]
      %v5071 = vld [vmem:[%s3212 + $0x68] sm:$0xf]
      %v5072 = vld [vmem:[%s3212 + $0x6c] sm:$0xf]
      %v5073 = vld [vmem:[%s3212 + $0x70] sm:$0xf]
      %v5074 = vld [vmem:[%s3212 + $0x74] sm:$0xf]
      %v5075 = vld [vmem:[%s3212 + $0x78] sm:$0xf]
      %v5076 = vld [vmem:[%s3212 + $0x7c] sm:$0xf]
      %v5077 = vld [vmem:[%s3245] sm:$0x1]
      %v5110 = vunpack.c.l.b16 %v5045
      %v5111 = vunpack.c.l.b16 %v5046
      %v5112 = vunpack.c.l.b16 %v5047
      %v5113 = vunpack.c.l.b16 %v5048
      %v5114 = vunpack.c.l.b16 %v5049
      %v5115 = vunpack.c.l.b16 %v5050
      %v5116 = vunpack.c.l.b16 %v5051
      %v5117 = vunpack.c.l.b16 %v5052
      %v5118 = vunpack.c.l.b16 %v5053
      %v5119 = vunpack.c.l.b16 %v5054
      %v5120 = vunpack.c.l.b16 %v5055
      %v5121 = vunpack.c.l.b16 %v5056
      %v5122 = vunpack.c.l.b16 %v5057
      %v5123 = vunpack.c.l.b16 %v5058
      %v5124 = vunpack.c.l.b16 %v5059
      %v5125 = vunpack.c.l.b16 %v5060
      %v5126 = vunpack.c.l.b16 %v5061
      %v5127 = vunpack.c.l.b16 %v5062
      %v5128 = vunpack.c.l.b16 %v5063
      %v5129 = vunpack.c.l.b16 %v5064
      %v5130 = vunpack.c.l.b16 %v5065
      %v5131 = vunpack.c.l.b16 %v5066
      %v5132 = vunpack.c.l.b16 %v5067
      %v5133 = vunpack.c.l.b16 %v5068
      %v5134 = vunpack.c.l.b16 %v5069
      %v5135 = vunpack.c.l.b16 %v5070
      %v5136 = vunpack.c.l.b16 %v5071
      %v5137 = vunpack.c.l.b16 %v5072
      %v5138 = vunpack.c.l.b16 %v5073
      %v5139 = vunpack.c.l.b16 %v5074
      %v5140 = vunpack.c.l.b16 %v5075
      %v5141 = vunpack.c.l.b16 %v5076
      %v5142 = vpack.c.b16 %v5111, %v5110
      %v5143 = vpack.c.b16 %v5113, %v5112
      %v5144 = vpack.c.b16 %v5115, %v5114
      %v5145 = vpack.c.b16 %v5117, %v5116
      %v5146 = vpack.c.b16 %v5119, %v5118
      %v5147 = vpack.c.b16 %v5121, %v5120
      %v5148 = vpack.c.b16 %v5123, %v5122
      %v5149 = vpack.c.b16 %v5125, %v5124
      %v5150 = vpack.c.b16 %v5127, %v5126
      %v5151 = vpack.c.b16 %v5129, %v5128
      %v5152 = vpack.c.b16 %v5131, %v5130
      %v5153 = vpack.c.b16 %v5133, %v5132
      %v5154 = vpack.c.b16 %v5135, %v5134
      %v5155 = vpack.c.b16 %v5137, %v5136
      %v5156 = vpack.c.b16 %v5139, %v5138
      %v5157 = vpack.c.b16 %v5141, %v5140
      %5174 = vmatprep.subr.bf16.mxu0 0
      %5175 = vmatpush1.bf16.msra.mxu0 %v5149
      %5176 = vmatprep.subr.bf16.mxu0 0
      %5177 = vmatpush1.bf16.msra.mxu0 %v5148
      %5178 = vmatprep.subr.bf16.mxu0 0
      %5179 = vmatpush1.bf16.msra.mxu0 %v5147
      %5180 = vmatprep.subr.bf16.mxu0 0
      %5181 = vmatpush1.bf16.msra.mxu0 %v5146
      %5182 = vmatprep.subr.bf16.mxu0 0
      %5183 = vmatpush1.bf16.msra.mxu0 %v5145
      %5184 = vmatprep.subr.bf16.mxu0 0
      %5185 = vmatpush1.bf16.msra.mxu0 %v5144
      %5186 = vmatprep.subr.bf16.mxu0 0
      %5187 = vmatpush1.bf16.msra.mxu0 %v5143
      %5188 = vmatprep.subr.bf16.mxu0 0
      %5189 = vmatpush1.bf16.msra.mxu0 %v5142
      %5190 = vmatprep.subr.bf16.mxu0 0
      %5191 = vmatpush2.bf16.msra.mxu0 %v5157
      %5192 = vmatprep.subr.bf16.mxu0 0
      %5193 = vmatpush2.bf16.msra.mxu0 %v5156
      %5194 = vmatprep.subr.bf16.mxu0 0
      %5195 = vmatpush2.bf16.msra.mxu0 %v5155
      %5196 = vmatprep.subr.bf16.mxu0 0
      %5197 = vmatpush2.bf16.msra.mxu0 %v5154
      %5198 = vmatprep.subr.bf16.mxu0 0
      %5199 = vmatpush2.bf16.msra.mxu0 %v5153
      %5200 = vmatprep.subr.bf16.mxu0 0
      %5201 = vmatpush2.bf16.msra.mxu0 %v5152
      %5202 = vmatprep.subr.bf16.mxu0 0
      %5203 = vmatpush2.bf16.msra.mxu0 %v5151
      %5204 = vmatprep.subr.bf16.mxu0 0
      %5205 = vmatpush2.bf16.msra.mxu0 %v5150
      %5206 = vmatprep.mubr.bf16.mxu0 %v5044
      %5207 = vmatmul.mubr.bf16.gmra.mxu0 %v5043
      %v5208 = vpop.f32.mrf.mxu0
      %v5209 = vadd.f32 %v5077, %v5208
      %v5210 = vpop.f32.mrf.mxu0
      %v5211 = vpop.f32.mrf.mxu0
      %v5212 = vpop.f32.mrf.mxu0
      %5213 = vdwg.mxu0
      %v5214 = vlaneseq
      %v5215 = vshrl.u32 %v5214, 7
      %v5216 = vsub.s32 0, %v5215
      %v5217 = vrot.slane %v5209, %v5216
      %v5218 = vadd.f32 %v4517, %v5217
      %v5219 = vld [vmem:[%s3388] sm:$0x1]
      %v5220 = vld [vmem:[%s3390] sm:$0x1]
      %v5221 = vsel %vm822, %v5218, 0.0
      %5222 = vadd.xlane.f32.xlu0 %v5221
      %v5223 = vpop.xlane.xlu0 %5222
      %v5224 = vmul.f32 %v5223, %v1749
      %v5225 = vsub.f32 %v5218, %v5224
      %v5226 = vmul.f32 %v5225, %v5225
      %v5227 = vsel %vm822, %v5226, 0.0
      %5228 = vadd.xlane.f32.xlu0 %v5227
      %v5229 = vpop.xlane.xlu0 %5228
      %v5230 = vmul.f32 %v5229, %v1749
      %v5231 = vadd.f32 %v5230, 1e-06
      %v5232 = vrsqrt.pop %v5231
      %v5233 = vmul.f32 %v5225, %v5232
      %v5235 = vlaneseq
      %v5236 = vshrl.u32 %v5235, 7
      %v5237 = vsub.s32 0, %v5236
      %v5238 = vrot.slane %v5219, %v5237
      %v5240 = vmul.f32 %v5233, %v5238
      %v5242 = vlaneseq
      %v5243 = vshrl.u32 %v5242, 7
      %v5244 = vsub.s32 0, %v5243
      %v5245 = vrot.slane %v5220, %v5244
      %v5247 = vadd.f32 %v5240, %v5245
      %v5248 = vpack.c.bf16 %v5247, %v5247
      %v5249 = vld [vmem:[%s3420] sm:$0xf]
      %v5250 = vld [vmem:[%s3420 + $0x4] sm:$0xf]
      %v5251 = vld [vmem:[%s3420 + $0x8] sm:$0xf]
      %v5252 = vld [vmem:[%s3420 + $0xc] sm:$0xf]
      %v5253 = vld [vmem:[%s3420 + $0x10] sm:$0xf]
      %v5254 = vld [vmem:[%s3420 + $0x14] sm:$0xf]
      %v5255 = vld [vmem:[%s3420 + $0x18] sm:$0xf]
      %v5256 = vld [vmem:[%s3420 + $0x1c] sm:$0xf]
      %v5257 = vld [vmem:[%s3429] sm:$0x1]
      %v5259 = vlaneseq
      %v5260 = vshrl.u32 %v5259, 7
      %v5261 = vsub.s32 0, %v5260
      %v5262 = vrot.slane %v5257, %v5261
      %v5272 = vunpack.c.l.b16 %v5249
      %v5273 = vunpack.c.l.b16 %v5250
      %v5274 = vunpack.c.l.b16 %v5251
      %v5275 = vunpack.c.l.b16 %v5252
      %v5276 = vunpack.c.l.b16 %v5253
      %v5277 = vunpack.c.l.b16 %v5254
      %v5278 = vunpack.c.l.b16 %v5255
      %v5279 = vunpack.c.l.b16 %v5256
      %v5280 = vpack.c.b16 %v5273, %v5272
      %v5281 = vpack.c.b16 %v5275, %v5274
      %v5282 = vpack.c.b16 %v5277, %v5276
      %v5283 = vpack.c.b16 %v5279, %v5278
      %v5289 = vsel %vm822, %v5248, 0
      %5291 = vmatprep.subr.bf16.mxu0 0
      %5292 = vmatpush1.bf16.msra.mxu0 0
      %5293 = vmatprep.subr.bf16.mxu0 0
      %5294 = vmatpush1.bf16.msra.mxu0 0
      %5295 = vmatprep.subr.bf16.mxu0 0
      %5296 = vmatpush1.bf16.msra.mxu0 0
      %5297 = vmatprep.subr.bf16.mxu0 0
      %5298 = vmatpush1.bf16.msra.mxu0 0
      %5299 = vmatprep.subr.bf16.mxu0 0
      %5300 = vmatpush1.bf16.msra.mxu0 %v5283
      %5301 = vmatprep.subr.bf16.mxu0 0
      %5302 = vmatpush1.bf16.msra.mxu0 %v5282
      %5303 = vmatprep.subr.bf16.mxu0 0
      %5304 = vmatpush1.bf16.msra.mxu0 %v5281
      %5305 = vmatprep.subr.bf16.mxu0 0
      %5306 = vmatpush1.bf16.msra.mxu0 %v5280
      %5307 = vmatprep.subr.bf16.mxu0 0
      %5308 = vmatpush2.bf16.msra.mxu0 0
      %5309 = vmatprep.subr.bf16.mxu0 0
      %5310 = vmatpush2.bf16.msra.mxu0 0
      %5311 = vmatprep.subr.bf16.mxu0 0
      %5312 = vmatpush2.bf16.msra.mxu0 0
      %5313 = vmatprep.subr.bf16.mxu0 0
      %5314 = vmatpush2.bf16.msra.mxu0 0
      %5315 = vmatprep.subr.bf16.mxu0 0
      %5316 = vmatpush2.bf16.msra.mxu0 0
      %5317 = vmatprep.subr.bf16.mxu0 0
      %5318 = vmatpush2.bf16.msra.mxu0 0
      %5319 = vmatprep.subr.bf16.mxu0 0
      %5320 = vmatpush2.bf16.msra.mxu0 0
      %5321 = vmatprep.subr.bf16.mxu0 0
      %5322 = vmatpush2.bf16.msra.mxu0 0
      %5323 = vmatprep.mubr.bf16.mxu0 0
      %5324 = vmatmul.mubr.bf16.gmra.mxu0 %v5289
      %v5325 = vpop.f32.mrf.mxu0
      %v5326 = vadd.f32 %v5262, %v5325
      %v5327 = vpop.f32.mrf.mxu0
      %v5328 = vpop.f32.mrf.mxu0
      %v5329 = vpop.f32.mrf.mxu0
      %5330 = vdwg.mxu0
      %v5331 = vmul.f32 %v5326, 0.5
      %v5332 = vmul.f32 %v5326, 0.044715
      %v5333 = vmul.f32 %v5332, %v5326
      %v5334 = vmul.f32 %v5333, %v5326
      %v5335 = vadd.f32 %v5326, %v5334
      %v5336 = vmul.f32 %v5335, 0.7978846
      %v5337 = vtanh.pop %v5336
      %v5338 = vadd.f32 %v5337, 1.0
      %v5339 = vmul.f32 %v5331, %v5338
      %v5340 = vpack.c.bf16 %v5339, %v5339
      %v5341 = vld [vmem:[%s3514] sm:$0xf]
      %v5342 = vld [vmem:[%s3514 + $0x4] sm:$0xf]
      %v5343 = vld [vmem:[%s3514 + $0x8] sm:$0xf]
      %v5344 = vld [vmem:[%s3514 + $0xc] sm:$0xf]
      %v5345 = vld [vmem:[%s3519] sm:$0x1]
      %v5347 = vlaneseq
      %v5348 = vshrl.u32 %v5347, 7
      %v5349 = vsub.s32 0, %v5348
      %v5350 = vrot.slane %v5345, %v5349
      %v5356 = vunpack.c.l.b16 %v5341
      %v5357 = vunpack.c.l.b16 %v5342
      %v5358 = vunpack.c.l.b16 %v5343
      %v5359 = vunpack.c.l.b16 %v5344
      %v5360 = vpack.c.b16 %v5357, %v5356
      %v5361 = vpack.c.b16 %v5359, %v5358
      %v5365 = vsel %vm2632, %v5340, 0
      %5367 = vmatprep.subr.bf16.mxu0 0
      %5368 = vmatpush1.bf16.msra.mxu0 0
      %5369 = vmatprep.subr.bf16.mxu0 0
      %5370 = vmatpush1.bf16.msra.mxu0 0
      %5371 = vmatprep.subr.bf16.mxu0 0
      %5372 = vmatpush1.bf16.msra.mxu0 0
      %5373 = vmatprep.subr.bf16.mxu0 0
      %5374 = vmatpush1.bf16.msra.mxu0 0
      %5375 = vmatprep.subr.bf16.mxu0 0
      %5376 = vmatpush1.bf16.msra.mxu0 0
      %5377 = vmatprep.subr.bf16.mxu0 0
      %5378 = vmatpush1.bf16.msra.mxu0 0
      %5379 = vmatprep.subr.bf16.mxu0 0
      %5380 = vmatpush1.bf16.msra.mxu0 %v5361
      %5381 = vmatprep.subr.bf16.mxu0 0
      %5382 = vmatpush1.bf16.msra.mxu0 %v5360
      %5383 = vmatprep.subr.bf16.mxu0 0
      %5384 = vmatpush2.bf16.msra.mxu0 0
      %5385 = vmatprep.subr.bf16.mxu0 0
      %5386 = vmatpush2.bf16.msra.mxu0 0
      %5387 = vmatprep.subr.bf16.mxu0 0
      %5388 = vmatpush2.bf16.msra.mxu0 0
      %5389 = vmatprep.subr.bf16.mxu0 0
      %5390 = vmatpush2.bf16.msra.mxu0 0
      %5391 = vmatprep.subr.bf16.mxu0 0
      %5392 = vmatpush2.bf16.msra.mxu0 0
      %5393 = vmatprep.subr.bf16.mxu0 0
      %5394 = vmatpush2.bf16.msra.mxu0 0
      %5395 = vmatprep.subr.bf16.mxu0 0
      %5396 = vmatpush2.bf16.msra.mxu0 0
      %5397 = vmatprep.subr.bf16.mxu0 0
      %5398 = vmatpush2.bf16.msra.mxu0 0
      %5399 = vmatprep.mubr.bf16.mxu0 0
      %5400 = vmatmul.mubr.bf16.gmra.mxu0 %v5365
      %v5401 = vpop.f32.mrf.mxu0
      %v5402 = vadd.f32 %v5350, %v5401
      %v5403 = vpop.f32.mrf.mxu0
      %v5404 = vpop.f32.mrf.mxu0
      %v5405 = vpop.f32.mrf.mxu0
      %5406 = vdwg.mxu0
      %v5407 = vadd.f32 %v5218, %v5402
      %v5408 = vadd.f32 %v3582, %v5407
      %v5409 = vld [vmem:[%s23] sm:$0xff]
      %v5410 = vld [vmem:[%s23 + $0x8] sm:$0xff]
      %v5411 = vld [vmem:[%s23 + $0x10] sm:$0xff]
      %v5412 = vld [vmem:[%s23 + $0x18] sm:$0xff]
      %v5413 = vld [vmem:[%s23 + $0x20] sm:$0xff]
      %v5414 = vld [vmem:[%s23 + $0x28] sm:$0xff]
      %v5415 = vld [vmem:[%s23 + $0x30] sm:$0xff]
      %v5416 = vld [vmem:[%s23 + $0x38] sm:$0xff]
      %v5417 = vld [vmem:[%s24] sm:$0x1]
      %v5418 = vmul.f32 %v5417, 2.0
      %v5420 = vsel %vm822, %v5408, 0
      %5422 = vmatprep.subr.mxu0 0.0
      %5423 = vmatpush1.msra.mxu0 0.0
      %5424 = vmatprep.subr.mxu0 0.0
      %5425 = vmatpush1.msra.mxu0 0.0
      %5426 = vmatprep.subr.mxu0 0.0
      %5427 = vmatpush1.msra.mxu0 0.0
      %5428 = vmatprep.subr.mxu0 0.0
      %5429 = vmatpush1.msra.mxu0 0.0
      %5430 = vmatprep.subr.mxu0 0.0
      %5431 = vmatpush1.msra.mxu0 0.0
      %5432 = vmatprep.subr.mxu0 0.0
      %5433 = vmatpush1.msra.mxu0 0.0
      %5434 = vmatprep.subr.mxu0 0.0
      %5435 = vmatpush1.msra.mxu0 0.0
      %5436 = vmatprep.subr.mxu0 0.0
      %5437 = vmatpush1.msra.mxu0 0.0
      %5438 = vmatprep.subr.mxu0 0.0
      %5439 = vmatpush1.msra.mxu0 %v5416
      %5440 = vmatprep.subr.mxu0 0.0
      %5441 = vmatpush1.msra.mxu0 %v5415
      %5442 = vmatprep.subr.mxu0 0.0
      %5443 = vmatpush1.msra.mxu0 %v5414
      %5444 = vmatprep.subr.mxu0 0.0
      %5445 = vmatpush1.msra.mxu0 %v5413
      %5446 = vmatprep.subr.mxu0 0.0
      %5447 = vmatpush1.msra.mxu0 %v5412
      %5448 = vmatprep.subr.mxu0 0.0
      %5449 = vmatpush1.msra.mxu0 %v5411
      %5450 = vmatprep.subr.mxu0 0.0
      %5451 = vmatpush1.msra.mxu0 %v5410
      %5452 = vmatprep.subr.mxu0 0.0
      %5453 = vmatpush1.msra.mxu0 %v5409
      %5454 = vmatprep.subr.mxu0 0.0
      %5455 = vmatpush2.msra.mxu0 0.0
      %5456 = vmatprep.subr.mxu0 0.0
      %5457 = vmatpush2.msra.mxu0 0.0
      %5458 = vmatprep.subr.mxu0 0.0
      %5459 = vmatpush2.msra.mxu0 0.0
      %5460 = vmatprep.subr.mxu0 0.0
      %5461 = vmatpush2.msra.mxu0 0.0
      %5462 = vmatprep.subr.mxu0 0.0
      %5463 = vmatpush2.msra.mxu0 0.0
      %5464 = vmatprep.subr.mxu0 0.0
      %5465 = vmatpush2.msra.mxu0 0.0
      %5466 = vmatprep.subr.mxu0 0.0
      %5467 = vmatpush2.msra.mxu0 0.0
      %5468 = vmatprep.subr.mxu0 0.0
      %5469 = vmatpush2.msra.mxu0 0.0
      %5470 = vmatprep.subr.mxu0 0.0
      %5471 = vmatpush2.msra.mxu0 0.0
      %5472 = vmatprep.subr.mxu0 0.0
      %5473 = vmatpush2.msra.mxu0 0.0
      %5474 = vmatprep.subr.mxu0 0.0
      %5475 = vmatpush2.msra.mxu0 0.0
      %5476 = vmatprep.subr.mxu0 0.0
      %5477 = vmatpush2.msra.mxu0 0.0
      %5478 = vmatprep.subr.mxu0 0.0
      %5479 = vmatpush2.msra.mxu0 0.0
      %5480 = vmatprep.subr.mxu0 0.0
      %5481 = vmatpush2.msra.mxu0 0.0
      %5482 = vmatprep.subr.mxu0 0.0
      %5483 = vmatpush2.msra.mxu0 0.0
      %5484 = vmatprep.subr.mxu0 0.0
      %5485 = vmatpush2.msra.mxu0 0.0
      %5486 = vmatprep.mubr.f32.mxu0 0.0
      %5487 = vmatmul.mubr.f32.gmra.mxu0 %v5420
      %v5488 = vpop.f32.mrf.mxu0
      %v5489 = vadd.f32 %v5418, %v5488
      %v5490 = vpop.f32.mrf.mxu0
      %5491 = vdwg.mxu0
      %5492 = vst [vmem:[%s760] sm:$0x1] %v5489
      %p5493 = scmp.lt.s32.totalorder %s36, 1
      %s5494 = scalar_select %p5493, %s36, 1
      %s5495 = scalar_lea.vmem %s25, %s5494
      // Predicated region
      $region121: #{lxnet_forward.3} parent=119 // pred_check
        %p5496 = pneg %p584
      $region122: #{lxnet_forward.3} parent=119 // pred_check_branch
        %5498 = sbr.rel (%p5496) target = $region124
      $region123: #{lxnet_forward.3} parent=119 // pred_region
        _
      $region124: #{lxnet_forward.3} parent=119 // pred_fallthru
        _
    $region120: #{lxnet_forward.3} parent=5 // pred_fallthru
      _
    %p5499 = scmp.le.s32.totalorder 2, %s31
    // Predicated region
    $region125: #{lxnet_forward.3} parent=5 // pred_check
      %p5500 = pneg %p5499
    $region126: #{lxnet_forward.3} parent=5 // pred_check_branch
      %5502 = sbr.rel (%p5500) target = $region128
    $region127: #{lxnet_forward.3} parent=5 // pred_region
      %s5503 = ssub.s32 %s31, 2
      // Predicated region
      $region129: #{lxnet_forward.3} parent=127 // pred_check
        %p5504 = pneg %p590
      $region130: #{lxnet_forward.3} parent=127 // pred_check_branch
        %5506 = sbr.rel (%p5504) target = $region132
      $region131: #{lxnet_forward.3} parent=127 // pred_region
        %p5507 = scmp.lt.s32.totalorder %s37, 1
        %s5508 = scalar_select %p5507, %s37, 1
        %s5509 = scalar_lea.vmem %s25, %s5508
      $region132: #{lxnet_forward.3} parent=127 // pred_fallthru
        _
    $region128: #{lxnet_forward.3} parent=5 // pred_fallthru
      _
  $region6: #{lxnet_forward.3} parent=0 // loop_footer
    %s35 = sadd.s32 1, %s31
  $region7: #{lxnet_forward.3} parent=0 // loop_footer_branch
    %30 = sbr.rel target = $region3
  $region8: #{lxnet_forward.3} parent=0 // loop_exit
    _

</llo_original>
